<compile_context>
chip_gen: v6e
topology: v6e:2x2x1
jax: 0.10.0
libtpu: 0.0.40
codegen_flags: <defaults>
</compile_context>

<pallas_src>
import functools

import jax
import jax.numpy as jnp
from jax.experimental import pallas as pl
from jax.experimental.pallas import tpu as pltpu


# --------------------------------------------------------------------------- #
# Helpers
# --------------------------------------------------------------------------- #
def _round_up(x, m):
    return (x + m - 1) // m * m


def _pick_row_tile(h_out, w_out, max_m=1024):
    """Largest divisor `th` of h_out with th*w_out a multiple of 8 and <= max_m."""
    for th in range(h_out, 0, -1):
        if h_out % th == 0 and (th * w_out) % 8 == 0 and th * w_out <= max_m:
            return th
    return h_out


def _bn_fold(gamma, beta, mean, var, eps=1e-5):
    scale = gamma / jnp.sqrt(var + eps)
    shift = beta - mean * scale
    return scale, shift


# --------------------------------------------------------------------------- #
# Kernel 1: fused 3x3 conv (stride 1) as 9 shifted MXU matmuls
#           + folded-BN shift + optional residual + optional ReLU
# --------------------------------------------------------------------------- #
def _conv3x3_bn_kernel(xp_ref, w_ref, shift_ref, *rest, th, w_out,
                       apply_relu, has_residual):
    if has_residual:
        res_ref, o_ref, acc_ref = rest
    else:
        o_ref, acc_ref = rest

    cpi = xp_ref.shape[-1]
    m = th * w_out
    r0 = pl.program_id(1) * th          # first output row of this row tile

    acc_ref[...] = jnp.zeros_like(acc_ref)
    for kh in range(3):
        for kw in range(3):
            # Shifted (th, w_out, cpi) window of the spatially-padded image.
            patch = xp_ref[pl.ds(r0 + kh, th), pl.ds(kw, w_out), :]
            patch = patch.reshape(m, cpi)                  # bf16
            acc_ref[...] += jnp.dot(patch, w_ref[kh, kw, :, :],
                                    preferred_element_type=jnp.float32)

    y = acc_ref[...] + shift_ref[...]                      # folded BN shift (f32)
    if has_residual:
        y = y + res_ref[...].astype(jnp.float32)
    if apply_relu:
        y = jnp.maximum(y, 0.0)
    o_ref[...] = y.astype(o_ref.dtype)


def _conv3x3_bn_direct(xp, w4, shift, residual, *, apply_relu, out_dtype):
    """xp: (N, H+2, W+2, Cp_in) bf16, w4: (3,3,Cp_in,Cp_out) bf16 (scale folded),
    shift: (1, Cp_out) f32, residual: (N, H*W, Cp_out) f32 or None."""
    n, hp, wp, cpi = xp.shape
    cpo = w4.shape[-1]
    h_out, w_out = hp - 2, wp - 2
    th = _pick_row_tile(h_out, w_out)
    nt = h_out // th
    m = th * w_out

    in_specs = [
        # Whole padded image per batch element; constant over the row-tile axis,
        # so it is fetched once per image and stays resident in VMEM.
        pl.BlockSpec((None, hp, wp, cpi), lambda b, t: (b, 0, 0, 0)),
        pl.BlockSpec((3, 3, cpi, cpo), lambda b, t: (0, 0, 0, 0)),
        pl.BlockSpec((1, cpo), lambda b, t: (0, 0)),
    ]
    args = [xp, w4, shift]
    if residual is not None:
        in_specs.append(pl.BlockSpec((None, m, cpo), lambda b, t: (b, t, 0)))
        args.append(residual)

    kernel = functools.partial(_conv3x3_bn_kernel, th=th, w_out=w_out,
                               apply_relu=apply_relu,
                               has_residual=residual is not None)
    return pl.pallas_call(
        kernel,
        out_shape=jax.ShapeDtypeStruct((n, h_out * w_out, cpo), out_dtype),
        grid=(n, nt),
        in_specs=in_specs,
        out_specs=pl.BlockSpec((None, m, cpo), lambda b, t: (b, t, 0)),
        scratch_shapes=[pltpu.VMEM((m, cpo), jnp.float32)],
        compiler_params=pltpu.CompilerParams(
            dimension_semantics=("parallel", "parallel")),
    )(*args)


# --------------------------------------------------------------------------- #
# Kernel 2: fused GEMM + folded-BN shift + optional residual + optional ReLU
#           (used for the 1x1 shortcut conv and the stride-2 conv1 path)
# --------------------------------------------------------------------------- #
def _fused_gemm_bn_kernel(x_ref, w_ref, shift_ref, *rest, apply_relu,
                          has_residual):
    if has_residual:
        res_ref, o_ref = rest
    else:
        (o_ref,) = rest
    y = jnp.dot(x_ref[...], w_ref[...], preferred_element_type=jnp.float32)
    y = y + shift_ref[...]
    if has_residual:
        y = y + res_ref[...].astype(jnp.float32)
    if apply_relu:
        y = jnp.maximum(y, 0.0)
    o_ref[...] = y.astype(o_ref.dtype)


def fused_gemm_bn(x2d, w2d, shift, residual=None, *, apply_relu, out_dtype,
                  tile_m=512):
    """x2d: (M, K) bf16, w2d: (K, Cp_out) bf16 (BN scale folded),
    shift: (1, Cp_out) f32, residual: (M, Cp_out) or None."""
    m, k = x2d.shape
    cout = w2d.shape[1]
    tile_m = min(tile_m, _round_up(m, 8))
    mp = _round_up(m, tile_m)
    if mp != m:
        x2d = jnp.pad(x2d, ((0, mp - m), (0, 0)))
        if residual is not None:
            residual = jnp.pad(residual, ((0, mp - m), (0, 0)))

    in_specs = [
        pl.BlockSpec((tile_m, k), lambda i: (i, 0)),
        # Grid-invariant weight block (fetched once, kept resident).
        pl.BlockSpec((k, cout), lambda i: (0, 0)),
        pl.BlockSpec((1, cout), lambda i: (0, 0)),
    ]
    args = [x2d, w2d, shift]
    if residual is not None:
        in_specs.append(pl.BlockSpec((tile_m, cout), lambda i: (i, 0)))
        args.append(residual)

    out = pl.pallas_call(
        functools.partial(_fused_gemm_bn_kernel, apply_relu=apply_relu,
                          has_residual=residual is not None),
        out_shape=jax.ShapeDtypeStruct((mp, cout), out_dtype),
        grid=(mp // tile_m,),
        in_specs=in_specs,
        out_specs=pl.BlockSpec((tile_m, cout), lambda i: (i, 0)),
        compiler_params=pltpu.CompilerParams(dimension_semantics=("parallel",)),
    )(*args)
    return out[:m] if mp != m else out


# --------------------------------------------------------------------------- #
# 3x3 conv dispatcher (direct in-kernel path vs tap-gather GEMM fallback)
# --------------------------------------------------------------------------- #
def _conv3x3_bn(xp, w4, shift, residual=None, *, stride, apply_relu, out_dtype):
    """xp: (N, H+2, W+2, Cp_in) bf16 spatially padded.  Returns (N, Ho*Wo, Cp_out)."""
    n, hp, wp, cpi = xp.shape
    cpo = w4.shape[-1]
    h_out = (hp - 3) // stride + 1
    w_out = (wp - 3) // stride + 1

    if stride == 1 and w_out % 8 == 0:
        return _conv3x3_bn_direct(xp, w4, shift, residual,
                                  apply_relu=apply_relu, out_dtype=out_dtype)

    # Fallback (strided conv / awkward widths): gather the 9 taps at *output*
    # resolution in JAX, then one fused GEMM. ~2.25x input bytes at stride 2,
    # not the 9x full-resolution im2col blowup.
    taps = []
    for kh in range(3):
        for kw in range(3):
            taps.append(xp[:, kh:kh + stride * (h_out - 1) + 1:stride,
                              kw:kw + stride * (w_out - 1) + 1:stride, :])
    col = jnp.concatenate(taps, axis=-1).reshape(n * h_out * w_out, 9 * cpi)
    res2d = None if residual is None else residual.reshape(n * h_out * w_out, cpo)
    out = fused_gemm_bn(col, w4.reshape(9 * cpi, cpo), shift, res2d,
                        apply_relu=apply_relu, out_dtype=out_dtype)
    return out.reshape(n, h_out * w_out, cpo)


# --------------------------------------------------------------------------- #
# Parameter preparation (done ONCE, outside the jitted hot path):
# BN folding, channel padding to multiples of 128, bf16 cast, GEMM layout.
# --------------------------------------------------------------------------- #
def _prep_conv3x3(w_oihw, scale, cpi, cpo):
    c_out, c_in = w_oihw.shape[0], w_oihw.shape[1]
    w = jnp.transpose(w_oihw, (2, 3, 1, 0)) * scale[None, None, None, :]
    w = jnp.pad(w, ((0, 0), (0, 0), (0, cpi - c_in), (0, cpo - c_out)))
    return w.astype(jnp.bfloat16)                     # (3, 3, cpi, cpo)


def _prep_conv1x1(w_oihw, scale, cpi, cpo):
    c_out, c_in = w_oihw.shape[0], w_oihw.shape[1]
    w = jnp.transpose(w_oihw, (2, 3, 1, 0)).reshape(c_in, c_out) * scale[None, :]
    w = jnp.pad(w, ((0, cpi - c_in), (0, cpo - c_out)))
    return w.astype(jnp.bfloat16)                     # (cpi, cpo)


def _prep_shift(shift, cpo):
    return jnp.pad(shift, (0, cpo - shift.shape[0])).astype(jnp.float32).reshape(1, cpo)


def prepare_block_params(params, *, c_in, c_out, stride=1, shortcut="B", eps=1e-5):
    cpi, cpo = _round_up(c_in, 128), _round_up(c_out, 128)
    s1, b1 = _bn_fold(params["bn1_gamma"], params["bn1_beta"],
                      params["bn1_mean"], params["bn1_var"], eps)
    s2, b2 = _bn_fold(params["bn2_gamma"], params["bn2_beta"],
                      params["bn2_mean"], params["bn2_var"], eps)
    prep = {
        "w1": _prep_conv3x3(params["conv1_w"], s1, cpi, cpo),
        "shift1": _prep_shift(b1, cpo),
        "w2": _prep_conv3x3(params["conv2_w"], s2, cpo, cpo),
        "shift2": _prep_shift(b2, cpo),
    }
    if ((c_out != c_in) or (stride != 1)) and shortcut == "B":
        ssc, bsc = _bn_fold(params["bnsc_gamma"], params["bnsc_beta"],
                            params["bnsc_mean"], params["bnsc_var"], eps)
        prep["wsc"] = _prep_conv1x1(params["convsc_w"], ssc, cpi, cpo)
        prep["shiftsc"] = _prep_shift(bsc, cpo)
    return prep


# --------------------------------------------------------------------------- #
# BasicBlock forward (hot path)
# --------------------------------------------------------------------------- #
def basic_block_forward(x_nchw, prep, *, c_in, c_out, stride=1, shortcut="B"):
    n, _, h, w = x_nchw.shape
    cpi, cpo = _round_up(c_in, 128), _round_up(c_out, 128)
    h1 = (h - 1) // stride + 1
    w1 = (w - 1) // stride + 1

    x_nhwc = jnp.transpose(x_nchw, (0, 2, 3, 1))                 # NCHW -> NHWC (f32)
    # bf16 matmul operand, lane-padded channels, +1 spatial halo for the 3x3.
    xq = jnp.pad(x_nhwc.astype(jnp.bfloat16),
                 ((0, 0), (1, 1), (1, 1), (0, cpi - c_in)))

    # ---- conv1 -> bn1 -> relu (fused); output bf16 feeds conv2's matmul ----
    out1 = _conv3x3_bn(xq, prep["w1"], prep["shift1"], residual=None,
                       stride=stride, apply_relu=True, out_dtype=jnp.bfloat16)

    # ---- shortcut path (f32 residual, channel-padded) ----
    downsample = (c_out != c_in) or (stride != 1)
    if not downsample:
        res = jnp.pad(x_nhwc, ((0, 0), (0, 0), (0, 0), (0, cpo - c_in)))
        res = res.reshape(n, h1 * w1, cpo)
    elif shortcut == "A":
        sub = x_nhwc[:, ::stride, ::stride, :]
        res = jnp.pad(sub, ((0, 0), (0, 0), (0, 0), (0, cpo - c_in)))
        res = res.reshape(n, h1 * w1, cpo)
    else:                                                        # 'B': 1x1 conv + BN
        sub = x_nhwc[:, ::stride, ::stride, :].astype(jnp.bfloat16)
        sub = jnp.pad(sub, ((0, 0), (0, 0), (0, 0), (0, cpi - c_in)))
        res = fused_gemm_bn(sub.reshape(n * h1 * w1, cpi), prep["wsc"],
                            prep["shiftsc"], apply_relu=False,
                            out_dtype=jnp.float32)
        res = res.reshape(n, h1 * w1, cpo)

    # ---- conv2 -> bn2 -> (+shortcut) -> relu (fused); output f32 ----
    out1p = jnp.pad(out1.reshape(n, h1, w1, cpo), ((0, 0), (1, 1), (1, 1), (0, 0)))
    out2 = _conv3x3_bn(out1p, prep["w2"], prep["shift2"], residual=res,
                       stride=1, apply_relu=True, out_dtype=jnp.float32)

    out = out2.reshape(n, h1, w1, cpo)[..., :c_out]
    return jnp.transpose(out, (0, 3, 1, 2))                      # NHWC -> NCHW


# --------------------------------------------------------------------------- #
# Pure-JAX reference (f32, lax conv) for the correctness check
# --------------------------------------------------------------------------- #
def _ref_forward(x_nchw, params, *, c_in, c_out, stride, shortcut, eps=1e-5):
    def conv(x, w, s, pad):
        return jax.lax.conv_general_dilated(
            x, w, (s, s), ((pad, pad), (pad, pad)),
            dimension_numbers=("NCHW", "OIHW", "NCHW"),
            precision=jax.lax.Precision.HIGHEST)

    def bn(x, pfx):
        g, b, m, v = (params[f"{pfx}_{k}"][None, :, None, None]
                      for k in ("gamma", "beta", "mean", "var"))
        return (x - m) / jnp.sqrt(v + eps) * g + b

    out = jax.nn.relu(bn(conv(x_nchw, params["conv1_w"], stride, 1), "bn1"))
    out = bn(conv(out, params["conv2_w"], 1, 1), "bn2")
    if (c_in == c_out) and (stride == 1):
        sc = x_nchw
    elif shortcut == "A":
        sc = x_nchw[:, :, ::stride, ::stride]
        sc = jnp.pad(sc, ((0, 0), (0, c_out - c_in), (0, 0), (0, 0)))
    else:
        sc = bn(conv(x_nchw, params["convsc_w"], stride, 0), "bnsc")
    return jax.nn.relu(out + sc)


# --------------------------------------------------------------------------- #
# Main
# --------------------------------------------------------------------------- #
def _make_params(key, c_in, c_out):
    ks = jax.random.split(key, 16)
    return {
        "conv1_w":   0.1 * jax.random.normal(ks[0], (c_out, c_in, 3, 3), jnp.float32),
        "bn1_gamma": 1.0 + 0.1 * jax.random.normal(ks[1], (c_out,), jnp.float32),
        "bn1_beta":  0.1 * jax.random.normal(ks[2], (c_out,), jnp.float32),
        "bn1_mean":  0.1 * jax.random.normal(ks[3], (c_out,), jnp.float32),
        "bn1_var":   0.5 + jnp.abs(jax.random.normal(ks[4], (c_out,), jnp.float32)),
        "conv2_w":   0.1 * jax.random.normal(ks[5], (c_out, c_out, 3, 3), jnp.float32),
        "bn2_gamma": 1.0 + 0.1 * jax.random.normal(ks[6], (c_out,), jnp.float32),
        "bn2_beta":  0.1 * jax.random.normal(ks[7], (c_out,), jnp.float32),
        "bn2_mean":  0.1 * jax.random.normal(ks[8], (c_out,), jnp.float32),
        "bn2_var":   0.5 + jnp.abs(jax.random.normal(ks[9], (c_out,), jnp.float32)),
        "convsc_w":  0.1 * jax.random.normal(ks[10], (c_out, c_in, 1, 1), jnp.float32),
        "bnsc_gamma": 1.0 + 0.1 * jax.random.normal(ks[11], (c_out,), jnp.float32),
        "bnsc_beta":  0.1 * jax.random.normal(ks[12], (c_out,), jnp.float32),
        "bnsc_mean":  0.1 * jax.random.normal(ks[13], (c_out,), jnp.float32),
        "bnsc_var":   0.5 + jnp.abs(jax.random.normal(ks[14], (c_out,), jnp.float32)),
    }


if __name__ == "__main__":
    key = jax.random.PRNGKey(0)
    k1, k2, kx1, kx2 = jax.random.split(key, 4)
    N, H, W = 2, 16, 16

    # --- Case 1: default BasicBlock (c_in == c_out, stride 1, identity shortcut)
    c_in = c_out = 4
    params1 = _make_params(k1, c_in, c_out)
    x1 = jax.random.normal(kx1, (N, c_in, H, W), jnp.float32)
    prep1 = prepare_block_params(params1, c_in=c_in, c_out=c_out, stride=1, shortcut="B")
    fwd1 = jax.jit(functools.partial(basic_block_forward, c_in=c_in, c_out=c_out,
                                     stride=1, shortcut="B"))
    out1 = fwd1(x1, prep1)
    jax.block_until_ready(out1)
    assert out1.shape == (N, c_out, H, W), out1.shape
    ref1 = _ref_forward(x1, params1, c_in=c_in, c_out=c_out, stride=1, shortcut="B")
    jax.block_until_ready(ref1)
    err1 = float(jnp.max(jnp.abs(out1 - ref1)))
    assert jnp.allclose(out1, ref1, atol=5e-2, rtol=5e-2), err1

    # --- Case 2: downsampling block (stride 2, c_out = 2*c_in, shortcut 'B')
    c_in2, c_out2 = 4, 8
    params2 = _make_params(k2, c_in2, c_out2)
    x2 = jax.random.normal(kx2, (N, c_in2, H, W), jnp.float32)
    prep2 = prepare_block_params(params2, c_in=c_in2, c_out=c_out2, stride=2, shortcut="B")
    fwd2 = jax.jit(functools.partial(basic_block_forward, c_in=c_in2, c_out=c_out2,
                                     stride=2, shortcut="B"))
    out2 = fwd2(x2, prep2)
    jax.block_until_ready(out2)
    assert out2.shape == (N, c_out2, H // 2, W // 2), out2.shape
    ref2 = _ref_forward(x2, params2, c_in=c_in2, c_out=c_out2, stride=2, shortcut="B")
    jax.block_until_ready(ref2)
    err2 = float(jnp.max(jnp.abs(out2 - ref2)))
    assert jnp.allclose(out2, ref2, atol=5e-2, rtol=5e-2), err2

    print("KERNEL_OK")
</pallas_src>

<mosaic_0001>
module attributes {stable_mosaic.version = 11 : i64} {
  func.func @_conv3x3_bn_kernel(%arg0: i32, %arg1: i32, %arg2: memref<1x18x18x128xbf16, #tpu.memory_space<vmem>>, %arg3: memref<3x3x128x128xbf16, #tpu.memory_space<vmem>>, %arg4: memref<1x128xf32, #tpu.memory_space<vmem>>, %arg5: memref<1x256x128xbf16, #tpu.memory_space<vmem>>, %arg6: memref<256x128xf32, #tpu.memory_space<vmem>>) attributes {dimension_semantics = [#tpu.dimension_semantics<parallel>, #tpu.dimension_semantics<parallel>], iteration_bounds = array<i64: 2, 1>, scalar_prefetch = 0 : i64, scratch_operands = 1 : i64, tpu.core_type = #tpu.core_type<tc>, window_params = [{transform_indices = @transform_0, window_bounds = array<i64: 1, 18, 18, 128>}, {pipeline_mode = #tpu.pipeline_mode<synchronous>, transform_indices = @transform_1, window_bounds = array<i64: 3, 3, 128, 128>}, {pipeline_mode = #tpu.pipeline_mode<synchronous>, transform_indices = @transform_2, window_bounds = array<i64: 1, 128>}, {transform_indices = @transform_3, window_bounds = array<i64: 1, 256, 128>}]} {
    %c16_i32 = arith.constant 16 : i32
    %0 = arith.muli %arg1, %c16_i32 : i32
    %cst = arith.constant 0.000000e+00 : f32
    %1 = vector.broadcast %cst : f32 to vector<256x128xf32>
    %c0 = arith.constant 0 : index
    %c0_0 = arith.constant 0 : index
    %2 = vector.load %arg6[%c0, %c0_0] : memref<256x128xf32, #tpu.memory_space<vmem>>, vector<256x128xf32>
    tpu.vector_store %arg6[%c0, %c0_0], %1 {strides = array<i32>} : memref<256x128xf32, #tpu.memory_space<vmem>>, vector<256x128xf32>,
    %c0_i32 = arith.constant 0 : i32
    %3 = arith.addi %0, %c0_i32 : i32
    %c0_1 = arith.constant 0 : index
    %4 = arith.index_cast %3 : i32 to index
    %c0_2 = arith.constant 0 : index
    %c0_3 = arith.constant 0 : index
    %5 = vector.load %arg2[%c0_1, %4, %c0_2, %c0_3] : memref<1x18x18x128xbf16, #tpu.memory_space<vmem>>, vector<1x16x16x128xbf16>
    %6 = vector.shape_cast %5 : vector<1x16x16x128xbf16> to vector<16x16x128xbf16>
    %7 = vector.shape_cast %6 : vector<16x16x128xbf16> to vector<256x128xbf16>
    %c0_4 = arith.constant 0 : index
    %c0_5 = arith.constant 0 : index
    %8 = vector.load %arg6[%c0_4, %c0_5] : memref<256x128xf32, #tpu.memory_space<vmem>>, vector<256x128xf32>
    %c0_6 = arith.constant 0 : index
    %c0_7 = arith.constant 0 : index
    %c0_8 = arith.constant 0 : index
    %c0_9 = arith.constant 0 : index
    %9 = vector.load %arg3[%c0_6, %c0_7, %c0_8, %c0_9] : memref<3x3x128x128xbf16, #tpu.memory_space<vmem>>, vector<1x1x128x128xbf16>
    %10 = vector.shape_cast %9 : vector<1x1x128x128xbf16> to vector<128x128xbf16>
    %cst_10 = arith.constant dense<0.000000e+00> : vector<256x128xf32>
    %11 = tpu.matmul %7, %10, %cst_10 {dimension_numbers = #tpu.dot_dimension_numbers<[1], [0], [0], [1], [0, 0, 1, 1], [], []>} : vector<256x128xbf16>, vector<128x128xbf16>, vector<256x128xf32> -> vector<256x128xf32>
    %12 = arith.addf %8, %11 : vector<256x128xf32>
    %c0_11 = arith.constant 0 : index
    %c0_12 = arith.constant 0 : index
    %13 = vector.load %arg6[%c0_11, %c0_12] : memref<256x128xf32, #tpu.memory_space<vmem>>, vector<256x128xf32>
    tpu.vector_store %arg6[%c0_11, %c0_12], %12 {strides = array<i32>} : memref<256x128xf32, #tpu.memory_space<vmem>>, vector<256x128xf32>,
    %c0_i32_13 = arith.constant 0 : i32
    %14 = arith.addi %0, %c0_i32_13 : i32
    %c0_14 = arith.constant 0 : index
    %15 = arith.index_cast %14 : i32 to index
    %c1 = arith.constant 1 : index
    %c0_15 = arith.constant 0 : index
    %16 = vector.load %arg2[%c0_14, %15, %c1, %c0_15] : memref<1x18x18x128xbf16, #tpu.memory_space<vmem>>, vector<1x16x16x128xbf16>
    %17 = vector.shape_cast %16 : vector<1x16x16x128xbf16> to vector<16x16x128xbf16>
    %18 = vector.shape_cast %17 : vector<16x16x128xbf16> to vector<256x128xbf16>
    %c0_16 = arith.constant 0 : index
    %c0_17 = arith.constant 0 : index
    %19 = vector.load %arg6[%c0_16, %c0_17] : memref<256x128xf32, #tpu.memory_space<vmem>>, vector<256x128xf32>
    %c0_18 = arith.constant 0 : index
    %c1_19 = arith.constant 1 : index
    %c0_20 = arith.constant 0 : index
    %c0_21 = arith.constant 0 : index
    %20 = vector.load %arg3[%c0_18, %c1_19, %c0_20, %c0_21] : memref<3x3x128x128xbf16, #tpu.memory_space<vmem>>, vector<1x1x128x128xbf16>
    %21 = vector.shape_cast %20 : vector<1x1x128x128xbf16> to vector<128x128xbf16>
    %cst_22 = arith.constant dense<0.000000e+00> : vector<256x128xf32>
    %22 = tpu.matmul %18, %21, %cst_22 {dimension_numbers = #tpu.dot_dimension_numbers<[1], [0], [0], [1], [0, 0, 1, 1], [], []>} : vector<256x128xbf16>, vector<128x128xbf16>, vector<256x128xf32> -> vector<256x128xf32>
    %23 = arith.addf %19, %22 : vector<256x128xf32>
    %c0_23 = arith.constant 0 : index
    %c0_24 = arith.constant 0 : index
    %24 = vector.load %arg6[%c0_23, %c0_24] : memref<256x128xf32, #tpu.memory_space<vmem>>, vector<256x128xf32>
    tpu.vector_store %arg6[%c0_23, %c0_24], %23 {strides = array<i32>} : memref<256x128xf32, #tpu.memory_space<vmem>>, vector<256x128xf32>,
    %c0_i32_25 = arith.constant 0 : i32
    %25 = arith.addi %0, %c0_i32_25 : i32
    %c0_26 = arith.constant 0 : index
    %26 = arith.index_cast %25 : i32 to index
    %c2 = arith.constant 2 : index
    %c0_27 = arith.constant 0 : index
    %27 = vector.load %arg2[%c0_26, %26, %c2, %c0_27] : memref<1x18x18x128xbf16, #tpu.memory_space<vmem>>, vector<1x16x16x128xbf16>
    %28 = vector.shape_cast %27 : vector<1x16x16x128xbf16> to vector<16x16x128xbf16>
    %29 = vector.shape_cast %28 : vector<16x16x128xbf16> to vector<256x128xbf16>
    %c0_28 = arith.constant 0 : index
    %c0_29 = arith.constant 0 : index
    %30 = vector.load %arg6[%c0_28, %c0_29] : memref<256x128xf32, #tpu.memory_space<vmem>>, vector<256x128xf32>
    %c0_30 = arith.constant 0 : index
    %c2_31 = arith.constant 2 : index
    %c0_32 = arith.constant 0 : index
    %c0_33 = arith.constant 0 : index
    %31 = vector.load %arg3[%c0_30, %c2_31, %c0_32, %c0_33] : memref<3x3x128x128xbf16, #tpu.memory_space<vmem>>, vector<1x1x128x128xbf16>
    %32 = vector.shape_cast %31 : vector<1x1x128x128xbf16> to vector<128x128xbf16>
    %cst_34 = arith.constant dense<0.000000e+00> : vector<256x128xf32>
    %33 = tpu.matmul %29, %32, %cst_34 {dimension_numbers = #tpu.dot_dimension_numbers<[1], [0], [0], [1], [0, 0, 1, 1], [], []>} : vector<256x128xbf16>, vector<128x128xbf16>, vector<256x128xf32> -> vector<256x128xf32>
    %34 = arith.addf %30, %33 : vector<256x128xf32>
    %c0_35 = arith.constant 0 : index
    %c0_36 = arith.constant 0 : index
    %35 = vector.load %arg6[%c0_35, %c0_36] : memref<256x128xf32, #tpu.memory_space<vmem>>, vector<256x128xf32>
    tpu.vector_store %arg6[%c0_35, %c0_36], %34 {strides = array<i32>} : memref<256x128xf32, #tpu.memory_space<vmem>>, vector<256x128xf32>,
    %c1_i32 = arith.constant 1 : i32
    %36 = arith.addi %0, %c1_i32 : i32
    %c0_37 = arith.constant 0 : index
    %37 = arith.index_cast %36 : i32 to index
    %c0_38 = arith.constant 0 : index
    %c0_39 = arith.constant 0 : index
    %38 = vector.load %arg2[%c0_37, %37, %c0_38, %c0_39] : memref<1x18x18x128xbf16, #tpu.memory_space<vmem>>, vector<1x16x16x128xbf16>
    %39 = vector.shape_cast %38 : vector<1x16x16x128xbf16> to vector<16x16x128xbf16>
    %40 = vector.shape_cast %39 : vector<16x16x128xbf16> to vector<256x128xbf16>
    %c0_40 = arith.constant 0 : index
    %c0_41 = arith.constant 0 : index
    %41 = vector.load %arg6[%c0_40, %c0_41] : memref<256x128xf32, #tpu.memory_space<vmem>>, vector<256x128xf32>
    %c1_42 = arith.constant 1 : index
    %c0_43 = arith.constant 0 : index
    %c0_44 = arith.constant 0 : index
    %c0_45 = arith.constant 0 : index
    %42 = vector.load %arg3[%c1_42, %c0_43, %c0_44, %c0_45] : memref<3x3x128x128xbf16, #tpu.memory_space<vmem>>, vector<1x1x128x128xbf16>
    %43 = vector.shape_cast %42 : vector<1x1x128x128xbf16> to vector<128x128xbf16>
    %cst_46 = arith.constant dense<0.000000e+00> : vector<256x128xf32>
    %44 = tpu.matmul %40, %43, %cst_46 {dimension_numbers = #tpu.dot_dimension_numbers<[1], [0], [0], [1], [0, 0, 1, 1], [], []>} : vector<256x128xbf16>, vector<128x128xbf16>, vector<256x128xf32> -> vector<256x128xf32>
    %45 = arith.addf %41, %44 : vector<256x128xf32>
    %c0_47 = arith.constant 0 : index
    %c0_48 = arith.constant 0 : index
    %46 = vector.load %arg6[%c0_47, %c0_48] : memref<256x128xf32, #tpu.memory_space<vmem>>, vector<256x128xf32>
    tpu.vector_store %arg6[%c0_47, %c0_48], %45 {strides = array<i32>} : memref<256x128xf32, #tpu.memory_space<vmem>>, vector<256x128xf32>,
    %c1_i32_49 = arith.constant 1 : i32
    %47 = arith.addi %0, %c1_i32_49 : i32
    %c0_50 = arith.constant 0 : index
    %48 = arith.index_cast %47 : i32 to index
    %c1_51 = arith.constant 1 : index
    %c0_52 = arith.constant 0 : index
    %49 = vector.load %arg2[%c0_50, %48, %c1_51, %c0_52] : memref<1x18x18x128xbf16, #tpu.memory_space<vmem>>, vector<1x16x16x128xbf16>
    %50 = vector.shape_cast %49 : vector<1x16x16x128xbf16> to vector<16x16x128xbf16>
    %51 = vector.shape_cast %50 : vector<16x16x128xbf16> to vector<256x128xbf16>
    %c0_53 = arith.constant 0 : index
    %c0_54 = arith.constant 0 : index
    %52 = vector.load %arg6[%c0_53, %c0_54] : memref<256x128xf32, #tpu.memory_space<vmem>>, vector<256x128xf32>
    %c1_55 = arith.constant 1 : index
    %c1_56 = arith.constant 1 : index
    %c0_57 = arith.constant 0 : index
    %c0_58 = arith.constant 0 : index
    %53 = vector.load %arg3[%c1_55, %c1_56, %c0_57, %c0_58] : memref<3x3x128x128xbf16, #tpu.memory_space<vmem>>, vector<1x1x128x128xbf16>
    %54 = vector.shape_cast %53 : vector<1x1x128x128xbf16> to vector<128x128xbf16>
    %cst_59 = arith.constant dense<0.000000e+00> : vector<256x128xf32>
    %55 = tpu.matmul %51, %54, %cst_59 {dimension_numbers = #tpu.dot_dimension_numbers<[1], [0], [0], [1], [0, 0, 1, 1], [], []>} : vector<256x128xbf16>, vector<128x128xbf16>, vector<256x128xf32> -> vector<256x128xf32>
    %56 = arith.addf %52, %55 : vector<256x128xf32>
    %c0_60 = arith.constant 0 : index
    %c0_61 = arith.constant 0 : index
    %57 = vector.load %arg6[%c0_60, %c0_61] : memref<256x128xf32, #tpu.memory_space<vmem>>, vector<256x128xf32>
    tpu.vector_store %arg6[%c0_60, %c0_61], %56 {strides = array<i32>} : memref<256x128xf32, #tpu.memory_space<vmem>>, vector<256x128xf32>,
    %c1_i32_62 = arith.constant 1 : i32
    %58 = arith.addi %0, %c1_i32_62 : i32
    %c0_63 = arith.constant 0 : index
    %59 = arith.index_cast %58 : i32 to index
    %c2_64 = arith.constant 2 : index
    %c0_65 = arith.constant 0 : index
    %60 = vector.load %arg2[%c0_63, %59, %c2_64, %c0_65] : memref<1x18x18x128xbf16, #tpu.memory_space<vmem>>, vector<1x16x16x128xbf16>
    %61 = vector.shape_cast %60 : vector<1x16x16x128xbf16> to vector<16x16x128xbf16>
    %62 = vector.shape_cast %61 : vector<16x16x128xbf16> to vector<256x128xbf16>
    %c0_66 = arith.constant 0 : index
    %c0_67 = arith.constant 0 : index
    %63 = vector.load %arg6[%c0_66, %c0_67] : memref<256x128xf32, #tpu.memory_space<vmem>>, vector<256x128xf32>
    %c1_68 = arith.constant 1 : index
    %c2_69 = arith.constant 2 : index
    %c0_70 = arith.constant 0 : index
    %c0_71 = arith.constant 0 : index
    %64 = vector.load %arg3[%c1_68, %c2_69, %c0_70, %c0_71] : memref<3x3x128x128xbf16, #tpu.memory_space<vmem>>, vector<1x1x128x128xbf16>
    %65 = vector.shape_cast %64 : vector<1x1x128x128xbf16> to vector<128x128xbf16>
    %cst_72 = arith.constant dense<0.000000e+00> : vector<256x128xf32>
    %66 = tpu.matmul %62, %65, %cst_72 {dimension_numbers = #tpu.dot_dimension_numbers<[1], [0], [0], [1], [0, 0, 1, 1], [], []>} : vector<256x128xbf16>, vector<128x128xbf16>, vector<256x128xf32> -> vector<256x128xf32>
    %67 = arith.addf %63, %66 : vector<256x128xf32>
    %c0_73 = arith.constant 0 : index
    %c0_74 = arith.constant 0 : index
    %68 = vector.load %arg6[%c0_73, %c0_74] : memref<256x128xf32, #tpu.memory_space<vmem>>, vector<256x128xf32>
    tpu.vector_store %arg6[%c0_73, %c0_74], %67 {strides = array<i32>} : memref<256x128xf32, #tpu.memory_space<vmem>>, vector<256x128xf32>,
    %c2_i32 = arith.constant 2 : i32
    %69 = arith.addi %0, %c2_i32 : i32
    %c0_75 = arith.constant 0 : index
    %70 = arith.index_cast %69 : i32 to index
    %c0_76 = arith.constant 0 : index
    %c0_77 = arith.constant 0 : index
    %71 = vector.load %arg2[%c0_75, %70, %c0_76, %c0_77] : memref<1x18x18x128xbf16, #tpu.memory_space<vmem>>, vector<1x16x16x128xbf16>
    %72 = vector.shape_cast %71 : vector<1x16x16x128xbf16> to vector<16x16x128xbf16>
    %73 = vector.shape_cast %72 : vector<16x16x128xbf16> to vector<256x128xbf16>
    %c0_78 = arith.constant 0 : index
    %c0_79 = arith.constant 0 : index
    %74 = vector.load %arg6[%c0_78, %c0_79] : memref<256x128xf32, #tpu.memory_space<vmem>>, vector<256x128xf32>
    %c2_80 = arith.constant 2 : index
    %c0_81 = arith.constant 0 : index
    %c0_82 = arith.constant 0 : index
    %c0_83 = arith.constant 0 : index
    %75 = vector.load %arg3[%c2_80, %c0_81, %c0_82, %c0_83] : memref<3x3x128x128xbf16, #tpu.memory_space<vmem>>, vector<1x1x128x128xbf16>
    %76 = vector.shape_cast %75 : vector<1x1x128x128xbf16> to vector<128x128xbf16>
    %cst_84 = arith.constant dense<0.000000e+00> : vector<256x128xf32>
    %77 = tpu.matmul %73, %76, %cst_84 {dimension_numbers = #tpu.dot_dimension_numbers<[1], [0], [0], [1], [0, 0, 1, 1], [], []>} : vector<256x128xbf16>, vector<128x128xbf16>, vector<256x128xf32> -> vector<256x128xf32>
    %78 = arith.addf %74, %77 : vector<256x128xf32>
    %c0_85 = arith.constant 0 : index
    %c0_86 = arith.constant 0 : index
    %79 = vector.load %arg6[%c0_85, %c0_86] : memref<256x128xf32, #tpu.memory_space<vmem>>, vector<256x128xf32>
    tpu.vector_store %arg6[%c0_85, %c0_86], %78 {strides = array<i32>} : memref<256x128xf32, #tpu.memory_space<vmem>>, vector<256x128xf32>,
    %c2_i32_87 = arith.constant 2 : i32
    %80 = arith.addi %0, %c2_i32_87 : i32
    %c0_88 = arith.constant 0 : index
    %81 = arith.index_cast %80 : i32 to index
    %c1_89 = arith.constant 1 : index
    %c0_90 = arith.constant 0 : index
    %82 = vector.load %arg2[%c0_88, %81, %c1_89, %c0_90] : memref<1x18x18x128xbf16, #tpu.memory_space<vmem>>, vector<1x16x16x128xbf16>
    %83 = vector.shape_cast %82 : vector<1x16x16x128xbf16> to vector<16x16x128xbf16>
    %84 = vector.shape_cast %83 : vector<16x16x128xbf16> to vector<256x128xbf16>
    %c0_91 = arith.constant 0 : index
    %c0_92 = arith.constant 0 : index
    %85 = vector.load %arg6[%c0_91, %c0_92] : memref<256x128xf32, #tpu.memory_space<vmem>>, vector<256x128xf32>
    %c2_93 = arith.constant 2 : index
    %c1_94 = arith.constant 1 : index
    %c0_95 = arith.constant 0 : index
    %c0_96 = arith.constant 0 : index
    %86 = vector.load %arg3[%c2_93, %c1_94, %c0_95, %c0_96] : memref<3x3x128x128xbf16, #tpu.memory_space<vmem>>, vector<1x1x128x128xbf16>
    %87 = vector.shape_cast %86 : vector<1x1x128x128xbf16> to vector<128x128xbf16>
    %cst_97 = arith.constant dense<0.000000e+00> : vector<256x128xf32>
    %88 = tpu.matmul %84, %87, %cst_97 {dimension_numbers = #tpu.dot_dimension_numbers<[1], [0], [0], [1], [0, 0, 1, 1], [], []>} : vector<256x128xbf16>, vector<128x128xbf16>, vector<256x128xf32> -> vector<256x128xf32>
    %89 = arith.addf %85, %88 : vector<256x128xf32>
    %c0_98 = arith.constant 0 : index
    %c0_99 = arith.constant 0 : index
    %90 = vector.load %arg6[%c0_98, %c0_99] : memref<256x128xf32, #tpu.memory_space<vmem>>, vector<256x128xf32>
    tpu.vector_store %arg6[%c0_98, %c0_99], %89 {strides = array<i32>} : memref<256x128xf32, #tpu.memory_space<vmem>>, vector<256x128xf32>,
    %c2_i32_100 = arith.constant 2 : i32
    %91 = arith.addi %0, %c2_i32_100 : i32
    %c0_101 = arith.constant 0 : index
    %92 = arith.index_cast %91 : i32 to index
    %c2_102 = arith.constant 2 : index
    %c0_103 = arith.constant 0 : index
    %93 = vector.load %arg2[%c0_101, %92, %c2_102, %c0_103] : memref<1x18x18x128xbf16, #tpu.memory_space<vmem>>, vector<1x16x16x128xbf16>
    %94 = vector.shape_cast %93 : vector<1x16x16x128xbf16> to vector<16x16x128xbf16>
    %95 = vector.shape_cast %94 : vector<16x16x128xbf16> to vector<256x128xbf16>
    %c0_104 = arith.constant 0 : index
    %c0_105 = arith.constant 0 : index
    %96 = vector.load %arg6[%c0_104, %c0_105] : memref<256x128xf32, #tpu.memory_space<vmem>>, vector<256x128xf32>
    %c2_106 = arith.constant 2 : index
    %c2_107 = arith.constant 2 : index
    %c0_108 = arith.constant 0 : index
    %c0_109 = arith.constant 0 : index
    %97 = vector.load %arg3[%c2_106, %c2_107, %c0_108, %c0_109] : memref<3x3x128x128xbf16, #tpu.memory_space<vmem>>, vector<1x1x128x128xbf16>
    %98 = vector.shape_cast %97 : vector<1x1x128x128xbf16> to vector<128x128xbf16>
    %cst_110 = arith.constant dense<0.000000e+00> : vector<256x128xf32>
    %99 = tpu.matmul %95, %98, %cst_110 {dimension_numbers = #tpu.dot_dimension_numbers<[1], [0], [0], [1], [0, 0, 1, 1], [], []>} : vector<256x128xbf16>, vector<128x128xbf16>, vector<256x128xf32> -> vector<256x128xf32>
    %100 = arith.addf %96, %99 : vector<256x128xf32>
    %c0_111 = arith.constant 0 : index
    %c0_112 = arith.constant 0 : index
    %101 = vector.load %arg6[%c0_111, %c0_112] : memref<256x128xf32, #tpu.memory_space<vmem>>, vector<256x128xf32>
    tpu.vector_store %arg6[%c0_111, %c0_112], %100 {strides = array<i32>} : memref<256x128xf32, #tpu.memory_space<vmem>>, vector<256x128xf32>,
    %c0_113 = arith.constant 0 : index
    %c0_114 = arith.constant 0 : index
    %102 = vector.load %arg6[%c0_113, %c0_114] : memref<256x128xf32, #tpu.memory_space<vmem>>, vector<256x128xf32>
    %c0_115 = arith.constant 0 : index
    %c0_116 = arith.constant 0 : index
    %103 = vector.load %arg4[%c0_115, %c0_116] : memref<1x128xf32, #tpu.memory_space<vmem>>, vector<1x128xf32>
    %104 = vector.broadcast %103 : vector<1x128xf32> to vector<256x128xf32>
    %105 = arith.addf %102, %104 : vector<256x128xf32>
    %cst_117 = arith.constant 0.000000e+00 : f32
    %106 = vector.broadcast %cst_117 : f32 to vector<256x128xf32>
    %107 = arith.maximumf %105, %106 : vector<256x128xf32>
    %108 = arith.truncf %107 : vector<256x128xf32> to vector<256x128xbf16>
    %c0_118 = arith.constant 0 : index
    %c0_119 = arith.constant 0 : index
    %c0_120 = arith.constant 0 : index
    %109 = vector.load %arg5[%c0_118, %c0_119, %c0_120] : memref<1x256x128xbf16, #tpu.memory_space<vmem>>, vector<1x256x128xbf16>
    %110 = vector.shape_cast %109 : vector<1x256x128xbf16> to vector<256x128xbf16>
    %111 = vector.shape_cast %108 : vector<256x128xbf16> to vector<1x256x128xbf16>
    tpu.vector_store %arg5[%c0_118, %c0_119, %c0_120], %111 {strides = array<i32>} : memref<1x256x128xbf16, #tpu.memory_space<vmem>>, vector<1x256x128xbf16>,
    return
  }
  func.func @transform_0(%arg0: i32, %arg1: i32) -> (i32, i32, i32, i32) {
    %c0_i32 = arith.constant 0 : i32
    %c0_i32_0 = arith.constant 0 : i32
    %c0_i32_1 = arith.constant 0 : i32
    %c0_i32_2 = arith.constant 0 : i32
    return %arg0, %c0_i32, %c0_i32_0, %c0_i32_1 : i32, i32, i32, i32
  }
  func.func @transform_1(%arg0: i32, %arg1: i32) -> (i32, i32, i32, i32) {
    %c0_i32 = arith.constant 0 : i32
    %c0_i32_0 = arith.constant 0 : i32
    %c0_i32_1 = arith.constant 0 : i32
    %c0_i32_2 = arith.constant 0 : i32
    %c0_i32_3 = arith.constant 0 : i32
    return %c0_i32, %c0_i32_0, %c0_i32_1, %c0_i32_2 : i32, i32, i32, i32
  }
  func.func @transform_2(%arg0: i32, %arg1: i32) -> (i32, i32) {
    %c0_i32 = arith.constant 0 : i32
    %c0_i32_0 = arith.constant 0 : i32
    %c0_i32_1 = arith.constant 0 : i32
    return %c0_i32, %c0_i32_0 : i32, i32
  }
  func.func @transform_3(%arg0: i32, %arg1: i32) -> (i32, i32, i32) {
    %c0_i32 = arith.constant 0 : i32
    %c0_i32_0 = arith.constant 0 : i32
    return %arg0, %arg1, %c0_i32 : i32, i32, i32
  }
}

module attributes {stable_mosaic.version = 11 : i64} {
  func.func @_conv3x3_bn_kernel(%arg0: i32, %arg1: i32, %arg2: memref<1x18x18x128xbf16, #tpu.memory_space<vmem>>, %arg3: memref<3x3x128x128xbf16, #tpu.memory_space<vmem>>, %arg4: memref<1x128xf32, #tpu.memory_space<vmem>>, %arg5: memref<1x256x128xf32, #tpu.memory_space<vmem>>, %arg6: memref<1x256x128xf32, #tpu.memory_space<vmem>>, %arg7: memref<256x128xf32, #tpu.memory_space<vmem>>) attributes {dimension_semantics = [#tpu.dimension_semantics<parallel>, #tpu.dimension_semantics<parallel>], iteration_bounds = array<i64: 2, 1>, scalar_prefetch = 0 : i64, scratch_operands = 1 : i64, tpu.core_type = #tpu.core_type<tc>, window_params = [{transform_indices = @transform_0, window_bounds = array<i64: 1, 18, 18, 128>}, {pipeline_mode = #tpu.pipeline_mode<synchronous>, transform_indices = @transform_1, window_bounds = array<i64: 3, 3, 128, 128>}, {pipeline_mode = #tpu.pipeline_mode<synchronous>, transform_indices = @transform_2, window_bounds = array<i64: 1, 128>}, {transform_indices = @transform_3, window_bounds = array<i64: 1, 256, 128>}, {transform_indices = @transform_4, window_bounds = array<i64: 1, 256, 128>}]} {
    %c16_i32 = arith.constant 16 : i32
    %0 = arith.muli %arg1, %c16_i32 : i32
    %cst = arith.constant 0.000000e+00 : f32
    %1 = vector.broadcast %cst : f32 to vector<256x128xf32>
    %c0 = arith.constant 0 : index
    %c0_0 = arith.constant 0 : index
    %2 = vector.load %arg7[%c0, %c0_0] : memref<256x128xf32, #tpu.memory_space<vmem>>, vector<256x128xf32>
    tpu.vector_store %arg7[%c0, %c0_0], %1 {strides = array<i32>} : memref<256x128xf32, #tpu.memory_space<vmem>>, vector<256x128xf32>,
    %c0_i32 = arith.constant 0 : i32
    %3 = arith.addi %0, %c0_i32 : i32
    %c0_1 = arith.constant 0 : index
    %4 = arith.index_cast %3 : i32 to index
    %c0_2 = arith.constant 0 : index
    %c0_3 = arith.constant 0 : index
    %5 = vector.load %arg2[%c0_1, %4, %c0_2, %c0_3] : memref<1x18x18x128xbf16, #tpu.memory_space<vmem>>, vector<1x16x16x128xbf16>
    %6 = vector.shape_cast %5 : vector<1x16x16x128xbf16> to vector<16x16x128xbf16>
    %7 = vector.shape_cast %6 : vector<16x16x128xbf16> to vector<256x128xbf16>
    %c0_4 = arith.constant 0 : index
    %c0_5 = arith.constant 0 : index
    %8 = vector.load %arg7[%c0_4, %c0_5] : memref<256x128xf32, #tpu.memory_space<vmem>>, vector<256x128xf32>
    %c0_6 = arith.constant 0 : index
    %c0_7 = arith.constant 0 : index
    %c0_8 = arith.constant 0 : index
    %c0_9 = arith.constant 0 : index
    %9 = vector.load %arg3[%c0_6, %c0_7, %c0_8, %c0_9] : memref<3x3x128x128xbf16, #tpu.memory_space<vmem>>, vector<1x1x128x128xbf16>
    %10 = vector.shape_cast %9 : vector<1x1x128x128xbf16> to vector<128x128xbf16>
    %cst_10 = arith.constant dense<0.000000e+00> : vector<256x128xf32>
    %11 = tpu.matmul %7, %10, %cst_10 {dimension_numbers = #tpu.dot_dimension_numbers<[1], [0], [0], [1], [0, 0, 1, 1], [], []>} : vector<256x128xbf16>, vector<128x128xbf16>, vector<256x128xf32> -> vector<256x128xf32>
    %12 = arith.addf %8, %11 : vector<256x128xf32>
    %c0_11 = arith.constant 0 : index
    %c0_12 = arith.constant 0 : index
    %13 = vector.load %arg7[%c0_11, %c0_12] : memref<256x128xf32, #tpu.memory_space<vmem>>, vector<256x128xf32>
    tpu.vector_store %arg7[%c0_11, %c0_12], %12 {strides = array<i32>} : memref<256x128xf32, #tpu.memory_space<vmem>>, vector<256x128xf32>,
    %c0_i32_13 = arith.constant 0 : i32
    %14 = arith.addi %0, %c0_i32_13 : i32
    %c0_14 = arith.constant 0 : index
    %15 = arith.index_cast %14 : i32 to index
    %c1 = arith.constant 1 : index
    %c0_15 = arith.constant 0 : index
    %16 = vector.load %arg2[%c0_14, %15, %c1, %c0_15] : memref<1x18x18x128xbf16, #tpu.memory_space<vmem>>, vector<1x16x16x128xbf16>
    %17 = vector.shape_cast %16 : vector<1x16x16x128xbf16> to vector<16x16x128xbf16>
    %18 = vector.shape_cast %17 : vector<16x16x128xbf16> to vector<256x128xbf16>
    %c0_16 = arith.constant 0 : index
    %c0_17 = arith.constant 0 : index
    %19 = vector.load %arg7[%c0_16, %c0_17] : memref<256x128xf32, #tpu.memory_space<vmem>>, vector<256x128xf32>
    %c0_18 = arith.constant 0 : index
    %c1_19 = arith.constant 1 : index
    %c0_20 = arith.constant 0 : index
    %c0_21 = arith.constant 0 : index
    %20 = vector.load %arg3[%c0_18, %c1_19, %c0_20, %c0_21] : memref<3x3x128x128xbf16, #tpu.memory_space<vmem>>, vector<1x1x128x128xbf16>
    %21 = vector.shape_cast %20 : vector<1x1x128x128xbf16> to vector<128x128xbf16>
    %cst_22 = arith.constant dense<0.000000e+00> : vector<256x128xf32>
    %22 = tpu.matmul %18, %21, %cst_22 {dimension_numbers = #tpu.dot_dimension_numbers<[1], [0], [0], [1], [0, 0, 1, 1], [], []>} : vector<256x128xbf16>, vector<128x128xbf16>, vector<256x128xf32> -> vector<256x128xf32>
    %23 = arith.addf %19, %22 : vector<256x128xf32>
    %c0_23 = arith.constant 0 : index
    %c0_24 = arith.constant 0 : index
    %24 = vector.load %arg7[%c0_23, %c0_24] : memref<256x128xf32, #tpu.memory_space<vmem>>, vector<256x128xf32>
    tpu.vector_store %arg7[%c0_23, %c0_24], %23 {strides = array<i32>} : memref<256x128xf32, #tpu.memory_space<vmem>>, vector<256x128xf32>,
    %c0_i32_25 = arith.constant 0 : i32
    %25 = arith.addi %0, %c0_i32_25 : i32
    %c0_26 = arith.constant 0 : index
    %26 = arith.index_cast %25 : i32 to index
    %c2 = arith.constant 2 : index
    %c0_27 = arith.constant 0 : index
    %27 = vector.load %arg2[%c0_26, %26, %c2, %c0_27] : memref<1x18x18x128xbf16, #tpu.memory_space<vmem>>, vector<1x16x16x128xbf16>
    %28 = vector.shape_cast %27 : vector<1x16x16x128xbf16> to vector<16x16x128xbf16>
    %29 = vector.shape_cast %28 : vector<16x16x128xbf16> to vector<256x128xbf16>
    %c0_28 = arith.constant 0 : index
    %c0_29 = arith.constant 0 : index
    %30 = vector.load %arg7[%c0_28, %c0_29] : memref<256x128xf32, #tpu.memory_space<vmem>>, vector<256x128xf32>
    %c0_30 = arith.constant 0 : index
    %c2_31 = arith.constant 2 : index
    %c0_32 = arith.constant 0 : index
    %c0_33 = arith.constant 0 : index
    %31 = vector.load %arg3[%c0_30, %c2_31, %c0_32, %c0_33] : memref<3x3x128x128xbf16, #tpu.memory_space<vmem>>, vector<1x1x128x128xbf16>
    %32 = vector.shape_cast %31 : vector<1x1x128x128xbf16> to vector<128x128xbf16>
    %cst_34 = arith.constant dense<0.000000e+00> : vector<256x128xf32>
    %33 = tpu.matmul %29, %32, %cst_34 {dimension_numbers = #tpu.dot_dimension_numbers<[1], [0], [0], [1], [0, 0, 1, 1], [], []>} : vector<256x128xbf16>, vector<128x128xbf16>, vector<256x128xf32> -> vector<256x128xf32>
    %34 = arith.addf %30, %33 : vector<256x128xf32>
    %c0_35 = arith.constant 0 : index
    %c0_36 = arith.constant 0 : index
    %35 = vector.load %arg7[%c0_35, %c0_36] : memref<256x128xf32, #tpu.memory_space<vmem>>, vector<256x128xf32>
    tpu.vector_store %arg7[%c0_35, %c0_36], %34 {strides = array<i32>} : memref<256x128xf32, #tpu.memory_space<vmem>>, vector<256x128xf32>,
    %c1_i32 = arith.constant 1 : i32
    %36 = arith.addi %0, %c1_i32 : i32
    %c0_37 = arith.constant 0 : index
    %37 = arith.index_cast %36 : i32 to index
    %c0_38 = arith.constant 0 : index
    %c0_39 = arith.constant 0 : index
    %38 = vector.load %arg2[%c0_37, %37, %c0_38, %c0_39] : memref<1x18x18x128xbf16, #tpu.memory_space<vmem>>, vector<1x16x16x128xbf16>
    %39 = vector.shape_cast %38 : vector<1x16x16x128xbf16> to vector<16x16x128xbf16>
    %40 = vector.shape_cast %39 : vector<16x16x128xbf16> to vector<256x128xbf16>
    %c0_40 = arith.constant 0 : index
    %c0_41 = arith.constant 0 : index
    %41 = vector.load %arg7[%c0_40, %c0_41] : memref<256x128xf32, #tpu.memory_space<vmem>>, vector<256x128xf32>
    %c1_42 = arith.constant 1 : index
    %c0_43 = arith.constant 0 : index
    %c0_44 = arith.constant 0 : index
    %c0_45 = arith.constant 0 : index
    %42 = vector.load %arg3[%c1_42, %c0_43, %c0_44, %c0_45] : memref<3x3x128x128xbf16, #tpu.memory_space<vmem>>, vector<1x1x128x128xbf16>
    %43 = vector.shape_cast %42 : vector<1x1x128x128xbf16> to vector<128x128xbf16>
    %cst_46 = arith.constant dense<0.000000e+00> : vector<256x128xf32>
    %44 = tpu.matmul %40, %43, %cst_46 {dimension_numbers = #tpu.dot_dimension_numbers<[1], [0], [0], [1], [0, 0, 1, 1], [], []>} : vector<256x128xbf16>, vector<128x128xbf16>, vector<256x128xf32> -> vector<256x128xf32>
    %45 = arith.addf %41, %44 : vector<256x128xf32>
    %c0_47 = arith.constant 0 : index
    %c0_48 = arith.constant 0 : index
    %46 = vector.load %arg7[%c0_47, %c0_48] : memref<256x128xf32, #tpu.memory_space<vmem>>, vector<256x128xf32>
    tpu.vector_store %arg7[%c0_47, %c0_48], %45 {strides = array<i32>} : memref<256x128xf32, #tpu.memory_space<vmem>>, vector<256x128xf32>,
    %c1_i32_49 = arith.constant 1 : i32
    %47 = arith.addi %0, %c1_i32_49 : i32
    %c0_50 = arith.constant 0 : index
    %48 = arith.index_cast %47 : i32 to index
    %c1_51 = arith.constant 1 : index
    %c0_52 = arith.constant 0 : index
    %49 = vector.load %arg2[%c0_50, %48, %c1_51, %c0_52] : memref<1x18x18x128xbf16, #tpu.memory_space<vmem>>, vector<1x16x16x128xbf16>
    %50 = vector.shape_cast %49 : vector<1x16x16x128xbf16> to vector<16x16x128xbf16>
    %51 = vector.shape_cast %50 : vector<16x16x128xbf16> to vector<256x128xbf16>
    %c0_53 = arith.constant 0 : index
    %c0_54 = arith.constant 0 : index
    %52 = vector.load %arg7[%c0_53, %c0_54] : memref<256x128xf32, #tpu.memory_space<vmem>>, vector<256x128xf32>
    %c1_55 = arith.constant 1 : index
    %c1_56 = arith.constant 1 : index
    %c0_57 = arith.constant 0 : index
    %c0_58 = arith.constant 0 : index
    %53 = vector.load %arg3[%c1_55, %c1_56, %c0_57, %c0_58] : memref<3x3x128x128xbf16, #tpu.memory_space<vmem>>, vector<1x1x128x128xbf16>
    %54 = vector.shape_cast %53 : vector<1x1x128x128xbf16> to vector<128x128xbf16>
    %cst_59 = arith.constant dense<0.000000e+00> : vector<256x128xf32>
    %55 = tpu.matmul %51, %54, %cst_59 {dimension_numbers = #tpu.dot_dimension_numbers<[1], [0], [0], [1], [0, 0, 1, 1], [], []>} : vector<256x128xbf16>, vector<128x128xbf16>, vector<256x128xf32> -> vector<256x128xf32>
    %56 = arith.addf %52, %55 : vector<256x128xf32>
    %c0_60 = arith.constant 0 : index
    %c0_61 = arith.constant 0 : index
    %57 = vector.load %arg7[%c0_60, %c0_61] : memref<256x128xf32, #tpu.memory_space<vmem>>, vector<256x128xf32>
    tpu.vector_store %arg7[%c0_60, %c0_61], %56 {strides = array<i32>} : memref<256x128xf32, #tpu.memory_space<vmem>>, vector<256x128xf32>,
    %c1_i32_62 = arith.constant 1 : i32
    %58 = arith.addi %0, %c1_i32_62 : i32
    %c0_63 = arith.constant 0 : index
    %59 = arith.index_cast %58 : i32 to index
    %c2_64 = arith.constant 2 : index
    %c0_65 = arith.constant 0 : index
    %60 = vector.load %arg2[%c0_63, %59, %c2_64, %c0_65] : memref<1x18x18x128xbf16, #tpu.memory_space<vmem>>, vector<1x16x16x128xbf16>
    %61 = vector.shape_cast %60 : vector<1x16x16x128xbf16> to vector<16x16x128xbf16>
    %62 = vector.shape_cast %61 : vector<16x16x128xbf16> to vector<256x128xbf16>
    %c0_66 = arith.constant 0 : index
    %c0_67 = arith.constant 0 : index
    %63 = vector.load %arg7[%c0_66, %c0_67] : memref<256x128xf32, #tpu.memory_space<vmem>>, vector<256x128xf32>
    %c1_68 = arith.constant 1 : index
    %c2_69 = arith.constant 2 : index
    %c0_70 = arith.constant 0 : index
    %c0_71 = arith.constant 0 : index
    %64 = vector.load %arg3[%c1_68, %c2_69, %c0_70, %c0_71] : memref<3x3x128x128xbf16, #tpu.memory_space<vmem>>, vector<1x1x128x128xbf16>
    %65 = vector.shape_cast %64 : vector<1x1x128x128xbf16> to vector<128x128xbf16>
    %cst_72 = arith.constant dense<0.000000e+00> : vector<256x128xf32>
    %66 = tpu.matmul %62, %65, %cst_72 {dimension_numbers = #tpu.dot_dimension_numbers<[1], [0], [0], [1], [0, 0, 1, 1], [], []>} : vector<256x128xbf16>, vector<128x128xbf16>, vector<256x128xf32> -> vector<256x128xf32>
    %67 = arith.addf %63, %66 : vector<256x128xf32>
    %c0_73 = arith.constant 0 : index
    %c0_74 = arith.constant 0 : index
    %68 = vector.load %arg7[%c0_73, %c0_74] : memref<256x128xf32, #tpu.memory_space<vmem>>, vector<256x128xf32>
    tpu.vector_store %arg7[%c0_73, %c0_74], %67 {strides = array<i32>} : memref<256x128xf32, #tpu.memory_space<vmem>>, vector<256x128xf32>,
    %c2_i32 = arith.constant 2 : i32
    %69 = arith.addi %0, %c2_i32 : i32
    %c0_75 = arith.constant 0 : index
    %70 = arith.index_cast %69 : i32 to index
    %c0_76 = arith.constant 0 : index
    %c0_77 = arith.constant 0 : index
    %71 = vector.load %arg2[%c0_75, %70, %c0_76, %c0_77] : memref<1x18x18x128xbf16, #tpu.memory_space<vmem>>, vector<1x16x16x128xbf16>
    %72 = vector.shape_cast %71 : vector<1x16x16x128xbf16> to vector<16x16x128xbf16>
    %73 = vector.shape_cast %72 : vector<16x16x128xbf16> to vector<256x128xbf16>
    %c0_78 = arith.constant 0 : index
    %c0_79 = arith.constant 0 : index
    %74 = vector.load %arg7[%c0_78, %c0_79] : memref<256x128xf32, #tpu.memory_space<vmem>>, vector<256x128xf32>
    %c2_80 = arith.constant 2 : index
    %c0_81 = arith.constant 0 : index
    %c0_82 = arith.constant 0 : index
    %c0_83 = arith.constant 0 : index
    %75 = vector.load %arg3[%c2_80, %c0_81, %c0_82, %c0_83] : memref<3x3x128x128xbf16, #tpu.memory_space<vmem>>, vector<1x1x128x128xbf16>
    %76 = vector.shape_cast %75 : vector<1x1x128x128xbf16> to vector<128x128xbf16>
    %cst_84 = arith.constant dense<0.000000e+00> : vector<256x128xf32>
    %77 = tpu.matmul %73, %76, %cst_84 {dimension_numbers = #tpu.dot_dimension_numbers<[1], [0], [0], [1], [0, 0, 1, 1], [], []>} : vector<256x128xbf16>, vector<128x128xbf16>, vector<256x128xf32> -> vector<256x128xf32>
    %78 = arith.addf %74, %77 : vector<256x128xf32>
    %c0_85 = arith.constant 0 : index
    %c0_86 = arith.constant 0 : index
    %79 = vector.load %arg7[%c0_85, %c0_86] : memref<256x128xf32, #tpu.memory_space<vmem>>, vector<256x128xf32>
    tpu.vector_store %arg7[%c0_85, %c0_86], %78 {strides = array<i32>} : memref<256x128xf32, #tpu.memory_space<vmem>>, vector<256x128xf32>,
    %c2_i32_87 = arith.constant 2 : i32
    %80 = arith.addi %0, %c2_i32_87 : i32
    %c0_88 = arith.constant 0 : index
    %81 = arith.index_cast %80 : i32 to index
    %c1_89 = arith.constant 1 : index
    %c0_90 = arith.constant 0 : index
    %82 = vector.load %arg2[%c0_88, %81, %c1_89, %c0_90] : memref<1x18x18x128xbf16, #tpu.memory_space<vmem>>, vector<1x16x16x128xbf16>
    %83 = vector.shape_cast %82 : vector<1x16x16x128xbf16> to vector<16x16x128xbf16>
    %84 = vector.shape_cast %83 : vector<16x16x128xbf16> to vector<256x128xbf16>
    %c0_91 = arith.constant 0 : index
    %c0_92 = arith.constant 0 : index
    %85 = vector.load %arg7[%c0_91, %c0_92] : memref<256x128xf32, #tpu.memory_space<vmem>>, vector<256x128xf32>
    %c2_93 = arith.constant 2 : index
    %c1_94 = arith.constant 1 : index
    %c0_95 = arith.constant 0 : index
    %c0_96 = arith.constant 0 : index
    %86 = vector.load %arg3[%c2_93, %c1_94, %c0_95, %c0_96] : memref<3x3x128x128xbf16, #tpu.memory_space<vmem>>, vector<1x1x128x128xbf16>
    %87 = vector.shape_cast %86 : vector<1x1x128x128xbf16> to vector<128x128xbf16>
    %cst_97 = arith.constant dense<0.000000e+00> : vector<256x128xf32>
    %88 = tpu.matmul %84, %87, %cst_97 {dimension_numbers = #tpu.dot_dimension_numbers<[1], [0], [0], [1], [0, 0, 1, 1], [], []>} : vector<256x128xbf16>, vector<128x128xbf16>, vector<256x128xf32> -> vector<256x128xf32>
    %89 = arith.addf %85, %88 : vector<256x128xf32>
    %c0_98 = arith.constant 0 : index
    %c0_99 = arith.constant 0 : index
    %90 = vector.load %arg7[%c0_98, %c0_99] : memref<256x128xf32, #tpu.memory_space<vmem>>, vector<256x128xf32>
    tpu.vector_store %arg7[%c0_98, %c0_99], %89 {strides = array<i32>} : memref<256x128xf32, #tpu.memory_space<vmem>>, vector<256x128xf32>,
    %c2_i32_100 = arith.constant 2 : i32
    %91 = arith.addi %0, %c2_i32_100 : i32
    %c0_101 = arith.constant 0 : index
    %92 = arith.index_cast %91 : i32 to index
    %c2_102 = arith.constant 2 : index
    %c0_103 = arith.constant 0 : index
    %93 = vector.load %arg2[%c0_101, %92, %c2_102, %c0_103] : memref<1x18x18x128xbf16, #tpu.memory_space<vmem>>, vector<1x16x16x128xbf16>
    %94 = vector.shape_cast %93 : vector<1x16x16x128xbf16> to vector<16x16x128xbf16>
    %95 = vector.shape_cast %94 : vector<16x16x128xbf16> to vector<256x128xbf16>
    %c0_104 = arith.constant 0 : index
    %c0_105 = arith.constant 0 : index
    %96 = vector.load %arg7[%c0_104, %c0_105] : memref<256x128xf32, #tpu.memory_space<vmem>>, vector<256x128xf32>
    %c2_106 = arith.constant 2 : index
    %c2_107 = arith.constant 2 : index
    %c0_108 = arith.constant 0 : index
    %c0_109 = arith.constant 0 : index
    %97 = vector.load %arg3[%c2_106, %c2_107, %c0_108, %c0_109] : memref<3x3x128x128xbf16, #tpu.memory_space<vmem>>, vector<1x1x128x128xbf16>
    %98 = vector.shape_cast %97 : vector<1x1x128x128xbf16> to vector<128x128xbf16>
    %cst_110 = arith.constant dense<0.000000e+00> : vector<256x128xf32>
    %99 = tpu.matmul %95, %98, %cst_110 {dimension_numbers = #tpu.dot_dimension_numbers<[1], [0], [0], [1], [0, 0, 1, 1], [], []>} : vector<256x128xbf16>, vector<128x128xbf16>, vector<256x128xf32> -> vector<256x128xf32>
    %100 = arith.addf %96, %99 : vector<256x128xf32>
    %c0_111 = arith.constant 0 : index
    %c0_112 = arith.constant 0 : index
    %101 = vector.load %arg7[%c0_111, %c0_112] : memref<256x128xf32, #tpu.memory_space<vmem>>, vector<256x128xf32>
    tpu.vector_store %arg7[%c0_111, %c0_112], %100 {strides = array<i32>} : memref<256x128xf32, #tpu.memory_space<vmem>>, vector<256x128xf32>,
    %c0_113 = arith.constant 0 : index
    %c0_114 = arith.constant 0 : index
    %102 = vector.load %arg7[%c0_113, %c0_114] : memref<256x128xf32, #tpu.memory_space<vmem>>, vector<256x128xf32>
    %c0_115 = arith.constant 0 : index
    %c0_116 = arith.constant 0 : index
    %103 = vector.load %arg4[%c0_115, %c0_116] : memref<1x128xf32, #tpu.memory_space<vmem>>, vector<1x128xf32>
    %104 = vector.broadcast %103 : vector<1x128xf32> to vector<256x128xf32>
    %105 = arith.addf %102, %104 : vector<256x128xf32>
    %c0_117 = arith.constant 0 : index
    %c0_118 = arith.constant 0 : index
    %c0_119 = arith.constant 0 : index
    %106 = vector.load %arg5[%c0_117, %c0_118, %c0_119] : memref<1x256x128xf32, #tpu.memory_space<vmem>>, vector<1x256x128xf32>
    %107 = vector.shape_cast %106 : vector<1x256x128xf32> to vector<256x128xf32>
    %108 = arith.addf %105, %107 : vector<256x128xf32>
    %cst_120 = arith.constant 0.000000e+00 : f32
    %109 = vector.broadcast %cst_120 : f32 to vector<256x128xf32>
    %110 = arith.maximumf %108, %109 : vector<256x128xf32>
    %c0_121 = arith.constant 0 : index
    %c0_122 = arith.constant 0 : index
    %c0_123 = arith.constant 0 : index
    %111 = vector.load %arg6[%c0_121, %c0_122, %c0_123] : memref<1x256x128xf32, #tpu.memory_space<vmem>>, vector<1x256x128xf32>
    %112 = vector.shape_cast %111 : vector<1x256x128xf32> to vector<256x128xf32>
    %113 = vector.shape_cast %110 : vector<256x128xf32> to vector<1x256x128xf32>
    tpu.vector_store %arg6[%c0_121, %c0_122, %c0_123], %113 {strides = array<i32>} : memref<1x256x128xf32, #tpu.memory_space<vmem>>, vector<1x256x128xf32>,
    return
  }
  func.func @transform_0(%arg0: i32, %arg1: i32) -> (i32, i32, i32, i32) {
    %c0_i32 = arith.constant 0 : i32
    %c0_i32_0 = arith.constant 0 : i32
    %c0_i32_1 = arith.constant 0 : i32
    %c0_i32_2 = arith.constant 0 : i32
    return %arg0, %c0_i32, %c0_i32_0, %c0_i32_1 : i32, i32, i32, i32
  }
  func.func @transform_1(%arg0: i32, %arg1: i32) -> (i32, i32, i32, i32) {
    %c0_i32 = arith.constant 0 : i32
    %c0_i32_0 = arith.constant 0 : i32
    %c0_i32_1 = arith.constant 0 : i32
    %c0_i32_2 = arith.constant 0 : i32
    %c0_i32_3 = arith.constant 0 : i32
    return %c0_i32, %c0_i32_0, %c0_i32_1, %c0_i32_2 : i32, i32, i32, i32
  }
  func.func @transform_2(%arg0: i32, %arg1: i32) -> (i32, i32) {
    %c0_i32 = arith.constant 0 : i32
    %c0_i32_0 = arith.constant 0 : i32
    %c0_i32_1 = arith.constant 0 : i32
    return %c0_i32, %c0_i32_0 : i32, i32
  }
  func.func @transform_3(%arg0: i32, %arg1: i32) -> (i32, i32, i32) {
    %c0_i32 = arith.constant 0 : i32
    %c0_i32_0 = arith.constant 0 : i32
    return %arg0, %arg1, %c0_i32 : i32, i32, i32
  }
  func.func @transform_4(%arg0: i32, %arg1: i32) -> (i32, i32, i32) {
    %c0_i32 = arith.constant 0 : i32
    %c0_i32_0 = arith.constant 0 : i32
    return %arg0, %arg1, %c0_i32 : i32, i32, i32
  }
}

</mosaic_0001>

<llo_original>
// kernel: basic_block_forward.2
$region0: #{basic_block_forward.2}
  #allocation0 [shape = 'u32[]', space=smem, size = 0x4, offset = 0x4, fixed_abs, tag = 'smem constant byte address 0x4 - core index']
  #allocation1 [shape = 'u32[144,128]{1,0:T(1,128)}', space=vmem, size = 0x12000, scoped, tag = 'internal scratch']
  #allocation2 [shape = 'f32[256,128]{1,0:T(8,128)}', space=vmem, size = 0x20000, scoped, tag = 'scratch operand']
  %s0 = inlined_call_operand.vmem [shape: bf16[2,18,18,128], index: 0, kind: input, shape index: {}]
  %s1 = inlined_call_operand.vmem [shape: bf16[3,3,128,128], index: 1, kind: input, shape index: {}]
  %s2 = inlined_call_operand.vmem [shape: f32[1,128], index: 2, kind: input, shape index: {}]
  %s3 = inlined_call_operand.vmem [shape: bf16[2,256,128], index: 3, kind: output, shape index: {}]
  %s4 = sld [smem:[#allocation0]]
  $region45: #{basic_block_forward.2} parent=0
    _
  %s6 = ssub.s32 1, %s4
  %s7 = scalar_select 0, %s6, %s4
  loop: start=0, step=1, limit=4
  $region2: #{basic_block_forward.2} parent=0 // loop_pre_header
    _
  $region3: #{basic_block_forward.2} parent=0 // loop_header
    %s9 = sphi 0, %s13
    %p10 = scmp.ge.s32.totalorder %s9, 4
    %s16 = sphi 0, %s28
    %s17 = sphi 0, %s24
    %s18 = sphi 0, %s16
    %s19 = sphi 0, %s17
    %s20 = sphi 0, %s18
    %s21 = sphi 0, %s19
    %s31 = sphi 0, %s33
    %s34 = sphi 0, %s31
    %s35 = sphi 0, %s34
    %s51 = sphi 0, %s35
    %s55 = sphi 0, %s55
    %s57 = sphi 0, %s55
    %s58 = sphi 0, %s57
    %s72 = sphi 0, %s58
    %s76 = sphi 0, %s76
    %s78 = sphi 0, %s76
    %s79 = sphi 0, %s78
    %s93 = sphi 0, %s79
    %s101 = sphi 0, %s103
    %s104 = sphi 0, %s101
    %s105 = sphi 0, %s104
    %s121 = sphi 0, %s105
  $region4: #{basic_block_forward.2} parent=0 // loop_header_branch
    %12 = sbr.rel (%p10) target = $region8
  $region5: #{basic_block_forward.2} parent=0 // loop_body
    %s14 = ssub.s32 %s9, 1
    %s15 = ssub.s32 %s9, 2
    %s22 = sadd.s32 1, %s17
    %p23 = scmp.ge.s32.totalorder %s22, 1
    %s24 = scalar_select %p23, 0, %s22
    %s25 = sadd.s32 1, %s16
    %s26 = scalar_select %p23, %s25, %s16
    %p27 = scmp.ge.s32.totalorder %s26, 2
    %s28 = scalar_select %p27, 0, %s26
    %s29 = ssub.s32 %s16, %s28
    %p30 = scmp.eq.s32.totalorder %s29, 0
    %s32 = sadd.s32 %s31, 1
    %s33 = scalar_select %p30, %s31, %s32
    %p36 = pneg %p30
    %p37 = scmp.eq.s32.totalorder %s9, 1
    %p38 = por %p36, %p37
    %p39 = scmp.ne.s32.totalorder %s31, %s34
    %p40 = scmp.eq.s32.totalorder %s9, 0
    %p41 = por %p39, %p40
    %p42 = scmp.ne.s32.totalorder %s31, %s34
    %p43 = scmp.eq.s32.totalorder %s14, 1
    %p44 = por %p42, %p43
    %p45 = scmp.ne.s32.totalorder %s34, %s35
    %p46 = scmp.eq.s32.totalorder %s14, 0
    %p47 = por %p45, %p46
    %p48 = scmp.ne.s32.totalorder %s34, %s35
    %p49 = scmp.eq.s32.totalorder %s15, 1
    %p50 = por %p48, %p49
    %p52 = scmp.ne.s32.totalorder %s35, %s51
    %p53 = scmp.eq.s32.totalorder %s15, 0
    %p54 = por %p52, %p53
    %s56 = sadd.s32 %s55, 1
    %p59 = scmp.eq.s32.totalorder %s9, 1
    %p60 = scmp.ne.s32.totalorder %s55, %s57
    %p61 = scmp.eq.s32.totalorder %s9, 0
    %p62 = por %p60, %p61
    %p63 = scmp.ne.s32.totalorder %s55, %s57
    %p64 = scmp.eq.s32.totalorder %s14, 1
    %p65 = por %p63, %p64
    %p66 = scmp.ne.s32.totalorder %s57, %s58
    %p67 = scmp.eq.s32.totalorder %s14, 0
    %p68 = por %p66, %p67
    %p69 = scmp.ne.s32.totalorder %s57, %s58
    %p70 = scmp.eq.s32.totalorder %s15, 1
    %p71 = por %p69, %p70
    %p73 = scmp.ne.s32.totalorder %s58, %s72
    %p74 = scmp.eq.s32.totalorder %s15, 0
    %p75 = por %p73, %p74
    %s77 = sadd.s32 %s76, 1
    %p80 = scmp.eq.s32.totalorder %s9, 1
    %p81 = scmp.ne.s32.totalorder %s76, %s78
    %p82 = scmp.eq.s32.totalorder %s9, 0
    %p83 = por %p81, %p82
    %p84 = scmp.ne.s32.totalorder %s76, %s78
    %p85 = scmp.eq.s32.totalorder %s14, 1
    %p86 = por %p84, %p85
    %p87 = scmp.ne.s32.totalorder %s78, %s79
    %p88 = scmp.eq.s32.totalorder %s14, 0
    %p89 = por %p87, %p88
    %p90 = scmp.ne.s32.totalorder %s78, %s79
    %p91 = scmp.eq.s32.totalorder %s15, 1
    %p92 = por %p90, %p91
    %p94 = scmp.ne.s32.totalorder %s79, %s93
    %p95 = scmp.eq.s32.totalorder %s15, 0
    %p96 = por %p94, %p95
    %s97 = ssub.s32 %s16, %s28
    %s98 = ssub.s32 %s17, %s24
    %s99 = sor.u32 %s97, %s98
    %p100 = scmp.eq.s32.totalorder %s99, 0
    %s102 = sadd.s32 %s101, 1
    %s103 = scalar_select %p100, %s101, %s102
    %p106 = pneg %p100
    %p107 = scmp.eq.s32.totalorder %s9, 1
    %p108 = por %p106, %p107
    %p109 = scmp.ne.s32.totalorder %s101, %s104
    %p110 = scmp.eq.s32.totalorder %s9, 0
    %p111 = por %p109, %p110
    %p112 = scmp.ne.s32.totalorder %s101, %s104
    %p113 = scmp.eq.s32.totalorder %s14, 1
    %p114 = por %p112, %p113
    %p115 = scmp.ne.s32.totalorder %s104, %s105
    %p116 = scmp.eq.s32.totalorder %s14, 0
    %p117 = por %p115, %p116
    %p118 = scmp.ne.s32.totalorder %s104, %s105
    %p119 = scmp.eq.s32.totalorder %s15, 1
    %p120 = por %p118, %p119
    %p122 = scmp.ne.s32.totalorder %s105, %s121
    %p123 = scmp.eq.s32.totalorder %s15, 0
    %p124 = por %p122, %p123
    %p125 = scmp.le.s32.totalorder 1, %s9
    %p126 = scmp.lt.s32.totalorder %s9, 3
    %p127 = pnand %p125, %p126
    %p128 = pneg %p127
    // Predicated region
    $region9: #{basic_block_forward.2} parent=5 // pred_check
      _
    $region10: #{basic_block_forward.2} parent=5 // pred_check_branch
      %130 = sbr.rel (%p127) target = $region12
    $region11: #{basic_block_forward.2} parent=5 // pred_region
      %s131 = ssub.s32 %s9, 1
      // Predicated region
      $region13: #{basic_block_forward.2} parent=11 // pred_check
        %p132 = pneg %p68
      $region14: #{basic_block_forward.2} parent=11 // pred_check_branch
        %134 = sbr.rel (%p132) target = $region16
      $region15: #{basic_block_forward.2} parent=11 // pred_region
        _
      $region16: #{basic_block_forward.2} parent=11 // pred_fallthru
        _
      // Predicated region
      $region17: #{basic_block_forward.2} parent=11 // pred_check
        %p135 = pneg %p89
      $region18: #{basic_block_forward.2} parent=11 // pred_check_branch
        %137 = sbr.rel (%p135) target = $region20
      $region19: #{basic_block_forward.2} parent=11 // pred_region
        _
      $region20: #{basic_block_forward.2} parent=11 // pred_fallthru
        _
    $region12: #{basic_block_forward.2} parent=5 // pred_fallthru
      _
    %p138 = scmp.lt.s32.totalorder %s9, 2
    // Predicated region
    $region21: #{basic_block_forward.2} parent=5 // pred_check
      %p139 = pneg %p138
    $region22: #{basic_block_forward.2} parent=5 // pred_check_branch
      %141 = sbr.rel (%p139) target = $region24
    $region23: #{basic_block_forward.2} parent=5 // pred_region
      // Predicated region
      $region25: #{basic_block_forward.2} parent=23 // pred_check
        %p142 = pneg %p41
      $region26: #{basic_block_forward.2} parent=23 // pred_check_branch
        %144 = sbr.rel (%p142) target = $region28
      $region27: #{basic_block_forward.2} parent=23 // pred_region
        %p145 = scmp.lt.s32.totalorder %s16, 1
        %s146 = scalar_select %p145, %s16, 1
        %s147 = smul.addr %s146, 54
        %s148 = smul.addr %s147, 4
        %s149 = scalar_lea.vmem %s0, %s148
      $region28: #{basic_block_forward.2} parent=23 // pred_fallthru
        _
    $region24: #{basic_block_forward.2} parent=5 // pred_fallthru
      _
    %p150 = scmp.le.s32.totalorder 1, %s9
    %p151 = scmp.lt.s32.totalorder %s9, 3
    %p152 = pnand %p150, %p151
    %p153 = pneg %p152
    // Predicated region
    $region29: #{basic_block_forward.2} parent=5 // pred_check
      _
    $region30: #{basic_block_forward.2} parent=5 // pred_check_branch
      %155 = sbr.rel (%p152) target = $region32
    $region31: #{basic_block_forward.2} parent=5 // pred_region
      %s156 = ssub.s32 %s9, 1
      %p157 = scmp.lt.s32.totalorder %s18, 1
      %s158 = scalar_select %p157, %s18, 1
      %s159 = smul.addr %s158, 54
      %s160 = smul.addr %s159, 4
      %s161 = scalar_lea.vmem %s0, %s160
      %p162 = pneg %p47
      %p163 = pneg %p44
      %p164 = pneg %p68
      %p165 = pneg %p65
      %p166 = pneg %p89
      %p167 = pneg %p86
      %p168 = pneg %p117
      %p169 = pneg %p114
      %s170 = smul.u32 32, %s19
      %p171 = scmp.lt.s32.totalorder %s18, 1
      %s172 = scalar_select %p171, %s18, 1
      %p173 = scmp.lt.s32.totalorder %s170, 31
      %s174 = scalar_select %p173, %s170, 31
      %s175 = smul.addr %s172, 32
      %s176 = sadd.s32 %s174, %s175
      %s177 = smul.addr %s176, 4
      %s178 = scalar_lea.vmem %s3, %s177
      %p179 = scmp.lt.s32.totalorder %s18, 1
      %s180 = scalar_select %p179, %s18, 1
      %s181 = smul.addr %s180, 54
      %s182 = smul.addr %s181, 4
      %s183 = scalar_lea.vmem %s0, %s182
      %s184 = smul.u32 32, %s19
      %p185 = scmp.lt.s32.totalorder %s18, 1
      %s186 = scalar_select %p185, %s18, 1
      %p187 = scmp.lt.s32.totalorder %s184, 31
      %s188 = scalar_select %p187, %s184, 31
      %s189 = smul.addr %s186, 32
      %s190 = sadd.s32 %s188, %s189
      %s191 = smul.addr %s190, 4
      %s192 = scalar_lea.vmem %s3, %s191
      %s193 = smul.u32 32, %s19
      %s195 = smul.u32 %s19, 16
      %196 = vst [vmem:[#allocation2] sm:$0xff] 0.0
      %197 = vst [vmem:[#allocation2 + $0x8] sm:$0xff] 0.0
      %198 = vst [vmem:[#allocation2 + $0x10] sm:$0xff] 0.0
      %199 = vst [vmem:[#allocation2 + $0x18] sm:$0xff] 0.0
      %200 = vst [vmem:[#allocation2 + $0x20] sm:$0xff] 0.0
      %201 = vst [vmem:[#allocation2 + $0x28] sm:$0xff] 0.0
      %202 = vst [vmem:[#allocation2 + $0x30] sm:$0xff] 0.0
      %203 = vst [vmem:[#allocation2 + $0x38] sm:$0xff] 0.0
      %204 = vst [vmem:[#allocation2 + $0x40] sm:$0xff] 0.0
      %205 = vst [vmem:[#allocation2 + $0x48] sm:$0xff] 0.0
      %206 = vst [vmem:[#allocation2 + $0x50] sm:$0xff] 0.0
      %207 = vst [vmem:[#allocation2 + $0x58] sm:$0xff] 0.0
      %208 = vst [vmem:[#allocation2 + $0x60] sm:$0xff] 0.0
      %209 = vst [vmem:[#allocation2 + $0x68] sm:$0xff] 0.0
      %210 = vst [vmem:[#allocation2 + $0x70] sm:$0xff] 0.0
      %211 = vst [vmem:[#allocation2 + $0x78] sm:$0xff] 0.0
      %212 = vst [vmem:[#allocation2 + $0x80] sm:$0xff] 0.0
      %213 = vst [vmem:[#allocation2 + $0x88] sm:$0xff] 0.0
      %214 = vst [vmem:[#allocation2 + $0x90] sm:$0xff] 0.0
      %215 = vst [vmem:[#allocation2 + $0x98] sm:$0xff] 0.0
      %216 = vst [vmem:[#allocation2 + $0xa0] sm:$0xff] 0.0
      %217 = vst [vmem:[#allocation2 + $0xa8] sm:$0xff] 0.0
      %218 = vst [vmem:[#allocation2 + $0xb0] sm:$0xff] 0.0
      %219 = vst [vmem:[#allocation2 + $0xb8] sm:$0xff] 0.0
      %220 = vst [vmem:[#allocation2 + $0xc0] sm:$0xff] 0.0
      %221 = vst [vmem:[#allocation2 + $0xc8] sm:$0xff] 0.0
      %222 = vst [vmem:[#allocation2 + $0xd0] sm:$0xff] 0.0
      %223 = vst [vmem:[#allocation2 + $0xd8] sm:$0xff] 0.0
      %224 = vst [vmem:[#allocation2 + $0xe0] sm:$0xff] 0.0
      %225 = vst [vmem:[#allocation2 + $0xe8] sm:$0xff] 0.0
      %226 = vst [vmem:[#allocation2 + $0xf0] sm:$0xff] 0.0
      %227 = vst [vmem:[#allocation2 + $0xf8] sm:$0xff] 0.0
      %s228 = smul.u32 %s195, 3
      %s229 = smul.addr %s228, 4
      %s230 = scalar_lea.vmem %s183, %s229
      %v231 = vld [vmem:[%s230] sm:$0xf]
      %v232 = vld [vmem:[%s230 + $0x4] sm:$0xf]
      %v233 = vld [vmem:[%s230 + $0xc] sm:$0xf]
      %v234 = vld [vmem:[%s230 + $0x10] sm:$0xf]
      %v235 = vld [vmem:[%s230 + $0x18] sm:$0xf]
      %v236 = vld [vmem:[%s230 + $0x1c] sm:$0xf]
      %v237 = vld [vmem:[%s230 + $0x24] sm:$0xf]
      %v238 = vld [vmem:[%s230 + $0x28] sm:$0xf]
      %v239 = vld [vmem:[%s230 + $0x30] sm:$0xf]
      %v240 = vld [vmem:[%s230 + $0x34] sm:$0xf]
      %v241 = vld [vmem:[%s230 + $0x3c] sm:$0xf]
      %v242 = vld [vmem:[%s230 + $0x40] sm:$0xf]
      %v243 = vld [vmem:[%s230 + $0x48] sm:$0xf]
      %v244 = vld [vmem:[%s230 + $0x4c] sm:$0xf]
      %v245 = vld [vmem:[%s230 + $0x54] sm:$0xf]
      %v246 = vld [vmem:[%s230 + $0x58] sm:$0xf]
      %v247 = vld [vmem:[%s230 + $0x60] sm:$0xf]
      %v248 = vld [vmem:[%s230 + $0x64] sm:$0xf]
      %v249 = vld [vmem:[%s230 + $0x6c] sm:$0xf]
      %v250 = vld [vmem:[%s230 + $0x70] sm:$0xf]
      %v251 = vld [vmem:[%s230 + $0x78] sm:$0xf]
      %v252 = vld [vmem:[%s230 + $0x7c] sm:$0xf]
      %v253 = vld [vmem:[%s230 + $0x84] sm:$0xf]
      %v254 = vld [vmem:[%s230 + $0x88] sm:$0xf]
      %v255 = vld [vmem:[%s230 + $0x90] sm:$0xf]
      %v256 = vld [vmem:[%s230 + $0x94] sm:$0xf]
      %v257 = vld [vmem:[%s230 + $0x9c] sm:$0xf]
      %v258 = vld [vmem:[%s230 + $0xa0] sm:$0xf]
      %v259 = vld [vmem:[%s230 + $0xa8] sm:$0xf]
      %v260 = vld [vmem:[%s230 + $0xac] sm:$0xf]
      %v261 = vld [vmem:[%s230 + $0xb4] sm:$0xf]
      %v262 = vld [vmem:[%s230 + $0xb8] sm:$0xf]
      %v263 = vld [vmem:[#allocation2] sm:$0xff]
      %v264 = vld [vmem:[#allocation2 + $0x8] sm:$0xff]
      %v265 = vld [vmem:[#allocation2 + $0x10] sm:$0xff]
      %v266 = vld [vmem:[#allocation2 + $0x18] sm:$0xff]
      %v267 = vld [vmem:[#allocation2 + $0x20] sm:$0xff]
      %v268 = vld [vmem:[#allocation2 + $0x28] sm:$0xff]
      %v269 = vld [vmem:[#allocation2 + $0x30] sm:$0xff]
      %v270 = vld [vmem:[#allocation2 + $0x38] sm:$0xff]
      %v271 = vld [vmem:[#allocation2 + $0x40] sm:$0xff]
      %v272 = vld [vmem:[#allocation2 + $0x48] sm:$0xff]
      %v273 = vld [vmem:[#allocation2 + $0x50] sm:$0xff]
      %v274 = vld [vmem:[#allocation2 + $0x58] sm:$0xff]
      %v275 = vld [vmem:[#allocation2 + $0x60] sm:$0xff]
      %v276 = vld [vmem:[#allocation2 + $0x68] sm:$0xff]
      %v277 = vld [vmem:[#allocation2 + $0x70] sm:$0xff]
      %v278 = vld [vmem:[#allocation2 + $0x78] sm:$0xff]
      %v279 = vld [vmem:[#allocation2 + $0x80] sm:$0xff]
      %v280 = vld [vmem:[#allocation2 + $0x88] sm:$0xff]
      %v281 = vld [vmem:[#allocation2 + $0x90] sm:$0xff]
      %v282 = vld [vmem:[#allocation2 + $0x98] sm:$0xff]
      %v283 = vld [vmem:[#allocation2 + $0xa0] sm:$0xff]
      %v284 = vld [vmem:[#allocation2 + $0xa8] sm:$0xff]
      %v285 = vld [vmem:[#allocation2 + $0xb0] sm:$0xff]
      %v286 = vld [vmem:[#allocation2 + $0xb8] sm:$0xff]
      %v287 = vld [vmem:[#allocation2 + $0xc0] sm:$0xff]
      %v288 = vld [vmem:[#allocation2 + $0xc8] sm:$0xff]
      %v289 = vld [vmem:[#allocation2 + $0xd0] sm:$0xff]
      %v290 = vld [vmem:[#allocation2 + $0xd8] sm:$0xff]
      %v291 = vld [vmem:[#allocation2 + $0xe0] sm:$0xff]
      %v292 = vld [vmem:[#allocation2 + $0xe8] sm:$0xff]
      %v293 = vld [vmem:[#allocation2 + $0xf0] sm:$0xff]
      %v294 = vld [vmem:[#allocation2 + $0xf8] sm:$0xff]
      %v295 = vld [vmem:[%s1] sm:$0xf]
      %v296 = vld [vmem:[%s1 + $0x4] sm:$0xf]
      %v297 = vld [vmem:[%s1 + $0x8] sm:$0xf]
      %v298 = vld [vmem:[%s1 + $0xc] sm:$0xf]
      %v299 = vld [vmem:[%s1 + $0x10] sm:$0xf]
      %v300 = vld [vmem:[%s1 + $0x14] sm:$0xf]
      %v301 = vld [vmem:[%s1 + $0x18] sm:$0xf]
      %v302 = vld [vmem:[%s1 + $0x1c] sm:$0xf]
      %v303 = vld [vmem:[%s1 + $0x20] sm:$0xf]
      %v304 = vld [vmem:[%s1 + $0x24] sm:$0xf]
      %v305 = vld [vmem:[%s1 + $0x28] sm:$0xf]
      %v306 = vld [vmem:[%s1 + $0x2c] sm:$0xf]
      %v307 = vld [vmem:[%s1 + $0x30] sm:$0xf]
      %v308 = vld [vmem:[%s1 + $0x34] sm:$0xf]
      %v309 = vld [vmem:[%s1 + $0x38] sm:$0xf]
      %v310 = vld [vmem:[%s1 + $0x3c] sm:$0xf]
      %v343 = vunpack.c.l.b16 %v231
      %v344 = vunpack.c.l.b16 %v232
      %v345 = vunpack.c.l.b16 %v233
      %v346 = vunpack.c.l.b16 %v234
      %v347 = vunpack.c.l.b16 %v235
      %v348 = vunpack.c.l.b16 %v236
      %v349 = vunpack.c.l.b16 %v237
      %v350 = vunpack.c.l.b16 %v238
      %v351 = vunpack.c.l.b16 %v239
      %v352 = vunpack.c.l.b16 %v240
      %v353 = vunpack.c.l.b16 %v241
      %v354 = vunpack.c.l.b16 %v242
      %v355 = vunpack.c.l.b16 %v243
      %v356 = vunpack.c.l.b16 %v244
      %v357 = vunpack.c.l.b16 %v245
      %v358 = vunpack.c.l.b16 %v246
      %v359 = vunpack.c.l.b16 %v247
      %v360 = vunpack.c.l.b16 %v248
      %v361 = vunpack.c.l.b16 %v249
      %v362 = vunpack.c.l.b16 %v250
      %v363 = vunpack.c.l.b16 %v251
      %v364 = vunpack.c.l.b16 %v252
      %v365 = vunpack.c.l.b16 %v253
      %v366 = vunpack.c.l.b16 %v254
      %v367 = vunpack.c.l.b16 %v255
      %v368 = vunpack.c.l.b16 %v256
      %v369 = vunpack.c.l.b16 %v257
      %v370 = vunpack.c.l.b16 %v258
      %v371 = vunpack.c.l.b16 %v259
      %v372 = vunpack.c.l.b16 %v260
      %v373 = vunpack.c.l.b16 %v261
      %v374 = vunpack.c.l.b16 %v262
      %v375 = vpack.c.b16 %v344, %v343
      %v376 = vpack.c.b16 %v346, %v345
      %v377 = vpack.c.b16 %v348, %v347
      %v378 = vpack.c.b16 %v350, %v349
      %v379 = vpack.c.b16 %v352, %v351
      %v380 = vpack.c.b16 %v354, %v353
      %v381 = vpack.c.b16 %v356, %v355
      %v382 = vpack.c.b16 %v358, %v357
      %v383 = vpack.c.b16 %v360, %v359
      %v384 = vpack.c.b16 %v362, %v361
      %v385 = vpack.c.b16 %v364, %v363
      %v386 = vpack.c.b16 %v366, %v365
      %v387 = vpack.c.b16 %v368, %v367
      %v388 = vpack.c.b16 %v370, %v369
      %v389 = vpack.c.b16 %v372, %v371
      %v390 = vpack.c.b16 %v374, %v373
      %v423 = vunpack.c.l.b16 %v295
      %v424 = vunpack.c.l.b16 %v296
      %v425 = vunpack.c.l.b16 %v297
      %v426 = vunpack.c.l.b16 %v298
      %v427 = vunpack.c.l.b16 %v299
      %v428 = vunpack.c.l.b16 %v300
      %v429 = vunpack.c.l.b16 %v301
      %v430 = vunpack.c.l.b16 %v302
      %v431 = vunpack.c.l.b16 %v303
      %v432 = vunpack.c.l.b16 %v304
      %v433 = vunpack.c.l.b16 %v305
      %v434 = vunpack.c.l.b16 %v306
      %v435 = vunpack.c.l.b16 %v307
      %v436 = vunpack.c.l.b16 %v308
      %v437 = vunpack.c.l.b16 %v309
      %v438 = vunpack.c.l.b16 %v310
      %v439 = vpack.c.b16 %v424, %v423
      %v440 = vpack.c.b16 %v426, %v425
      %v441 = vpack.c.b16 %v428, %v427
      %v442 = vpack.c.b16 %v430, %v429
      %v443 = vpack.c.b16 %v432, %v431
      %v444 = vpack.c.b16 %v434, %v433
      %v445 = vpack.c.b16 %v436, %v435
      %v446 = vpack.c.b16 %v438, %v437
      %455 = vmatprep.subr.bf16.mxu0 0
      %456 = vmatpush1.bf16.msra.mxu0 %v446
      %457 = vmatprep.subr.bf16.mxu0 0
      %458 = vmatpush1.bf16.msra.mxu0 %v445
      %459 = vmatprep.subr.bf16.mxu0 0
      %460 = vmatpush1.bf16.msra.mxu0 %v444
      %461 = vmatprep.subr.bf16.mxu0 0
      %462 = vmatpush1.bf16.msra.mxu0 %v443
      %463 = vmatprep.subr.bf16.mxu0 0
      %464 = vmatpush1.bf16.msra.mxu0 %v442
      %465 = vmatprep.subr.bf16.mxu0 0
      %466 = vmatpush1.bf16.msra.mxu0 %v441
      %467 = vmatprep.subr.bf16.mxu0 0
      %468 = vmatpush1.bf16.msra.mxu0 %v440
      %469 = vmatprep.subr.bf16.mxu0 0
      %470 = vmatpush1.bf16.msra.mxu0 %v439
      %471 = vmatprep.subr.bf16.mxu0 0
      %472 = vmatpush2.bf16.msra.mxu0 0
      %473 = vmatprep.subr.bf16.mxu0 0
      %474 = vmatpush2.bf16.msra.mxu0 0
      %475 = vmatprep.subr.bf16.mxu0 0
      %476 = vmatpush2.bf16.msra.mxu0 0
      %477 = vmatprep.subr.bf16.mxu0 0
      %478 = vmatpush2.bf16.msra.mxu0 0
      %479 = vmatprep.subr.bf16.mxu0 0
      %480 = vmatpush2.bf16.msra.mxu0 0
      %481 = vmatprep.subr.bf16.mxu0 0
      %482 = vmatpush2.bf16.msra.mxu0 0
      %483 = vmatprep.subr.bf16.mxu0 0
      %484 = vmatpush2.bf16.msra.mxu0 0
      %485 = vmatprep.subr.bf16.mxu0 0
      %486 = vmatpush2.bf16.msra.mxu0 0
      %487 = vmatprep.mubr.bf16.mxu0 0
      %488 = vmatmul.mubr.bf16.gmra.mxu0 %v375
      %v489 = vpop.f32.mrf.mxu0
      %v490 = vadd.f32 0.0, %v489
      %v491 = vpop.f32.mrf.mxu0
      %v492 = vpop.f32.mrf.mxu0
      %v493 = vadd.f32 0.0, %v492
      %v494 = vpop.f32.mrf.mxu0
      %495 = vmatprep.mubr.bf16.mxu0 0
      %496 = vmatmul.mubr.bf16.gmra.mxu0 %v376
      %v497 = vpop.f32.mrf.mxu0
      %v498 = vadd.f32 0.0, %v497
      %v499 = vpop.f32.mrf.mxu0
      %v500 = vpop.f32.mrf.mxu0
      %v501 = vadd.f32 0.0, %v500
      %v502 = vpop.f32.mrf.mxu0
      %503 = vmatprep.mubr.bf16.mxu0 0
      %504 = vmatmul.mubr.bf16.gmra.mxu0 %v377
      %v505 = vpop.f32.mrf.mxu0
      %v506 = vadd.f32 0.0, %v505
      %v507 = vpop.f32.mrf.mxu0
      %v508 = vpop.f32.mrf.mxu0
      %v509 = vadd.f32 0.0, %v508
      %v510 = vpop.f32.mrf.mxu0
      %511 = vmatprep.mubr.bf16.mxu0 0
      %512 = vmatmul.mubr.bf16.gmra.mxu0 %v378
      %v513 = vpop.f32.mrf.mxu0
      %v514 = vadd.f32 0.0, %v513
      %v515 = vpop.f32.mrf.mxu0
      %v516 = vpop.f32.mrf.mxu0
      %v517 = vadd.f32 0.0, %v516
      %v518 = vpop.f32.mrf.mxu0
      %519 = vmatprep.mubr.bf16.mxu0 0
      %520 = vmatmul.mubr.bf16.gmra.mxu0 %v379
      %v521 = vpop.f32.mrf.mxu0
      %v522 = vadd.f32 0.0, %v521
      %v523 = vpop.f32.mrf.mxu0
      %v524 = vpop.f32.mrf.mxu0
      %v525 = vadd.f32 0.0, %v524
      %v526 = vpop.f32.mrf.mxu0
      %527 = vmatprep.mubr.bf16.mxu0 0
      %528 = vmatmul.mubr.bf16.gmra.mxu0 %v380
      %v529 = vpop.f32.mrf.mxu0
      %v530 = vadd.f32 0.0, %v529
      %v531 = vpop.f32.mrf.mxu0
      %v532 = vpop.f32.mrf.mxu0
      %v533 = vadd.f32 0.0, %v532
      %v534 = vpop.f32.mrf.mxu0
      %535 = vmatprep.mubr.bf16.mxu0 0
      %536 = vmatmul.mubr.bf16.gmra.mxu0 %v381
      %v537 = vpop.f32.mrf.mxu0
      %v538 = vadd.f32 0.0, %v537
      %v539 = vpop.f32.mrf.mxu0
      %v540 = vpop.f32.mrf.mxu0
      %v541 = vadd.f32 0.0, %v540
      %v542 = vpop.f32.mrf.mxu0
      %543 = vmatprep.mubr.bf16.mxu0 0
      %544 = vmatmul.mubr.bf16.gmra.mxu0 %v382
      %v545 = vpop.f32.mrf.mxu0
      %v546 = vadd.f32 0.0, %v545
      %v547 = vpop.f32.mrf.mxu0
      %v548 = vpop.f32.mrf.mxu0
      %v549 = vadd.f32 0.0, %v548
      %v550 = vpop.f32.mrf.mxu0
      %551 = vmatprep.mubr.bf16.mxu0 0
      %552 = vmatmul.mubr.bf16.gmra.mxu0 %v383
      %v553 = vpop.f32.mrf.mxu0
      %v554 = vadd.f32 0.0, %v553
      %v555 = vpop.f32.mrf.mxu0
      %v556 = vpop.f32.mrf.mxu0
      %v557 = vadd.f32 0.0, %v556
      %v558 = vpop.f32.mrf.mxu0
      %559 = vmatprep.mubr.bf16.mxu0 0
      %560 = vmatmul.mubr.bf16.gmra.mxu0 %v384
      %v561 = vpop.f32.mrf.mxu0
      %v562 = vadd.f32 0.0, %v561
      %v563 = vpop.f32.mrf.mxu0
      %v564 = vpop.f32.mrf.mxu0
      %v565 = vadd.f32 0.0, %v564
      %v566 = vpop.f32.mrf.mxu0
      %567 = vmatprep.mubr.bf16.mxu0 0
      %568 = vmatmul.mubr.bf16.gmra.mxu0 %v385
      %v569 = vpop.f32.mrf.mxu0
      %v570 = vadd.f32 0.0, %v569
      %v571 = vpop.f32.mrf.mxu0
      %v572 = vpop.f32.mrf.mxu0
      %v573 = vadd.f32 0.0, %v572
      %v574 = vpop.f32.mrf.mxu0
      %575 = vmatprep.mubr.bf16.mxu0 0
      %576 = vmatmul.mubr.bf16.gmra.mxu0 %v386
      %v577 = vpop.f32.mrf.mxu0
      %v578 = vadd.f32 0.0, %v577
      %v579 = vpop.f32.mrf.mxu0
      %v580 = vpop.f32.mrf.mxu0
      %v581 = vadd.f32 0.0, %v580
      %v582 = vpop.f32.mrf.mxu0
      %583 = vmatprep.mubr.bf16.mxu0 0
      %584 = vmatmul.mubr.bf16.gmra.mxu0 %v387
      %v585 = vpop.f32.mrf.mxu0
      %v586 = vadd.f32 0.0, %v585
      %v587 = vpop.f32.mrf.mxu0
      %v588 = vpop.f32.mrf.mxu0
      %v589 = vadd.f32 0.0, %v588
      %v590 = vpop.f32.mrf.mxu0
      %591 = vmatprep.mubr.bf16.mxu0 0
      %592 = vmatmul.mubr.bf16.gmra.mxu0 %v388
      %v593 = vpop.f32.mrf.mxu0
      %v594 = vadd.f32 0.0, %v593
      %v595 = vpop.f32.mrf.mxu0
      %v596 = vpop.f32.mrf.mxu0
      %v597 = vadd.f32 0.0, %v596
      %v598 = vpop.f32.mrf.mxu0
      %599 = vmatprep.mubr.bf16.mxu0 0
      %600 = vmatmul.mubr.bf16.gmra.mxu0 %v389
      %v601 = vpop.f32.mrf.mxu0
      %v602 = vadd.f32 0.0, %v601
      %v603 = vpop.f32.mrf.mxu0
      %v604 = vpop.f32.mrf.mxu0
      %v605 = vadd.f32 0.0, %v604
      %v606 = vpop.f32.mrf.mxu0
      %607 = vmatprep.mubr.bf16.mxu0 0
      %608 = vmatmul.mubr.bf16.gmra.mxu0 %v390
      %v609 = vpop.f32.mrf.mxu0
      %v610 = vadd.f32 0.0, %v609
      %v611 = vpop.f32.mrf.mxu0
      %v612 = vpop.f32.mrf.mxu0
      %v613 = vadd.f32 0.0, %v612
      %v614 = vpop.f32.mrf.mxu0
      %615 = vdwg.mxu0
      %v616 = vadd.f32 %v263, %v490
      %v617 = vadd.f32 %v264, %v493
      %v618 = vadd.f32 %v265, %v498
      %v619 = vadd.f32 %v266, %v501
      %v620 = vadd.f32 %v267, %v506
      %v621 = vadd.f32 %v268, %v509
      %v622 = vadd.f32 %v269, %v514
      %v623 = vadd.f32 %v270, %v517
      %v624 = vadd.f32 %v271, %v522
      %v625 = vadd.f32 %v272, %v525
      %v626 = vadd.f32 %v273, %v530
      %v627 = vadd.f32 %v274, %v533
      %v628 = vadd.f32 %v275, %v538
      %v629 = vadd.f32 %v276, %v541
      %v630 = vadd.f32 %v277, %v546
      %v631 = vadd.f32 %v278, %v549
      %v632 = vadd.f32 %v279, %v554
      %v633 = vadd.f32 %v280, %v557
      %v634 = vadd.f32 %v281, %v562
      %v635 = vadd.f32 %v282, %v565
      %v636 = vadd.f32 %v283, %v570
      %v637 = vadd.f32 %v284, %v573
      %v638 = vadd.f32 %v285, %v578
      %v639 = vadd.f32 %v286, %v581
      %v640 = vadd.f32 %v287, %v586
      %v641 = vadd.f32 %v288, %v589
      %v642 = vadd.f32 %v289, %v594
      %v643 = vadd.f32 %v290, %v597
      %v644 = vadd.f32 %v291, %v602
      %v645 = vadd.f32 %v292, %v605
      %v646 = vadd.f32 %v293, %v610
      %v647 = vadd.f32 %v294, %v613
      %648 = vst [vmem:[#allocation2] sm:$0xff] %v616
      %649 = vst [vmem:[#allocation2 + $0x8] sm:$0xff] %v617
      %650 = vst [vmem:[#allocation2 + $0x10] sm:$0xff] %v618
      %651 = vst [vmem:[#allocation2 + $0x18] sm:$0xff] %v619
      %652 = vst [vmem:[#allocation2 + $0x20] sm:$0xff] %v620
      %653 = vst [vmem:[#allocation2 + $0x28] sm:$0xff] %v621
      %654 = vst [vmem:[#allocation2 + $0x30] sm:$0xff] %v622
      %655 = vst [vmem:[#allocation2 + $0x38] sm:$0xff] %v623
      %656 = vst [vmem:[#allocation2 + $0x40] sm:$0xff] %v624
      %657 = vst [vmem:[#allocation2 + $0x48] sm:$0xff] %v625
      %658 = vst [vmem:[#allocation2 + $0x50] sm:$0xff] %v626
      %659 = vst [vmem:[#allocation2 + $0x58] sm:$0xff] %v627
      %660 = vst [vmem:[#allocation2 + $0x60] sm:$0xff] %v628
      %661 = vst [vmem:[#allocation2 + $0x68] sm:$0xff] %v629
      %662 = vst [vmem:[#allocation2 + $0x70] sm:$0xff] %v630
      %663 = vst [vmem:[#allocation2 + $0x78] sm:$0xff] %v631
      %664 = vst [vmem:[#allocation2 + $0x80] sm:$0xff] %v632
      %665 = vst [vmem:[#allocation2 + $0x88] sm:$0xff] %v633
      %666 = vst [vmem:[#allocation2 + $0x90] sm:$0xff] %v634
      %667 = vst [vmem:[#allocation2 + $0x98] sm:$0xff] %v635
      %668 = vst [vmem:[#allocation2 + $0xa0] sm:$0xff] %v636
      %669 = vst [vmem:[#allocation2 + $0xa8] sm:$0xff] %v637
      %670 = vst [vmem:[#allocation2 + $0xb0] sm:$0xff] %v638
      %671 = vst [vmem:[#allocation2 + $0xb8] sm:$0xff] %v639
      %672 = vst [vmem:[#allocation2 + $0xc0] sm:$0xff] %v640
      %673 = vst [vmem:[#allocation2 + $0xc8] sm:$0xff] %v641
      %674 = vst [vmem:[#allocation2 + $0xd0] sm:$0xff] %v642
      %675 = vst [vmem:[#allocation2 + $0xd8] sm:$0xff] %v643
      %676 = vst [vmem:[#allocation2 + $0xe0] sm:$0xff] %v644
      %677 = vst [vmem:[#allocation2 + $0xe8] sm:$0xff] %v645
      %678 = vst [vmem:[#allocation2 + $0xf0] sm:$0xff] %v646
      %679 = vst [vmem:[#allocation2 + $0xf8] sm:$0xff] %v647
      %v680 = vld [vmem:[%s230] sm:$0xf]
      %v681 = vld [vmem:[%s230 + $0x4] sm:$0xf]
      %v682 = vld [vmem:[%s230 + $0x8] sm:$0x1]
      %v683 = vld [vmem:[%s230 + $0xc] sm:$0xf]
      %v684 = vld [vmem:[%s230 + $0x10] sm:$0xf]
      %v685 = vld [vmem:[%s230 + $0x14] sm:$0x1]
      %v686 = vld [vmem:[%s230 + $0x18] sm:$0xf]
      %v687 = vld [vmem:[%s230 + $0x1c] sm:$0xf]
      %v688 = vld [vmem:[%s230 + $0x20] sm:$0x1]
      %v689 = vld [vmem:[%s230 + $0x24] sm:$0xf]
      %v690 = vld [vmem:[%s230 + $0x28] sm:$0xf]
      %v691 = vld [vmem:[%s230 + $0x2c] sm:$0x1]
      %v692 = vld [vmem:[%s230 + $0x30] sm:$0xf]
      %v693 = vld [vmem:[%s230 + $0x34] sm:$0xf]
      %v694 = vld [vmem:[%s230 + $0x38] sm:$0x1]
      %v695 = vld [vmem:[%s230 + $0x3c] sm:$0xf]
      %v696 = vld [vmem:[%s230 + $0x40] sm:$0xf]
      %v697 = vld [vmem:[%s230 + $0x44] sm:$0x1]
      %v698 = vld [vmem:[%s230 + $0x48] sm:$0xf]
      %v699 = vld [vmem:[%s230 + $0x4c] sm:$0xf]
      %v700 = vld [vmem:[%s230 + $0x50] sm:$0x1]
      %v701 = vld [vmem:[%s230 + $0x54] sm:$0xf]
      %v702 = vld [vmem:[%s230 + $0x58] sm:$0xf]
      %v703 = vld [vmem:[%s230 + $0x5c] sm:$0x1]
      %v704 = vld [vmem:[%s230 + $0x60] sm:$0xf]
      %v705 = vld [vmem:[%s230 + $0x64] sm:$0xf]
      %v706 = vld [vmem:[%s230 + $0x68] sm:$0x1]
      %v707 = vld [vmem:[%s230 + $0x6c] sm:$0xf]
      %v708 = vld [vmem:[%s230 + $0x70] sm:$0xf]
      %v709 = vld [vmem:[%s230 + $0x74] sm:$0x1]
      %v710 = vld [vmem:[%s230 + $0x78] sm:$0xf]
      %v711 = vld [vmem:[%s230 + $0x7c] sm:$0xf]
      %v712 = vld [vmem:[%s230 + $0x80] sm:$0x1]
      %v713 = vld [vmem:[%s230 + $0x84] sm:$0xf]
      %v714 = vld [vmem:[%s230 + $0x88] sm:$0xf]
      %v715 = vld [vmem:[%s230 + $0x8c] sm:$0x1]
      %v716 = vld [vmem:[%s230 + $0x90] sm:$0xf]
      %v717 = vld [vmem:[%s230 + $0x94] sm:$0xf]
      %v718 = vld [vmem:[%s230 + $0x98] sm:$0x1]
      %v719 = vld [vmem:[%s230 + $0x9c] sm:$0xf]
      %v720 = vld [vmem:[%s230 + $0xa0] sm:$0xf]
      %v721 = vld [vmem:[%s230 + $0xa4] sm:$0x1]
      %v722 = vld [vmem:[%s230 + $0xa8] sm:$0xf]
      %v723 = vld [vmem:[%s230 + $0xac] sm:$0xf]
      %v724 = vld [vmem:[%s230 + $0xb0] sm:$0x1]
      %v725 = vld [vmem:[%s230 + $0xb4] sm:$0xf]
      %v726 = vld [vmem:[%s230 + $0xb8] sm:$0xf]
      %v727 = vld [vmem:[%s230 + $0xbc] sm:$0x1]
      %vm728 = vsmask.f32 3328
      %vm729 = vsmask.f32 7440
      %vm730 = vmor %vm728, %vm729
      %v732 = vshrl.u32 %v680, 16
      %v734 = vrot.slane %v732, 4
      %v735 = vshll.u32 %v680, 16
      %v737 = vrot.slane %v735, 5
      %v738 = vor.u32 %v734, %v737
      %v739 = vrot.slane %v738, 4
      %v741 = vshll.u32 %v681, 16
      %v743 = vrot.slane %v741, 5
      %v744 = vsel %vm730, %v739, %v743
      %v745 = vshrl.u32 %v681, 16
      %v747 = vrot.slane %v745, 4
      %v748 = vor.u32 %v747, %v743
      %v749 = vrot.slane %v748, 4
      %v751 = vshll.u32 %v682, 16
      %v753 = vrot.slane %v751, 5
      %v754 = vsel %vm730, %v749, %v753
      %v756 = vshrl.u32 %v683, 16
      %v758 = vrot.slane %v756, 4
      %v759 = vshll.u32 %v683, 16
      %v761 = vrot.slane %v759, 5
      %v762 = vor.u32 %v758, %v761
      %v763 = vrot.slane %v762, 4
      %v765 = vshll.u32 %v684, 16
      %v767 = vrot.slane %v765, 5
      %v768 = vsel %vm730, %v763, %v767
      %v769 = vshrl.u32 %v684, 16
      %v771 = vrot.slane %v769, 4
      %v772 = vor.u32 %v771, %v767
      %v773 = vrot.slane %v772, 4
      %v775 = vshll.u32 %v685, 16
      %v777 = vrot.slane %v775, 5
      %v778 = vsel %vm730, %v773, %v777
      %v780 = vshrl.u32 %v686, 16
      %v782 = vrot.slane %v780, 4
      %v783 = vshll.u32 %v686, 16
      %v785 = vrot.slane %v783, 5
      %v786 = vor.u32 %v782, %v785
      %v787 = vrot.slane %v786, 4
      %v789 = vshll.u32 %v687, 16
      %v791 = vrot.slane %v789, 5
      %v792 = vsel %vm730, %v787, %v791
      %v793 = vshrl.u32 %v687, 16
      %v795 = vrot.slane %v793, 4
      %v796 = vor.u32 %v795, %v791
      %v797 = vrot.slane %v796, 4
      %v799 = vshll.u32 %v688, 16
      %v801 = vrot.slane %v799, 5
      %v802 = vsel %vm730, %v797, %v801
      %v804 = vshrl.u32 %v689, 16
      %v806 = vrot.slane %v804, 4
      %v807 = vshll.u32 %v689, 16
      %v809 = vrot.slane %v807, 5
      %v810 = vor.u32 %v806, %v809
      %v811 = vrot.slane %v810, 4
      %v813 = vshll.u32 %v690, 16
      %v815 = vrot.slane %v813, 5
      %v816 = vsel %vm730, %v811, %v815
      %v817 = vshrl.u32 %v690, 16
      %v819 = vrot.slane %v817, 4
      %v820 = vor.u32 %v819, %v815
      %v821 = vrot.slane %v820, 4
      %v823 = vshll.u32 %v691, 16
      %v825 = vrot.slane %v823, 5
      %v826 = vsel %vm730, %v821, %v825
      %v828 = vshrl.u32 %v692, 16
      %v830 = vrot.slane %v828, 4
      %v831 = vshll.u32 %v692, 16
      %v833 = vrot.slane %v831, 5
      %v834 = vor.u32 %v830, %v833
      %v835 = vrot.slane %v834, 4
      %v837 = vshll.u32 %v693, 16
      %v839 = vrot.slane %v837, 5
      %v840 = vsel %vm730, %v835, %v839
      %v841 = vshrl.u32 %v693, 16
      %v843 = vrot.slane %v841, 4
      %v844 = vor.u32 %v843, %v839
      %v845 = vrot.slane %v844, 4
      %v847 = vshll.u32 %v694, 16
      %v849 = vrot.slane %v847, 5
      %v850 = vsel %vm730, %v845, %v849
      %v852 = vshrl.u32 %v695, 16
      %v854 = vrot.slane %v852, 4
      %v855 = vshll.u32 %v695, 16
      %v857 = vrot.slane %v855, 5
      %v858 = vor.u32 %v854, %v857
      %v859 = vrot.slane %v858, 4
      %v861 = vshll.u32 %v696, 16
      %v863 = vrot.slane %v861, 5
      %v864 = vsel %vm730, %v859, %v863
      %v865 = vshrl.u32 %v696, 16
      %v867 = vrot.slane %v865, 4
      %v868 = vor.u32 %v867, %v863
      %v869 = vrot.slane %v868, 4
      %v871 = vshll.u32 %v697, 16
      %v873 = vrot.slane %v871, 5
      %v874 = vsel %vm730, %v869, %v873
      %v876 = vshrl.u32 %v698, 16
      %v878 = vrot.slane %v876, 4
      %v879 = vshll.u32 %v698, 16
      %v881 = vrot.slane %v879, 5
      %v882 = vor.u32 %v878, %v881
      %v883 = vrot.slane %v882, 4
      %v885 = vshll.u32 %v699, 16
      %v887 = vrot.slane %v885, 5
      %v888 = vsel %vm730, %v883, %v887
      %v889 = vshrl.u32 %v699, 16
      %v891 = vrot.slane %v889, 4
      %v892 = vor.u32 %v891, %v887
      %v893 = vrot.slane %v892, 4
      %v895 = vshll.u32 %v700, 16
      %v897 = vrot.slane %v895, 5
      %v898 = vsel %vm730, %v893, %v897
      %v900 = vshrl.u32 %v701, 16
      %v902 = vrot.slane %v900, 4
      %v903 = vshll.u32 %v701, 16
      %v905 = vrot.slane %v903, 5
      %v906 = vor.u32 %v902, %v905
      %v907 = vrot.slane %v906, 4
      %v909 = vshll.u32 %v702, 16
      %v911 = vrot.slane %v909, 5
      %v912 = vsel %vm730, %v907, %v911
      %v913 = vshrl.u32 %v702, 16
      %v915 = vrot.slane %v913, 4
      %v916 = vor.u32 %v915, %v911
      %v917 = vrot.slane %v916, 4
      %v919 = vshll.u32 %v703, 16
      %v921 = vrot.slane %v919, 5
      %v922 = vsel %vm730, %v917, %v921
      %v924 = vshrl.u32 %v704, 16
      %v926 = vrot.slane %v924, 4
      %v927 = vshll.u32 %v704, 16
      %v929 = vrot.slane %v927, 5
      %v930 = vor.u32 %v926, %v929
      %v931 = vrot.slane %v930, 4
      %v933 = vshll.u32 %v705, 16
      %v935 = vrot.slane %v933, 5
      %v936 = vsel %vm730, %v931, %v935
      %v937 = vshrl.u32 %v705, 16
      %v939 = vrot.slane %v937, 4
      %v940 = vor.u32 %v939, %v935
      %v941 = vrot.slane %v940, 4
      %v943 = vshll.u32 %v706, 16
      %v945 = vrot.slane %v943, 5
      %v946 = vsel %vm730, %v941, %v945
      %v948 = vshrl.u32 %v707, 16
      %v950 = vrot.slane %v948, 4
      %v951 = vshll.u32 %v707, 16
      %v953 = vrot.slane %v951, 5
      %v954 = vor.u32 %v950, %v953
      %v955 = vrot.slane %v954, 4
      %v957 = vshll.u32 %v708, 16
      %v959 = vrot.slane %v957, 5
      %v960 = vsel %vm730, %v955, %v959
      %v961 = vshrl.u32 %v708, 16
      %v963 = vrot.slane %v961, 4
      %v964 = vor.u32 %v963, %v959
      %v965 = vrot.slane %v964, 4
      %v967 = vshll.u32 %v709, 16
      %v969 = vrot.slane %v967, 5
      %v970 = vsel %vm730, %v965, %v969
      %v972 = vshrl.u32 %v710, 16
      %v974 = vrot.slane %v972, 4
      %v975 = vshll.u32 %v710, 16
      %v977 = vrot.slane %v975, 5
      %v978 = vor.u32 %v974, %v977
      %v979 = vrot.slane %v978, 4
      %v981 = vshll.u32 %v711, 16
      %v983 = vrot.slane %v981, 5
      %v984 = vsel %vm730, %v979, %v983
      %v985 = vshrl.u32 %v711, 16
      %v987 = vrot.slane %v985, 4
      %v988 = vor.u32 %v987, %v983
      %v989 = vrot.slane %v988, 4
      %v991 = vshll.u32 %v712, 16
      %v993 = vrot.slane %v991, 5
      %v994 = vsel %vm730, %v989, %v993
      %v996 = vshrl.u32 %v713, 16
      %v998 = vrot.slane %v996, 4
      %v999 = vshll.u32 %v713, 16
      %v1001 = vrot.slane %v999, 5
      %v1002 = vor.u32 %v998, %v1001
      %v1003 = vrot.slane %v1002, 4
      %v1005 = vshll.u32 %v714, 16
      %v1007 = vrot.slane %v1005, 5
      %v1008 = vsel %vm730, %v1003, %v1007
      %v1009 = vshrl.u32 %v714, 16
      %v1011 = vrot.slane %v1009, 4
      %v1012 = vor.u32 %v1011, %v1007
      %v1013 = vrot.slane %v1012, 4
      %v1015 = vshll.u32 %v715, 16
      %v1017 = vrot.slane %v1015, 5
      %v1018 = vsel %vm730, %v1013, %v1017
      %v1020 = vshrl.u32 %v716, 16
      %v1022 = vrot.slane %v1020, 4
      %v1023 = vshll.u32 %v716, 16
      %v1025 = vrot.slane %v1023, 5
      %v1026 = vor.u32 %v1022, %v1025
      %v1027 = vrot.slane %v1026, 4
      %v1029 = vshll.u32 %v717, 16
      %v1031 = vrot.slane %v1029, 5
      %v1032 = vsel %vm730, %v1027, %v1031
      %v1033 = vshrl.u32 %v717, 16
      %v1035 = vrot.slane %v1033, 4
      %v1036 = vor.u32 %v1035, %v1031
      %v1037 = vrot.slane %v1036, 4
      %v1039 = vshll.u32 %v718, 16
      %v1041 = vrot.slane %v1039, 5
      %v1042 = vsel %vm730, %v1037, %v1041
      %v1044 = vshrl.u32 %v719, 16
      %v1046 = vrot.slane %v1044, 4
      %v1047 = vshll.u32 %v719, 16
      %v1049 = vrot.slane %v1047, 5
      %v1050 = vor.u32 %v1046, %v1049
      %v1051 = vrot.slane %v1050, 4
      %v1053 = vshll.u32 %v720, 16
      %v1055 = vrot.slane %v1053, 5
      %v1056 = vsel %vm730, %v1051, %v1055
      %v1057 = vshrl.u32 %v720, 16
      %v1059 = vrot.slane %v1057, 4
      %v1060 = vor.u32 %v1059, %v1055
      %v1061 = vrot.slane %v1060, 4
      %v1063 = vshll.u32 %v721, 16
      %v1065 = vrot.slane %v1063, 5
      %v1066 = vsel %vm730, %v1061, %v1065
      %v1068 = vshrl.u32 %v722, 16
      %v1070 = vrot.slane %v1068, 4
      %v1071 = vshll.u32 %v722, 16
      %v1073 = vrot.slane %v1071, 5
      %v1074 = vor.u32 %v1070, %v1073
      %v1075 = vrot.slane %v1074, 4
      %v1077 = vshll.u32 %v723, 16
      %v1079 = vrot.slane %v1077, 5
      %v1080 = vsel %vm730, %v1075, %v1079
      %v1081 = vshrl.u32 %v723, 16
      %v1083 = vrot.slane %v1081, 4
      %v1084 = vor.u32 %v1083, %v1079
      %v1085 = vrot.slane %v1084, 4
      %v1087 = vshll.u32 %v724, 16
      %v1089 = vrot.slane %v1087, 5
      %v1090 = vsel %vm730, %v1085, %v1089
      %v1092 = vshrl.u32 %v725, 16
      %v1094 = vrot.slane %v1092, 4
      %v1095 = vshll.u32 %v725, 16
      %v1097 = vrot.slane %v1095, 5
      %v1098 = vor.u32 %v1094, %v1097
      %v1099 = vrot.slane %v1098, 4
      %v1101 = vshll.u32 %v726, 16
      %v1103 = vrot.slane %v1101, 5
      %v1104 = vsel %vm730, %v1099, %v1103
      %v1105 = vshrl.u32 %v726, 16
      %v1107 = vrot.slane %v1105, 4
      %v1108 = vor.u32 %v1107, %v1103
      %v1109 = vrot.slane %v1108, 4
      %v1111 = vshll.u32 %v727, 16
      %v1113 = vrot.slane %v1111, 5
      %v1114 = vsel %vm730, %v1109, %v1113
      %v1115 = vld [vmem:[#allocation2] sm:$0xff]
      %v1116 = vld [vmem:[#allocation2 + $0x8] sm:$0xff]
      %v1117 = vld [vmem:[#allocation2 + $0x10] sm:$0xff]
      %v1118 = vld [vmem:[#allocation2 + $0x18] sm:$0xff]
      %v1119 = vld [vmem:[#allocation2 + $0x20] sm:$0xff]
      %v1120 = vld [vmem:[#allocation2 + $0x28] sm:$0xff]
      %v1121 = vld [vmem:[#allocation2 + $0x30] sm:$0xff]
      %v1122 = vld [vmem:[#allocation2 + $0x38] sm:$0xff]
      %v1123 = vld [vmem:[#allocation2 + $0x40] sm:$0xff]
      %v1124 = vld [vmem:[#allocation2 + $0x48] sm:$0xff]
      %v1125 = vld [vmem:[#allocation2 + $0x50] sm:$0xff]
      %v1126 = vld [vmem:[#allocation2 + $0x58] sm:$0xff]
      %v1127 = vld [vmem:[#allocation2 + $0x60] sm:$0xff]
      %v1128 = vld [vmem:[#allocation2 + $0x68] sm:$0xff]
      %v1129 = vld [vmem:[#allocation2 + $0x70] sm:$0xff]
      %v1130 = vld [vmem:[#allocation2 + $0x78] sm:$0xff]
      %v1131 = vld [vmem:[#allocation2 + $0x80] sm:$0xff]
      %v1132 = vld [vmem:[#allocation2 + $0x88] sm:$0xff]
      %v1133 = vld [vmem:[#allocation2 + $0x90] sm:$0xff]
      %v1134 = vld [vmem:[#allocation2 + $0x98] sm:$0xff]
      %v1135 = vld [vmem:[#allocation2 + $0xa0] sm:$0xff]
      %v1136 = vld [vmem:[#allocation2 + $0xa8] sm:$0xff]
      %v1137 = vld [vmem:[#allocation2 + $0xb0] sm:$0xff]
      %v1138 = vld [vmem:[#allocation2 + $0xb8] sm:$0xff]
      %v1139 = vld [vmem:[#allocation2 + $0xc0] sm:$0xff]
      %v1140 = vld [vmem:[#allocation2 + $0xc8] sm:$0xff]
      %v1141 = vld [vmem:[#allocation2 + $0xd0] sm:$0xff]
      %v1142 = vld [vmem:[#allocation2 + $0xd8] sm:$0xff]
      %v1143 = vld [vmem:[#allocation2 + $0xe0] sm:$0xff]
      %v1144 = vld [vmem:[#allocation2 + $0xe8] sm:$0xff]
      %v1145 = vld [vmem:[#allocation2 + $0xf0] sm:$0xff]
      %v1146 = vld [vmem:[#allocation2 + $0xf8] sm:$0xff]
      %s1147 = scalar_lea.vmem %s1, 64
      %v1148 = vld [vmem:[%s1147] sm:$0xf]
      %v1149 = vld [vmem:[%s1147 + $0x4] sm:$0xf]
      %v1150 = vld [vmem:[%s1147 + $0x8] sm:$0xf]
      %v1151 = vld [vmem:[%s1147 + $0xc] sm:$0xf]
      %v1152 = vld [vmem:[%s1147 + $0x10] sm:$0xf]
      %v1153 = vld [vmem:[%s1147 + $0x14] sm:$0xf]
      %v1154 = vld [vmem:[%s1147 + $0x18] sm:$0xf]
      %v1155 = vld [vmem:[%s1147 + $0x1c] sm:$0xf]
      %v1156 = vld [vmem:[%s1147 + $0x20] sm:$0xf]
      %v1157 = vld [vmem:[%s1147 + $0x24] sm:$0xf]
      %v1158 = vld [vmem:[%s1147 + $0x28] sm:$0xf]
      %v1159 = vld [vmem:[%s1147 + $0x2c] sm:$0xf]
      %v1160 = vld [vmem:[%s1147 + $0x30] sm:$0xf]
      %v1161 = vld [vmem:[%s1147 + $0x34] sm:$0xf]
      %v1162 = vld [vmem:[%s1147 + $0x38] sm:$0xf]
      %v1163 = vld [vmem:[%s1147 + $0x3c] sm:$0xf]
      %v1164 = vunpack.c.l.b16 %v744
      %v1165 = vunpack.c.l.b16 %v754
      %v1166 = vunpack.c.l.b16 %v768
      %v1167 = vunpack.c.l.b16 %v778
      %v1168 = vunpack.c.l.b16 %v792
      %v1169 = vunpack.c.l.b16 %v802
      %v1170 = vunpack.c.l.b16 %v816
      %v1171 = vunpack.c.l.b16 %v826
      %v1172 = vunpack.c.l.b16 %v840
      %v1173 = vunpack.c.l.b16 %v850
      %v1174 = vunpack.c.l.b16 %v864
      %v1175 = vunpack.c.l.b16 %v874
      %v1176 = vunpack.c.l.b16 %v888
      %v1177 = vunpack.c.l.b16 %v898
      %v1178 = vunpack.c.l.b16 %v912
      %v1179 = vunpack.c.l.b16 %v922
      %v1180 = vunpack.c.l.b16 %v936
      %v1181 = vunpack.c.l.b16 %v946
      %v1182 = vunpack.c.l.b16 %v960
      %v1183 = vunpack.c.l.b16 %v970
      %v1184 = vunpack.c.l.b16 %v984
      %v1185 = vunpack.c.l.b16 %v994
      %v1186 = vunpack.c.l.b16 %v1008
      %v1187 = vunpack.c.l.b16 %v1018
      %v1188 = vunpack.c.l.b16 %v1032
      %v1189 = vunpack.c.l.b16 %v1042
      %v1190 = vunpack.c.l.b16 %v1056
      %v1191 = vunpack.c.l.b16 %v1066
      %v1192 = vunpack.c.l.b16 %v1080
      %v1193 = vunpack.c.l.b16 %v1090
      %v1194 = vunpack.c.l.b16 %v1104
      %v1195 = vunpack.c.l.b16 %v1114
      %v1196 = vpack.c.b16 %v1165, %v1164
      %v1197 = vpack.c.b16 %v1167, %v1166
      %v1198 = vpack.c.b16 %v1169, %v1168
      %v1199 = vpack.c.b16 %v1171, %v1170
      %v1200 = vpack.c.b16 %v1173, %v1172
      %v1201 = vpack.c.b16 %v1175, %v1174
      %v1202 = vpack.c.b16 %v1177, %v1176
      %v1203 = vpack.c.b16 %v1179, %v1178
      %v1204 = vpack.c.b16 %v1181, %v1180
      %v1205 = vpack.c.b16 %v1183, %v1182
      %v1206 = vpack.c.b16 %v1185, %v1184
      %v1207 = vpack.c.b16 %v1187, %v1186
      %v1208 = vpack.c.b16 %v1189, %v1188
      %v1209 = vpack.c.b16 %v1191, %v1190
      %v1210 = vpack.c.b16 %v1193, %v1192
      %v1211 = vpack.c.b16 %v1195, %v1194
      %v1244 = vunpack.c.l.b16 %v1148
      %v1245 = vunpack.c.l.b16 %v1149
      %v1246 = vunpack.c.l.b16 %v1150
      %v1247 = vunpack.c.l.b16 %v1151
      %v1248 = vunpack.c.l.b16 %v1152
      %v1249 = vunpack.c.l.b16 %v1153
      %v1250 = vunpack.c.l.b16 %v1154
      %v1251 = vunpack.c.l.b16 %v1155
      %v1252 = vunpack.c.l.b16 %v1156
      %v1253 = vunpack.c.l.b16 %v1157
      %v1254 = vunpack.c.l.b16 %v1158
      %v1255 = vunpack.c.l.b16 %v1159
      %v1256 = vunpack.c.l.b16 %v1160
      %v1257 = vunpack.c.l.b16 %v1161
      %v1258 = vunpack.c.l.b16 %v1162
      %v1259 = vunpack.c.l.b16 %v1163
      %v1260 = vpack.c.b16 %v1245, %v1244
      %v1261 = vpack.c.b16 %v1247, %v1246
      %v1262 = vpack.c.b16 %v1249, %v1248
      %v1263 = vpack.c.b16 %v1251, %v1250
      %v1264 = vpack.c.b16 %v1253, %v1252
      %v1265 = vpack.c.b16 %v1255, %v1254
      %v1266 = vpack.c.b16 %v1257, %v1256
      %v1267 = vpack.c.b16 %v1259, %v1258
      %1276 = vmatprep.subr.bf16.mxu0 0
      %1277 = vmatpush1.bf16.msra.mxu0 %v1267
      %1278 = vmatprep.subr.bf16.mxu0 0
      %1279 = vmatpush1.bf16.msra.mxu0 %v1266
      %1280 = vmatprep.subr.bf16.mxu0 0
      %1281 = vmatpush1.bf16.msra.mxu0 %v1265
      %1282 = vmatprep.subr.bf16.mxu0 0
      %1283 = vmatpush1.bf16.msra.mxu0 %v1264
      %1284 = vmatprep.subr.bf16.mxu0 0
      %1285 = vmatpush1.bf16.msra.mxu0 %v1263
      %1286 = vmatprep.subr.bf16.mxu0 0
      %1287 = vmatpush1.bf16.msra.mxu0 %v1262
      %1288 = vmatprep.subr.bf16.mxu0 0
      %1289 = vmatpush1.bf16.msra.mxu0 %v1261
      %1290 = vmatprep.subr.bf16.mxu0 0
      %1291 = vmatpush1.bf16.msra.mxu0 %v1260
      %1292 = vmatprep.subr.bf16.mxu0 0
      %1293 = vmatpush2.bf16.msra.mxu0 0
      %1294 = vmatprep.subr.bf16.mxu0 0
      %1295 = vmatpush2.bf16.msra.mxu0 0
      %1296 = vmatprep.subr.bf16.mxu0 0
      %1297 = vmatpush2.bf16.msra.mxu0 0
      %1298 = vmatprep.subr.bf16.mxu0 0
      %1299 = vmatpush2.bf16.msra.mxu0 0
      %1300 = vmatprep.subr.bf16.mxu0 0
      %1301 = vmatpush2.bf16.msra.mxu0 0
      %1302 = vmatprep.subr.bf16.mxu0 0
      %1303 = vmatpush2.bf16.msra.mxu0 0
      %1304 = vmatprep.subr.bf16.mxu0 0
      %1305 = vmatpush2.bf16.msra.mxu0 0
      %1306 = vmatprep.subr.bf16.mxu0 0
      %1307 = vmatpush2.bf16.msra.mxu0 0
      %1308 = vmatprep.mubr.bf16.mxu0 0
      %1309 = vmatmul.mubr.bf16.gmra.mxu0 %v1196
      %v1310 = vpop.f32.mrf.mxu0
      %v1311 = vadd.f32 0.0, %v1310
      %v1312 = vpop.f32.mrf.mxu0
      %v1313 = vpop.f32.mrf.mxu0
      %v1314 = vadd.f32 0.0, %v1313
      %v1315 = vpop.f32.mrf.mxu0
      %1316 = vmatprep.mubr.bf16.mxu0 0
      %1317 = vmatmul.mubr.bf16.gmra.mxu0 %v1197
      %v1318 = vpop.f32.mrf.mxu0
      %v1319 = vadd.f32 0.0, %v1318
      %v1320 = vpop.f32.mrf.mxu0
      %v1321 = vpop.f32.mrf.mxu0
      %v1322 = vadd.f32 0.0, %v1321
      %v1323 = vpop.f32.mrf.mxu0
      %1324 = vmatprep.mubr.bf16.mxu0 0
      %1325 = vmatmul.mubr.bf16.gmra.mxu0 %v1198
      %v1326 = vpop.f32.mrf.mxu0
      %v1327 = vadd.f32 0.0, %v1326
      %v1328 = vpop.f32.mrf.mxu0
      %v1329 = vpop.f32.mrf.mxu0
      %v1330 = vadd.f32 0.0, %v1329
      %v1331 = vpop.f32.mrf.mxu0
      %1332 = vmatprep.mubr.bf16.mxu0 0
      %1333 = vmatmul.mubr.bf16.gmra.mxu0 %v1199
      %v1334 = vpop.f32.mrf.mxu0
      %v1335 = vadd.f32 0.0, %v1334
      %v1336 = vpop.f32.mrf.mxu0
      %v1337 = vpop.f32.mrf.mxu0
      %v1338 = vadd.f32 0.0, %v1337
      %v1339 = vpop.f32.mrf.mxu0
      %1340 = vmatprep.mubr.bf16.mxu0 0
      %1341 = vmatmul.mubr.bf16.gmra.mxu0 %v1200
      %v1342 = vpop.f32.mrf.mxu0
      %v1343 = vadd.f32 0.0, %v1342
      %v1344 = vpop.f32.mrf.mxu0
      %v1345 = vpop.f32.mrf.mxu0
      %v1346 = vadd.f32 0.0, %v1345
      %v1347 = vpop.f32.mrf.mxu0
      %1348 = vmatprep.mubr.bf16.mxu0 0
      %1349 = vmatmul.mubr.bf16.gmra.mxu0 %v1201
      %v1350 = vpop.f32.mrf.mxu0
      %v1351 = vadd.f32 0.0, %v1350
      %v1352 = vpop.f32.mrf.mxu0
      %v1353 = vpop.f32.mrf.mxu0
      %v1354 = vadd.f32 0.0, %v1353
      %v1355 = vpop.f32.mrf.mxu0
      %1356 = vmatprep.mubr.bf16.mxu0 0
      %1357 = vmatmul.mubr.bf16.gmra.mxu0 %v1202
      %v1358 = vpop.f32.mrf.mxu0
      %v1359 = vadd.f32 0.0, %v1358
      %v1360 = vpop.f32.mrf.mxu0
      %v1361 = vpop.f32.mrf.mxu0
      %v1362 = vadd.f32 0.0, %v1361
      %v1363 = vpop.f32.mrf.mxu0
      %1364 = vmatprep.mubr.bf16.mxu0 0
      %1365 = vmatmul.mubr.bf16.gmra.mxu0 %v1203
      %v1366 = vpop.f32.mrf.mxu0
      %v1367 = vadd.f32 0.0, %v1366
      %v1368 = vpop.f32.mrf.mxu0
      %v1369 = vpop.f32.mrf.mxu0
      %v1370 = vadd.f32 0.0, %v1369
      %v1371 = vpop.f32.mrf.mxu0
      %1372 = vmatprep.mubr.bf16.mxu0 0
      %1373 = vmatmul.mubr.bf16.gmra.mxu0 %v1204
      %v1374 = vpop.f32.mrf.mxu0
      %v1375 = vadd.f32 0.0, %v1374
      %v1376 = vpop.f32.mrf.mxu0
      %v1377 = vpop.f32.mrf.mxu0
      %v1378 = vadd.f32 0.0, %v1377
      %v1379 = vpop.f32.mrf.mxu0
      %1380 = vmatprep.mubr.bf16.mxu0 0
      %1381 = vmatmul.mubr.bf16.gmra.mxu0 %v1205
      %v1382 = vpop.f32.mrf.mxu0
      %v1383 = vadd.f32 0.0, %v1382
      %v1384 = vpop.f32.mrf.mxu0
      %v1385 = vpop.f32.mrf.mxu0
      %v1386 = vadd.f32 0.0, %v1385
      %v1387 = vpop.f32.mrf.mxu0
      %1388 = vmatprep.mubr.bf16.mxu0 0
      %1389 = vmatmul.mubr.bf16.gmra.mxu0 %v1206
      %v1390 = vpop.f32.mrf.mxu0
      %v1391 = vadd.f32 0.0, %v1390
      %v1392 = vpop.f32.mrf.mxu0
      %v1393 = vpop.f32.mrf.mxu0
      %v1394 = vadd.f32 0.0, %v1393
      %v1395 = vpop.f32.mrf.mxu0
      %1396 = vmatprep.mubr.bf16.mxu0 0
      %1397 = vmatmul.mubr.bf16.gmra.mxu0 %v1207
      %v1398 = vpop.f32.mrf.mxu0
      %v1399 = vadd.f32 0.0, %v1398
      %v1400 = vpop.f32.mrf.mxu0
      %v1401 = vpop.f32.mrf.mxu0
      %v1402 = vadd.f32 0.0, %v1401
      %v1403 = vpop.f32.mrf.mxu0
      %1404 = vmatprep.mubr.bf16.mxu0 0
      %1405 = vmatmul.mubr.bf16.gmra.mxu0 %v1208
      %v1406 = vpop.f32.mrf.mxu0
      %v1407 = vadd.f32 0.0, %v1406
      %v1408 = vpop.f32.mrf.mxu0
      %v1409 = vpop.f32.mrf.mxu0
      %v1410 = vadd.f32 0.0, %v1409
      %v1411 = vpop.f32.mrf.mxu0
      %1412 = vmatprep.mubr.bf16.mxu0 0
      %1413 = vmatmul.mubr.bf16.gmra.mxu0 %v1209
      %v1414 = vpop.f32.mrf.mxu0
      %v1415 = vadd.f32 0.0, %v1414
      %v1416 = vpop.f32.mrf.mxu0
      %v1417 = vpop.f32.mrf.mxu0
      %v1418 = vadd.f32 0.0, %v1417
      %v1419 = vpop.f32.mrf.mxu0
      %1420 = vmatprep.mubr.bf16.mxu0 0
      %1421 = vmatmul.mubr.bf16.gmra.mxu0 %v1210
      %v1422 = vpop.f32.mrf.mxu0
      %v1423 = vadd.f32 0.0, %v1422
      %v1424 = vpop.f32.mrf.mxu0
      %v1425 = vpop.f32.mrf.mxu0
      %v1426 = vadd.f32 0.0, %v1425
      %v1427 = vpop.f32.mrf.mxu0
      %1428 = vmatprep.mubr.bf16.mxu0 0
      %1429 = vmatmul.mubr.bf16.gmra.mxu0 %v1211
      %v1430 = vpop.f32.mrf.mxu0
      %v1431 = vadd.f32 0.0, %v1430
      %v1432 = vpop.f32.mrf.mxu0
      %v1433 = vpop.f32.mrf.mxu0
      %v1434 = vadd.f32 0.0, %v1433
      %v1435 = vpop.f32.mrf.mxu0
      %1436 = vdwg.mxu0
      %v1437 = vadd.f32 %v1115, %v1311
      %v1438 = vadd.f32 %v1116, %v1314
      %v1439 = vadd.f32 %v1117, %v1319
      %v1440 = vadd.f32 %v1118, %v1322
      %v1441 = vadd.f32 %v1119, %v1327
      %v1442 = vadd.f32 %v1120, %v1330
      %v1443 = vadd.f32 %v1121, %v1335
      %v1444 = vadd.f32 %v1122, %v1338
      %v1445 = vadd.f32 %v1123, %v1343
      %v1446 = vadd.f32 %v1124, %v1346
      %v1447 = vadd.f32 %v1125, %v1351
      %v1448 = vadd.f32 %v1126, %v1354
      %v1449 = vadd.f32 %v1127, %v1359
      %v1450 = vadd.f32 %v1128, %v1362
      %v1451 = vadd.f32 %v1129, %v1367
      %v1452 = vadd.f32 %v1130, %v1370
      %v1453 = vadd.f32 %v1131, %v1375
      %v1454 = vadd.f32 %v1132, %v1378
      %v1455 = vadd.f32 %v1133, %v1383
      %v1456 = vadd.f32 %v1134, %v1386
      %v1457 = vadd.f32 %v1135, %v1391
      %v1458 = vadd.f32 %v1136, %v1394
      %v1459 = vadd.f32 %v1137, %v1399
      %v1460 = vadd.f32 %v1138, %v1402
      %v1461 = vadd.f32 %v1139, %v1407
      %v1462 = vadd.f32 %v1140, %v1410
      %v1463 = vadd.f32 %v1141, %v1415
      %v1464 = vadd.f32 %v1142, %v1418
      %v1465 = vadd.f32 %v1143, %v1423
      %v1466 = vadd.f32 %v1144, %v1426
      %v1467 = vadd.f32 %v1145, %v1431
      %v1468 = vadd.f32 %v1146, %v1434
      %1469 = vst [vmem:[#allocation2] sm:$0xff] %v1437
      %1470 = vst [vmem:[#allocation2 + $0x8] sm:$0xff] %v1438
      %1471 = vst [vmem:[#allocation2 + $0x10] sm:$0xff] %v1439
      %1472 = vst [vmem:[#allocation2 + $0x18] sm:$0xff] %v1440
      %1473 = vst [vmem:[#allocation2 + $0x20] sm:$0xff] %v1441
      %1474 = vst [vmem:[#allocation2 + $0x28] sm:$0xff] %v1442
      %1475 = vst [vmem:[#allocation2 + $0x30] sm:$0xff] %v1443
      %1476 = vst [vmem:[#allocation2 + $0x38] sm:$0xff] %v1444
      %1477 = vst [vmem:[#allocation2 + $0x40] sm:$0xff] %v1445
      %1478 = vst [vmem:[#allocation2 + $0x48] sm:$0xff] %v1446
      %1479 = vst [vmem:[#allocation2 + $0x50] sm:$0xff] %v1447
      %1480 = vst [vmem:[#allocation2 + $0x58] sm:$0xff] %v1448
      %1481 = vst [vmem:[#allocation2 + $0x60] sm:$0xff] %v1449
      %1482 = vst [vmem:[#allocation2 + $0x68] sm:$0xff] %v1450
      %1483 = vst [vmem:[#allocation2 + $0x70] sm:$0xff] %v1451
      %1484 = vst [vmem:[#allocation2 + $0x78] sm:$0xff] %v1452
      %1485 = vst [vmem:[#allocation2 + $0x80] sm:$0xff] %v1453
      %1486 = vst [vmem:[#allocation2 + $0x88] sm:$0xff] %v1454
      %1487 = vst [vmem:[#allocation2 + $0x90] sm:$0xff] %v1455
      %1488 = vst [vmem:[#allocation2 + $0x98] sm:$0xff] %v1456
      %1489 = vst [vmem:[#allocation2 + $0xa0] sm:$0xff] %v1457
      %1490 = vst [vmem:[#allocation2 + $0xa8] sm:$0xff] %v1458
      %1491 = vst [vmem:[#allocation2 + $0xb0] sm:$0xff] %v1459
      %1492 = vst [vmem:[#allocation2 + $0xb8] sm:$0xff] %v1460
      %1493 = vst [vmem:[#allocation2 + $0xc0] sm:$0xff] %v1461
      %1494 = vst [vmem:[#allocation2 + $0xc8] sm:$0xff] %v1462
      %1495 = vst [vmem:[#allocation2 + $0xd0] sm:$0xff] %v1463
      %1496 = vst [vmem:[#allocation2 + $0xd8] sm:$0xff] %v1464
      %1497 = vst [vmem:[#allocation2 + $0xe0] sm:$0xff] %v1465
      %1498 = vst [vmem:[#allocation2 + $0xe8] sm:$0xff] %v1466
      %1499 = vst [vmem:[#allocation2 + $0xf0] sm:$0xff] %v1467
      %1500 = vst [vmem:[#allocation2 + $0xf8] sm:$0xff] %v1468
      %v1501 = vld [vmem:[%s230] sm:$0xe]
      %v1502 = vld [vmem:[%s230 + $0x4] sm:$0xf]
      %v1503 = vld [vmem:[%s230 + $0x8] sm:$0x1]
      %v1504 = vld [vmem:[%s230 + $0xc] sm:$0xe]
      %v1505 = vld [vmem:[%s230 + $0x10] sm:$0xf]
      %v1506 = vld [vmem:[%s230 + $0x14] sm:$0x1]
      %v1507 = vld [vmem:[%s230 + $0x18] sm:$0xe]
      %v1508 = vld [vmem:[%s230 + $0x1c] sm:$0xf]
      %v1509 = vld [vmem:[%s230 + $0x20] sm:$0x1]
      %v1510 = vld [vmem:[%s230 + $0x24] sm:$0xe]
      %v1511 = vld [vmem:[%s230 + $0x28] sm:$0xf]
      %v1512 = vld [vmem:[%s230 + $0x2c] sm:$0x1]
      %v1513 = vld [vmem:[%s230 + $0x30] sm:$0xe]
      %v1514 = vld [vmem:[%s230 + $0x34] sm:$0xf]
      %v1515 = vld [vmem:[%s230 + $0x38] sm:$0x1]
      %v1516 = vld [vmem:[%s230 + $0x3c] sm:$0xe]
      %v1517 = vld [vmem:[%s230 + $0x40] sm:$0xf]
      %v1518 = vld [vmem:[%s230 + $0x44] sm:$0x1]
      %v1519 = vld [vmem:[%s230 + $0x48] sm:$0xe]
      %v1520 = vld [vmem:[%s230 + $0x4c] sm:$0xf]
      %v1521 = vld [vmem:[%s230 + $0x50] sm:$0x1]
      %v1522 = vld [vmem:[%s230 + $0x54] sm:$0xe]
      %v1523 = vld [vmem:[%s230 + $0x58] sm:$0xf]
      %v1524 = vld [vmem:[%s230 + $0x5c] sm:$0x1]
      %v1525 = vld [vmem:[%s230 + $0x60] sm:$0xe]
      %v1526 = vld [vmem:[%s230 + $0x64] sm:$0xf]
      %v1527 = vld [vmem:[%s230 + $0x68] sm:$0x1]
      %v1528 = vld [vmem:[%s230 + $0x6c] sm:$0xe]
      %v1529 = vld [vmem:[%s230 + $0x70] sm:$0xf]
      %v1530 = vld [vmem:[%s230 + $0x74] sm:$0x1]
      %v1531 = vld [vmem:[%s230 + $0x78] sm:$0xe]
      %v1532 = vld [vmem:[%s230 + $0x7c] sm:$0xf]
      %v1533 = vld [vmem:[%s230 + $0x80] sm:$0x1]
      %v1534 = vld [vmem:[%s230 + $0x84] sm:$0xe]
      %v1535 = vld [vmem:[%s230 + $0x88] sm:$0xf]
      %v1536 = vld [vmem:[%s230 + $0x8c] sm:$0x1]
      %v1537 = vld [vmem:[%s230 + $0x90] sm:$0xe]
      %v1538 = vld [vmem:[%s230 + $0x94] sm:$0xf]
      %v1539 = vld [vmem:[%s230 + $0x98] sm:$0x1]
      %v1540 = vld [vmem:[%s230 + $0x9c] sm:$0xe]
      %v1541 = vld [vmem:[%s230 + $0xa0] sm:$0xf]
      %v1542 = vld [vmem:[%s230 + $0xa4] sm:$0x1]
      %v1543 = vld [vmem:[%s230 + $0xa8] sm:$0xe]
      %v1544 = vld [vmem:[%s230 + $0xac] sm:$0xf]
      %v1545 = vld [vmem:[%s230 + $0xb0] sm:$0x1]
      %v1546 = vld [vmem:[%s230 + $0xb4] sm:$0xe]
      %v1547 = vld [vmem:[%s230 + $0xb8] sm:$0xf]
      %v1548 = vld [vmem:[%s230 + $0xbc] sm:$0x1]
      %vm1597 = vcmask 1042432
      %vm1598 = vcmask 1046532
      %vm1599 = vmor %vm1597, %vm1598
      %v1600 = vrot.slane %v1501, 5
      %v1601 = vrot.slane %v1600, 4
      %v1602 = vrot.slane %v1502, 5
      %v1603 = vsel %vm1599, %v1601, %v1602
      %v1604 = vrot.slane %v1602, 4
      %v1605 = vrot.slane %v1503, 5
      %v1606 = vsel %vm1599, %v1604, %v1605
      %v1607 = vrot.slane %v1504, 5
      %v1608 = vrot.slane %v1607, 4
      %v1609 = vrot.slane %v1505, 5
      %v1610 = vsel %vm1599, %v1608, %v1609
      %v1611 = vrot.slane %v1609, 4
      %v1612 = vrot.slane %v1506, 5
      %v1613 = vsel %vm1599, %v1611, %v1612
      %v1614 = vrot.slane %v1507, 5
      %v1615 = vrot.slane %v1614, 4
      %v1616 = vrot.slane %v1508, 5
      %v1617 = vsel %vm1599, %v1615, %v1616
      %v1618 = vrot.slane %v1616, 4
      %v1619 = vrot.slane %v1509, 5
      %v1620 = vsel %vm1599, %v1618, %v1619
      %v1621 = vrot.slane %v1510, 5
      %v1622 = vrot.slane %v1621, 4
      %v1623 = vrot.slane %v1511, 5
      %v1624 = vsel %vm1599, %v1622, %v1623
      %v1625 = vrot.slane %v1623, 4
      %v1626 = vrot.slane %v1512, 5
      %v1627 = vsel %vm1599, %v1625, %v1626
      %v1628 = vrot.slane %v1513, 5
      %v1629 = vrot.slane %v1628, 4
      %v1630 = vrot.slane %v1514, 5
      %v1631 = vsel %vm1599, %v1629, %v1630
      %v1632 = vrot.slane %v1630, 4
      %v1633 = vrot.slane %v1515, 5
      %v1634 = vsel %vm1599, %v1632, %v1633
      %v1635 = vrot.slane %v1516, 5
      %v1636 = vrot.slane %v1635, 4
      %v1637 = vrot.slane %v1517, 5
      %v1638 = vsel %vm1599, %v1636, %v1637
      %v1639 = vrot.slane %v1637, 4
      %v1640 = vrot.slane %v1518, 5
      %v1641 = vsel %vm1599, %v1639, %v1640
      %v1642 = vrot.slane %v1519, 5
      %v1643 = vrot.slane %v1642, 4
      %v1644 = vrot.slane %v1520, 5
      %v1645 = vsel %vm1599, %v1643, %v1644
      %v1646 = vrot.slane %v1644, 4
      %v1647 = vrot.slane %v1521, 5
      %v1648 = vsel %vm1599, %v1646, %v1647
      %v1649 = vrot.slane %v1522, 5
      %v1650 = vrot.slane %v1649, 4
      %v1651 = vrot.slane %v1523, 5
      %v1652 = vsel %vm1599, %v1650, %v1651
      %v1653 = vrot.slane %v1651, 4
      %v1654 = vrot.slane %v1524, 5
      %v1655 = vsel %vm1599, %v1653, %v1654
      %v1656 = vrot.slane %v1525, 5
      %v1657 = vrot.slane %v1656, 4
      %v1658 = vrot.slane %v1526, 5
      %v1659 = vsel %vm1599, %v1657, %v1658
      %v1660 = vrot.slane %v1658, 4
      %v1661 = vrot.slane %v1527, 5
      %v1662 = vsel %vm1599, %v1660, %v1661
      %v1663 = vrot.slane %v1528, 5
      %v1664 = vrot.slane %v1663, 4
      %v1665 = vrot.slane %v1529, 5
      %v1666 = vsel %vm1599, %v1664, %v1665
      %v1667 = vrot.slane %v1665, 4
      %v1668 = vrot.slane %v1530, 5
      %v1669 = vsel %vm1599, %v1667, %v1668
      %v1670 = vrot.slane %v1531, 5
      %v1671 = vrot.slane %v1670, 4
      %v1672 = vrot.slane %v1532, 5
      %v1673 = vsel %vm1599, %v1671, %v1672
      %v1674 = vrot.slane %v1672, 4
      %v1675 = vrot.slane %v1533, 5
      %v1676 = vsel %vm1599, %v1674, %v1675
      %v1677 = vrot.slane %v1534, 5
      %v1678 = vrot.slane %v1677, 4
      %v1679 = vrot.slane %v1535, 5
      %v1680 = vsel %vm1599, %v1678, %v1679
      %v1681 = vrot.slane %v1679, 4
      %v1682 = vrot.slane %v1536, 5
      %v1683 = vsel %vm1599, %v1681, %v1682
      %v1684 = vrot.slane %v1537, 5
      %v1685 = vrot.slane %v1684, 4
      %v1686 = vrot.slane %v1538, 5
      %v1687 = vsel %vm1599, %v1685, %v1686
      %v1688 = vrot.slane %v1686, 4
      %v1689 = vrot.slane %v1539, 5
      %v1690 = vsel %vm1599, %v1688, %v1689
      %v1691 = vrot.slane %v1540, 5
      %v1692 = vrot.slane %v1691, 4
      %v1693 = vrot.slane %v1541, 5
      %v1694 = vsel %vm1599, %v1692, %v1693
      %v1695 = vrot.slane %v1693, 4
      %v1696 = vrot.slane %v1542, 5
      %v1697 = vsel %vm1599, %v1695, %v1696
      %v1698 = vrot.slane %v1543, 5
      %v1699 = vrot.slane %v1698, 4
      %v1700 = vrot.slane %v1544, 5
      %v1701 = vsel %vm1599, %v1699, %v1700
      %v1702 = vrot.slane %v1700, 4
      %v1703 = vrot.slane %v1545, 5
      %v1704 = vsel %vm1599, %v1702, %v1703
      %v1705 = vrot.slane %v1546, 5
      %v1706 = vrot.slane %v1705, 4
      %v1707 = vrot.slane %v1547, 5
      %v1708 = vsel %vm1599, %v1706, %v1707
      %v1709 = vrot.slane %v1707, 4
      %v1710 = vrot.slane %v1548, 5
      %v1711 = vsel %vm1599, %v1709, %v1710
      %v1712 = vld [vmem:[#allocation2] sm:$0xff]
      %v1713 = vld [vmem:[#allocation2 + $0x8] sm:$0xff]
      %v1714 = vld [vmem:[#allocation2 + $0x10] sm:$0xff]
      %v1715 = vld [vmem:[#allocation2 + $0x18] sm:$0xff]
      %v1716 = vld [vmem:[#allocation2 + $0x20] sm:$0xff]
      %v1717 = vld [vmem:[#allocation2 + $0x28] sm:$0xff]
      %v1718 = vld [vmem:[#allocation2 + $0x30] sm:$0xff]
      %v1719 = vld [vmem:[#allocation2 + $0x38] sm:$0xff]
      %v1720 = vld [vmem:[#allocation2 + $0x40] sm:$0xff]
      %v1721 = vld [vmem:[#allocation2 + $0x48] sm:$0xff]
      %v1722 = vld [vmem:[#allocation2 + $0x50] sm:$0xff]
      %v1723 = vld [vmem:[#allocation2 + $0x58] sm:$0xff]
      %v1724 = vld [vmem:[#allocation2 + $0x60] sm:$0xff]
      %v1725 = vld [vmem:[#allocation2 + $0x68] sm:$0xff]
      %v1726 = vld [vmem:[#allocation2 + $0x70] sm:$0xff]
      %v1727 = vld [vmem:[#allocation2 + $0x78] sm:$0xff]
      %v1728 = vld [vmem:[#allocation2 + $0x80] sm:$0xff]
      %v1729 = vld [vmem:[#allocation2 + $0x88] sm:$0xff]
      %v1730 = vld [vmem:[#allocation2 + $0x90] sm:$0xff]
      %v1731 = vld [vmem:[#allocation2 + $0x98] sm:$0xff]
      %v1732 = vld [vmem:[#allocation2 + $0xa0] sm:$0xff]
      %v1733 = vld [vmem:[#allocation2 + $0xa8] sm:$0xff]
      %v1734 = vld [vmem:[#allocation2 + $0xb0] sm:$0xff]
      %v1735 = vld [vmem:[#allocation2 + $0xb8] sm:$0xff]
      %v1736 = vld [vmem:[#allocation2 + $0xc0] sm:$0xff]
      %v1737 = vld [vmem:[#allocation2 + $0xc8] sm:$0xff]
      %v1738 = vld [vmem:[#allocation2 + $0xd0] sm:$0xff]
      %v1739 = vld [vmem:[#allocation2 + $0xd8] sm:$0xff]
      %v1740 = vld [vmem:[#allocation2 + $0xe0] sm:$0xff]
      %v1741 = vld [vmem:[#allocation2 + $0xe8] sm:$0xff]
      %v1742 = vld [vmem:[#allocation2 + $0xf0] sm:$0xff]
      %v1743 = vld [vmem:[#allocation2 + $0xf8] sm:$0xff]
      %s1744 = scalar_lea.vmem %s1, 128
      %v1745 = vld [vmem:[%s1744] sm:$0xf]
      %v1746 = vld [vmem:[%s1744 + $0x4] sm:$0xf]
      %v1747 = vld [vmem:[%s1744 + $0x8] sm:$0xf]
      %v1748 = vld [vmem:[%s1744 + $0xc] sm:$0xf]
      %v1749 = vld [vmem:[%s1744 + $0x10] sm:$0xf]
      %v1750 = vld [vmem:[%s1744 + $0x14] sm:$0xf]
      %v1751 = vld [vmem:[%s1744 + $0x18] sm:$0xf]
      %v1752 = vld [vmem:[%s1744 + $0x1c] sm:$0xf]
      %v1753 = vld [vmem:[%s1744 + $0x20] sm:$0xf]
      %v1754 = vld [vmem:[%s1744 + $0x24] sm:$0xf]
      %v1755 = vld [vmem:[%s1744 + $0x28] sm:$0xf]
      %v1756 = vld [vmem:[%s1744 + $0x2c] sm:$0xf]
      %v1757 = vld [vmem:[%s1744 + $0x30] sm:$0xf]
      %v1758 = vld [vmem:[%s1744 + $0x34] sm:$0xf]
      %v1759 = vld [vmem:[%s1744 + $0x38] sm:$0xf]
      %v1760 = vld [vmem:[%s1744 + $0x3c] sm:$0xf]
      %v1761 = vunpack.c.l.b16 %v1603
      %v1762 = vunpack.c.l.b16 %v1606
      %v1763 = vunpack.c.l.b16 %v1610
      %v1764 = vunpack.c.l.b16 %v1613
      %v1765 = vunpack.c.l.b16 %v1617
      %v1766 = vunpack.c.l.b16 %v1620
      %v1767 = vunpack.c.l.b16 %v1624
      %v1768 = vunpack.c.l.b16 %v1627
      %v1769 = vunpack.c.l.b16 %v1631
      %v1770 = vunpack.c.l.b16 %v1634
      %v1771 = vunpack.c.l.b16 %v1638
      %v1772 = vunpack.c.l.b16 %v1641
      %v1773 = vunpack.c.l.b16 %v1645
      %v1774 = vunpack.c.l.b16 %v1648
      %v1775 = vunpack.c.l.b16 %v1652
      %v1776 = vunpack.c.l.b16 %v1655
      %v1777 = vunpack.c.l.b16 %v1659
      %v1778 = vunpack.c.l.b16 %v1662
      %v1779 = vunpack.c.l.b16 %v1666
      %v1780 = vunpack.c.l.b16 %v1669
      %v1781 = vunpack.c.l.b16 %v1673
      %v1782 = vunpack.c.l.b16 %v1676
      %v1783 = vunpack.c.l.b16 %v1680
      %v1784 = vunpack.c.l.b16 %v1683
      %v1785 = vunpack.c.l.b16 %v1687
      %v1786 = vunpack.c.l.b16 %v1690
      %v1787 = vunpack.c.l.b16 %v1694
      %v1788 = vunpack.c.l.b16 %v1697
      %v1789 = vunpack.c.l.b16 %v1701
      %v1790 = vunpack.c.l.b16 %v1704
      %v1791 = vunpack.c.l.b16 %v1708
      %v1792 = vunpack.c.l.b16 %v1711
      %v1793 = vpack.c.b16 %v1762, %v1761
      %v1794 = vpack.c.b16 %v1764, %v1763
      %v1795 = vpack.c.b16 %v1766, %v1765
      %v1796 = vpack.c.b16 %v1768, %v1767
      %v1797 = vpack.c.b16 %v1770, %v1769
      %v1798 = vpack.c.b16 %v1772, %v1771
      %v1799 = vpack.c.b16 %v1774, %v1773
      %v1800 = vpack.c.b16 %v1776, %v1775
      %v1801 = vpack.c.b16 %v1778, %v1777
      %v1802 = vpack.c.b16 %v1780, %v1779
      %v1803 = vpack.c.b16 %v1782, %v1781
      %v1804 = vpack.c.b16 %v1784, %v1783
      %v1805 = vpack.c.b16 %v1786, %v1785
      %v1806 = vpack.c.b16 %v1788, %v1787
      %v1807 = vpack.c.b16 %v1790, %v1789
      %v1808 = vpack.c.b16 %v1792, %v1791
      %v1841 = vunpack.c.l.b16 %v1745
      %v1842 = vunpack.c.l.b16 %v1746
      %v1843 = vunpack.c.l.b16 %v1747
      %v1844 = vunpack.c.l.b16 %v1748
      %v1845 = vunpack.c.l.b16 %v1749
      %v1846 = vunpack.c.l.b16 %v1750
      %v1847 = vunpack.c.l.b16 %v1751
      %v1848 = vunpack.c.l.b16 %v1752
      %v1849 = vunpack.c.l.b16 %v1753
      %v1850 = vunpack.c.l.b16 %v1754
      %v1851 = vunpack.c.l.b16 %v1755
      %v1852 = vunpack.c.l.b16 %v1756
      %v1853 = vunpack.c.l.b16 %v1757
      %v1854 = vunpack.c.l.b16 %v1758
      %v1855 = vunpack.c.l.b16 %v1759
      %v1856 = vunpack.c.l.b16 %v1760
      %v1857 = vpack.c.b16 %v1842, %v1841
      %v1858 = vpack.c.b16 %v1844, %v1843
      %v1859 = vpack.c.b16 %v1846, %v1845
      %v1860 = vpack.c.b16 %v1848, %v1847
      %v1861 = vpack.c.b16 %v1850, %v1849
      %v1862 = vpack.c.b16 %v1852, %v1851
      %v1863 = vpack.c.b16 %v1854, %v1853
      %v1864 = vpack.c.b16 %v1856, %v1855
      %1873 = vmatprep.subr.bf16.mxu0 0
      %1874 = vmatpush1.bf16.msra.mxu0 %v1864
      %1875 = vmatprep.subr.bf16.mxu0 0
      %1876 = vmatpush1.bf16.msra.mxu0 %v1863
      %1877 = vmatprep.subr.bf16.mxu0 0
      %1878 = vmatpush1.bf16.msra.mxu0 %v1862
      %1879 = vmatprep.subr.bf16.mxu0 0
      %1880 = vmatpush1.bf16.msra.mxu0 %v1861
      %1881 = vmatprep.subr.bf16.mxu0 0
      %1882 = vmatpush1.bf16.msra.mxu0 %v1860
      %1883 = vmatprep.subr.bf16.mxu0 0
      %1884 = vmatpush1.bf16.msra.mxu0 %v1859
      %1885 = vmatprep.subr.bf16.mxu0 0
      %1886 = vmatpush1.bf16.msra.mxu0 %v1858
      %1887 = vmatprep.subr.bf16.mxu0 0
      %1888 = vmatpush1.bf16.msra.mxu0 %v1857
      %1889 = vmatprep.subr.bf16.mxu0 0
      %1890 = vmatpush2.bf16.msra.mxu0 0
      %1891 = vmatprep.subr.bf16.mxu0 0
      %1892 = vmatpush2.bf16.msra.mxu0 0
      %1893 = vmatprep.subr.bf16.mxu0 0
      %1894 = vmatpush2.bf16.msra.mxu0 0
      %1895 = vmatprep.subr.bf16.mxu0 0
      %1896 = vmatpush2.bf16.msra.mxu0 0
      %1897 = vmatprep.subr.bf16.mxu0 0
      %1898 = vmatpush2.bf16.msra.mxu0 0
      %1899 = vmatprep.subr.bf16.mxu0 0
      %1900 = vmatpush2.bf16.msra.mxu0 0
      %1901 = vmatprep.subr.bf16.mxu0 0
      %1902 = vmatpush2.bf16.msra.mxu0 0
      %1903 = vmatprep.subr.bf16.mxu0 0
      %1904 = vmatpush2.bf16.msra.mxu0 0
      %1905 = vmatprep.mubr.bf16.mxu0 0
      %1906 = vmatmul.mubr.bf16.gmra.mxu0 %v1793
      %v1907 = vpop.f32.mrf.mxu0
      %v1908 = vadd.f32 0.0, %v1907
      %v1909 = vpop.f32.mrf.mxu0
      %v1910 = vpop.f32.mrf.mxu0
      %v1911 = vadd.f32 0.0, %v1910
      %v1912 = vpop.f32.mrf.mxu0
      %1913 = vmatprep.mubr.bf16.mxu0 0
      %1914 = vmatmul.mubr.bf16.gmra.mxu0 %v1794
      %v1915 = vpop.f32.mrf.mxu0
      %v1916 = vadd.f32 0.0, %v1915
      %v1917 = vpop.f32.mrf.mxu0
      %v1918 = vpop.f32.mrf.mxu0
      %v1919 = vadd.f32 0.0, %v1918
      %v1920 = vpop.f32.mrf.mxu0
      %1921 = vmatprep.mubr.bf16.mxu0 0
      %1922 = vmatmul.mubr.bf16.gmra.mxu0 %v1795
      %v1923 = vpop.f32.mrf.mxu0
      %v1924 = vadd.f32 0.0, %v1923
      %v1925 = vpop.f32.mrf.mxu0
      %v1926 = vpop.f32.mrf.mxu0
      %v1927 = vadd.f32 0.0, %v1926
      %v1928 = vpop.f32.mrf.mxu0
      %1929 = vmatprep.mubr.bf16.mxu0 0
      %1930 = vmatmul.mubr.bf16.gmra.mxu0 %v1796
      %v1931 = vpop.f32.mrf.mxu0
      %v1932 = vadd.f32 0.0, %v1931
      %v1933 = vpop.f32.mrf.mxu0
      %v1934 = vpop.f32.mrf.mxu0
      %v1935 = vadd.f32 0.0, %v1934
      %v1936 = vpop.f32.mrf.mxu0
      %1937 = vmatprep.mubr.bf16.mxu0 0
      %1938 = vmatmul.mubr.bf16.gmra.mxu0 %v1797
      %v1939 = vpop.f32.mrf.mxu0
      %v1940 = vadd.f32 0.0, %v1939
      %v1941 = vpop.f32.mrf.mxu0
      %v1942 = vpop.f32.mrf.mxu0
      %v1943 = vadd.f32 0.0, %v1942
      %v1944 = vpop.f32.mrf.mxu0
      %1945 = vmatprep.mubr.bf16.mxu0 0
      %1946 = vmatmul.mubr.bf16.gmra.mxu0 %v1798
      %v1947 = vpop.f32.mrf.mxu0
      %v1948 = vadd.f32 0.0, %v1947
      %v1949 = vpop.f32.mrf.mxu0
      %v1950 = vpop.f32.mrf.mxu0
      %v1951 = vadd.f32 0.0, %v1950
      %v1952 = vpop.f32.mrf.mxu0
      %1953 = vmatprep.mubr.bf16.mxu0 0
      %1954 = vmatmul.mubr.bf16.gmra.mxu0 %v1799
      %v1955 = vpop.f32.mrf.mxu0
      %v1956 = vadd.f32 0.0, %v1955
      %v1957 = vpop.f32.mrf.mxu0
      %v1958 = vpop.f32.mrf.mxu0
      %v1959 = vadd.f32 0.0, %v1958
      %v1960 = vpop.f32.mrf.mxu0
      %1961 = vmatprep.mubr.bf16.mxu0 0
      %1962 = vmatmul.mubr.bf16.gmra.mxu0 %v1800
      %v1963 = vpop.f32.mrf.mxu0
      %v1964 = vadd.f32 0.0, %v1963
      %v1965 = vpop.f32.mrf.mxu0
      %v1966 = vpop.f32.mrf.mxu0
      %v1967 = vadd.f32 0.0, %v1966
      %v1968 = vpop.f32.mrf.mxu0
      %1969 = vmatprep.mubr.bf16.mxu0 0
      %1970 = vmatmul.mubr.bf16.gmra.mxu0 %v1801
      %v1971 = vpop.f32.mrf.mxu0
      %v1972 = vadd.f32 0.0, %v1971
      %v1973 = vpop.f32.mrf.mxu0
      %v1974 = vpop.f32.mrf.mxu0
      %v1975 = vadd.f32 0.0, %v1974
      %v1976 = vpop.f32.mrf.mxu0
      %1977 = vmatprep.mubr.bf16.mxu0 0
      %1978 = vmatmul.mubr.bf16.gmra.mxu0 %v1802
      %v1979 = vpop.f32.mrf.mxu0
      %v1980 = vadd.f32 0.0, %v1979
      %v1981 = vpop.f32.mrf.mxu0
      %v1982 = vpop.f32.mrf.mxu0
      %v1983 = vadd.f32 0.0, %v1982
      %v1984 = vpop.f32.mrf.mxu0
      %1985 = vmatprep.mubr.bf16.mxu0 0
      %1986 = vmatmul.mubr.bf16.gmra.mxu0 %v1803
      %v1987 = vpop.f32.mrf.mxu0
      %v1988 = vadd.f32 0.0, %v1987
      %v1989 = vpop.f32.mrf.mxu0
      %v1990 = vpop.f32.mrf.mxu0
      %v1991 = vadd.f32 0.0, %v1990
      %v1992 = vpop.f32.mrf.mxu0
      %1993 = vmatprep.mubr.bf16.mxu0 0
      %1994 = vmatmul.mubr.bf16.gmra.mxu0 %v1804
      %v1995 = vpop.f32.mrf.mxu0
      %v1996 = vadd.f32 0.0, %v1995
      %v1997 = vpop.f32.mrf.mxu0
      %v1998 = vpop.f32.mrf.mxu0
      %v1999 = vadd.f32 0.0, %v1998
      %v2000 = vpop.f32.mrf.mxu0
      %2001 = vmatprep.mubr.bf16.mxu0 0
      %2002 = vmatmul.mubr.bf16.gmra.mxu0 %v1805
      %v2003 = vpop.f32.mrf.mxu0
      %v2004 = vadd.f32 0.0, %v2003
      %v2005 = vpop.f32.mrf.mxu0
      %v2006 = vpop.f32.mrf.mxu0
      %v2007 = vadd.f32 0.0, %v2006
      %v2008 = vpop.f32.mrf.mxu0
      %2009 = vmatprep.mubr.bf16.mxu0 0
      %2010 = vmatmul.mubr.bf16.gmra.mxu0 %v1806
      %v2011 = vpop.f32.mrf.mxu0
      %v2012 = vadd.f32 0.0, %v2011
      %v2013 = vpop.f32.mrf.mxu0
      %v2014 = vpop.f32.mrf.mxu0
      %v2015 = vadd.f32 0.0, %v2014
      %v2016 = vpop.f32.mrf.mxu0
      %2017 = vmatprep.mubr.bf16.mxu0 0
      %2018 = vmatmul.mubr.bf16.gmra.mxu0 %v1807
      %v2019 = vpop.f32.mrf.mxu0
      %v2020 = vadd.f32 0.0, %v2019
      %v2021 = vpop.f32.mrf.mxu0
      %v2022 = vpop.f32.mrf.mxu0
      %v2023 = vadd.f32 0.0, %v2022
      %v2024 = vpop.f32.mrf.mxu0
      %2025 = vmatprep.mubr.bf16.mxu0 0
      %2026 = vmatmul.mubr.bf16.gmra.mxu0 %v1808
      %v2027 = vpop.f32.mrf.mxu0
      %v2028 = vadd.f32 0.0, %v2027
      %v2029 = vpop.f32.mrf.mxu0
      %v2030 = vpop.f32.mrf.mxu0
      %v2031 = vadd.f32 0.0, %v2030
      %v2032 = vpop.f32.mrf.mxu0
      %2033 = vdwg.mxu0
      %v2034 = vadd.f32 %v1712, %v1908
      %v2035 = vadd.f32 %v1713, %v1911
      %v2036 = vadd.f32 %v1714, %v1916
      %v2037 = vadd.f32 %v1715, %v1919
      %v2038 = vadd.f32 %v1716, %v1924
      %v2039 = vadd.f32 %v1717, %v1927
      %v2040 = vadd.f32 %v1718, %v1932
      %v2041 = vadd.f32 %v1719, %v1935
      %v2042 = vadd.f32 %v1720, %v1940
      %v2043 = vadd.f32 %v1721, %v1943
      %v2044 = vadd.f32 %v1722, %v1948
      %v2045 = vadd.f32 %v1723, %v1951
      %v2046 = vadd.f32 %v1724, %v1956
      %v2047 = vadd.f32 %v1725, %v1959
      %v2048 = vadd.f32 %v1726, %v1964
      %v2049 = vadd.f32 %v1727, %v1967
      %v2050 = vadd.f32 %v1728, %v1972
      %v2051 = vadd.f32 %v1729, %v1975
      %v2052 = vadd.f32 %v1730, %v1980
      %v2053 = vadd.f32 %v1731, %v1983
      %v2054 = vadd.f32 %v1732, %v1988
      %v2055 = vadd.f32 %v1733, %v1991
      %v2056 = vadd.f32 %v1734, %v1996
      %v2057 = vadd.f32 %v1735, %v1999
      %v2058 = vadd.f32 %v1736, %v2004
      %v2059 = vadd.f32 %v1737, %v2007
      %v2060 = vadd.f32 %v1738, %v2012
      %v2061 = vadd.f32 %v1739, %v2015
      %v2062 = vadd.f32 %v1740, %v2020
      %v2063 = vadd.f32 %v1741, %v2023
      %v2064 = vadd.f32 %v1742, %v2028
      %v2065 = vadd.f32 %v1743, %v2031
      %2066 = vst [vmem:[#allocation2] sm:$0xff] %v2034
      %2067 = vst [vmem:[#allocation2 + $0x8] sm:$0xff] %v2035
      %2068 = vst [vmem:[#allocation2 + $0x10] sm:$0xff] %v2036
      %2069 = vst [vmem:[#allocation2 + $0x18] sm:$0xff] %v2037
      %2070 = vst [vmem:[#allocation2 + $0x20] sm:$0xff] %v2038
      %2071 = vst [vmem:[#allocation2 + $0x28] sm:$0xff] %v2039
      %2072 = vst [vmem:[#allocation2 + $0x30] sm:$0xff] %v2040
      %2073 = vst [vmem:[#allocation2 + $0x38] sm:$0xff] %v2041
      %2074 = vst [vmem:[#allocation2 + $0x40] sm:$0xff] %v2042
      %2075 = vst [vmem:[#allocation2 + $0x48] sm:$0xff] %v2043
      %2076 = vst [vmem:[#allocation2 + $0x50] sm:$0xff] %v2044
      %2077 = vst [vmem:[#allocation2 + $0x58] sm:$0xff] %v2045
      %2078 = vst [vmem:[#allocation2 + $0x60] sm:$0xff] %v2046
      %2079 = vst [vmem:[#allocation2 + $0x68] sm:$0xff] %v2047
      %2080 = vst [vmem:[#allocation2 + $0x70] sm:$0xff] %v2048
      %2081 = vst [vmem:[#allocation2 + $0x78] sm:$0xff] %v2049
      %2082 = vst [vmem:[#allocation2 + $0x80] sm:$0xff] %v2050
      %2083 = vst [vmem:[#allocation2 + $0x88] sm:$0xff] %v2051
      %2084 = vst [vmem:[#allocation2 + $0x90] sm:$0xff] %v2052
      %2085 = vst [vmem:[#allocation2 + $0x98] sm:$0xff] %v2053
      %2086 = vst [vmem:[#allocation2 + $0xa0] sm:$0xff] %v2054
      %2087 = vst [vmem:[#allocation2 + $0xa8] sm:$0xff] %v2055
      %2088 = vst [vmem:[#allocation2 + $0xb0] sm:$0xff] %v2056
      %2089 = vst [vmem:[#allocation2 + $0xb8] sm:$0xff] %v2057
      %2090 = vst [vmem:[#allocation2 + $0xc0] sm:$0xff] %v2058
      %2091 = vst [vmem:[#allocation2 + $0xc8] sm:$0xff] %v2059
      %2092 = vst [vmem:[#allocation2 + $0xd0] sm:$0xff] %v2060
      %2093 = vst [vmem:[#allocation2 + $0xd8] sm:$0xff] %v2061
      %2094 = vst [vmem:[#allocation2 + $0xe0] sm:$0xff] %v2062
      %2095 = vst [vmem:[#allocation2 + $0xe8] sm:$0xff] %v2063
      %2096 = vst [vmem:[#allocation2 + $0xf0] sm:$0xff] %v2064
      %2097 = vst [vmem:[#allocation2 + $0xf8] sm:$0xff] %v2065
      %s2098 = sadd.s32 %s195, 1
      %s2099 = smul.u32 %s2098, 3
      %s2100 = smul.addr %s2099, 4
      %s2101 = scalar_lea.vmem %s183, %s2100
      %v2102 = vld [vmem:[%s2101] sm:$0xf]
      %v2103 = vld [vmem:[%s2101 + $0x4] sm:$0xf]
      %v2104 = vld [vmem:[%s2101 + $0xc] sm:$0xf]
      %v2105 = vld [vmem:[%s2101 + $0x10] sm:$0xf]
      %v2106 = vld [vmem:[%s2101 + $0x18] sm:$0xf]
      %v2107 = vld [vmem:[%s2101 + $0x1c] sm:$0xf]
      %v2108 = vld [vmem:[%s2101 + $0x24] sm:$0xf]
      %v2109 = vld [vmem:[%s2101 + $0x28] sm:$0xf]
      %v2110 = vld [vmem:[%s2101 + $0x30] sm:$0xf]
      %v2111 = vld [vmem:[%s2101 + $0x34] sm:$0xf]
      %v2112 = vld [vmem:[%s2101 + $0x3c] sm:$0xf]
      %v2113 = vld [vmem:[%s2101 + $0x40] sm:$0xf]
      %v2114 = vld [vmem:[%s2101 + $0x48] sm:$0xf]
      %v2115 = vld [vmem:[%s2101 + $0x4c] sm:$0xf]
      %v2116 = vld [vmem:[%s2101 + $0x54] sm:$0xf]
      %v2117 = vld [vmem:[%s2101 + $0x58] sm:$0xf]
      %v2118 = vld [vmem:[%s2101 + $0x60] sm:$0xf]
      %v2119 = vld [vmem:[%s2101 + $0x64] sm:$0xf]
      %v2120 = vld [vmem:[%s2101 + $0x6c] sm:$0xf]
      %v2121 = vld [vmem:[%s2101 + $0x70] sm:$0xf]
      %v2122 = vld [vmem:[%s2101 + $0x78] sm:$0xf]
      %v2123 = vld [vmem:[%s2101 + $0x7c] sm:$0xf]
      %v2124 = vld [vmem:[%s2101 + $0x84] sm:$0xf]
      %v2125 = vld [vmem:[%s2101 + $0x88] sm:$0xf]
      %v2126 = vld [vmem:[%s2101 + $0x90] sm:$0xf]
      %v2127 = vld [vmem:[%s2101 + $0x94] sm:$0xf]
      %v2128 = vld [vmem:[%s2101 + $0x9c] sm:$0xf]
      %v2129 = vld [vmem:[%s2101 + $0xa0] sm:$0xf]
      %v2130 = vld [vmem:[%s2101 + $0xa8] sm:$0xf]
      %v2131 = vld [vmem:[%s2101 + $0xac] sm:$0xf]
      %v2132 = vld [vmem:[%s2101 + $0xb4] sm:$0xf]
      %v2133 = vld [vmem:[%s2101 + $0xb8] sm:$0xf]
      %v2134 = vld [vmem:[#allocation2] sm:$0xff]
      %v2135 = vld [vmem:[#allocation2 + $0x8] sm:$0xff]
      %v2136 = vld [vmem:[#allocation2 + $0x10] sm:$0xff]
      %v2137 = vld [vmem:[#allocation2 + $0x18] sm:$0xff]
      %v2138 = vld [vmem:[#allocation2 + $0x20] sm:$0xff]
      %v2139 = vld [vmem:[#allocation2 + $0x28] sm:$0xff]
      %v2140 = vld [vmem:[#allocation2 + $0x30] sm:$0xff]
      %v2141 = vld [vmem:[#allocation2 + $0x38] sm:$0xff]
      %v2142 = vld [vmem:[#allocation2 + $0x40] sm:$0xff]
      %v2143 = vld [vmem:[#allocation2 + $0x48] sm:$0xff]
      %v2144 = vld [vmem:[#allocation2 + $0x50] sm:$0xff]
      %v2145 = vld [vmem:[#allocation2 + $0x58] sm:$0xff]
      %v2146 = vld [vmem:[#allocation2 + $0x60] sm:$0xff]
      %v2147 = vld [vmem:[#allocation2 + $0x68] sm:$0xff]
      %v2148 = vld [vmem:[#allocation2 + $0x70] sm:$0xff]
      %v2149 = vld [vmem:[#allocation2 + $0x78] sm:$0xff]
      %v2150 = vld [vmem:[#allocation2 + $0x80] sm:$0xff]
      %v2151 = vld [vmem:[#allocation2 + $0x88] sm:$0xff]
      %v2152 = vld [vmem:[#allocation2 + $0x90] sm:$0xff]
      %v2153 = vld [vmem:[#allocation2 + $0x98] sm:$0xff]
      %v2154 = vld [vmem:[#allocation2 + $0xa0] sm:$0xff]
      %v2155 = vld [vmem:[#allocation2 + $0xa8] sm:$0xff]
      %v2156 = vld [vmem:[#allocation2 + $0xb0] sm:$0xff]
      %v2157 = vld [vmem:[#allocation2 + $0xb8] sm:$0xff]
      %v2158 = vld [vmem:[#allocation2 + $0xc0] sm:$0xff]
      %v2159 = vld [vmem:[#allocation2 + $0xc8] sm:$0xff]
      %v2160 = vld [vmem:[#allocation2 + $0xd0] sm:$0xff]
      %v2161 = vld [vmem:[#allocation2 + $0xd8] sm:$0xff]
      %v2162 = vld [vmem:[#allocation2 + $0xe0] sm:$0xff]
      %v2163 = vld [vmem:[#allocation2 + $0xe8] sm:$0xff]
      %v2164 = vld [vmem:[#allocation2 + $0xf0] sm:$0xff]
      %v2165 = vld [vmem:[#allocation2 + $0xf8] sm:$0xff]
      %s2166 = scalar_lea.vmem %s1, 192
      %v2167 = vld [vmem:[%s2166] sm:$0xf]
      %v2168 = vld [vmem:[%s2166 + $0x4] sm:$0xf]
      %v2169 = vld [vmem:[%s2166 + $0x8] sm:$0xf]
      %v2170 = vld [vmem:[%s2166 + $0xc] sm:$0xf]
      %v2171 = vld [vmem:[%s2166 + $0x10] sm:$0xf]
      %v2172 = vld [vmem:[%s2166 + $0x14] sm:$0xf]
      %v2173 = vld [vmem:[%s2166 + $0x18] sm:$0xf]
      %v2174 = vld [vmem:[%s2166 + $0x1c] sm:$0xf]
      %v2175 = vld [vmem:[%s2166 + $0x20] sm:$0xf]
      %v2176 = vld [vmem:[%s2166 + $0x24] sm:$0xf]
      %v2177 = vld [vmem:[%s2166 + $0x28] sm:$0xf]
      %v2178 = vld [vmem:[%s2166 + $0x2c] sm:$0xf]
      %v2179 = vld [vmem:[%s2166 + $0x30] sm:$0xf]
      %v2180 = vld [vmem:[%s2166 + $0x34] sm:$0xf]
      %v2181 = vld [vmem:[%s2166 + $0x38] sm:$0xf]
      %v2182 = vld [vmem:[%s2166 + $0x3c] sm:$0xf]
      %v2215 = vunpack.c.l.b16 %v2102
      %v2216 = vunpack.c.l.b16 %v2103
      %v2217 = vunpack.c.l.b16 %v2104
      %v2218 = vunpack.c.l.b16 %v2105
      %v2219 = vunpack.c.l.b16 %v2106
      %v2220 = vunpack.c.l.b16 %v2107
      %v2221 = vunpack.c.l.b16 %v2108
      %v2222 = vunpack.c.l.b16 %v2109
      %v2223 = vunpack.c.l.b16 %v2110
      %v2224 = vunpack.c.l.b16 %v2111
      %v2225 = vunpack.c.l.b16 %v2112
      %v2226 = vunpack.c.l.b16 %v2113
      %v2227 = vunpack.c.l.b16 %v2114
      %v2228 = vunpack.c.l.b16 %v2115
      %v2229 = vunpack.c.l.b16 %v2116
      %v2230 = vunpack.c.l.b16 %v2117
      %v2231 = vunpack.c.l.b16 %v2118
      %v2232 = vunpack.c.l.b16 %v2119
      %v2233 = vunpack.c.l.b16 %v2120
      %v2234 = vunpack.c.l.b16 %v2121
      %v2235 = vunpack.c.l.b16 %v2122
      %v2236 = vunpack.c.l.b16 %v2123
      %v2237 = vunpack.c.l.b16 %v2124
      %v2238 = vunpack.c.l.b16 %v2125
      %v2239 = vunpack.c.l.b16 %v2126
      %v2240 = vunpack.c.l.b16 %v2127
      %v2241 = vunpack.c.l.b16 %v2128
      %v2242 = vunpack.c.l.b16 %v2129
      %v2243 = vunpack.c.l.b16 %v2130
      %v2244 = vunpack.c.l.b16 %v2131
      %v2245 = vunpack.c.l.b16 %v2132
      %v2246 = vunpack.c.l.b16 %v2133
      %v2247 = vpack.c.b16 %v2216, %v2215
      %v2248 = vpack.c.b16 %v2218, %v2217
      %v2249 = vpack.c.b16 %v2220, %v2219
      %v2250 = vpack.c.b16 %v2222, %v2221
      %v2251 = vpack.c.b16 %v2224, %v2223
      %v2252 = vpack.c.b16 %v2226, %v2225
      %v2253 = vpack.c.b16 %v2228, %v2227
      %v2254 = vpack.c.b16 %v2230, %v2229
      %v2255 = vpack.c.b16 %v2232, %v2231
      %v2256 = vpack.c.b16 %v2234, %v2233
      %v2257 = vpack.c.b16 %v2236, %v2235
      %v2258 = vpack.c.b16 %v2238, %v2237
      %v2259 = vpack.c.b16 %v2240, %v2239
      %v2260 = vpack.c.b16 %v2242, %v2241
      %v2261 = vpack.c.b16 %v2244, %v2243
      %v2262 = vpack.c.b16 %v2246, %v2245
      %v2295 = vunpack.c.l.b16 %v2167
      %v2296 = vunpack.c.l.b16 %v2168
      %v2297 = vunpack.c.l.b16 %v2169
      %v2298 = vunpack.c.l.b16 %v2170
      %v2299 = vunpack.c.l.b16 %v2171
      %v2300 = vunpack.c.l.b16 %v2172
      %v2301 = vunpack.c.l.b16 %v2173
      %v2302 = vunpack.c.l.b16 %v2174
      %v2303 = vunpack.c.l.b16 %v2175
      %v2304 = vunpack.c.l.b16 %v2176
      %v2305 = vunpack.c.l.b16 %v2177
      %v2306 = vunpack.c.l.b16 %v2178
      %v2307 = vunpack.c.l.b16 %v2179
      %v2308 = vunpack.c.l.b16 %v2180
      %v2309 = vunpack.c.l.b16 %v2181
      %v2310 = vunpack.c.l.b16 %v2182
      %v2311 = vpack.c.b16 %v2296, %v2295
      %v2312 = vpack.c.b16 %v2298, %v2297
      %v2313 = vpack.c.b16 %v2300, %v2299
      %v2314 = vpack.c.b16 %v2302, %v2301
      %v2315 = vpack.c.b16 %v2304, %v2303
      %v2316 = vpack.c.b16 %v2306, %v2305
      %v2317 = vpack.c.b16 %v2308, %v2307
      %v2318 = vpack.c.b16 %v2310, %v2309
      %2327 = vmatprep.subr.bf16.mxu0 0
      %2328 = vmatpush1.bf16.msra.mxu0 %v2318
      %2329 = vmatprep.subr.bf16.mxu0 0
      %2330 = vmatpush1.bf16.msra.mxu0 %v2317
      %2331 = vmatprep.subr.bf16.mxu0 0
      %2332 = vmatpush1.bf16.msra.mxu0 %v2316
      %2333 = vmatprep.subr.bf16.mxu0 0
      %2334 = vmatpush1.bf16.msra.mxu0 %v2315
      %2335 = vmatprep.subr.bf16.mxu0 0
      %2336 = vmatpush1.bf16.msra.mxu0 %v2314
      %2337 = vmatprep.subr.bf16.mxu0 0
      %2338 = vmatpush1.bf16.msra.mxu0 %v2313
      %2339 = vmatprep.subr.bf16.mxu0 0
      %2340 = vmatpush1.bf16.msra.mxu0 %v2312
      %2341 = vmatprep.subr.bf16.mxu0 0
      %2342 = vmatpush1.bf16.msra.mxu0 %v2311
      %2343 = vmatprep.subr.bf16.mxu0 0
      %2344 = vmatpush2.bf16.msra.mxu0 0
      %2345 = vmatprep.subr.bf16.mxu0 0
      %2346 = vmatpush2.bf16.msra.mxu0 0
      %2347 = vmatprep.subr.bf16.mxu0 0
      %2348 = vmatpush2.bf16.msra.mxu0 0
      %2349 = vmatprep.subr.bf16.mxu0 0
      %2350 = vmatpush2.bf16.msra.mxu0 0
      %2351 = vmatprep.subr.bf16.mxu0 0
      %2352 = vmatpush2.bf16.msra.mxu0 0
      %2353 = vmatprep.subr.bf16.mxu0 0
      %2354 = vmatpush2.bf16.msra.mxu0 0
      %2355 = vmatprep.subr.bf16.mxu0 0
      %2356 = vmatpush2.bf16.msra.mxu0 0
      %2357 = vmatprep.subr.bf16.mxu0 0
      %2358 = vmatpush2.bf16.msra.mxu0 0
      %2359 = vmatprep.mubr.bf16.mxu0 0
      %2360 = vmatmul.mubr.bf16.gmra.mxu0 %v2247
      %v2361 = vpop.f32.mrf.mxu0
      %v2362 = vadd.f32 0.0, %v2361
      %v2363 = vpop.f32.mrf.mxu0
      %v2364 = vpop.f32.mrf.mxu0
      %v2365 = vadd.f32 0.0, %v2364
      %v2366 = vpop.f32.mrf.mxu0
      %2367 = vmatprep.mubr.bf16.mxu0 0
      %2368 = vmatmul.mubr.bf16.gmra.mxu0 %v2248
      %v2369 = vpop.f32.mrf.mxu0
      %v2370 = vadd.f32 0.0, %v2369
      %v2371 = vpop.f32.mrf.mxu0
      %v2372 = vpop.f32.mrf.mxu0
      %v2373 = vadd.f32 0.0, %v2372
      %v2374 = vpop.f32.mrf.mxu0
      %2375 = vmatprep.mubr.bf16.mxu0 0
      %2376 = vmatmul.mubr.bf16.gmra.mxu0 %v2249
      %v2377 = vpop.f32.mrf.mxu0
      %v2378 = vadd.f32 0.0, %v2377
      %v2379 = vpop.f32.mrf.mxu0
      %v2380 = vpop.f32.mrf.mxu0
      %v2381 = vadd.f32 0.0, %v2380
      %v2382 = vpop.f32.mrf.mxu0
      %2383 = vmatprep.mubr.bf16.mxu0 0
      %2384 = vmatmul.mubr.bf16.gmra.mxu0 %v2250
      %v2385 = vpop.f32.mrf.mxu0
      %v2386 = vadd.f32 0.0, %v2385
      %v2387 = vpop.f32.mrf.mxu0
      %v2388 = vpop.f32.mrf.mxu0
      %v2389 = vadd.f32 0.0, %v2388
      %v2390 = vpop.f32.mrf.mxu0
      %2391 = vmatprep.mubr.bf16.mxu0 0
      %2392 = vmatmul.mubr.bf16.gmra.mxu0 %v2251
      %v2393 = vpop.f32.mrf.mxu0
      %v2394 = vadd.f32 0.0, %v2393
      %v2395 = vpop.f32.mrf.mxu0
      %v2396 = vpop.f32.mrf.mxu0
      %v2397 = vadd.f32 0.0, %v2396
      %v2398 = vpop.f32.mrf.mxu0
      %2399 = vmatprep.mubr.bf16.mxu0 0
      %2400 = vmatmul.mubr.bf16.gmra.mxu0 %v2252
      %v2401 = vpop.f32.mrf.mxu0
      %v2402 = vadd.f32 0.0, %v2401
      %v2403 = vpop.f32.mrf.mxu0
      %v2404 = vpop.f32.mrf.mxu0
      %v2405 = vadd.f32 0.0, %v2404
      %v2406 = vpop.f32.mrf.mxu0
      %2407 = vmatprep.mubr.bf16.mxu0 0
      %2408 = vmatmul.mubr.bf16.gmra.mxu0 %v2253
      %v2409 = vpop.f32.mrf.mxu0
      %v2410 = vadd.f32 0.0, %v2409
      %v2411 = vpop.f32.mrf.mxu0
      %v2412 = vpop.f32.mrf.mxu0
      %v2413 = vadd.f32 0.0, %v2412
      %v2414 = vpop.f32.mrf.mxu0
      %2415 = vmatprep.mubr.bf16.mxu0 0
      %2416 = vmatmul.mubr.bf16.gmra.mxu0 %v2254
      %v2417 = vpop.f32.mrf.mxu0
      %v2418 = vadd.f32 0.0, %v2417
      %v2419 = vpop.f32.mrf.mxu0
      %v2420 = vpop.f32.mrf.mxu0
      %v2421 = vadd.f32 0.0, %v2420
      %v2422 = vpop.f32.mrf.mxu0
      %2423 = vmatprep.mubr.bf16.mxu0 0
      %2424 = vmatmul.mubr.bf16.gmra.mxu0 %v2255
      %v2425 = vpop.f32.mrf.mxu0
      %v2426 = vadd.f32 0.0, %v2425
      %v2427 = vpop.f32.mrf.mxu0
      %v2428 = vpop.f32.mrf.mxu0
      %v2429 = vadd.f32 0.0, %v2428
      %v2430 = vpop.f32.mrf.mxu0
      %2431 = vmatprep.mubr.bf16.mxu0 0
      %2432 = vmatmul.mubr.bf16.gmra.mxu0 %v2256
      %v2433 = vpop.f32.mrf.mxu0
      %v2434 = vadd.f32 0.0, %v2433
      %v2435 = vpop.f32.mrf.mxu0
      %v2436 = vpop.f32.mrf.mxu0
      %v2437 = vadd.f32 0.0, %v2436
      %v2438 = vpop.f32.mrf.mxu0
      %2439 = vmatprep.mubr.bf16.mxu0 0
      %2440 = vmatmul.mubr.bf16.gmra.mxu0 %v2257
      %v2441 = vpop.f32.mrf.mxu0
      %v2442 = vadd.f32 0.0, %v2441
      %v2443 = vpop.f32.mrf.mxu0
      %v2444 = vpop.f32.mrf.mxu0
      %v2445 = vadd.f32 0.0, %v2444
      %v2446 = vpop.f32.mrf.mxu0
      %2447 = vmatprep.mubr.bf16.mxu0 0
      %2448 = vmatmul.mubr.bf16.gmra.mxu0 %v2258
      %v2449 = vpop.f32.mrf.mxu0
      %v2450 = vadd.f32 0.0, %v2449
      %v2451 = vpop.f32.mrf.mxu0
      %v2452 = vpop.f32.mrf.mxu0
      %v2453 = vadd.f32 0.0, %v2452
      %v2454 = vpop.f32.mrf.mxu0
      %2455 = vmatprep.mubr.bf16.mxu0 0
      %2456 = vmatmul.mubr.bf16.gmra.mxu0 %v2259
      %v2457 = vpop.f32.mrf.mxu0
      %v2458 = vadd.f32 0.0, %v2457
      %v2459 = vpop.f32.mrf.mxu0
      %v2460 = vpop.f32.mrf.mxu0
      %v2461 = vadd.f32 0.0, %v2460
      %v2462 = vpop.f32.mrf.mxu0
      %2463 = vmatprep.mubr.bf16.mxu0 0
      %2464 = vmatmul.mubr.bf16.gmra.mxu0 %v2260
      %v2465 = vpop.f32.mrf.mxu0
      %v2466 = vadd.f32 0.0, %v2465
      %v2467 = vpop.f32.mrf.mxu0
      %v2468 = vpop.f32.mrf.mxu0
      %v2469 = vadd.f32 0.0, %v2468
      %v2470 = vpop.f32.mrf.mxu0
      %2471 = vmatprep.mubr.bf16.mxu0 0
      %2472 = vmatmul.mubr.bf16.gmra.mxu0 %v2261
      %v2473 = vpop.f32.mrf.mxu0
      %v2474 = vadd.f32 0.0, %v2473
      %v2475 = vpop.f32.mrf.mxu0
      %v2476 = vpop.f32.mrf.mxu0
      %v2477 = vadd.f32 0.0, %v2476
      %v2478 = vpop.f32.mrf.mxu0
      %2479 = vmatprep.mubr.bf16.mxu0 0
      %2480 = vmatmul.mubr.bf16.gmra.mxu0 %v2262
      %v2481 = vpop.f32.mrf.mxu0
      %v2482 = vadd.f32 0.0, %v2481
      %v2483 = vpop.f32.mrf.mxu0
      %v2484 = vpop.f32.mrf.mxu0
      %v2485 = vadd.f32 0.0, %v2484
      %v2486 = vpop.f32.mrf.mxu0
      %2487 = vdwg.mxu0
      %v2488 = vadd.f32 %v2134, %v2362
      %v2489 = vadd.f32 %v2135, %v2365
      %v2490 = vadd.f32 %v2136, %v2370
      %v2491 = vadd.f32 %v2137, %v2373
      %v2492 = vadd.f32 %v2138, %v2378
      %v2493 = vadd.f32 %v2139, %v2381
      %v2494 = vadd.f32 %v2140, %v2386
      %v2495 = vadd.f32 %v2141, %v2389
      %v2496 = vadd.f32 %v2142, %v2394
      %v2497 = vadd.f32 %v2143, %v2397
      %v2498 = vadd.f32 %v2144, %v2402
      %v2499 = vadd.f32 %v2145, %v2405
      %v2500 = vadd.f32 %v2146, %v2410
      %v2501 = vadd.f32 %v2147, %v2413
      %v2502 = vadd.f32 %v2148, %v2418
      %v2503 = vadd.f32 %v2149, %v2421
      %v2504 = vadd.f32 %v2150, %v2426
      %v2505 = vadd.f32 %v2151, %v2429
      %v2506 = vadd.f32 %v2152, %v2434
      %v2507 = vadd.f32 %v2153, %v2437
      %v2508 = vadd.f32 %v2154, %v2442
      %v2509 = vadd.f32 %v2155, %v2445
      %v2510 = vadd.f32 %v2156, %v2450
      %v2511 = vadd.f32 %v2157, %v2453
      %v2512 = vadd.f32 %v2158, %v2458
      %v2513 = vadd.f32 %v2159, %v2461
      %v2514 = vadd.f32 %v2160, %v2466
      %v2515 = vadd.f32 %v2161, %v2469
      %v2516 = vadd.f32 %v2162, %v2474
      %v2517 = vadd.f32 %v2163, %v2477
      %v2518 = vadd.f32 %v2164, %v2482
      %v2519 = vadd.f32 %v2165, %v2485
      %2520 = vst [vmem:[#allocation2] sm:$0xff] %v2488
      %2521 = vst [vmem:[#allocation2 + $0x8] sm:$0xff] %v2489
      %2522 = vst [vmem:[#allocation2 + $0x10] sm:$0xff] %v2490
      %2523 = vst [vmem:[#allocation2 + $0x18] sm:$0xff] %v2491
      %2524 = vst [vmem:[#allocation2 + $0x20] sm:$0xff] %v2492
      %2525 = vst [vmem:[#allocation2 + $0x28] sm:$0xff] %v2493
      %2526 = vst [vmem:[#allocation2 + $0x30] sm:$0xff] %v2494
      %2527 = vst [vmem:[#allocation2 + $0x38] sm:$0xff] %v2495
      %2528 = vst [vmem:[#allocation2 + $0x40] sm:$0xff] %v2496
      %2529 = vst [vmem:[#allocation2 + $0x48] sm:$0xff] %v2497
      %2530 = vst [vmem:[#allocation2 + $0x50] sm:$0xff] %v2498
      %2531 = vst [vmem:[#allocation2 + $0x58] sm:$0xff] %v2499
      %2532 = vst [vmem:[#allocation2 + $0x60] sm:$0xff] %v2500
      %2533 = vst [vmem:[#allocation2 + $0x68] sm:$0xff] %v2501
      %2534 = vst [vmem:[#allocation2 + $0x70] sm:$0xff] %v2502
      %2535 = vst [vmem:[#allocation2 + $0x78] sm:$0xff] %v2503
      %2536 = vst [vmem:[#allocation2 + $0x80] sm:$0xff] %v2504
      %2537 = vst [vmem:[#allocation2 + $0x88] sm:$0xff] %v2505
      %2538 = vst [vmem:[#allocation2 + $0x90] sm:$0xff] %v2506
      %2539 = vst [vmem:[#allocation2 + $0x98] sm:$0xff] %v2507
      %2540 = vst [vmem:[#allocation2 + $0xa0] sm:$0xff] %v2508
      %2541 = vst [vmem:[#allocation2 + $0xa8] sm:$0xff] %v2509
      %2542 = vst [vmem:[#allocation2 + $0xb0] sm:$0xff] %v2510
      %2543 = vst [vmem:[#allocation2 + $0xb8] sm:$0xff] %v2511
      %2544 = vst [vmem:[#allocation2 + $0xc0] sm:$0xff] %v2512
      %2545 = vst [vmem:[#allocation2 + $0xc8] sm:$0xff] %v2513
      %2546 = vst [vmem:[#allocation2 + $0xd0] sm:$0xff] %v2514
      %2547 = vst [vmem:[#allocation2 + $0xd8] sm:$0xff] %v2515
      %2548 = vst [vmem:[#allocation2 + $0xe0] sm:$0xff] %v2516
      %2549 = vst [vmem:[#allocation2 + $0xe8] sm:$0xff] %v2517
      %2550 = vst [vmem:[#allocation2 + $0xf0] sm:$0xff] %v2518
      %2551 = vst [vmem:[#allocation2 + $0xf8] sm:$0xff] %v2519
      %v2552 = vld [vmem:[%s2101] sm:$0xf]
      %v2553 = vld [vmem:[%s2101 + $0x4] sm:$0xf]
      %v2554 = vld [vmem:[%s2101 + $0x8] sm:$0x1]
      %v2555 = vld [vmem:[%s2101 + $0xc] sm:$0xf]
      %v2556 = vld [vmem:[%s2101 + $0x10] sm:$0xf]
      %v2557 = vld [vmem:[%s2101 + $0x14] sm:$0x1]
      %v2558 = vld [vmem:[%s2101 + $0x18] sm:$0xf]
      %v2559 = vld [vmem:[%s2101 + $0x1c] sm:$0xf]
      %v2560 = vld [vmem:[%s2101 + $0x20] sm:$0x1]
      %v2561 = vld [vmem:[%s2101 + $0x24] sm:$0xf]
      %v2562 = vld [vmem:[%s2101 + $0x28] sm:$0xf]
      %v2563 = vld [vmem:[%s2101 + $0x2c] sm:$0x1]
      %v2564 = vld [vmem:[%s2101 + $0x30] sm:$0xf]
      %v2565 = vld [vmem:[%s2101 + $0x34] sm:$0xf]
      %v2566 = vld [vmem:[%s2101 + $0x38] sm:$0x1]
      %v2567 = vld [vmem:[%s2101 + $0x3c] sm:$0xf]
      %v2568 = vld [vmem:[%s2101 + $0x40] sm:$0xf]
      %v2569 = vld [vmem:[%s2101 + $0x44] sm:$0x1]
      %v2570 = vld [vmem:[%s2101 + $0x48] sm:$0xf]
      %v2571 = vld [vmem:[%s2101 + $0x4c] sm:$0xf]
      %v2572 = vld [vmem:[%s2101 + $0x50] sm:$0x1]
      %v2573 = vld [vmem:[%s2101 + $0x54] sm:$0xf]
      %v2574 = vld [vmem:[%s2101 + $0x58] sm:$0xf]
      %v2575 = vld [vmem:[%s2101 + $0x5c] sm:$0x1]
      %v2576 = vld [vmem:[%s2101 + $0x60] sm:$0xf]
      %v2577 = vld [vmem:[%s2101 + $0x64] sm:$0xf]
      %v2578 = vld [vmem:[%s2101 + $0x68] sm:$0x1]
      %v2579 = vld [vmem:[%s2101 + $0x6c] sm:$0xf]
      %v2580 = vld [vmem:[%s2101 + $0x70] sm:$0xf]
      %v2581 = vld [vmem:[%s2101 + $0x74] sm:$0x1]
      %v2582 = vld [vmem:[%s2101 + $0x78] sm:$0xf]
      %v2583 = vld [vmem:[%s2101 + $0x7c] sm:$0xf]
      %v2584 = vld [vmem:[%s2101 + $0x80] sm:$0x1]
      %v2585 = vld [vmem:[%s2101 + $0x84] sm:$0xf]
      %v2586 = vld [vmem:[%s2101 + $0x88] sm:$0xf]
      %v2587 = vld [vmem:[%s2101 + $0x8c] sm:$0x1]
      %v2588 = vld [vmem:[%s2101 + $0x90] sm:$0xf]
      %v2589 = vld [vmem:[%s2101 + $0x94] sm:$0xf]
      %v2590 = vld [vmem:[%s2101 + $0x98] sm:$0x1]
      %v2591 = vld [vmem:[%s2101 + $0x9c] sm:$0xf]
      %v2592 = vld [vmem:[%s2101 + $0xa0] sm:$0xf]
      %v2593 = vld [vmem:[%s2101 + $0xa4] sm:$0x1]
      %v2594 = vld [vmem:[%s2101 + $0xa8] sm:$0xf]
      %v2595 = vld [vmem:[%s2101 + $0xac] sm:$0xf]
      %v2596 = vld [vmem:[%s2101 + $0xb0] sm:$0x1]
      %v2597 = vld [vmem:[%s2101 + $0xb4] sm:$0xf]
      %v2598 = vld [vmem:[%s2101 + $0xb8] sm:$0xf]
      %v2599 = vld [vmem:[%s2101 + $0xbc] sm:$0x1]
      %v2601 = vshrl.u32 %v2552, 16
      %v2603 = vrot.slane %v2601, 4
      %v2604 = vshll.u32 %v2552, 16
      %v2606 = vrot.slane %v2604, 5
      %v2607 = vor.u32 %v2603, %v2606
      %v2608 = vrot.slane %v2607, 4
      %v2610 = vshll.u32 %v2553, 16
      %v2612 = vrot.slane %v2610, 5
      %v2613 = vsel %vm730, %v2608, %v2612
      %v2614 = vshrl.u32 %v2553, 16
      %v2616 = vrot.slane %v2614, 4
      %v2617 = vor.u32 %v2616, %v2612
      %v2618 = vrot.slane %v2617, 4
      %v2620 = vshll.u32 %v2554, 16
      %v2622 = vrot.slane %v2620, 5
      %v2623 = vsel %vm730, %v2618, %v2622
      %v2625 = vshrl.u32 %v2555, 16
      %v2627 = vrot.slane %v2625, 4
      %v2628 = vshll.u32 %v2555, 16
      %v2630 = vrot.slane %v2628, 5
      %v2631 = vor.u32 %v2627, %v2630
      %v2632 = vrot.slane %v2631, 4
      %v2634 = vshll.u32 %v2556, 16
      %v2636 = vrot.slane %v2634, 5
      %v2637 = vsel %vm730, %v2632, %v2636
      %v2638 = vshrl.u32 %v2556, 16
      %v2640 = vrot.slane %v2638, 4
      %v2641 = vor.u32 %v2640, %v2636
      %v2642 = vrot.slane %v2641, 4
      %v2644 = vshll.u32 %v2557, 16
      %v2646 = vrot.slane %v2644, 5
      %v2647 = vsel %vm730, %v2642, %v2646
      %v2649 = vshrl.u32 %v2558, 16
      %v2651 = vrot.slane %v2649, 4
      %v2652 = vshll.u32 %v2558, 16
      %v2654 = vrot.slane %v2652, 5
      %v2655 = vor.u32 %v2651, %v2654
      %v2656 = vrot.slane %v2655, 4
      %v2658 = vshll.u32 %v2559, 16
      %v2660 = vrot.slane %v2658, 5
      %v2661 = vsel %vm730, %v2656, %v2660
      %v2662 = vshrl.u32 %v2559, 16
      %v2664 = vrot.slane %v2662, 4
      %v2665 = vor.u32 %v2664, %v2660
      %v2666 = vrot.slane %v2665, 4
      %v2668 = vshll.u32 %v2560, 16
      %v2670 = vrot.slane %v2668, 5
      %v2671 = vsel %vm730, %v2666, %v2670
      %v2673 = vshrl.u32 %v2561, 16
      %v2675 = vrot.slane %v2673, 4
      %v2676 = vshll.u32 %v2561, 16
      %v2678 = vrot.slane %v2676, 5
      %v2679 = vor.u32 %v2675, %v2678
      %v2680 = vrot.slane %v2679, 4
      %v2682 = vshll.u32 %v2562, 16
      %v2684 = vrot.slane %v2682, 5
      %v2685 = vsel %vm730, %v2680, %v2684
      %v2686 = vshrl.u32 %v2562, 16
      %v2688 = vrot.slane %v2686, 4
      %v2689 = vor.u32 %v2688, %v2684
      %v2690 = vrot.slane %v2689, 4
      %v2692 = vshll.u32 %v2563, 16
      %v2694 = vrot.slane %v2692, 5
      %v2695 = vsel %vm730, %v2690, %v2694
      %v2697 = vshrl.u32 %v2564, 16
      %v2699 = vrot.slane %v2697, 4
      %v2700 = vshll.u32 %v2564, 16
      %v2702 = vrot.slane %v2700, 5
      %v2703 = vor.u32 %v2699, %v2702
      %v2704 = vrot.slane %v2703, 4
      %v2706 = vshll.u32 %v2565, 16
      %v2708 = vrot.slane %v2706, 5
      %v2709 = vsel %vm730, %v2704, %v2708
      %v2710 = vshrl.u32 %v2565, 16
      %v2712 = vrot.slane %v2710, 4
      %v2713 = vor.u32 %v2712, %v2708
      %v2714 = vrot.slane %v2713, 4
      %v2716 = vshll.u32 %v2566, 16
      %v2718 = vrot.slane %v2716, 5
      %v2719 = vsel %vm730, %v2714, %v2718
      %v2721 = vshrl.u32 %v2567, 16
      %v2723 = vrot.slane %v2721, 4
      %v2724 = vshll.u32 %v2567, 16
      %v2726 = vrot.slane %v2724, 5
      %v2727 = vor.u32 %v2723, %v2726
      %v2728 = vrot.slane %v2727, 4
      %v2730 = vshll.u32 %v2568, 16
      %v2732 = vrot.slane %v2730, 5
      %v2733 = vsel %vm730, %v2728, %v2732
      %v2734 = vshrl.u32 %v2568, 16
      %v2736 = vrot.slane %v2734, 4
      %v2737 = vor.u32 %v2736, %v2732
      %v2738 = vrot.slane %v2737, 4
      %v2740 = vshll.u32 %v2569, 16
      %v2742 = vrot.slane %v2740, 5
      %v2743 = vsel %vm730, %v2738, %v2742
      %v2745 = vshrl.u32 %v2570, 16
      %v2747 = vrot.slane %v2745, 4
      %v2748 = vshll.u32 %v2570, 16
      %v2750 = vrot.slane %v2748, 5
      %v2751 = vor.u32 %v2747, %v2750
      %v2752 = vrot.slane %v2751, 4
      %v2754 = vshll.u32 %v2571, 16
      %v2756 = vrot.slane %v2754, 5
      %v2757 = vsel %vm730, %v2752, %v2756
      %v2758 = vshrl.u32 %v2571, 16
      %v2760 = vrot.slane %v2758, 4
      %v2761 = vor.u32 %v2760, %v2756
      %v2762 = vrot.slane %v2761, 4
      %v2764 = vshll.u32 %v2572, 16
      %v2766 = vrot.slane %v2764, 5
      %v2767 = vsel %vm730, %v2762, %v2766
      %v2769 = vshrl.u32 %v2573, 16
      %v2771 = vrot.slane %v2769, 4
      %v2772 = vshll.u32 %v2573, 16
      %v2774 = vrot.slane %v2772, 5
      %v2775 = vor.u32 %v2771, %v2774
      %v2776 = vrot.slane %v2775, 4
      %v2778 = vshll.u32 %v2574, 16
      %v2780 = vrot.slane %v2778, 5
      %v2781 = vsel %vm730, %v2776, %v2780
      %v2782 = vshrl.u32 %v2574, 16
      %v2784 = vrot.slane %v2782, 4
      %v2785 = vor.u32 %v2784, %v2780
      %v2786 = vrot.slane %v2785, 4
      %v2788 = vshll.u32 %v2575, 16
      %v2790 = vrot.slane %v2788, 5
      %v2791 = vsel %vm730, %v2786, %v2790
      %v2793 = vshrl.u32 %v2576, 16
      %v2795 = vrot.slane %v2793, 4
      %v2796 = vshll.u32 %v2576, 16
      %v2798 = vrot.slane %v2796, 5
      %v2799 = vor.u32 %v2795, %v2798
      %v2800 = vrot.slane %v2799, 4
      %v2802 = vshll.u32 %v2577, 16
      %v2804 = vrot.slane %v2802, 5
      %v2805 = vsel %vm730, %v2800, %v2804
      %v2806 = vshrl.u32 %v2577, 16
      %v2808 = vrot.slane %v2806, 4
      %v2809 = vor.u32 %v2808, %v2804
      %v2810 = vrot.slane %v2809, 4
      %v2812 = vshll.u32 %v2578, 16
      %v2814 = vrot.slane %v2812, 5
      %v2815 = vsel %vm730, %v2810, %v2814
      %v2817 = vshrl.u32 %v2579, 16
      %v2819 = vrot.slane %v2817, 4
      %v2820 = vshll.u32 %v2579, 16
      %v2822 = vrot.slane %v2820, 5
      %v2823 = vor.u32 %v2819, %v2822
      %v2824 = vrot.slane %v2823, 4
      %v2826 = vshll.u32 %v2580, 16
      %v2828 = vrot.slane %v2826, 5
      %v2829 = vsel %vm730, %v2824, %v2828
      %v2830 = vshrl.u32 %v2580, 16
      %v2832 = vrot.slane %v2830, 4
      %v2833 = vor.u32 %v2832, %v2828
      %v2834 = vrot.slane %v2833, 4
      %v2836 = vshll.u32 %v2581, 16
      %v2838 = vrot.slane %v2836, 5
      %v2839 = vsel %vm730, %v2834, %v2838
      %v2841 = vshrl.u32 %v2582, 16
      %v2843 = vrot.slane %v2841, 4
      %v2844 = vshll.u32 %v2582, 16
      %v2846 = vrot.slane %v2844, 5
      %v2847 = vor.u32 %v2843, %v2846
      %v2848 = vrot.slane %v2847, 4
      %v2850 = vshll.u32 %v2583, 16
      %v2852 = vrot.slane %v2850, 5
      %v2853 = vsel %vm730, %v2848, %v2852
      %v2854 = vshrl.u32 %v2583, 16
      %v2856 = vrot.slane %v2854, 4
      %v2857 = vor.u32 %v2856, %v2852
      %v2858 = vrot.slane %v2857, 4
      %v2860 = vshll.u32 %v2584, 16
      %v2862 = vrot.slane %v2860, 5
      %v2863 = vsel %vm730, %v2858, %v2862
      %v2865 = vshrl.u32 %v2585, 16
      %v2867 = vrot.slane %v2865, 4
      %v2868 = vshll.u32 %v2585, 16
      %v2870 = vrot.slane %v2868, 5
      %v2871 = vor.u32 %v2867, %v2870
      %v2872 = vrot.slane %v2871, 4
      %v2874 = vshll.u32 %v2586, 16
      %v2876 = vrot.slane %v2874, 5
      %v2877 = vsel %vm730, %v2872, %v2876
      %v2878 = vshrl.u32 %v2586, 16
      %v2880 = vrot.slane %v2878, 4
      %v2881 = vor.u32 %v2880, %v2876
      %v2882 = vrot.slane %v2881, 4
      %v2884 = vshll.u32 %v2587, 16
      %v2886 = vrot.slane %v2884, 5
      %v2887 = vsel %vm730, %v2882, %v2886
      %v2889 = vshrl.u32 %v2588, 16
      %v2891 = vrot.slane %v2889, 4
      %v2892 = vshll.u32 %v2588, 16
      %v2894 = vrot.slane %v2892, 5
      %v2895 = vor.u32 %v2891, %v2894
      %v2896 = vrot.slane %v2895, 4
      %v2898 = vshll.u32 %v2589, 16
      %v2900 = vrot.slane %v2898, 5
      %v2901 = vsel %vm730, %v2896, %v2900
      %v2902 = vshrl.u32 %v2589, 16
      %v2904 = vrot.slane %v2902, 4
      %v2905 = vor.u32 %v2904, %v2900
      %v2906 = vrot.slane %v2905, 4
      %v2908 = vshll.u32 %v2590, 16
      %v2910 = vrot.slane %v2908, 5
      %v2911 = vsel %vm730, %v2906, %v2910
      %v2913 = vshrl.u32 %v2591, 16
      %v2915 = vrot.slane %v2913, 4
      %v2916 = vshll.u32 %v2591, 16
      %v2918 = vrot.slane %v2916, 5
      %v2919 = vor.u32 %v2915, %v2918
      %v2920 = vrot.slane %v2919, 4
      %v2922 = vshll.u32 %v2592, 16
      %v2924 = vrot.slane %v2922, 5
      %v2925 = vsel %vm730, %v2920, %v2924
      %v2926 = vshrl.u32 %v2592, 16
      %v2928 = vrot.slane %v2926, 4
      %v2929 = vor.u32 %v2928, %v2924
      %v2930 = vrot.slane %v2929, 4
      %v2932 = vshll.u32 %v2593, 16
      %v2934 = vrot.slane %v2932, 5
      %v2935 = vsel %vm730, %v2930, %v2934
      %v2937 = vshrl.u32 %v2594, 16
      %v2939 = vrot.slane %v2937, 4
      %v2940 = vshll.u32 %v2594, 16
      %v2942 = vrot.slane %v2940, 5
      %v2943 = vor.u32 %v2939, %v2942
      %v2944 = vrot.slane %v2943, 4
      %v2946 = vshll.u32 %v2595, 16
      %v2948 = vrot.slane %v2946, 5
      %v2949 = vsel %vm730, %v2944, %v2948
      %v2950 = vshrl.u32 %v2595, 16
      %v2952 = vrot.slane %v2950, 4
      %v2953 = vor.u32 %v2952, %v2948
      %v2954 = vrot.slane %v2953, 4
      %v2956 = vshll.u32 %v2596, 16
      %v2958 = vrot.slane %v2956, 5
      %v2959 = vsel %vm730, %v2954, %v2958
      %v2961 = vshrl.u32 %v2597, 16
      %v2963 = vrot.slane %v2961, 4
      %v2964 = vshll.u32 %v2597, 16
      %v2966 = vrot.slane %v2964, 5
      %v2967 = vor.u32 %v2963, %v2966
      %v2968 = vrot.slane %v2967, 4
      %v2970 = vshll.u32 %v2598, 16
      %v2972 = vrot.slane %v2970, 5
      %v2973 = vsel %vm730, %v2968, %v2972
      %v2974 = vshrl.u32 %v2598, 16
      %v2976 = vrot.slane %v2974, 4
      %v2977 = vor.u32 %v2976, %v2972
      %v2978 = vrot.slane %v2977, 4
      %v2980 = vshll.u32 %v2599, 16
      %v2982 = vrot.slane %v2980, 5
      %v2983 = vsel %vm730, %v2978, %v2982
      %v2984 = vld [vmem:[#allocation2] sm:$0xff]
      %v2985 = vld [vmem:[#allocation2 + $0x8] sm:$0xff]
      %v2986 = vld [vmem:[#allocation2 + $0x10] sm:$0xff]
      %v2987 = vld [vmem:[#allocation2 + $0x18] sm:$0xff]
      %v2988 = vld [vmem:[#allocation2 + $0x20] sm:$0xff]
      %v2989 = vld [vmem:[#allocation2 + $0x28] sm:$0xff]
      %v2990 = vld [vmem:[#allocation2 + $0x30] sm:$0xff]
      %v2991 = vld [vmem:[#allocation2 + $0x38] sm:$0xff]
      %v2992 = vld [vmem:[#allocation2 + $0x40] sm:$0xff]
      %v2993 = vld [vmem:[#allocation2 + $0x48] sm:$0xff]
      %v2994 = vld [vmem:[#allocation2 + $0x50] sm:$0xff]
      %v2995 = vld [vmem:[#allocation2 + $0x58] sm:$0xff]
      %v2996 = vld [vmem:[#allocation2 + $0x60] sm:$0xff]
      %v2997 = vld [vmem:[#allocation2 + $0x68] sm:$0xff]
      %v2998 = vld [vmem:[#allocation2 + $0x70] sm:$0xff]
      %v2999 = vld [vmem:[#allocation2 + $0x78] sm:$0xff]
      %v3000 = vld [vmem:[#allocation2 + $0x80] sm:$0xff]
      %v3001 = vld [vmem:[#allocation2 + $0x88] sm:$0xff]
      %v3002 = vld [vmem:[#allocation2 + $0x90] sm:$0xff]
      %v3003 = vld [vmem:[#allocation2 + $0x98] sm:$0xff]
      %v3004 = vld [vmem:[#allocation2 + $0xa0] sm:$0xff]
      %v3005 = vld [vmem:[#allocation2 + $0xa8] sm:$0xff]
      %v3006 = vld [vmem:[#allocation2 + $0xb0] sm:$0xff]
      %v3007 = vld [vmem:[#allocation2 + $0xb8] sm:$0xff]
      %v3008 = vld [vmem:[#allocation2 + $0xc0] sm:$0xff]
      %v3009 = vld [vmem:[#allocation2 + $0xc8] sm:$0xff]
      %v3010 = vld [vmem:[#allocation2 + $0xd0] sm:$0xff]
      %v3011 = vld [vmem:[#allocation2 + $0xd8] sm:$0xff]
      %v3012 = vld [vmem:[#allocation2 + $0xe0] sm:$0xff]
      %v3013 = vld [vmem:[#allocation2 + $0xe8] sm:$0xff]
      %v3014 = vld [vmem:[#allocation2 + $0xf0] sm:$0xff]
      %v3015 = vld [vmem:[#allocation2 + $0xf8] sm:$0xff]
      %s3016 = scalar_lea.vmem %s1, 256
      %v3017 = vld [vmem:[%s3016] sm:$0xf]
      %v3018 = vld [vmem:[%s3016 + $0x4] sm:$0xf]
      %v3019 = vld [vmem:[%s3016 + $0x8] sm:$0xf]
      %v3020 = vld [vmem:[%s3016 + $0xc] sm:$0xf]
      %v3021 = vld [vmem:[%s3016 + $0x10] sm:$0xf]
      %v3022 = vld [vmem:[%s3016 + $0x14] sm:$0xf]
      %v3023 = vld [vmem:[%s3016 + $0x18] sm:$0xf]
      %v3024 = vld [vmem:[%s3016 + $0x1c] sm:$0xf]
      %v3025 = vld [vmem:[%s3016 + $0x20] sm:$0xf]
      %v3026 = vld [vmem:[%s3016 + $0x24] sm:$0xf]
      %v3027 = vld [vmem:[%s3016 + $0x28] sm:$0xf]
      %v3028 = vld [vmem:[%s3016 + $0x2c] sm:$0xf]
      %v3029 = vld [vmem:[%s3016 + $0x30] sm:$0xf]
      %v3030 = vld [vmem:[%s3016 + $0x34] sm:$0xf]
      %v3031 = vld [vmem:[%s3016 + $0x38] sm:$0xf]
      %v3032 = vld [vmem:[%s3016 + $0x3c] sm:$0xf]
      %v3033 = vunpack.c.l.b16 %v2613
      %v3034 = vunpack.c.l.b16 %v2623
      %v3035 = vunpack.c.l.b16 %v2637
      %v3036 = vunpack.c.l.b16 %v2647
      %v3037 = vunpack.c.l.b16 %v2661
      %v3038 = vunpack.c.l.b16 %v2671
      %v3039 = vunpack.c.l.b16 %v2685
      %v3040 = vunpack.c.l.b16 %v2695
      %v3041 = vunpack.c.l.b16 %v2709
      %v3042 = vunpack.c.l.b16 %v2719
      %v3043 = vunpack.c.l.b16 %v2733
      %v3044 = vunpack.c.l.b16 %v2743
      %v3045 = vunpack.c.l.b16 %v2757
      %v3046 = vunpack.c.l.b16 %v2767
      %v3047 = vunpack.c.l.b16 %v2781
      %v3048 = vunpack.c.l.b16 %v2791
      %v3049 = vunpack.c.l.b16 %v2805
      %v3050 = vunpack.c.l.b16 %v2815
      %v3051 = vunpack.c.l.b16 %v2829
      %v3052 = vunpack.c.l.b16 %v2839
      %v3053 = vunpack.c.l.b16 %v2853
      %v3054 = vunpack.c.l.b16 %v2863
      %v3055 = vunpack.c.l.b16 %v2877
      %v3056 = vunpack.c.l.b16 %v2887
      %v3057 = vunpack.c.l.b16 %v2901
      %v3058 = vunpack.c.l.b16 %v2911
      %v3059 = vunpack.c.l.b16 %v2925
      %v3060 = vunpack.c.l.b16 %v2935
      %v3061 = vunpack.c.l.b16 %v2949
      %v3062 = vunpack.c.l.b16 %v2959
      %v3063 = vunpack.c.l.b16 %v2973
      %v3064 = vunpack.c.l.b16 %v2983
      %v3065 = vpack.c.b16 %v3034, %v3033
      %v3066 = vpack.c.b16 %v3036, %v3035
      %v3067 = vpack.c.b16 %v3038, %v3037
      %v3068 = vpack.c.b16 %v3040, %v3039
      %v3069 = vpack.c.b16 %v3042, %v3041
      %v3070 = vpack.c.b16 %v3044, %v3043
      %v3071 = vpack.c.b16 %v3046, %v3045
      %v3072 = vpack.c.b16 %v3048, %v3047
      %v3073 = vpack.c.b16 %v3050, %v3049
      %v3074 = vpack.c.b16 %v3052, %v3051
      %v3075 = vpack.c.b16 %v3054, %v3053
      %v3076 = vpack.c.b16 %v3056, %v3055
      %v3077 = vpack.c.b16 %v3058, %v3057
      %v3078 = vpack.c.b16 %v3060, %v3059
      %v3079 = vpack.c.b16 %v3062, %v3061
      %v3080 = vpack.c.b16 %v3064, %v3063
      %v3113 = vunpack.c.l.b16 %v3017
      %v3114 = vunpack.c.l.b16 %v3018
      %v3115 = vunpack.c.l.b16 %v3019
      %v3116 = vunpack.c.l.b16 %v3020
      %v3117 = vunpack.c.l.b16 %v3021
      %v3118 = vunpack.c.l.b16 %v3022
      %v3119 = vunpack.c.l.b16 %v3023
      %v3120 = vunpack.c.l.b16 %v3024
      %v3121 = vunpack.c.l.b16 %v3025
      %v3122 = vunpack.c.l.b16 %v3026
      %v3123 = vunpack.c.l.b16 %v3027
      %v3124 = vunpack.c.l.b16 %v3028
      %v3125 = vunpack.c.l.b16 %v3029
      %v3126 = vunpack.c.l.b16 %v3030
      %v3127 = vunpack.c.l.b16 %v3031
      %v3128 = vunpack.c.l.b16 %v3032
      %v3129 = vpack.c.b16 %v3114, %v3113
      %v3130 = vpack.c.b16 %v3116, %v3115
      %v3131 = vpack.c.b16 %v3118, %v3117
      %v3132 = vpack.c.b16 %v3120, %v3119
      %v3133 = vpack.c.b16 %v3122, %v3121
      %v3134 = vpack.c.b16 %v3124, %v3123
      %v3135 = vpack.c.b16 %v3126, %v3125
      %v3136 = vpack.c.b16 %v3128, %v3127
      %3145 = vmatprep.subr.bf16.mxu0 0
      %3146 = vmatpush1.bf16.msra.mxu0 %v3136
      %3147 = vmatprep.subr.bf16.mxu0 0
      %3148 = vmatpush1.bf16.msra.mxu0 %v3135
      %3149 = vmatprep.subr.bf16.mxu0 0
      %3150 = vmatpush1.bf16.msra.mxu0 %v3134
      %3151 = vmatprep.subr.bf16.mxu0 0
      %3152 = vmatpush1.bf16.msra.mxu0 %v3133
      %3153 = vmatprep.subr.bf16.mxu0 0
      %3154 = vmatpush1.bf16.msra.mxu0 %v3132
      %3155 = vmatprep.subr.bf16.mxu0 0
      %3156 = vmatpush1.bf16.msra.mxu0 %v3131
      %3157 = vmatprep.subr.bf16.mxu0 0
      %3158 = vmatpush1.bf16.msra.mxu0 %v3130
      %3159 = vmatprep.subr.bf16.mxu0 0
      %3160 = vmatpush1.bf16.msra.mxu0 %v3129
      %3161 = vmatprep.subr.bf16.mxu0 0
      %3162 = vmatpush2.bf16.msra.mxu0 0
      %3163 = vmatprep.subr.bf16.mxu0 0
      %3164 = vmatpush2.bf16.msra.mxu0 0
      %3165 = vmatprep.subr.bf16.mxu0 0
      %3166 = vmatpush2.bf16.msra.mxu0 0
      %3167 = vmatprep.subr.bf16.mxu0 0
      %3168 = vmatpush2.bf16.msra.mxu0 0
      %3169 = vmatprep.subr.bf16.mxu0 0
      %3170 = vmatpush2.bf16.msra.mxu0 0
      %3171 = vmatprep.subr.bf16.mxu0 0
      %3172 = vmatpush2.bf16.msra.mxu0 0
      %3173 = vmatprep.subr.bf16.mxu0 0
      %3174 = vmatpush2.bf16.msra.mxu0 0
      %3175 = vmatprep.subr.bf16.mxu0 0
      %3176 = vmatpush2.bf16.msra.mxu0 0
      %3177 = vmatprep.mubr.bf16.mxu0 0
      %3178 = vmatmul.mubr.bf16.gmra.mxu0 %v3065
      %v3179 = vpop.f32.mrf.mxu0
      %v3180 = vadd.f32 0.0, %v3179
      %v3181 = vpop.f32.mrf.mxu0
      %v3182 = vpop.f32.mrf.mxu0
      %v3183 = vadd.f32 0.0, %v3182
      %v3184 = vpop.f32.mrf.mxu0
      %3185 = vmatprep.mubr.bf16.mxu0 0
      %3186 = vmatmul.mubr.bf16.gmra.mxu0 %v3066
      %v3187 = vpop.f32.mrf.mxu0
      %v3188 = vadd.f32 0.0, %v3187
      %v3189 = vpop.f32.mrf.mxu0
      %v3190 = vpop.f32.mrf.mxu0
      %v3191 = vadd.f32 0.0, %v3190
      %v3192 = vpop.f32.mrf.mxu0
      %3193 = vmatprep.mubr.bf16.mxu0 0
      %3194 = vmatmul.mubr.bf16.gmra.mxu0 %v3067
      %v3195 = vpop.f32.mrf.mxu0
      %v3196 = vadd.f32 0.0, %v3195
      %v3197 = vpop.f32.mrf.mxu0
      %v3198 = vpop.f32.mrf.mxu0
      %v3199 = vadd.f32 0.0, %v3198
      %v3200 = vpop.f32.mrf.mxu0
      %3201 = vmatprep.mubr.bf16.mxu0 0
      %3202 = vmatmul.mubr.bf16.gmra.mxu0 %v3068
      %v3203 = vpop.f32.mrf.mxu0
      %v3204 = vadd.f32 0.0, %v3203
      %v3205 = vpop.f32.mrf.mxu0
      %v3206 = vpop.f32.mrf.mxu0
      %v3207 = vadd.f32 0.0, %v3206
      %v3208 = vpop.f32.mrf.mxu0
      %3209 = vmatprep.mubr.bf16.mxu0 0
      %3210 = vmatmul.mubr.bf16.gmra.mxu0 %v3069
      %v3211 = vpop.f32.mrf.mxu0
      %v3212 = vadd.f32 0.0, %v3211
      %v3213 = vpop.f32.mrf.mxu0
      %v3214 = vpop.f32.mrf.mxu0
      %v3215 = vadd.f32 0.0, %v3214
      %v3216 = vpop.f32.mrf.mxu0
      %3217 = vmatprep.mubr.bf16.mxu0 0
      %3218 = vmatmul.mubr.bf16.gmra.mxu0 %v3070
      %v3219 = vpop.f32.mrf.mxu0
      %v3220 = vadd.f32 0.0, %v3219
      %v3221 = vpop.f32.mrf.mxu0
      %v3222 = vpop.f32.mrf.mxu0
      %v3223 = vadd.f32 0.0, %v3222
      %v3224 = vpop.f32.mrf.mxu0
      %3225 = vmatprep.mubr.bf16.mxu0 0
      %3226 = vmatmul.mubr.bf16.gmra.mxu0 %v3071
      %v3227 = vpop.f32.mrf.mxu0
      %v3228 = vadd.f32 0.0, %v3227
      %v3229 = vpop.f32.mrf.mxu0
      %v3230 = vpop.f32.mrf.mxu0
      %v3231 = vadd.f32 0.0, %v3230
      %v3232 = vpop.f32.mrf.mxu0
      %3233 = vmatprep.mubr.bf16.mxu0 0
      %3234 = vmatmul.mubr.bf16.gmra.mxu0 %v3072
      %v3235 = vpop.f32.mrf.mxu0
      %v3236 = vadd.f32 0.0, %v3235
      %v3237 = vpop.f32.mrf.mxu0
      %v3238 = vpop.f32.mrf.mxu0
      %v3239 = vadd.f32 0.0, %v3238
      %v3240 = vpop.f32.mrf.mxu0
      %3241 = vmatprep.mubr.bf16.mxu0 0
      %3242 = vmatmul.mubr.bf16.gmra.mxu0 %v3073
      %v3243 = vpop.f32.mrf.mxu0
      %v3244 = vadd.f32 0.0, %v3243
      %v3245 = vpop.f32.mrf.mxu0
      %v3246 = vpop.f32.mrf.mxu0
      %v3247 = vadd.f32 0.0, %v3246
      %v3248 = vpop.f32.mrf.mxu0
      %3249 = vmatprep.mubr.bf16.mxu0 0
      %3250 = vmatmul.mubr.bf16.gmra.mxu0 %v3074
      %v3251 = vpop.f32.mrf.mxu0
      %v3252 = vadd.f32 0.0, %v3251
      %v3253 = vpop.f32.mrf.mxu0
      %v3254 = vpop.f32.mrf.mxu0
      %v3255 = vadd.f32 0.0, %v3254
      %v3256 = vpop.f32.mrf.mxu0
      %3257 = vmatprep.mubr.bf16.mxu0 0
      %3258 = vmatmul.mubr.bf16.gmra.mxu0 %v3075
      %v3259 = vpop.f32.mrf.mxu0
      %v3260 = vadd.f32 0.0, %v3259
      %v3261 = vpop.f32.mrf.mxu0
      %v3262 = vpop.f32.mrf.mxu0
      %v3263 = vadd.f32 0.0, %v3262
      %v3264 = vpop.f32.mrf.mxu0
      %3265 = vmatprep.mubr.bf16.mxu0 0
      %3266 = vmatmul.mubr.bf16.gmra.mxu0 %v3076
      %v3267 = vpop.f32.mrf.mxu0
      %v3268 = vadd.f32 0.0, %v3267
      %v3269 = vpop.f32.mrf.mxu0
      %v3270 = vpop.f32.mrf.mxu0
      %v3271 = vadd.f32 0.0, %v3270
      %v3272 = vpop.f32.mrf.mxu0
      %3273 = vmatprep.mubr.bf16.mxu0 0
      %3274 = vmatmul.mubr.bf16.gmra.mxu0 %v3077
      %v3275 = vpop.f32.mrf.mxu0
      %v3276 = vadd.f32 0.0, %v3275
      %v3277 = vpop.f32.mrf.mxu0
      %v3278 = vpop.f32.mrf.mxu0
      %v3279 = vadd.f32 0.0, %v3278
      %v3280 = vpop.f32.mrf.mxu0
      %3281 = vmatprep.mubr.bf16.mxu0 0
      %3282 = vmatmul.mubr.bf16.gmra.mxu0 %v3078
      %v3283 = vpop.f32.mrf.mxu0
      %v3284 = vadd.f32 0.0, %v3283
      %v3285 = vpop.f32.mrf.mxu0
      %v3286 = vpop.f32.mrf.mxu0
      %v3287 = vadd.f32 0.0, %v3286
      %v3288 = vpop.f32.mrf.mxu0
      %3289 = vmatprep.mubr.bf16.mxu0 0
      %3290 = vmatmul.mubr.bf16.gmra.mxu0 %v3079
      %v3291 = vpop.f32.mrf.mxu0
      %v3292 = vadd.f32 0.0, %v3291
      %v3293 = vpop.f32.mrf.mxu0
      %v3294 = vpop.f32.mrf.mxu0
      %v3295 = vadd.f32 0.0, %v3294
      %v3296 = vpop.f32.mrf.mxu0
      %3297 = vmatprep.mubr.bf16.mxu0 0
      %3298 = vmatmul.mubr.bf16.gmra.mxu0 %v3080
      %v3299 = vpop.f32.mrf.mxu0
      %v3300 = vadd.f32 0.0, %v3299
      %v3301 = vpop.f32.mrf.mxu0
      %v3302 = vpop.f32.mrf.mxu0
      %v3303 = vadd.f32 0.0, %v3302
      %v3304 = vpop.f32.mrf.mxu0
      %3305 = vdwg.mxu0
      %v3306 = vadd.f32 %v2984, %v3180
      %v3307 = vadd.f32 %v2985, %v3183
      %v3308 = vadd.f32 %v2986, %v3188
      %v3309 = vadd.f32 %v2987, %v3191
      %v3310 = vadd.f32 %v2988, %v3196
      %v3311 = vadd.f32 %v2989, %v3199
      %v3312 = vadd.f32 %v2990, %v3204
      %v3313 = vadd.f32 %v2991, %v3207
      %v3314 = vadd.f32 %v2992, %v3212
      %v3315 = vadd.f32 %v2993, %v3215
      %v3316 = vadd.f32 %v2994, %v3220
      %v3317 = vadd.f32 %v2995, %v3223
      %v3318 = vadd.f32 %v2996, %v3228
      %v3319 = vadd.f32 %v2997, %v3231
      %v3320 = vadd.f32 %v2998, %v3236
      %v3321 = vadd.f32 %v2999, %v3239
      %v3322 = vadd.f32 %v3000, %v3244
      %v3323 = vadd.f32 %v3001, %v3247
      %v3324 = vadd.f32 %v3002, %v3252
      %v3325 = vadd.f32 %v3003, %v3255
      %v3326 = vadd.f32 %v3004, %v3260
      %v3327 = vadd.f32 %v3005, %v3263
      %v3328 = vadd.f32 %v3006, %v3268
      %v3329 = vadd.f32 %v3007, %v3271
      %v3330 = vadd.f32 %v3008, %v3276
      %v3331 = vadd.f32 %v3009, %v3279
      %v3332 = vadd.f32 %v3010, %v3284
      %v3333 = vadd.f32 %v3011, %v3287
      %v3334 = vadd.f32 %v3012, %v3292
      %v3335 = vadd.f32 %v3013, %v3295
      %v3336 = vadd.f32 %v3014, %v3300
      %v3337 = vadd.f32 %v3015, %v3303
      %3338 = vst [vmem:[#allocation2] sm:$0xff] %v3306
      %3339 = vst [vmem:[#allocation2 + $0x8] sm:$0xff] %v3307
      %3340 = vst [vmem:[#allocation2 + $0x10] sm:$0xff] %v3308
      %3341 = vst [vmem:[#allocation2 + $0x18] sm:$0xff] %v3309
      %3342 = vst [vmem:[#allocation2 + $0x20] sm:$0xff] %v3310
      %3343 = vst [vmem:[#allocation2 + $0x28] sm:$0xff] %v3311
      %3344 = vst [vmem:[#allocation2 + $0x30] sm:$0xff] %v3312
      %3345 = vst [vmem:[#allocation2 + $0x38] sm:$0xff] %v3313
      %3346 = vst [vmem:[#allocation2 + $0x40] sm:$0xff] %v3314
      %3347 = vst [vmem:[#allocation2 + $0x48] sm:$0xff] %v3315
      %3348 = vst [vmem:[#allocation2 + $0x50] sm:$0xff] %v3316
      %3349 = vst [vmem:[#allocation2 + $0x58] sm:$0xff] %v3317
      %3350 = vst [vmem:[#allocation2 + $0x60] sm:$0xff] %v3318
      %3351 = vst [vmem:[#allocation2 + $0x68] sm:$0xff] %v3319
      %3352 = vst [vmem:[#allocation2 + $0x70] sm:$0xff] %v3320
      %3353 = vst [vmem:[#allocation2 + $0x78] sm:$0xff] %v3321
      %3354 = vst [vmem:[#allocation2 + $0x80] sm:$0xff] %v3322
      %3355 = vst [vmem:[#allocation2 + $0x88] sm:$0xff] %v3323
      %3356 = vst [vmem:[#allocation2 + $0x90] sm:$0xff] %v3324
      %3357 = vst [vmem:[#allocation2 + $0x98] sm:$0xff] %v3325
      %3358 = vst [vmem:[#allocation2 + $0xa0] sm:$0xff] %v3326
      %3359 = vst [vmem:[#allocation2 + $0xa8] sm:$0xff] %v3327
      %3360 = vst [vmem:[#allocation2 + $0xb0] sm:$0xff] %v3328
      %3361 = vst [vmem:[#allocation2 + $0xb8] sm:$0xff] %v3329
      %3362 = vst [vmem:[#allocation2 + $0xc0] sm:$0xff] %v3330
      %3363 = vst [vmem:[#allocation2 + $0xc8] sm:$0xff] %v3331
      %3364 = vst [vmem:[#allocation2 + $0xd0] sm:$0xff] %v3332
      %3365 = vst [vmem:[#allocation2 + $0xd8] sm:$0xff] %v3333
      %3366 = vst [vmem:[#allocation2 + $0xe0] sm:$0xff] %v3334
      %3367 = vst [vmem:[#allocation2 + $0xe8] sm:$0xff] %v3335
      %3368 = vst [vmem:[#allocation2 + $0xf0] sm:$0xff] %v3336
      %3369 = vst [vmem:[#allocation2 + $0xf8] sm:$0xff] %v3337
      %v3370 = vld [vmem:[%s2101] sm:$0xe]
      %v3371 = vld [vmem:[%s2101 + $0x4] sm:$0xf]
      %v3372 = vld [vmem:[%s2101 + $0x8] sm:$0x1]
      %v3373 = vld [vmem:[%s2101 + $0xc] sm:$0xe]
      %v3374 = vld [vmem:[%s2101 + $0x10] sm:$0xf]
      %v3375 = vld [vmem:[%s2101 + $0x14] sm:$0x1]
      %v3376 = vld [vmem:[%s2101 + $0x18] sm:$0xe]
      %v3377 = vld [vmem:[%s2101 + $0x1c] sm:$0xf]
      %v3378 = vld [vmem:[%s2101 + $0x20] sm:$0x1]
      %v3379 = vld [vmem:[%s2101 + $0x24] sm:$0xe]
      %v3380 = vld [vmem:[%s2101 + $0x28] sm:$0xf]
      %v3381 = vld [vmem:[%s2101 + $0x2c] sm:$0x1]
      %v3382 = vld [vmem:[%s2101 + $0x30] sm:$0xe]
      %v3383 = vld [vmem:[%s2101 + $0x34] sm:$0xf]
      %v3384 = vld [vmem:[%s2101 + $0x38] sm:$0x1]
      %v3385 = vld [vmem:[%s2101 + $0x3c] sm:$0xe]
      %v3386 = vld [vmem:[%s2101 + $0x40] sm:$0xf]
      %v3387 = vld [vmem:[%s2101 + $0x44] sm:$0x1]
      %v3388 = vld [vmem:[%s2101 + $0x48] sm:$0xe]
      %v3389 = vld [vmem:[%s2101 + $0x4c] sm:$0xf]
      %v3390 = vld [vmem:[%s2101 + $0x50] sm:$0x1]
      %v3391 = vld [vmem:[%s2101 + $0x54] sm:$0xe]
      %v3392 = vld [vmem:[%s2101 + $0x58] sm:$0xf]
      %v3393 = vld [vmem:[%s2101 + $0x5c] sm:$0x1]
      %v3394 = vld [vmem:[%s2101 + $0x60] sm:$0xe]
      %v3395 = vld [vmem:[%s2101 + $0x64] sm:$0xf]
      %v3396 = vld [vmem:[%s2101 + $0x68] sm:$0x1]
      %v3397 = vld [vmem:[%s2101 + $0x6c] sm:$0xe]
      %v3398 = vld [vmem:[%s2101 + $0x70] sm:$0xf]
      %v3399 = vld [vmem:[%s2101 + $0x74] sm:$0x1]
      %v3400 = vld [vmem:[%s2101 + $0x78] sm:$0xe]
      %v3401 = vld [vmem:[%s2101 + $0x7c] sm:$0xf]
      %v3402 = vld [vmem:[%s2101 + $0x80] sm:$0x1]
      %v3403 = vld [vmem:[%s2101 + $0x84] sm:$0xe]
      %v3404 = vld [vmem:[%s2101 + $0x88] sm:$0xf]
      %v3405 = vld [vmem:[%s2101 + $0x8c] sm:$0x1]
      %v3406 = vld [vmem:[%s2101 + $0x90] sm:$0xe]
      %v3407 = vld [vmem:[%s2101 + $0x94] sm:$0xf]
      %v3408 = vld [vmem:[%s2101 + $0x98] sm:$0x1]
      %v3409 = vld [vmem:[%s2101 + $0x9c] sm:$0xe]
      %v3410 = vld [vmem:[%s2101 + $0xa0] sm:$0xf]
      %v3411 = vld [vmem:[%s2101 + $0xa4] sm:$0x1]
      %v3412 = vld [vmem:[%s2101 + $0xa8] sm:$0xe]
      %v3413 = vld [vmem:[%s2101 + $0xac] sm:$0xf]
      %v3414 = vld [vmem:[%s2101 + $0xb0] sm:$0x1]
      %v3415 = vld [vmem:[%s2101 + $0xb4] sm:$0xe]
      %v3416 = vld [vmem:[%s2101 + $0xb8] sm:$0xf]
      %v3417 = vld [vmem:[%s2101 + $0xbc] sm:$0x1]
      %v3466 = vrot.slane %v3370, 5
      %v3467 = vrot.slane %v3466, 4
      %v3468 = vrot.slane %v3371, 5
      %v3469 = vsel %vm1599, %v3467, %v3468
      %v3470 = vrot.slane %v3468, 4
      %v3471 = vrot.slane %v3372, 5
      %v3472 = vsel %vm1599, %v3470, %v3471
      %v3473 = vrot.slane %v3373, 5
      %v3474 = vrot.slane %v3473, 4
      %v3475 = vrot.slane %v3374, 5
      %v3476 = vsel %vm1599, %v3474, %v3475
      %v3477 = vrot.slane %v3475, 4
      %v3478 = vrot.slane %v3375, 5
      %v3479 = vsel %vm1599, %v3477, %v3478
      %v3480 = vrot.slane %v3376, 5
      %v3481 = vrot.slane %v3480, 4
      %v3482 = vrot.slane %v3377, 5
      %v3483 = vsel %vm1599, %v3481, %v3482
      %v3484 = vrot.slane %v3482, 4
      %v3485 = vrot.slane %v3378, 5
      %v3486 = vsel %vm1599, %v3484, %v3485
      %v3487 = vrot.slane %v3379, 5
      %v3488 = vrot.slane %v3487, 4
      %v3489 = vrot.slane %v3380, 5
      %v3490 = vsel %vm1599, %v3488, %v3489
      %v3491 = vrot.slane %v3489, 4
      %v3492 = vrot.slane %v3381, 5
      %v3493 = vsel %vm1599, %v3491, %v3492
      %v3494 = vrot.slane %v3382, 5
      %v3495 = vrot.slane %v3494, 4
      %v3496 = vrot.slane %v3383, 5
      %v3497 = vsel %vm1599, %v3495, %v3496
      %v3498 = vrot.slane %v3496, 4
      %v3499 = vrot.slane %v3384, 5
      %v3500 = vsel %vm1599, %v3498, %v3499
      %v3501 = vrot.slane %v3385, 5
      %v3502 = vrot.slane %v3501, 4
      %v3503 = vrot.slane %v3386, 5
      %v3504 = vsel %vm1599, %v3502, %v3503
      %v3505 = vrot.slane %v3503, 4
      %v3506 = vrot.slane %v3387, 5
      %v3507 = vsel %vm1599, %v3505, %v3506
      %v3508 = vrot.slane %v3388, 5
      %v3509 = vrot.slane %v3508, 4
      %v3510 = vrot.slane %v3389, 5
      %v3511 = vsel %vm1599, %v3509, %v3510
      %v3512 = vrot.slane %v3510, 4
      %v3513 = vrot.slane %v3390, 5
      %v3514 = vsel %vm1599, %v3512, %v3513
      %v3515 = vrot.slane %v3391, 5
      %v3516 = vrot.slane %v3515, 4
      %v3517 = vrot.slane %v3392, 5
      %v3518 = vsel %vm1599, %v3516, %v3517
      %v3519 = vrot.slane %v3517, 4
      %v3520 = vrot.slane %v3393, 5
      %v3521 = vsel %vm1599, %v3519, %v3520
      %v3522 = vrot.slane %v3394, 5
      %v3523 = vrot.slane %v3522, 4
      %v3524 = vrot.slane %v3395, 5
      %v3525 = vsel %vm1599, %v3523, %v3524
      %v3526 = vrot.slane %v3524, 4
      %v3527 = vrot.slane %v3396, 5
      %v3528 = vsel %vm1599, %v3526, %v3527
      %v3529 = vrot.slane %v3397, 5
      %v3530 = vrot.slane %v3529, 4
      %v3531 = vrot.slane %v3398, 5
      %v3532 = vsel %vm1599, %v3530, %v3531
      %v3533 = vrot.slane %v3531, 4
      %v3534 = vrot.slane %v3399, 5
      %v3535 = vsel %vm1599, %v3533, %v3534
      %v3536 = vrot.slane %v3400, 5
      %v3537 = vrot.slane %v3536, 4
      %v3538 = vrot.slane %v3401, 5
      %v3539 = vsel %vm1599, %v3537, %v3538
      %v3540 = vrot.slane %v3538, 4
      %v3541 = vrot.slane %v3402, 5
      %v3542 = vsel %vm1599, %v3540, %v3541
      %v3543 = vrot.slane %v3403, 5
      %v3544 = vrot.slane %v3543, 4
      %v3545 = vrot.slane %v3404, 5
      %v3546 = vsel %vm1599, %v3544, %v3545
      %v3547 = vrot.slane %v3545, 4
      %v3548 = vrot.slane %v3405, 5
      %v3549 = vsel %vm1599, %v3547, %v3548
      %v3550 = vrot.slane %v3406, 5
      %v3551 = vrot.slane %v3550, 4
      %v3552 = vrot.slane %v3407, 5
      %v3553 = vsel %vm1599, %v3551, %v3552
      %v3554 = vrot.slane %v3552, 4
      %v3555 = vrot.slane %v3408, 5
      %v3556 = vsel %vm1599, %v3554, %v3555
      %v3557 = vrot.slane %v3409, 5
      %v3558 = vrot.slane %v3557, 4
      %v3559 = vrot.slane %v3410, 5
      %v3560 = vsel %vm1599, %v3558, %v3559
      %v3561 = vrot.slane %v3559, 4
      %v3562 = vrot.slane %v3411, 5
      %v3563 = vsel %vm1599, %v3561, %v3562
      %v3564 = vrot.slane %v3412, 5
      %v3565 = vrot.slane %v3564, 4
      %v3566 = vrot.slane %v3413, 5
      %v3567 = vsel %vm1599, %v3565, %v3566
      %v3568 = vrot.slane %v3566, 4
      %v3569 = vrot.slane %v3414, 5
      %v3570 = vsel %vm1599, %v3568, %v3569
      %v3571 = vrot.slane %v3415, 5
      %v3572 = vrot.slane %v3571, 4
      %v3573 = vrot.slane %v3416, 5
      %v3574 = vsel %vm1599, %v3572, %v3573
      %v3575 = vrot.slane %v3573, 4
      %v3576 = vrot.slane %v3417, 5
      %v3577 = vsel %vm1599, %v3575, %v3576
      %v3578 = vld [vmem:[#allocation2] sm:$0xff]
      %v3579 = vld [vmem:[#allocation2 + $0x8] sm:$0xff]
      %v3580 = vld [vmem:[#allocation2 + $0x10] sm:$0xff]
      %v3581 = vld [vmem:[#allocation2 + $0x18] sm:$0xff]
      %v3582 = vld [vmem:[#allocation2 + $0x20] sm:$0xff]
      %v3583 = vld [vmem:[#allocation2 + $0x28] sm:$0xff]
      %v3584 = vld [vmem:[#allocation2 + $0x30] sm:$0xff]
      %v3585 = vld [vmem:[#allocation2 + $0x38] sm:$0xff]
      %v3586 = vld [vmem:[#allocation2 + $0x40] sm:$0xff]
      %v3587 = vld [vmem:[#allocation2 + $0x48] sm:$0xff]
      %v3588 = vld [vmem:[#allocation2 + $0x50] sm:$0xff]
      %v3589 = vld [vmem:[#allocation2 + $0x58] sm:$0xff]
      %v3590 = vld [vmem:[#allocation2 + $0x60] sm:$0xff]
      %v3591 = vld [vmem:[#allocation2 + $0x68] sm:$0xff]
      %v3592 = vld [vmem:[#allocation2 + $0x70] sm:$0xff]
      %v3593 = vld [vmem:[#allocation2 + $0x78] sm:$0xff]
      %v3594 = vld [vmem:[#allocation2 + $0x80] sm:$0xff]
      %v3595 = vld [vmem:[#allocation2 + $0x88] sm:$0xff]
      %v3596 = vld [vmem:[#allocation2 + $0x90] sm:$0xff]
      %v3597 = vld [vmem:[#allocation2 + $0x98] sm:$0xff]
      %v3598 = vld [vmem:[#allocation2 + $0xa0] sm:$0xff]
      %v3599 = vld [vmem:[#allocation2 + $0xa8] sm:$0xff]
      %v3600 = vld [vmem:[#allocation2 + $0xb0] sm:$0xff]
      %v3601 = vld [vmem:[#allocation2 + $0xb8] sm:$0xff]
      %v3602 = vld [vmem:[#allocation2 + $0xc0] sm:$0xff]
      %v3603 = vld [vmem:[#allocation2 + $0xc8] sm:$0xff]
      %v3604 = vld [vmem:[#allocation2 + $0xd0] sm:$0xff]
      %v3605 = vld [vmem:[#allocation2 + $0xd8] sm:$0xff]
      %v3606 = vld [vmem:[#allocation2 + $0xe0] sm:$0xff]
      %v3607 = vld [vmem:[#allocation2 + $0xe8] sm:$0xff]
      %v3608 = vld [vmem:[#allocation2 + $0xf0] sm:$0xff]
      %v3609 = vld [vmem:[#allocation2 + $0xf8] sm:$0xff]
      %s3610 = scalar_lea.vmem %s1, 320
      %v3611 = vld [vmem:[%s3610] sm:$0xf]
      %v3612 = vld [vmem:[%s3610 + $0x4] sm:$0xf]
      %v3613 = vld [vmem:[%s3610 + $0x8] sm:$0xf]
      %v3614 = vld [vmem:[%s3610 + $0xc] sm:$0xf]
      %v3615 = vld [vmem:[%s3610 + $0x10] sm:$0xf]
      %v3616 = vld [vmem:[%s3610 + $0x14] sm:$0xf]
      %v3617 = vld [vmem:[%s3610 + $0x18] sm:$0xf]
      %v3618 = vld [vmem:[%s3610 + $0x1c] sm:$0xf]
      %v3619 = vld [vmem:[%s3610 + $0x20] sm:$0xf]
      %v3620 = vld [vmem:[%s3610 + $0x24] sm:$0xf]
      %v3621 = vld [vmem:[%s3610 + $0x28] sm:$0xf]
      %v3622 = vld [vmem:[%s3610 + $0x2c] sm:$0xf]
      %v3623 = vld [vmem:[%s3610 + $0x30] sm:$0xf]
      %v3624 = vld [vmem:[%s3610 + $0x34] sm:$0xf]
      %v3625 = vld [vmem:[%s3610 + $0x38] sm:$0xf]
      %v3626 = vld [vmem:[%s3610 + $0x3c] sm:$0xf]
      %v3627 = vunpack.c.l.b16 %v3469
      %v3628 = vunpack.c.l.b16 %v3472
      %v3629 = vunpack.c.l.b16 %v3476
      %v3630 = vunpack.c.l.b16 %v3479
      %v3631 = vunpack.c.l.b16 %v3483
      %v3632 = vunpack.c.l.b16 %v3486
      %v3633 = vunpack.c.l.b16 %v3490
      %v3634 = vunpack.c.l.b16 %v3493
      %v3635 = vunpack.c.l.b16 %v3497
      %v3636 = vunpack.c.l.b16 %v3500
      %v3637 = vunpack.c.l.b16 %v3504
      %v3638 = vunpack.c.l.b16 %v3507
      %v3639 = vunpack.c.l.b16 %v3511
      %v3640 = vunpack.c.l.b16 %v3514
      %v3641 = vunpack.c.l.b16 %v3518
      %v3642 = vunpack.c.l.b16 %v3521
      %v3643 = vunpack.c.l.b16 %v3525
      %v3644 = vunpack.c.l.b16 %v3528
      %v3645 = vunpack.c.l.b16 %v3532
      %v3646 = vunpack.c.l.b16 %v3535
      %v3647 = vunpack.c.l.b16 %v3539
      %v3648 = vunpack.c.l.b16 %v3542
      %v3649 = vunpack.c.l.b16 %v3546
      %v3650 = vunpack.c.l.b16 %v3549
      %v3651 = vunpack.c.l.b16 %v3553
      %v3652 = vunpack.c.l.b16 %v3556
      %v3653 = vunpack.c.l.b16 %v3560
      %v3654 = vunpack.c.l.b16 %v3563
      %v3655 = vunpack.c.l.b16 %v3567
      %v3656 = vunpack.c.l.b16 %v3570
      %v3657 = vunpack.c.l.b16 %v3574
      %v3658 = vunpack.c.l.b16 %v3577
      %v3659 = vpack.c.b16 %v3628, %v3627
      %v3660 = vpack.c.b16 %v3630, %v3629
      %v3661 = vpack.c.b16 %v3632, %v3631
      %v3662 = vpack.c.b16 %v3634, %v3633
      %v3663 = vpack.c.b16 %v3636, %v3635
      %v3664 = vpack.c.b16 %v3638, %v3637
      %v3665 = vpack.c.b16 %v3640, %v3639
      %v3666 = vpack.c.b16 %v3642, %v3641
      %v3667 = vpack.c.b16 %v3644, %v3643
      %v3668 = vpack.c.b16 %v3646, %v3645
      %v3669 = vpack.c.b16 %v3648, %v3647
      %v3670 = vpack.c.b16 %v3650, %v3649
      %v3671 = vpack.c.b16 %v3652, %v3651
      %v3672 = vpack.c.b16 %v3654, %v3653
      %v3673 = vpack.c.b16 %v3656, %v3655
      %v3674 = vpack.c.b16 %v3658, %v3657
      %v3707 = vunpack.c.l.b16 %v3611
      %v3708 = vunpack.c.l.b16 %v3612
      %v3709 = vunpack.c.l.b16 %v3613
      %v3710 = vunpack.c.l.b16 %v3614
      %v3711 = vunpack.c.l.b16 %v3615
      %v3712 = vunpack.c.l.b16 %v3616
      %v3713 = vunpack.c.l.b16 %v3617
      %v3714 = vunpack.c.l.b16 %v3618
      %v3715 = vunpack.c.l.b16 %v3619
      %v3716 = vunpack.c.l.b16 %v3620
      %v3717 = vunpack.c.l.b16 %v3621
      %v3718 = vunpack.c.l.b16 %v3622
      %v3719 = vunpack.c.l.b16 %v3623
      %v3720 = vunpack.c.l.b16 %v3624
      %v3721 = vunpack.c.l.b16 %v3625
      %v3722 = vunpack.c.l.b16 %v3626
      %v3723 = vpack.c.b16 %v3708, %v3707
      %v3724 = vpack.c.b16 %v3710, %v3709
      %v3725 = vpack.c.b16 %v3712, %v3711
      %v3726 = vpack.c.b16 %v3714, %v3713
      %v3727 = vpack.c.b16 %v3716, %v3715
      %v3728 = vpack.c.b16 %v3718, %v3717
      %v3729 = vpack.c.b16 %v3720, %v3719
      %v3730 = vpack.c.b16 %v3722, %v3721
      %3739 = vmatprep.subr.bf16.mxu0 0
      %3740 = vmatpush1.bf16.msra.mxu0 %v3730
      %3741 = vmatprep.subr.bf16.mxu0 0
      %3742 = vmatpush1.bf16.msra.mxu0 %v3729
      %3743 = vmatprep.subr.bf16.mxu0 0
      %3744 = vmatpush1.bf16.msra.mxu0 %v3728
      %3745 = vmatprep.subr.bf16.mxu0 0
      %3746 = vmatpush1.bf16.msra.mxu0 %v3727
      %3747 = vmatprep.subr.bf16.mxu0 0
      %3748 = vmatpush1.bf16.msra.mxu0 %v3726
      %3749 = vmatprep.subr.bf16.mxu0 0
      %3750 = vmatpush1.bf16.msra.mxu0 %v3725
      %3751 = vmatprep.subr.bf16.mxu0 0
      %3752 = vmatpush1.bf16.msra.mxu0 %v3724
      %3753 = vmatprep.subr.bf16.mxu0 0
      %3754 = vmatpush1.bf16.msra.mxu0 %v3723
      %3755 = vmatprep.subr.bf16.mxu0 0
      %3756 = vmatpush2.bf16.msra.mxu0 0
      %3757 = vmatprep.subr.bf16.mxu0 0
      %3758 = vmatpush2.bf16.msra.mxu0 0
      %3759 = vmatprep.subr.bf16.mxu0 0
      %3760 = vmatpush2.bf16.msra.mxu0 0
      %3761 = vmatprep.subr.bf16.mxu0 0
      %3762 = vmatpush2.bf16.msra.mxu0 0
      %3763 = vmatprep.subr.bf16.mxu0 0
      %3764 = vmatpush2.bf16.msra.mxu0 0
      %3765 = vmatprep.subr.bf16.mxu0 0
      %3766 = vmatpush2.bf16.msra.mxu0 0
      %3767 = vmatprep.subr.bf16.mxu0 0
      %3768 = vmatpush2.bf16.msra.mxu0 0
      %3769 = vmatprep.subr.bf16.mxu0 0
      %3770 = vmatpush2.bf16.msra.mxu0 0
      %3771 = vmatprep.mubr.bf16.mxu0 0
      %3772 = vmatmul.mubr.bf16.gmra.mxu0 %v3659
      %v3773 = vpop.f32.mrf.mxu0
      %v3774 = vadd.f32 0.0, %v3773
      %v3775 = vpop.f32.mrf.mxu0
      %v3776 = vpop.f32.mrf.mxu0
      %v3777 = vadd.f32 0.0, %v3776
      %v3778 = vpop.f32.mrf.mxu0
      %3779 = vmatprep.mubr.bf16.mxu0 0
      %3780 = vmatmul.mubr.bf16.gmra.mxu0 %v3660
      %v3781 = vpop.f32.mrf.mxu0
      %v3782 = vadd.f32 0.0, %v3781
      %v3783 = vpop.f32.mrf.mxu0
      %v3784 = vpop.f32.mrf.mxu0
      %v3785 = vadd.f32 0.0, %v3784
      %v3786 = vpop.f32.mrf.mxu0
      %3787 = vmatprep.mubr.bf16.mxu0 0
      %3788 = vmatmul.mubr.bf16.gmra.mxu0 %v3661
      %v3789 = vpop.f32.mrf.mxu0
      %v3790 = vadd.f32 0.0, %v3789
      %v3791 = vpop.f32.mrf.mxu0
      %v3792 = vpop.f32.mrf.mxu0
      %v3793 = vadd.f32 0.0, %v3792
      %v3794 = vpop.f32.mrf.mxu0
      %3795 = vmatprep.mubr.bf16.mxu0 0
      %3796 = vmatmul.mubr.bf16.gmra.mxu0 %v3662
      %v3797 = vpop.f32.mrf.mxu0
      %v3798 = vadd.f32 0.0, %v3797
      %v3799 = vpop.f32.mrf.mxu0
      %v3800 = vpop.f32.mrf.mxu0
      %v3801 = vadd.f32 0.0, %v3800
      %v3802 = vpop.f32.mrf.mxu0
      %3803 = vmatprep.mubr.bf16.mxu0 0
      %3804 = vmatmul.mubr.bf16.gmra.mxu0 %v3663
      %v3805 = vpop.f32.mrf.mxu0
      %v3806 = vadd.f32 0.0, %v3805
      %v3807 = vpop.f32.mrf.mxu0
      %v3808 = vpop.f32.mrf.mxu0
      %v3809 = vadd.f32 0.0, %v3808
      %v3810 = vpop.f32.mrf.mxu0
      %3811 = vmatprep.mubr.bf16.mxu0 0
      %3812 = vmatmul.mubr.bf16.gmra.mxu0 %v3664
      %v3813 = vpop.f32.mrf.mxu0
      %v3814 = vadd.f32 0.0, %v3813
      %v3815 = vpop.f32.mrf.mxu0
      %v3816 = vpop.f32.mrf.mxu0
      %v3817 = vadd.f32 0.0, %v3816
      %v3818 = vpop.f32.mrf.mxu0
      %3819 = vmatprep.mubr.bf16.mxu0 0
      %3820 = vmatmul.mubr.bf16.gmra.mxu0 %v3665
      %v3821 = vpop.f32.mrf.mxu0
      %v3822 = vadd.f32 0.0, %v3821
      %v3823 = vpop.f32.mrf.mxu0
      %v3824 = vpop.f32.mrf.mxu0
      %v3825 = vadd.f32 0.0, %v3824
      %v3826 = vpop.f32.mrf.mxu0
      %3827 = vmatprep.mubr.bf16.mxu0 0
      %3828 = vmatmul.mubr.bf16.gmra.mxu0 %v3666
      %v3829 = vpop.f32.mrf.mxu0
      %v3830 = vadd.f32 0.0, %v3829
      %v3831 = vpop.f32.mrf.mxu0
      %v3832 = vpop.f32.mrf.mxu0
      %v3833 = vadd.f32 0.0, %v3832
      %v3834 = vpop.f32.mrf.mxu0
      %3835 = vmatprep.mubr.bf16.mxu0 0
      %3836 = vmatmul.mubr.bf16.gmra.mxu0 %v3667
      %v3837 = vpop.f32.mrf.mxu0
      %v3838 = vadd.f32 0.0, %v3837
      %v3839 = vpop.f32.mrf.mxu0
      %v3840 = vpop.f32.mrf.mxu0
      %v3841 = vadd.f32 0.0, %v3840
      %v3842 = vpop.f32.mrf.mxu0
      %3843 = vmatprep.mubr.bf16.mxu0 0
      %3844 = vmatmul.mubr.bf16.gmra.mxu0 %v3668
      %v3845 = vpop.f32.mrf.mxu0
      %v3846 = vadd.f32 0.0, %v3845
      %v3847 = vpop.f32.mrf.mxu0
      %v3848 = vpop.f32.mrf.mxu0
      %v3849 = vadd.f32 0.0, %v3848
      %v3850 = vpop.f32.mrf.mxu0
      %3851 = vmatprep.mubr.bf16.mxu0 0
      %3852 = vmatmul.mubr.bf16.gmra.mxu0 %v3669
      %v3853 = vpop.f32.mrf.mxu0
      %v3854 = vadd.f32 0.0, %v3853
      %v3855 = vpop.f32.mrf.mxu0
      %v3856 = vpop.f32.mrf.mxu0
      %v3857 = vadd.f32 0.0, %v3856
      %v3858 = vpop.f32.mrf.mxu0
      %3859 = vmatprep.mubr.bf16.mxu0 0
      %3860 = vmatmul.mubr.bf16.gmra.mxu0 %v3670
      %v3861 = vpop.f32.mrf.mxu0
      %v3862 = vadd.f32 0.0, %v3861
      %v3863 = vpop.f32.mrf.mxu0
      %v3864 = vpop.f32.mrf.mxu0
      %v3865 = vadd.f32 0.0, %v3864
      %v3866 = vpop.f32.mrf.mxu0
      %3867 = vmatprep.mubr.bf16.mxu0 0
      %3868 = vmatmul.mubr.bf16.gmra.mxu0 %v3671
      %v3869 = vpop.f32.mrf.mxu0
      %v3870 = vadd.f32 0.0, %v3869
      %v3871 = vpop.f32.mrf.mxu0
      %v3872 = vpop.f32.mrf.mxu0
      %v3873 = vadd.f32 0.0, %v3872
      %v3874 = vpop.f32.mrf.mxu0
      %3875 = vmatprep.mubr.bf16.mxu0 0
      %3876 = vmatmul.mubr.bf16.gmra.mxu0 %v3672
      %v3877 = vpop.f32.mrf.mxu0
      %v3878 = vadd.f32 0.0, %v3877
      %v3879 = vpop.f32.mrf.mxu0
      %v3880 = vpop.f32.mrf.mxu0
      %v3881 = vadd.f32 0.0, %v3880
      %v3882 = vpop.f32.mrf.mxu0
      %3883 = vmatprep.mubr.bf16.mxu0 0
      %3884 = vmatmul.mubr.bf16.gmra.mxu0 %v3673
      %v3885 = vpop.f32.mrf.mxu0
      %v3886 = vadd.f32 0.0, %v3885
      %v3887 = vpop.f32.mrf.mxu0
      %v3888 = vpop.f32.mrf.mxu0
      %v3889 = vadd.f32 0.0, %v3888
      %v3890 = vpop.f32.mrf.mxu0
      %3891 = vmatprep.mubr.bf16.mxu0 0
      %3892 = vmatmul.mubr.bf16.gmra.mxu0 %v3674
      %v3893 = vpop.f32.mrf.mxu0
      %v3894 = vadd.f32 0.0, %v3893
      %v3895 = vpop.f32.mrf.mxu0
      %v3896 = vpop.f32.mrf.mxu0
      %v3897 = vadd.f32 0.0, %v3896
      %v3898 = vpop.f32.mrf.mxu0
      %3899 = vdwg.mxu0
      %v3900 = vadd.f32 %v3578, %v3774
      %v3901 = vadd.f32 %v3579, %v3777
      %v3902 = vadd.f32 %v3580, %v3782
      %v3903 = vadd.f32 %v3581, %v3785
      %v3904 = vadd.f32 %v3582, %v3790
      %v3905 = vadd.f32 %v3583, %v3793
      %v3906 = vadd.f32 %v3584, %v3798
      %v3907 = vadd.f32 %v3585, %v3801
      %v3908 = vadd.f32 %v3586, %v3806
      %v3909 = vadd.f32 %v3587, %v3809
      %v3910 = vadd.f32 %v3588, %v3814
      %v3911 = vadd.f32 %v3589, %v3817
      %v3912 = vadd.f32 %v3590, %v3822
      %v3913 = vadd.f32 %v3591, %v3825
      %v3914 = vadd.f32 %v3592, %v3830
      %v3915 = vadd.f32 %v3593, %v3833
      %v3916 = vadd.f32 %v3594, %v3838
      %v3917 = vadd.f32 %v3595, %v3841
      %v3918 = vadd.f32 %v3596, %v3846
      %v3919 = vadd.f32 %v3597, %v3849
      %v3920 = vadd.f32 %v3598, %v3854
      %v3921 = vadd.f32 %v3599, %v3857
      %v3922 = vadd.f32 %v3600, %v3862
      %v3923 = vadd.f32 %v3601, %v3865
      %v3924 = vadd.f32 %v3602, %v3870
      %v3925 = vadd.f32 %v3603, %v3873
      %v3926 = vadd.f32 %v3604, %v3878
      %v3927 = vadd.f32 %v3605, %v3881
      %v3928 = vadd.f32 %v3606, %v3886
      %v3929 = vadd.f32 %v3607, %v3889
      %v3930 = vadd.f32 %v3608, %v3894
      %v3931 = vadd.f32 %v3609, %v3897
      %3932 = vst [vmem:[#allocation2] sm:$0xff] %v3900
      %3933 = vst [vmem:[#allocation2 + $0x8] sm:$0xff] %v3901
      %3934 = vst [vmem:[#allocation2 + $0x10] sm:$0xff] %v3902
      %3935 = vst [vmem:[#allocation2 + $0x18] sm:$0xff] %v3903
      %3936 = vst [vmem:[#allocation2 + $0x20] sm:$0xff] %v3904
      %3937 = vst [vmem:[#allocation2 + $0x28] sm:$0xff] %v3905
      %3938 = vst [vmem:[#allocation2 + $0x30] sm:$0xff] %v3906
      %3939 = vst [vmem:[#allocation2 + $0x38] sm:$0xff] %v3907
      %3940 = vst [vmem:[#allocation2 + $0x40] sm:$0xff] %v3908
      %3941 = vst [vmem:[#allocation2 + $0x48] sm:$0xff] %v3909
      %3942 = vst [vmem:[#allocation2 + $0x50] sm:$0xff] %v3910
      %3943 = vst [vmem:[#allocation2 + $0x58] sm:$0xff] %v3911
      %3944 = vst [vmem:[#allocation2 + $0x60] sm:$0xff] %v3912
      %3945 = vst [vmem:[#allocation2 + $0x68] sm:$0xff] %v3913
      %3946 = vst [vmem:[#allocation2 + $0x70] sm:$0xff] %v3914
      %3947 = vst [vmem:[#allocation2 + $0x78] sm:$0xff] %v3915
      %3948 = vst [vmem:[#allocation2 + $0x80] sm:$0xff] %v3916
      %3949 = vst [vmem:[#allocation2 + $0x88] sm:$0xff] %v3917
      %3950 = vst [vmem:[#allocation2 + $0x90] sm:$0xff] %v3918
      %3951 = vst [vmem:[#allocation2 + $0x98] sm:$0xff] %v3919
      %3952 = vst [vmem:[#allocation2 + $0xa0] sm:$0xff] %v3920
      %3953 = vst [vmem:[#allocation2 + $0xa8] sm:$0xff] %v3921
      %3954 = vst [vmem:[#allocation2 + $0xb0] sm:$0xff] %v3922
      %3955 = vst [vmem:[#allocation2 + $0xb8] sm:$0xff] %v3923
      %3956 = vst [vmem:[#allocation2 + $0xc0] sm:$0xff] %v3924
      %3957 = vst [vmem:[#allocation2 + $0xc8] sm:$0xff] %v3925
      %3958 = vst [vmem:[#allocation2 + $0xd0] sm:$0xff] %v3926
      %3959 = vst [vmem:[#allocation2 + $0xd8] sm:$0xff] %v3927
      %3960 = vst [vmem:[#allocation2 + $0xe0] sm:$0xff] %v3928
      %3961 = vst [vmem:[#allocation2 + $0xe8] sm:$0xff] %v3929
      %3962 = vst [vmem:[#allocation2 + $0xf0] sm:$0xff] %v3930
      %3963 = vst [vmem:[#allocation2 + $0xf8] sm:$0xff] %v3931
      %s3964 = sadd.s32 %s195, 2
      %s3965 = smul.u32 %s3964, 3
      %s3966 = smul.addr %s3965, 4
      %s3967 = scalar_lea.vmem %s183, %s3966
      %v3968 = vld [vmem:[%s3967] sm:$0xf]
      %v3969 = vld [vmem:[%s3967 + $0x4] sm:$0xf]
      %v3970 = vld [vmem:[%s3967 + $0xc] sm:$0xf]
      %v3971 = vld [vmem:[%s3967 + $0x10] sm:$0xf]
      %v3972 = vld [vmem:[%s3967 + $0x18] sm:$0xf]
      %v3973 = vld [vmem:[%s3967 + $0x1c] sm:$0xf]
      %v3974 = vld [vmem:[%s3967 + $0x24] sm:$0xf]
      %v3975 = vld [vmem:[%s3967 + $0x28] sm:$0xf]
      %v3976 = vld [vmem:[%s3967 + $0x30] sm:$0xf]
      %v3977 = vld [vmem:[%s3967 + $0x34] sm:$0xf]
      %v3978 = vld [vmem:[%s3967 + $0x3c] sm:$0xf]
      %v3979 = vld [vmem:[%s3967 + $0x40] sm:$0xf]
      %v3980 = vld [vmem:[%s3967 + $0x48] sm:$0xf]
      %v3981 = vld [vmem:[%s3967 + $0x4c] sm:$0xf]
      %v3982 = vld [vmem:[%s3967 + $0x54] sm:$0xf]
      %v3983 = vld [vmem:[%s3967 + $0x58] sm:$0xf]
      %v3984 = vld [vmem:[%s3967 + $0x60] sm:$0xf]
      %v3985 = vld [vmem:[%s3967 + $0x64] sm:$0xf]
      %v3986 = vld [vmem:[%s3967 + $0x6c] sm:$0xf]
      %v3987 = vld [vmem:[%s3967 + $0x70] sm:$0xf]
      %v3988 = vld [vmem:[%s3967 + $0x78] sm:$0xf]
      %v3989 = vld [vmem:[%s3967 + $0x7c] sm:$0xf]
      %v3990 = vld [vmem:[%s3967 + $0x84] sm:$0xf]
      %v3991 = vld [vmem:[%s3967 + $0x88] sm:$0xf]
      %v3992 = vld [vmem:[%s3967 + $0x90] sm:$0xf]
      %v3993 = vld [vmem:[%s3967 + $0x94] sm:$0xf]
      %v3994 = vld [vmem:[%s3967 + $0x9c] sm:$0xf]
      %v3995 = vld [vmem:[%s3967 + $0xa0] sm:$0xf]
      %v3996 = vld [vmem:[%s3967 + $0xa8] sm:$0xf]
      %v3997 = vld [vmem:[%s3967 + $0xac] sm:$0xf]
      %v3998 = vld [vmem:[%s3967 + $0xb4] sm:$0xf]
      %v3999 = vld [vmem:[%s3967 + $0xb8] sm:$0xf]
      %v4000 = vld [vmem:[#allocation2] sm:$0xff]
      %v4001 = vld [vmem:[#allocation2 + $0x8] sm:$0xff]
      %v4002 = vld [vmem:[#allocation2 + $0x10] sm:$0xff]
      %v4003 = vld [vmem:[#allocation2 + $0x18] sm:$0xff]
      %v4004 = vld [vmem:[#allocation2 + $0x20] sm:$0xff]
      %v4005 = vld [vmem:[#allocation2 + $0x28] sm:$0xff]
      %v4006 = vld [vmem:[#allocation2 + $0x30] sm:$0xff]
      %v4007 = vld [vmem:[#allocation2 + $0x38] sm:$0xff]
      %v4008 = vld [vmem:[#allocation2 + $0x40] sm:$0xff]
      %v4009 = vld [vmem:[#allocation2 + $0x48] sm:$0xff]
      %v4010 = vld [vmem:[#allocation2 + $0x50] sm:$0xff]
      %v4011 = vld [vmem:[#allocation2 + $0x58] sm:$0xff]
      %v4012 = vld [vmem:[#allocation2 + $0x60] sm:$0xff]
      %v4013 = vld [vmem:[#allocation2 + $0x68] sm:$0xff]
      %v4014 = vld [vmem:[#allocation2 + $0x70] sm:$0xff]
      %v4015 = vld [vmem:[#allocation2 + $0x78] sm:$0xff]
      %v4016 = vld [vmem:[#allocation2 + $0x80] sm:$0xff]
      %v4017 = vld [vmem:[#allocation2 + $0x88] sm:$0xff]
      %v4018 = vld [vmem:[#allocation2 + $0x90] sm:$0xff]
      %v4019 = vld [vmem:[#allocation2 + $0x98] sm:$0xff]
      %v4020 = vld [vmem:[#allocation2 + $0xa0] sm:$0xff]
      %v4021 = vld [vmem:[#allocation2 + $0xa8] sm:$0xff]
      %v4022 = vld [vmem:[#allocation2 + $0xb0] sm:$0xff]
      %v4023 = vld [vmem:[#allocation2 + $0xb8] sm:$0xff]
      %v4024 = vld [vmem:[#allocation2 + $0xc0] sm:$0xff]
      %v4025 = vld [vmem:[#allocation2 + $0xc8] sm:$0xff]
      %v4026 = vld [vmem:[#allocation2 + $0xd0] sm:$0xff]
      %v4027 = vld [vmem:[#allocation2 + $0xd8] sm:$0xff]
      %v4028 = vld [vmem:[#allocation2 + $0xe0] sm:$0xff]
      %v4029 = vld [vmem:[#allocation2 + $0xe8] sm:$0xff]
      %v4030 = vld [vmem:[#allocation2 + $0xf0] sm:$0xff]
      %v4031 = vld [vmem:[#allocation2 + $0xf8] sm:$0xff]
      %s4032 = scalar_lea.vmem %s1, 384
      %v4033 = vld [vmem:[%s4032] sm:$0xf]
      %v4034 = vld [vmem:[%s4032 + $0x4] sm:$0xf]
      %v4035 = vld [vmem:[%s4032 + $0x8] sm:$0xf]
      %v4036 = vld [vmem:[%s4032 + $0xc] sm:$0xf]
      %v4037 = vld [vmem:[%s4032 + $0x10] sm:$0xf]
      %v4038 = vld [vmem:[%s4032 + $0x14] sm:$0xf]
      %v4039 = vld [vmem:[%s4032 + $0x18] sm:$0xf]
      %v4040 = vld [vmem:[%s4032 + $0x1c] sm:$0xf]
      %v4041 = vld [vmem:[%s4032 + $0x20] sm:$0xf]
      %v4042 = vld [vmem:[%s4032 + $0x24] sm:$0xf]
      %v4043 = vld [vmem:[%s4032 + $0x28] sm:$0xf]
      %v4044 = vld [vmem:[%s4032 + $0x2c] sm:$0xf]
      %v4045 = vld [vmem:[%s4032 + $0x30] sm:$0xf]
      %v4046 = vld [vmem:[%s4032 + $0x34] sm:$0xf]
      %v4047 = vld [vmem:[%s4032 + $0x38] sm:$0xf]
      %v4048 = vld [vmem:[%s4032 + $0x3c] sm:$0xf]
      %v4081 = vunpack.c.l.b16 %v3968
      %v4082 = vunpack.c.l.b16 %v3969
      %v4083 = vunpack.c.l.b16 %v3970
      %v4084 = vunpack.c.l.b16 %v3971
      %v4085 = vunpack.c.l.b16 %v3972
      %v4086 = vunpack.c.l.b16 %v3973
      %v4087 = vunpack.c.l.b16 %v3974
      %v4088 = vunpack.c.l.b16 %v3975
      %v4089 = vunpack.c.l.b16 %v3976
      %v4090 = vunpack.c.l.b16 %v3977
      %v4091 = vunpack.c.l.b16 %v3978
      %v4092 = vunpack.c.l.b16 %v3979
      %v4093 = vunpack.c.l.b16 %v3980
      %v4094 = vunpack.c.l.b16 %v3981
      %v4095 = vunpack.c.l.b16 %v3982
      %v4096 = vunpack.c.l.b16 %v3983
      %v4097 = vunpack.c.l.b16 %v3984
      %v4098 = vunpack.c.l.b16 %v3985
      %v4099 = vunpack.c.l.b16 %v3986
      %v4100 = vunpack.c.l.b16 %v3987
      %v4101 = vunpack.c.l.b16 %v3988
      %v4102 = vunpack.c.l.b16 %v3989
      %v4103 = vunpack.c.l.b16 %v3990
      %v4104 = vunpack.c.l.b16 %v3991
      %v4105 = vunpack.c.l.b16 %v3992
      %v4106 = vunpack.c.l.b16 %v3993
      %v4107 = vunpack.c.l.b16 %v3994
      %v4108 = vunpack.c.l.b16 %v3995
      %v4109 = vunpack.c.l.b16 %v3996
      %v4110 = vunpack.c.l.b16 %v3997
      %v4111 = vunpack.c.l.b16 %v3998
      %v4112 = vunpack.c.l.b16 %v3999
      %v4113 = vpack.c.b16 %v4082, %v4081
      %v4114 = vpack.c.b16 %v4084, %v4083
      %v4115 = vpack.c.b16 %v4086, %v4085
      %v4116 = vpack.c.b16 %v4088, %v4087
      %v4117 = vpack.c.b16 %v4090, %v4089
      %v4118 = vpack.c.b16 %v4092, %v4091
      %v4119 = vpack.c.b16 %v4094, %v4093
      %v4120 = vpack.c.b16 %v4096, %v4095
      %v4121 = vpack.c.b16 %v4098, %v4097
      %v4122 = vpack.c.b16 %v4100, %v4099
      %v4123 = vpack.c.b16 %v4102, %v4101
      %v4124 = vpack.c.b16 %v4104, %v4103
      %v4125 = vpack.c.b16 %v4106, %v4105
      %v4126 = vpack.c.b16 %v4108, %v4107
      %v4127 = vpack.c.b16 %v4110, %v4109
      %v4128 = vpack.c.b16 %v4112, %v4111
      %v4161 = vunpack.c.l.b16 %v4033
      %v4162 = vunpack.c.l.b16 %v4034
      %v4163 = vunpack.c.l.b16 %v4035
      %v4164 = vunpack.c.l.b16 %v4036
      %v4165 = vunpack.c.l.b16 %v4037
      %v4166 = vunpack.c.l.b16 %v4038
      %v4167 = vunpack.c.l.b16 %v4039
      %v4168 = vunpack.c.l.b16 %v4040
      %v4169 = vunpack.c.l.b16 %v4041
      %v4170 = vunpack.c.l.b16 %v4042
      %v4171 = vunpack.c.l.b16 %v4043
      %v4172 = vunpack.c.l.b16 %v4044
      %v4173 = vunpack.c.l.b16 %v4045
      %v4174 = vunpack.c.l.b16 %v4046
      %v4175 = vunpack.c.l.b16 %v4047
      %v4176 = vunpack.c.l.b16 %v4048
      %v4177 = vpack.c.b16 %v4162, %v4161
      %v4178 = vpack.c.b16 %v4164, %v4163
      %v4179 = vpack.c.b16 %v4166, %v4165
      %v4180 = vpack.c.b16 %v4168, %v4167
      %v4181 = vpack.c.b16 %v4170, %v4169
      %v4182 = vpack.c.b16 %v4172, %v4171
      %v4183 = vpack.c.b16 %v4174, %v4173
      %v4184 = vpack.c.b16 %v4176, %v4175
      %4193 = vmatprep.subr.bf16.mxu0 0
      %4194 = vmatpush1.bf16.msra.mxu0 %v4184
      %4195 = vmatprep.subr.bf16.mxu0 0
      %4196 = vmatpush1.bf16.msra.mxu0 %v4183
      %4197 = vmatprep.subr.bf16.mxu0 0
      %4198 = vmatpush1.bf16.msra.mxu0 %v4182
      %4199 = vmatprep.subr.bf16.mxu0 0
      %4200 = vmatpush1.bf16.msra.mxu0 %v4181
      %4201 = vmatprep.subr.bf16.mxu0 0
      %4202 = vmatpush1.bf16.msra.mxu0 %v4180
      %4203 = vmatprep.subr.bf16.mxu0 0
      %4204 = vmatpush1.bf16.msra.mxu0 %v4179
      %4205 = vmatprep.subr.bf16.mxu0 0
      %4206 = vmatpush1.bf16.msra.mxu0 %v4178
      %4207 = vmatprep.subr.bf16.mxu0 0
      %4208 = vmatpush1.bf16.msra.mxu0 %v4177
      %4209 = vmatprep.subr.bf16.mxu0 0
      %4210 = vmatpush2.bf16.msra.mxu0 0
      %4211 = vmatprep.subr.bf16.mxu0 0
      %4212 = vmatpush2.bf16.msra.mxu0 0
      %4213 = vmatprep.subr.bf16.mxu0 0
      %4214 = vmatpush2.bf16.msra.mxu0 0
      %4215 = vmatprep.subr.bf16.mxu0 0
      %4216 = vmatpush2.bf16.msra.mxu0 0
      %4217 = vmatprep.subr.bf16.mxu0 0
      %4218 = vmatpush2.bf16.msra.mxu0 0
      %4219 = vmatprep.subr.bf16.mxu0 0
      %4220 = vmatpush2.bf16.msra.mxu0 0
      %4221 = vmatprep.subr.bf16.mxu0 0
      %4222 = vmatpush2.bf16.msra.mxu0 0
      %4223 = vmatprep.subr.bf16.mxu0 0
      %4224 = vmatpush2.bf16.msra.mxu0 0
      %4225 = vmatprep.mubr.bf16.mxu0 0
      %4226 = vmatmul.mubr.bf16.gmra.mxu0 %v4113
      %v4227 = vpop.f32.mrf.mxu0
      %v4228 = vadd.f32 0.0, %v4227
      %v4229 = vpop.f32.mrf.mxu0
      %v4230 = vpop.f32.mrf.mxu0
      %v4231 = vadd.f32 0.0, %v4230
      %v4232 = vpop.f32.mrf.mxu0
      %4233 = vmatprep.mubr.bf16.mxu0 0
      %4234 = vmatmul.mubr.bf16.gmra.mxu0 %v4114
      %v4235 = vpop.f32.mrf.mxu0
      %v4236 = vadd.f32 0.0, %v4235
      %v4237 = vpop.f32.mrf.mxu0
      %v4238 = vpop.f32.mrf.mxu0
      %v4239 = vadd.f32 0.0, %v4238
      %v4240 = vpop.f32.mrf.mxu0
      %4241 = vmatprep.mubr.bf16.mxu0 0
      %4242 = vmatmul.mubr.bf16.gmra.mxu0 %v4115
      %v4243 = vpop.f32.mrf.mxu0
      %v4244 = vadd.f32 0.0, %v4243
      %v4245 = vpop.f32.mrf.mxu0
      %v4246 = vpop.f32.mrf.mxu0
      %v4247 = vadd.f32 0.0, %v4246
      %v4248 = vpop.f32.mrf.mxu0
      %4249 = vmatprep.mubr.bf16.mxu0 0
      %4250 = vmatmul.mubr.bf16.gmra.mxu0 %v4116
      %v4251 = vpop.f32.mrf.mxu0
      %v4252 = vadd.f32 0.0, %v4251
      %v4253 = vpop.f32.mrf.mxu0
      %v4254 = vpop.f32.mrf.mxu0
      %v4255 = vadd.f32 0.0, %v4254
      %v4256 = vpop.f32.mrf.mxu0
      %4257 = vmatprep.mubr.bf16.mxu0 0
      %4258 = vmatmul.mubr.bf16.gmra.mxu0 %v4117
      %v4259 = vpop.f32.mrf.mxu0
      %v4260 = vadd.f32 0.0, %v4259
      %v4261 = vpop.f32.mrf.mxu0
      %v4262 = vpop.f32.mrf.mxu0
      %v4263 = vadd.f32 0.0, %v4262
      %v4264 = vpop.f32.mrf.mxu0
      %4265 = vmatprep.mubr.bf16.mxu0 0
      %4266 = vmatmul.mubr.bf16.gmra.mxu0 %v4118
      %v4267 = vpop.f32.mrf.mxu0
      %v4268 = vadd.f32 0.0, %v4267
      %v4269 = vpop.f32.mrf.mxu0
      %v4270 = vpop.f32.mrf.mxu0
      %v4271 = vadd.f32 0.0, %v4270
      %v4272 = vpop.f32.mrf.mxu0
      %4273 = vmatprep.mubr.bf16.mxu0 0
      %4274 = vmatmul.mubr.bf16.gmra.mxu0 %v4119
      %v4275 = vpop.f32.mrf.mxu0
      %v4276 = vadd.f32 0.0, %v4275
      %v4277 = vpop.f32.mrf.mxu0
      %v4278 = vpop.f32.mrf.mxu0
      %v4279 = vadd.f32 0.0, %v4278
      %v4280 = vpop.f32.mrf.mxu0
      %4281 = vmatprep.mubr.bf16.mxu0 0
      %4282 = vmatmul.mubr.bf16.gmra.mxu0 %v4120
      %v4283 = vpop.f32.mrf.mxu0
      %v4284 = vadd.f32 0.0, %v4283
      %v4285 = vpop.f32.mrf.mxu0
      %v4286 = vpop.f32.mrf.mxu0
      %v4287 = vadd.f32 0.0, %v4286
      %v4288 = vpop.f32.mrf.mxu0
      %4289 = vmatprep.mubr.bf16.mxu0 0
      %4290 = vmatmul.mubr.bf16.gmra.mxu0 %v4121
      %v4291 = vpop.f32.mrf.mxu0
      %v4292 = vadd.f32 0.0, %v4291
      %v4293 = vpop.f32.mrf.mxu0
      %v4294 = vpop.f32.mrf.mxu0
      %v4295 = vadd.f32 0.0, %v4294
      %v4296 = vpop.f32.mrf.mxu0
      %4297 = vmatprep.mubr.bf16.mxu0 0
      %4298 = vmatmul.mubr.bf16.gmra.mxu0 %v4122
      %v4299 = vpop.f32.mrf.mxu0
      %v4300 = vadd.f32 0.0, %v4299
      %v4301 = vpop.f32.mrf.mxu0
      %v4302 = vpop.f32.mrf.mxu0
      %v4303 = vadd.f32 0.0, %v4302
      %v4304 = vpop.f32.mrf.mxu0
      %4305 = vmatprep.mubr.bf16.mxu0 0
      %4306 = vmatmul.mubr.bf16.gmra.mxu0 %v4123
      %v4307 = vpop.f32.mrf.mxu0
      %v4308 = vadd.f32 0.0, %v4307
      %v4309 = vpop.f32.mrf.mxu0
      %v4310 = vpop.f32.mrf.mxu0
      %v4311 = vadd.f32 0.0, %v4310
      %v4312 = vpop.f32.mrf.mxu0
      %4313 = vmatprep.mubr.bf16.mxu0 0
      %4314 = vmatmul.mubr.bf16.gmra.mxu0 %v4124
      %v4315 = vpop.f32.mrf.mxu0
      %v4316 = vadd.f32 0.0, %v4315
      %v4317 = vpop.f32.mrf.mxu0
      %v4318 = vpop.f32.mrf.mxu0
      %v4319 = vadd.f32 0.0, %v4318
      %v4320 = vpop.f32.mrf.mxu0
      %4321 = vmatprep.mubr.bf16.mxu0 0
      %4322 = vmatmul.mubr.bf16.gmra.mxu0 %v4125
      %v4323 = vpop.f32.mrf.mxu0
      %v4324 = vadd.f32 0.0, %v4323
      %v4325 = vpop.f32.mrf.mxu0
      %v4326 = vpop.f32.mrf.mxu0
      %v4327 = vadd.f32 0.0, %v4326
      %v4328 = vpop.f32.mrf.mxu0
      %4329 = vmatprep.mubr.bf16.mxu0 0
      %4330 = vmatmul.mubr.bf16.gmra.mxu0 %v4126
      %v4331 = vpop.f32.mrf.mxu0
      %v4332 = vadd.f32 0.0, %v4331
      %v4333 = vpop.f32.mrf.mxu0
      %v4334 = vpop.f32.mrf.mxu0
      %v4335 = vadd.f32 0.0, %v4334
      %v4336 = vpop.f32.mrf.mxu0
      %4337 = vmatprep.mubr.bf16.mxu0 0
      %4338 = vmatmul.mubr.bf16.gmra.mxu0 %v4127
      %v4339 = vpop.f32.mrf.mxu0
      %v4340 = vadd.f32 0.0, %v4339
      %v4341 = vpop.f32.mrf.mxu0
      %v4342 = vpop.f32.mrf.mxu0
      %v4343 = vadd.f32 0.0, %v4342
      %v4344 = vpop.f32.mrf.mxu0
      %4345 = vmatprep.mubr.bf16.mxu0 0
      %4346 = vmatmul.mubr.bf16.gmra.mxu0 %v4128
      %v4347 = vpop.f32.mrf.mxu0
      %v4348 = vadd.f32 0.0, %v4347
      %v4349 = vpop.f32.mrf.mxu0
      %v4350 = vpop.f32.mrf.mxu0
      %v4351 = vadd.f32 0.0, %v4350
      %v4352 = vpop.f32.mrf.mxu0
      %4353 = vdwg.mxu0
      %v4354 = vadd.f32 %v4000, %v4228
      %v4355 = vadd.f32 %v4001, %v4231
      %v4356 = vadd.f32 %v4002, %v4236
      %v4357 = vadd.f32 %v4003, %v4239
      %v4358 = vadd.f32 %v4004, %v4244
      %v4359 = vadd.f32 %v4005, %v4247
      %v4360 = vadd.f32 %v4006, %v4252
      %v4361 = vadd.f32 %v4007, %v4255
      %v4362 = vadd.f32 %v4008, %v4260
      %v4363 = vadd.f32 %v4009, %v4263
      %v4364 = vadd.f32 %v4010, %v4268
      %v4365 = vadd.f32 %v4011, %v4271
      %v4366 = vadd.f32 %v4012, %v4276
      %v4367 = vadd.f32 %v4013, %v4279
      %v4368 = vadd.f32 %v4014, %v4284
      %v4369 = vadd.f32 %v4015, %v4287
      %v4370 = vadd.f32 %v4016, %v4292
      %v4371 = vadd.f32 %v4017, %v4295
      %v4372 = vadd.f32 %v4018, %v4300
      %v4373 = vadd.f32 %v4019, %v4303
      %v4374 = vadd.f32 %v4020, %v4308
      %v4375 = vadd.f32 %v4021, %v4311
      %v4376 = vadd.f32 %v4022, %v4316
      %v4377 = vadd.f32 %v4023, %v4319
      %v4378 = vadd.f32 %v4024, %v4324
      %v4379 = vadd.f32 %v4025, %v4327
      %v4380 = vadd.f32 %v4026, %v4332
      %v4381 = vadd.f32 %v4027, %v4335
      %v4382 = vadd.f32 %v4028, %v4340
      %v4383 = vadd.f32 %v4029, %v4343
      %v4384 = vadd.f32 %v4030, %v4348
      %v4385 = vadd.f32 %v4031, %v4351
      %4386 = vst [vmem:[#allocation2] sm:$0xff] %v4354
      %4387 = vst [vmem:[#allocation2 + $0x8] sm:$0xff] %v4355
      %4388 = vst [vmem:[#allocation2 + $0x10] sm:$0xff] %v4356
      %4389 = vst [vmem:[#allocation2 + $0x18] sm:$0xff] %v4357
      %4390 = vst [vmem:[#allocation2 + $0x20] sm:$0xff] %v4358
      %4391 = vst [vmem:[#allocation2 + $0x28] sm:$0xff] %v4359
      %4392 = vst [vmem:[#allocation2 + $0x30] sm:$0xff] %v4360
      %4393 = vst [vmem:[#allocation2 + $0x38] sm:$0xff] %v4361
      %4394 = vst [vmem:[#allocation2 + $0x40] sm:$0xff] %v4362
      %4395 = vst [vmem:[#allocation2 + $0x48] sm:$0xff] %v4363
      %4396 = vst [vmem:[#allocation2 + $0x50] sm:$0xff] %v4364
      %4397 = vst [vmem:[#allocation2 + $0x58] sm:$0xff] %v4365
      %4398 = vst [vmem:[#allocation2 + $0x60] sm:$0xff] %v4366
      %4399 = vst [vmem:[#allocation2 + $0x68] sm:$0xff] %v4367
      %4400 = vst [vmem:[#allocation2 + $0x70] sm:$0xff] %v4368
      %4401 = vst [vmem:[#allocation2 + $0x78] sm:$0xff] %v4369
      %4402 = vst [vmem:[#allocation2 + $0x80] sm:$0xff] %v4370
      %4403 = vst [vmem:[#allocation2 + $0x88] sm:$0xff] %v4371
      %4404 = vst [vmem:[#allocation2 + $0x90] sm:$0xff] %v4372
      %4405 = vst [vmem:[#allocation2 + $0x98] sm:$0xff] %v4373
      %4406 = vst [vmem:[#allocation2 + $0xa0] sm:$0xff] %v4374
      %4407 = vst [vmem:[#allocation2 + $0xa8] sm:$0xff] %v4375
      %4408 = vst [vmem:[#allocation2 + $0xb0] sm:$0xff] %v4376
      %4409 = vst [vmem:[#allocation2 + $0xb8] sm:$0xff] %v4377
      %4410 = vst [vmem:[#allocation2 + $0xc0] sm:$0xff] %v4378
      %4411 = vst [vmem:[#allocation2 + $0xc8] sm:$0xff] %v4379
      %4412 = vst [vmem:[#allocation2 + $0xd0] sm:$0xff] %v4380
      %4413 = vst [vmem:[#allocation2 + $0xd8] sm:$0xff] %v4381
      %4414 = vst [vmem:[#allocation2 + $0xe0] sm:$0xff] %v4382
      %4415 = vst [vmem:[#allocation2 + $0xe8] sm:$0xff] %v4383
      %4416 = vst [vmem:[#allocation2 + $0xf0] sm:$0xff] %v4384
      %4417 = vst [vmem:[#allocation2 + $0xf8] sm:$0xff] %v4385
      %v4418 = vld [vmem:[%s3967] sm:$0xf]
      %v4419 = vld [vmem:[%s3967 + $0x4] sm:$0xf]
      %v4420 = vld [vmem:[%s3967 + $0x8] sm:$0x1]
      %v4421 = vld [vmem:[%s3967 + $0xc] sm:$0xf]
      %v4422 = vld [vmem:[%s3967 + $0x10] sm:$0xf]
      %v4423 = vld [vmem:[%s3967 + $0x14] sm:$0x1]
      %v4424 = vld [vmem:[%s3967 + $0x18] sm:$0xf]
      %v4425 = vld [vmem:[%s3967 + $0x1c] sm:$0xf]
      %v4426 = vld [vmem:[%s3967 + $0x20] sm:$0x1]
      %v4427 = vld [vmem:[%s3967 + $0x24] sm:$0xf]
      %v4428 = vld [vmem:[%s3967 + $0x28] sm:$0xf]
      %v4429 = vld [vmem:[%s3967 + $0x2c] sm:$0x1]
      %v4430 = vld [vmem:[%s3967 + $0x30] sm:$0xf]
      %v4431 = vld [vmem:[%s3967 + $0x34] sm:$0xf]
      %v4432 = vld [vmem:[%s3967 + $0x38] sm:$0x1]
      %v4433 = vld [vmem:[%s3967 + $0x3c] sm:$0xf]
      %v4434 = vld [vmem:[%s3967 + $0x40] sm:$0xf]
      %v4435 = vld [vmem:[%s3967 + $0x44] sm:$0x1]
      %v4436 = vld [vmem:[%s3967 + $0x48] sm:$0xf]
      %v4437 = vld [vmem:[%s3967 + $0x4c] sm:$0xf]
      %v4438 = vld [vmem:[%s3967 + $0x50] sm:$0x1]
      %v4439 = vld [vmem:[%s3967 + $0x54] sm:$0xf]
      %v4440 = vld [vmem:[%s3967 + $0x58] sm:$0xf]
      %v4441 = vld [vmem:[%s3967 + $0x5c] sm:$0x1]
      %v4442 = vld [vmem:[%s3967 + $0x60] sm:$0xf]
      %v4443 = vld [vmem:[%s3967 + $0x64] sm:$0xf]
      %v4444 = vld [vmem:[%s3967 + $0x68] sm:$0x1]
      %v4445 = vld [vmem:[%s3967 + $0x6c] sm:$0xf]
      %v4446 = vld [vmem:[%s3967 + $0x70] sm:$0xf]
      %v4447 = vld [vmem:[%s3967 + $0x74] sm:$0x1]
      %v4448 = vld [vmem:[%s3967 + $0x78] sm:$0xf]
      %v4449 = vld [vmem:[%s3967 + $0x7c] sm:$0xf]
      %v4450 = vld [vmem:[%s3967 + $0x80] sm:$0x1]
      %v4451 = vld [vmem:[%s3967 + $0x84] sm:$0xf]
      %v4452 = vld [vmem:[%s3967 + $0x88] sm:$0xf]
      %v4453 = vld [vmem:[%s3967 + $0x8c] sm:$0x1]
      %v4454 = vld [vmem:[%s3967 + $0x90] sm:$0xf]
      %v4455 = vld [vmem:[%s3967 + $0x94] sm:$0xf]
      %v4456 = vld [vmem:[%s3967 + $0x98] sm:$0x1]
      %v4457 = vld [vmem:[%s3967 + $0x9c] sm:$0xf]
      %v4458 = vld [vmem:[%s3967 + $0xa0] sm:$0xf]
      %v4459 = vld [vmem:[%s3967 + $0xa4] sm:$0x1]
      %v4460 = vld [vmem:[%s3967 + $0xa8] sm:$0xf]
      %v4461 = vld [vmem:[%s3967 + $0xac] sm:$0xf]
      %v4462 = vld [vmem:[%s3967 + $0xb0] sm:$0x1]
      %v4463 = vld [vmem:[%s3967 + $0xb4] sm:$0xf]
      %v4464 = vld [vmem:[%s3967 + $0xb8] sm:$0xf]
      %v4465 = vld [vmem:[%s3967 + $0xbc] sm:$0x1]
      %v4467 = vshrl.u32 %v4418, 16
      %v4469 = vrot.slane %v4467, 4
      %v4470 = vshll.u32 %v4418, 16
      %v4472 = vrot.slane %v4470, 5
      %v4473 = vor.u32 %v4469, %v4472
      %v4474 = vrot.slane %v4473, 4
      %v4476 = vshll.u32 %v4419, 16
      %v4478 = vrot.slane %v4476, 5
      %v4479 = vsel %vm730, %v4474, %v4478
      %v4480 = vshrl.u32 %v4419, 16
      %v4482 = vrot.slane %v4480, 4
      %v4483 = vor.u32 %v4482, %v4478
      %v4484 = vrot.slane %v4483, 4
      %v4486 = vshll.u32 %v4420, 16
      %v4488 = vrot.slane %v4486, 5
      %v4489 = vsel %vm730, %v4484, %v4488
      %v4491 = vshrl.u32 %v4421, 16
      %v4493 = vrot.slane %v4491, 4
      %v4494 = vshll.u32 %v4421, 16
      %v4496 = vrot.slane %v4494, 5
      %v4497 = vor.u32 %v4493, %v4496
      %v4498 = vrot.slane %v4497, 4
      %v4500 = vshll.u32 %v4422, 16
      %v4502 = vrot.slane %v4500, 5
      %v4503 = vsel %vm730, %v4498, %v4502
      %v4504 = vshrl.u32 %v4422, 16
      %v4506 = vrot.slane %v4504, 4
      %v4507 = vor.u32 %v4506, %v4502
      %v4508 = vrot.slane %v4507, 4
      %v4510 = vshll.u32 %v4423, 16
      %v4512 = vrot.slane %v4510, 5
      %v4513 = vsel %vm730, %v4508, %v4512
      %v4515 = vshrl.u32 %v4424, 16
      %v4517 = vrot.slane %v4515, 4
      %v4518 = vshll.u32 %v4424, 16
      %v4520 = vrot.slane %v4518, 5
      %v4521 = vor.u32 %v4517, %v4520
      %v4522 = vrot.slane %v4521, 4
      %v4524 = vshll.u32 %v4425, 16
      %v4526 = vrot.slane %v4524, 5
      %v4527 = vsel %vm730, %v4522, %v4526
      %v4528 = vshrl.u32 %v4425, 16
      %v4530 = vrot.slane %v4528, 4
      %v4531 = vor.u32 %v4530, %v4526
      %v4532 = vrot.slane %v4531, 4
      %v4534 = vshll.u32 %v4426, 16
      %v4536 = vrot.slane %v4534, 5
      %v4537 = vsel %vm730, %v4532, %v4536
      %v4539 = vshrl.u32 %v4427, 16
      %v4541 = vrot.slane %v4539, 4
      %v4542 = vshll.u32 %v4427, 16
      %v4544 = vrot.slane %v4542, 5
      %v4545 = vor.u32 %v4541, %v4544
      %v4546 = vrot.slane %v4545, 4
      %v4548 = vshll.u32 %v4428, 16
      %v4550 = vrot.slane %v4548, 5
      %v4551 = vsel %vm730, %v4546, %v4550
      %v4552 = vshrl.u32 %v4428, 16
      %v4554 = vrot.slane %v4552, 4
      %v4555 = vor.u32 %v4554, %v4550
      %v4556 = vrot.slane %v4555, 4
      %v4558 = vshll.u32 %v4429, 16
      %v4560 = vrot.slane %v4558, 5
      %v4561 = vsel %vm730, %v4556, %v4560
      %v4563 = vshrl.u32 %v4430, 16
      %v4565 = vrot.slane %v4563, 4
      %v4566 = vshll.u32 %v4430, 16
      %v4568 = vrot.slane %v4566, 5
      %v4569 = vor.u32 %v4565, %v4568
      %v4570 = vrot.slane %v4569, 4
      %v4572 = vshll.u32 %v4431, 16
      %v4574 = vrot.slane %v4572, 5
      %v4575 = vsel %vm730, %v4570, %v4574
      %v4576 = vshrl.u32 %v4431, 16
      %v4578 = vrot.slane %v4576, 4
      %v4579 = vor.u32 %v4578, %v4574
      %v4580 = vrot.slane %v4579, 4
      %v4582 = vshll.u32 %v4432, 16
      %v4584 = vrot.slane %v4582, 5
      %v4585 = vsel %vm730, %v4580, %v4584
      %v4587 = vshrl.u32 %v4433, 16
      %v4589 = vrot.slane %v4587, 4
      %v4590 = vshll.u32 %v4433, 16
      %v4592 = vrot.slane %v4590, 5
      %v4593 = vor.u32 %v4589, %v4592
      %v4594 = vrot.slane %v4593, 4
      %v4596 = vshll.u32 %v4434, 16
      %v4598 = vrot.slane %v4596, 5
      %v4599 = vsel %vm730, %v4594, %v4598
      %v4600 = vshrl.u32 %v4434, 16
      %v4602 = vrot.slane %v4600, 4
      %v4603 = vor.u32 %v4602, %v4598
      %v4604 = vrot.slane %v4603, 4
      %v4606 = vshll.u32 %v4435, 16
      %v4608 = vrot.slane %v4606, 5
      %v4609 = vsel %vm730, %v4604, %v4608
      %v4611 = vshrl.u32 %v4436, 16
      %v4613 = vrot.slane %v4611, 4
      %v4614 = vshll.u32 %v4436, 16
      %v4616 = vrot.slane %v4614, 5
      %v4617 = vor.u32 %v4613, %v4616
      %v4618 = vrot.slane %v4617, 4
      %v4620 = vshll.u32 %v4437, 16
      %v4622 = vrot.slane %v4620, 5
      %v4623 = vsel %vm730, %v4618, %v4622
      %v4624 = vshrl.u32 %v4437, 16
      %v4626 = vrot.slane %v4624, 4
      %v4627 = vor.u32 %v4626, %v4622
      %v4628 = vrot.slane %v4627, 4
      %v4630 = vshll.u32 %v4438, 16
      %v4632 = vrot.slane %v4630, 5
      %v4633 = vsel %vm730, %v4628, %v4632
      %v4635 = vshrl.u32 %v4439, 16
      %v4637 = vrot.slane %v4635, 4
      %v4638 = vshll.u32 %v4439, 16
      %v4640 = vrot.slane %v4638, 5
      %v4641 = vor.u32 %v4637, %v4640
      %v4642 = vrot.slane %v4641, 4
      %v4644 = vshll.u32 %v4440, 16
      %v4646 = vrot.slane %v4644, 5
      %v4647 = vsel %vm730, %v4642, %v4646
      %v4648 = vshrl.u32 %v4440, 16
      %v4650 = vrot.slane %v4648, 4
      %v4651 = vor.u32 %v4650, %v4646
      %v4652 = vrot.slane %v4651, 4
      %v4654 = vshll.u32 %v4441, 16
      %v4656 = vrot.slane %v4654, 5
      %v4657 = vsel %vm730, %v4652, %v4656
      %v4659 = vshrl.u32 %v4442, 16
      %v4661 = vrot.slane %v4659, 4
      %v4662 = vshll.u32 %v4442, 16
      %v4664 = vrot.slane %v4662, 5
      %v4665 = vor.u32 %v4661, %v4664
      %v4666 = vrot.slane %v4665, 4
      %v4668 = vshll.u32 %v4443, 16
      %v4670 = vrot.slane %v4668, 5
      %v4671 = vsel %vm730, %v4666, %v4670
      %v4672 = vshrl.u32 %v4443, 16
      %v4674 = vrot.slane %v4672, 4
      %v4675 = vor.u32 %v4674, %v4670
      %v4676 = vrot.slane %v4675, 4
      %v4678 = vshll.u32 %v4444, 16
      %v4680 = vrot.slane %v4678, 5
      %v4681 = vsel %vm730, %v4676, %v4680
      %v4683 = vshrl.u32 %v4445, 16
      %v4685 = vrot.slane %v4683, 4
      %v4686 = vshll.u32 %v4445, 16
      %v4688 = vrot.slane %v4686, 5
      %v4689 = vor.u32 %v4685, %v4688
      %v4690 = vrot.slane %v4689, 4
      %v4692 = vshll.u32 %v4446, 16
      %v4694 = vrot.slane %v4692, 5
      %v4695 = vsel %vm730, %v4690, %v4694
      %v4696 = vshrl.u32 %v4446, 16
      %v4698 = vrot.slane %v4696, 4
      %v4699 = vor.u32 %v4698, %v4694
      %v4700 = vrot.slane %v4699, 4
      %v4702 = vshll.u32 %v4447, 16
      %v4704 = vrot.slane %v4702, 5
      %v4705 = vsel %vm730, %v4700, %v4704
      %v4707 = vshrl.u32 %v4448, 16
      %v4709 = vrot.slane %v4707, 4
      %v4710 = vshll.u32 %v4448, 16
      %v4712 = vrot.slane %v4710, 5
      %v4713 = vor.u32 %v4709, %v4712
      %v4714 = vrot.slane %v4713, 4
      %v4716 = vshll.u32 %v4449, 16
      %v4718 = vrot.slane %v4716, 5
      %v4719 = vsel %vm730, %v4714, %v4718
      %v4720 = vshrl.u32 %v4449, 16
      %v4722 = vrot.slane %v4720, 4
      %v4723 = vor.u32 %v4722, %v4718
      %v4724 = vrot.slane %v4723, 4
      %v4726 = vshll.u32 %v4450, 16
      %v4728 = vrot.slane %v4726, 5
      %v4729 = vsel %vm730, %v4724, %v4728
      %v4731 = vshrl.u32 %v4451, 16
      %v4733 = vrot.slane %v4731, 4
      %v4734 = vshll.u32 %v4451, 16
      %v4736 = vrot.slane %v4734, 5
      %v4737 = vor.u32 %v4733, %v4736
      %v4738 = vrot.slane %v4737, 4
      %v4740 = vshll.u32 %v4452, 16
      %v4742 = vrot.slane %v4740, 5
      %v4743 = vsel %vm730, %v4738, %v4742
      %v4744 = vshrl.u32 %v4452, 16
      %v4746 = vrot.slane %v4744, 4
      %v4747 = vor.u32 %v4746, %v4742
      %v4748 = vrot.slane %v4747, 4
      %v4750 = vshll.u32 %v4453, 16
      %v4752 = vrot.slane %v4750, 5
      %v4753 = vsel %vm730, %v4748, %v4752
      %v4755 = vshrl.u32 %v4454, 16
      %v4757 = vrot.slane %v4755, 4
      %v4758 = vshll.u32 %v4454, 16
      %v4760 = vrot.slane %v4758, 5
      %v4761 = vor.u32 %v4757, %v4760
      %v4762 = vrot.slane %v4761, 4
      %v4764 = vshll.u32 %v4455, 16
      %v4766 = vrot.slane %v4764, 5
      %v4767 = vsel %vm730, %v4762, %v4766
      %v4768 = vshrl.u32 %v4455, 16
      %v4770 = vrot.slane %v4768, 4
      %v4771 = vor.u32 %v4770, %v4766
      %v4772 = vrot.slane %v4771, 4
      %v4774 = vshll.u32 %v4456, 16
      %v4776 = vrot.slane %v4774, 5
      %v4777 = vsel %vm730, %v4772, %v4776
      %v4779 = vshrl.u32 %v4457, 16
      %v4781 = vrot.slane %v4779, 4
      %v4782 = vshll.u32 %v4457, 16
      %v4784 = vrot.slane %v4782, 5
      %v4785 = vor.u32 %v4781, %v4784
      %v4786 = vrot.slane %v4785, 4
      %v4788 = vshll.u32 %v4458, 16
      %v4790 = vrot.slane %v4788, 5
      %v4791 = vsel %vm730, %v4786, %v4790
      %v4792 = vshrl.u32 %v4458, 16
      %v4794 = vrot.slane %v4792, 4
      %v4795 = vor.u32 %v4794, %v4790
      %v4796 = vrot.slane %v4795, 4
      %v4798 = vshll.u32 %v4459, 16
      %v4800 = vrot.slane %v4798, 5
      %v4801 = vsel %vm730, %v4796, %v4800
      %v4803 = vshrl.u32 %v4460, 16
      %v4805 = vrot.slane %v4803, 4
      %v4806 = vshll.u32 %v4460, 16
      %v4808 = vrot.slane %v4806, 5
      %v4809 = vor.u32 %v4805, %v4808
      %v4810 = vrot.slane %v4809, 4
      %v4812 = vshll.u32 %v4461, 16
      %v4814 = vrot.slane %v4812, 5
      %v4815 = vsel %vm730, %v4810, %v4814
      %v4816 = vshrl.u32 %v4461, 16
      %v4818 = vrot.slane %v4816, 4
      %v4819 = vor.u32 %v4818, %v4814
      %v4820 = vrot.slane %v4819, 4
      %v4822 = vshll.u32 %v4462, 16
      %v4824 = vrot.slane %v4822, 5
      %v4825 = vsel %vm730, %v4820, %v4824
      %v4827 = vshrl.u32 %v4463, 16
      %v4829 = vrot.slane %v4827, 4
      %v4830 = vshll.u32 %v4463, 16
      %v4832 = vrot.slane %v4830, 5
      %v4833 = vor.u32 %v4829, %v4832
      %v4834 = vrot.slane %v4833, 4
      %v4836 = vshll.u32 %v4464, 16
      %v4838 = vrot.slane %v4836, 5
      %v4839 = vsel %vm730, %v4834, %v4838
      %v4840 = vshrl.u32 %v4464, 16
      %v4842 = vrot.slane %v4840, 4
      %v4843 = vor.u32 %v4842, %v4838
      %v4844 = vrot.slane %v4843, 4
      %v4846 = vshll.u32 %v4465, 16
      %v4848 = vrot.slane %v4846, 5
      %v4849 = vsel %vm730, %v4844, %v4848
      %v4850 = vld [vmem:[#allocation2] sm:$0xff]
      %v4851 = vld [vmem:[#allocation2 + $0x8] sm:$0xff]
      %v4852 = vld [vmem:[#allocation2 + $0x10] sm:$0xff]
      %v4853 = vld [vmem:[#allocation2 + $0x18] sm:$0xff]
      %v4854 = vld [vmem:[#allocation2 + $0x20] sm:$0xff]
      %v4855 = vld [vmem:[#allocation2 + $0x28] sm:$0xff]
      %v4856 = vld [vmem:[#allocation2 + $0x30] sm:$0xff]
      %v4857 = vld [vmem:[#allocation2 + $0x38] sm:$0xff]
      %v4858 = vld [vmem:[#allocation2 + $0x40] sm:$0xff]
      %v4859 = vld [vmem:[#allocation2 + $0x48] sm:$0xff]
      %v4860 = vld [vmem:[#allocation2 + $0x50] sm:$0xff]
      %v4861 = vld [vmem:[#allocation2 + $0x58] sm:$0xff]
      %v4862 = vld [vmem:[#allocation2 + $0x60] sm:$0xff]
      %v4863 = vld [vmem:[#allocation2 + $0x68] sm:$0xff]
      %v4864 = vld [vmem:[#allocation2 + $0x70] sm:$0xff]
      %v4865 = vld [vmem:[#allocation2 + $0x78] sm:$0xff]
      %v4866 = vld [vmem:[#allocation2 + $0x80] sm:$0xff]
      %v4867 = vld [vmem:[#allocation2 + $0x88] sm:$0xff]
      %v4868 = vld [vmem:[#allocation2 + $0x90] sm:$0xff]
      %v4869 = vld [vmem:[#allocation2 + $0x98] sm:$0xff]
      %v4870 = vld [vmem:[#allocation2 + $0xa0] sm:$0xff]
      %v4871 = vld [vmem:[#allocation2 + $0xa8] sm:$0xff]
      %v4872 = vld [vmem:[#allocation2 + $0xb0] sm:$0xff]
      %v4873 = vld [vmem:[#allocation2 + $0xb8] sm:$0xff]
      %v4874 = vld [vmem:[#allocation2 + $0xc0] sm:$0xff]
      %v4875 = vld [vmem:[#allocation2 + $0xc8] sm:$0xff]
      %v4876 = vld [vmem:[#allocation2 + $0xd0] sm:$0xff]
      %v4877 = vld [vmem:[#allocation2 + $0xd8] sm:$0xff]
      %v4878 = vld [vmem:[#allocation2 + $0xe0] sm:$0xff]
      %v4879 = vld [vmem:[#allocation2 + $0xe8] sm:$0xff]
      %v4880 = vld [vmem:[#allocation2 + $0xf0] sm:$0xff]
      %v4881 = vld [vmem:[#allocation2 + $0xf8] sm:$0xff]
      %s4882 = scalar_lea.vmem %s1, 448
      %v4883 = vld [vmem:[%s4882] sm:$0xf]
      %v4884 = vld [vmem:[%s4882 + $0x4] sm:$0xf]
      %v4885 = vld [vmem:[%s4882 + $0x8] sm:$0xf]
      %v4886 = vld [vmem:[%s4882 + $0xc] sm:$0xf]
      %v4887 = vld [vmem:[%s4882 + $0x10] sm:$0xf]
      %v4888 = vld [vmem:[%s4882 + $0x14] sm:$0xf]
      %v4889 = vld [vmem:[%s4882 + $0x18] sm:$0xf]
      %v4890 = vld [vmem:[%s4882 + $0x1c] sm:$0xf]
      %v4891 = vld [vmem:[%s4882 + $0x20] sm:$0xf]
      %v4892 = vld [vmem:[%s4882 + $0x24] sm:$0xf]
      %v4893 = vld [vmem:[%s4882 + $0x28] sm:$0xf]
      %v4894 = vld [vmem:[%s4882 + $0x2c] sm:$0xf]
      %v4895 = vld [vmem:[%s4882 + $0x30] sm:$0xf]
      %v4896 = vld [vmem:[%s4882 + $0x34] sm:$0xf]
      %v4897 = vld [vmem:[%s4882 + $0x38] sm:$0xf]
      %v4898 = vld [vmem:[%s4882 + $0x3c] sm:$0xf]
      %v4899 = vunpack.c.l.b16 %v4479
      %v4900 = vunpack.c.l.b16 %v4489
      %v4901 = vunpack.c.l.b16 %v4503
      %v4902 = vunpack.c.l.b16 %v4513
      %v4903 = vunpack.c.l.b16 %v4527
      %v4904 = vunpack.c.l.b16 %v4537
      %v4905 = vunpack.c.l.b16 %v4551
      %v4906 = vunpack.c.l.b16 %v4561
      %v4907 = vunpack.c.l.b16 %v4575
      %v4908 = vunpack.c.l.b16 %v4585
      %v4909 = vunpack.c.l.b16 %v4599
      %v4910 = vunpack.c.l.b16 %v4609
      %v4911 = vunpack.c.l.b16 %v4623
      %v4912 = vunpack.c.l.b16 %v4633
      %v4913 = vunpack.c.l.b16 %v4647
      %v4914 = vunpack.c.l.b16 %v4657
      %v4915 = vunpack.c.l.b16 %v4671
      %v4916 = vunpack.c.l.b16 %v4681
      %v4917 = vunpack.c.l.b16 %v4695
      %v4918 = vunpack.c.l.b16 %v4705
      %v4919 = vunpack.c.l.b16 %v4719
      %v4920 = vunpack.c.l.b16 %v4729
      %v4921 = vunpack.c.l.b16 %v4743
      %v4922 = vunpack.c.l.b16 %v4753
      %v4923 = vunpack.c.l.b16 %v4767
      %v4924 = vunpack.c.l.b16 %v4777
      %v4925 = vunpack.c.l.b16 %v4791
      %v4926 = vunpack.c.l.b16 %v4801
      %v4927 = vunpack.c.l.b16 %v4815
      %v4928 = vunpack.c.l.b16 %v4825
      %v4929 = vunpack.c.l.b16 %v4839
      %v4930 = vunpack.c.l.b16 %v4849
      %v4931 = vpack.c.b16 %v4900, %v4899
      %v4932 = vpack.c.b16 %v4902, %v4901
      %v4933 = vpack.c.b16 %v4904, %v4903
      %v4934 = vpack.c.b16 %v4906, %v4905
      %v4935 = vpack.c.b16 %v4908, %v4907
      %v4936 = vpack.c.b16 %v4910, %v4909
      %v4937 = vpack.c.b16 %v4912, %v4911
      %v4938 = vpack.c.b16 %v4914, %v4913
      %v4939 = vpack.c.b16 %v4916, %v4915
      %v4940 = vpack.c.b16 %v4918, %v4917
      %v4941 = vpack.c.b16 %v4920, %v4919
      %v4942 = vpack.c.b16 %v4922, %v4921
      %v4943 = vpack.c.b16 %v4924, %v4923
      %v4944 = vpack.c.b16 %v4926, %v4925
      %v4945 = vpack.c.b16 %v4928, %v4927
      %v4946 = vpack.c.b16 %v4930, %v4929
      %v4979 = vunpack.c.l.b16 %v4883
      %v4980 = vunpack.c.l.b16 %v4884
      %v4981 = vunpack.c.l.b16 %v4885
      %v4982 = vunpack.c.l.b16 %v4886
      %v4983 = vunpack.c.l.b16 %v4887
      %v4984 = vunpack.c.l.b16 %v4888
      %v4985 = vunpack.c.l.b16 %v4889
      %v4986 = vunpack.c.l.b16 %v4890
      %v4987 = vunpack.c.l.b16 %v4891
      %v4988 = vunpack.c.l.b16 %v4892
      %v4989 = vunpack.c.l.b16 %v4893
      %v4990 = vunpack.c.l.b16 %v4894
      %v4991 = vunpack.c.l.b16 %v4895
      %v4992 = vunpack.c.l.b16 %v4896
      %v4993 = vunpack.c.l.b16 %v4897
      %v4994 = vunpack.c.l.b16 %v4898
      %v4995 = vpack.c.b16 %v4980, %v4979
      %v4996 = vpack.c.b16 %v4982, %v4981
      %v4997 = vpack.c.b16 %v4984, %v4983
      %v4998 = vpack.c.b16 %v4986, %v4985
      %v4999 = vpack.c.b16 %v4988, %v4987
      %v5000 = vpack.c.b16 %v4990, %v4989
      %v5001 = vpack.c.b16 %v4992, %v4991
      %v5002 = vpack.c.b16 %v4994, %v4993
      %5011 = vmatprep.subr.bf16.mxu0 0
      %5012 = vmatpush1.bf16.msra.mxu0 %v5002
      %5013 = vmatprep.subr.bf16.mxu0 0
      %5014 = vmatpush1.bf16.msra.mxu0 %v5001
      %5015 = vmatprep.subr.bf16.mxu0 0
      %5016 = vmatpush1.bf16.msra.mxu0 %v5000
      %5017 = vmatprep.subr.bf16.mxu0 0
      %5018 = vmatpush1.bf16.msra.mxu0 %v4999
      %5019 = vmatprep.subr.bf16.mxu0 0
      %5020 = vmatpush1.bf16.msra.mxu0 %v4998
      %5021 = vmatprep.subr.bf16.mxu0 0
      %5022 = vmatpush1.bf16.msra.mxu0 %v4997
      %5023 = vmatprep.subr.bf16.mxu0 0
      %5024 = vmatpush1.bf16.msra.mxu0 %v4996
      %5025 = vmatprep.subr.bf16.mxu0 0
      %5026 = vmatpush1.bf16.msra.mxu0 %v4995
      %5027 = vmatprep.subr.bf16.mxu0 0
      %5028 = vmatpush2.bf16.msra.mxu0 0
      %5029 = vmatprep.subr.bf16.mxu0 0
      %5030 = vmatpush2.bf16.msra.mxu0 0
      %5031 = vmatprep.subr.bf16.mxu0 0
      %5032 = vmatpush2.bf16.msra.mxu0 0
      %5033 = vmatprep.subr.bf16.mxu0 0
      %5034 = vmatpush2.bf16.msra.mxu0 0
      %5035 = vmatprep.subr.bf16.mxu0 0
      %5036 = vmatpush2.bf16.msra.mxu0 0
      %5037 = vmatprep.subr.bf16.mxu0 0
      %5038 = vmatpush2.bf16.msra.mxu0 0
      %5039 = vmatprep.subr.bf16.mxu0 0
      %5040 = vmatpush2.bf16.msra.mxu0 0
      %5041 = vmatprep.subr.bf16.mxu0 0
      %5042 = vmatpush2.bf16.msra.mxu0 0
      %5043 = vmatprep.mubr.bf16.mxu0 0
      %5044 = vmatmul.mubr.bf16.gmra.mxu0 %v4931
      %v5045 = vpop.f32.mrf.mxu0
      %v5046 = vadd.f32 0.0, %v5045
      %v5047 = vpop.f32.mrf.mxu0
      %v5048 = vpop.f32.mrf.mxu0
      %v5049 = vadd.f32 0.0, %v5048
      %v5050 = vpop.f32.mrf.mxu0
      %5051 = vmatprep.mubr.bf16.mxu0 0
      %5052 = vmatmul.mubr.bf16.gmra.mxu0 %v4932
      %v5053 = vpop.f32.mrf.mxu0
      %v5054 = vadd.f32 0.0, %v5053
      %v5055 = vpop.f32.mrf.mxu0
      %v5056 = vpop.f32.mrf.mxu0
      %v5057 = vadd.f32 0.0, %v5056
      %v5058 = vpop.f32.mrf.mxu0
      %5059 = vmatprep.mubr.bf16.mxu0 0
      %5060 = vmatmul.mubr.bf16.gmra.mxu0 %v4933
      %v5061 = vpop.f32.mrf.mxu0
      %v5062 = vadd.f32 0.0, %v5061
      %v5063 = vpop.f32.mrf.mxu0
      %v5064 = vpop.f32.mrf.mxu0
      %v5065 = vadd.f32 0.0, %v5064
      %v5066 = vpop.f32.mrf.mxu0
      %5067 = vmatprep.mubr.bf16.mxu0 0
      %5068 = vmatmul.mubr.bf16.gmra.mxu0 %v4934
      %v5069 = vpop.f32.mrf.mxu0
      %v5070 = vadd.f32 0.0, %v5069
      %v5071 = vpop.f32.mrf.mxu0
      %v5072 = vpop.f32.mrf.mxu0
      %v5073 = vadd.f32 0.0, %v5072
      %v5074 = vpop.f32.mrf.mxu0
      %5075 = vmatprep.mubr.bf16.mxu0 0
      %5076 = vmatmul.mubr.bf16.gmra.mxu0 %v4935
      %v5077 = vpop.f32.mrf.mxu0
      %v5078 = vadd.f32 0.0, %v5077
      %v5079 = vpop.f32.mrf.mxu0
      %v5080 = vpop.f32.mrf.mxu0
      %v5081 = vadd.f32 0.0, %v5080
      %v5082 = vpop.f32.mrf.mxu0
      %5083 = vmatprep.mubr.bf16.mxu0 0
      %5084 = vmatmul.mubr.bf16.gmra.mxu0 %v4936
      %v5085 = vpop.f32.mrf.mxu0
      %v5086 = vadd.f32 0.0, %v5085
      %v5087 = vpop.f32.mrf.mxu0
      %v5088 = vpop.f32.mrf.mxu0
      %v5089 = vadd.f32 0.0, %v5088
      %v5090 = vpop.f32.mrf.mxu0
      %5091 = vmatprep.mubr.bf16.mxu0 0
      %5092 = vmatmul.mubr.bf16.gmra.mxu0 %v4937
      %v5093 = vpop.f32.mrf.mxu0
      %v5094 = vadd.f32 0.0, %v5093
      %v5095 = vpop.f32.mrf.mxu0
      %v5096 = vpop.f32.mrf.mxu0
      %v5097 = vadd.f32 0.0, %v5096
      %v5098 = vpop.f32.mrf.mxu0
      %5099 = vmatprep.mubr.bf16.mxu0 0
      %5100 = vmatmul.mubr.bf16.gmra.mxu0 %v4938
      %v5101 = vpop.f32.mrf.mxu0
      %v5102 = vadd.f32 0.0, %v5101
      %v5103 = vpop.f32.mrf.mxu0
      %v5104 = vpop.f32.mrf.mxu0
      %v5105 = vadd.f32 0.0, %v5104
      %v5106 = vpop.f32.mrf.mxu0
      %5107 = vmatprep.mubr.bf16.mxu0 0
      %5108 = vmatmul.mubr.bf16.gmra.mxu0 %v4939
      %v5109 = vpop.f32.mrf.mxu0
      %v5110 = vadd.f32 0.0, %v5109
      %v5111 = vpop.f32.mrf.mxu0
      %v5112 = vpop.f32.mrf.mxu0
      %v5113 = vadd.f32 0.0, %v5112
      %v5114 = vpop.f32.mrf.mxu0
      %5115 = vmatprep.mubr.bf16.mxu0 0
      %5116 = vmatmul.mubr.bf16.gmra.mxu0 %v4940
      %v5117 = vpop.f32.mrf.mxu0
      %v5118 = vadd.f32 0.0, %v5117
      %v5119 = vpop.f32.mrf.mxu0
      %v5120 = vpop.f32.mrf.mxu0
      %v5121 = vadd.f32 0.0, %v5120
      %v5122 = vpop.f32.mrf.mxu0
      %5123 = vmatprep.mubr.bf16.mxu0 0
      %5124 = vmatmul.mubr.bf16.gmra.mxu0 %v4941
      %v5125 = vpop.f32.mrf.mxu0
      %v5126 = vadd.f32 0.0, %v5125
      %v5127 = vpop.f32.mrf.mxu0
      %v5128 = vpop.f32.mrf.mxu0
      %v5129 = vadd.f32 0.0, %v5128
      %v5130 = vpop.f32.mrf.mxu0
      %5131 = vmatprep.mubr.bf16.mxu0 0
      %5132 = vmatmul.mubr.bf16.gmra.mxu0 %v4942
      %v5133 = vpop.f32.mrf.mxu0
      %v5134 = vadd.f32 0.0, %v5133
      %v5135 = vpop.f32.mrf.mxu0
      %v5136 = vpop.f32.mrf.mxu0
      %v5137 = vadd.f32 0.0, %v5136
      %v5138 = vpop.f32.mrf.mxu0
      %5139 = vmatprep.mubr.bf16.mxu0 0
      %5140 = vmatmul.mubr.bf16.gmra.mxu0 %v4943
      %v5141 = vpop.f32.mrf.mxu0
      %v5142 = vadd.f32 0.0, %v5141
      %v5143 = vpop.f32.mrf.mxu0
      %v5144 = vpop.f32.mrf.mxu0
      %v5145 = vadd.f32 0.0, %v5144
      %v5146 = vpop.f32.mrf.mxu0
      %5147 = vmatprep.mubr.bf16.mxu0 0
      %5148 = vmatmul.mubr.bf16.gmra.mxu0 %v4944
      %v5149 = vpop.f32.mrf.mxu0
      %v5150 = vadd.f32 0.0, %v5149
      %v5151 = vpop.f32.mrf.mxu0
      %v5152 = vpop.f32.mrf.mxu0
      %v5153 = vadd.f32 0.0, %v5152
      %v5154 = vpop.f32.mrf.mxu0
      %5155 = vmatprep.mubr.bf16.mxu0 0
      %5156 = vmatmul.mubr.bf16.gmra.mxu0 %v4945
      %v5157 = vpop.f32.mrf.mxu0
      %v5158 = vadd.f32 0.0, %v5157
      %v5159 = vpop.f32.mrf.mxu0
      %v5160 = vpop.f32.mrf.mxu0
      %v5161 = vadd.f32 0.0, %v5160
      %v5162 = vpop.f32.mrf.mxu0
      %5163 = vmatprep.mubr.bf16.mxu0 0
      %5164 = vmatmul.mubr.bf16.gmra.mxu0 %v4946
      %v5165 = vpop.f32.mrf.mxu0
      %v5166 = vadd.f32 0.0, %v5165
      %v5167 = vpop.f32.mrf.mxu0
      %v5168 = vpop.f32.mrf.mxu0
      %v5169 = vadd.f32 0.0, %v5168
      %v5170 = vpop.f32.mrf.mxu0
      %5171 = vdwg.mxu0
      %v5172 = vadd.f32 %v4850, %v5046
      %v5173 = vadd.f32 %v4851, %v5049
      %v5174 = vadd.f32 %v4852, %v5054
      %v5175 = vadd.f32 %v4853, %v5057
      %v5176 = vadd.f32 %v4854, %v5062
      %v5177 = vadd.f32 %v4855, %v5065
      %v5178 = vadd.f32 %v4856, %v5070
      %v5179 = vadd.f32 %v4857, %v5073
      %v5180 = vadd.f32 %v4858, %v5078
      %v5181 = vadd.f32 %v4859, %v5081
      %v5182 = vadd.f32 %v4860, %v5086
      %v5183 = vadd.f32 %v4861, %v5089
      %v5184 = vadd.f32 %v4862, %v5094
      %v5185 = vadd.f32 %v4863, %v5097
      %v5186 = vadd.f32 %v4864, %v5102
      %v5187 = vadd.f32 %v4865, %v5105
      %v5188 = vadd.f32 %v4866, %v5110
      %v5189 = vadd.f32 %v4867, %v5113
      %v5190 = vadd.f32 %v4868, %v5118
      %v5191 = vadd.f32 %v4869, %v5121
      %v5192 = vadd.f32 %v4870, %v5126
      %v5193 = vadd.f32 %v4871, %v5129
      %v5194 = vadd.f32 %v4872, %v5134
      %v5195 = vadd.f32 %v4873, %v5137
      %v5196 = vadd.f32 %v4874, %v5142
      %v5197 = vadd.f32 %v4875, %v5145
      %v5198 = vadd.f32 %v4876, %v5150
      %v5199 = vadd.f32 %v4877, %v5153
      %v5200 = vadd.f32 %v4878, %v5158
      %v5201 = vadd.f32 %v4879, %v5161
      %v5202 = vadd.f32 %v4880, %v5166
      %v5203 = vadd.f32 %v4881, %v5169
      %5204 = vst [vmem:[#allocation2] sm:$0xff] %v5172
      %5205 = vst [vmem:[#allocation2 + $0x8] sm:$0xff] %v5173
      %5206 = vst [vmem:[#allocation2 + $0x10] sm:$0xff] %v5174
      %5207 = vst [vmem:[#allocation2 + $0x18] sm:$0xff] %v5175
      %5208 = vst [vmem:[#allocation2 + $0x20] sm:$0xff] %v5176
      %5209 = vst [vmem:[#allocation2 + $0x28] sm:$0xff] %v5177
      %5210 = vst [vmem:[#allocation2 + $0x30] sm:$0xff] %v5178
      %5211 = vst [vmem:[#allocation2 + $0x38] sm:$0xff] %v5179
      %5212 = vst [vmem:[#allocation2 + $0x40] sm:$0xff] %v5180
      %5213 = vst [vmem:[#allocation2 + $0x48] sm:$0xff] %v5181
      %5214 = vst [vmem:[#allocation2 + $0x50] sm:$0xff] %v5182
      %5215 = vst [vmem:[#allocation2 + $0x58] sm:$0xff] %v5183
      %5216 = vst [vmem:[#allocation2 + $0x60] sm:$0xff] %v5184
      %5217 = vst [vmem:[#allocation2 + $0x68] sm:$0xff] %v5185
      %5218 = vst [vmem:[#allocation2 + $0x70] sm:$0xff] %v5186
      %5219 = vst [vmem:[#allocation2 + $0x78] sm:$0xff] %v5187
      %5220 = vst [vmem:[#allocation2 + $0x80] sm:$0xff] %v5188
      %5221 = vst [vmem:[#allocation2 + $0x88] sm:$0xff] %v5189
      %5222 = vst [vmem:[#allocation2 + $0x90] sm:$0xff] %v5190
      %5223 = vst [vmem:[#allocation2 + $0x98] sm:$0xff] %v5191
      %5224 = vst [vmem:[#allocation2 + $0xa0] sm:$0xff] %v5192
      %5225 = vst [vmem:[#allocation2 + $0xa8] sm:$0xff] %v5193
      %5226 = vst [vmem:[#allocation2 + $0xb0] sm:$0xff] %v5194
      %5227 = vst [vmem:[#allocation2 + $0xb8] sm:$0xff] %v5195
      %5228 = vst [vmem:[#allocation2 + $0xc0] sm:$0xff] %v5196
      %5229 = vst [vmem:[#allocation2 + $0xc8] sm:$0xff] %v5197
      %5230 = vst [vmem:[#allocation2 + $0xd0] sm:$0xff] %v5198
      %5231 = vst [vmem:[#allocation2 + $0xd8] sm:$0xff] %v5199
      %5232 = vst [vmem:[#allocation2 + $0xe0] sm:$0xff] %v5200
      %5233 = vst [vmem:[#allocation2 + $0xe8] sm:$0xff] %v5201
      %5234 = vst [vmem:[#allocation2 + $0xf0] sm:$0xff] %v5202
      %5235 = vst [vmem:[#allocation2 + $0xf8] sm:$0xff] %v5203
      %v5236 = vld [vmem:[%s3967] sm:$0xe]
      %v5237 = vld [vmem:[%s3967 + $0x4] sm:$0xf]
      %v5238 = vld [vmem:[%s3967 + $0x8] sm:$0x1]
      %v5239 = vld [vmem:[%s3967 + $0xc] sm:$0xe]
      %v5240 = vld [vmem:[%s3967 + $0x10] sm:$0xf]
      %v5241 = vld [vmem:[%s3967 + $0x14] sm:$0x1]
      %v5242 = vld [vmem:[%s3967 + $0x18] sm:$0xe]
      %v5243 = vld [vmem:[%s3967 + $0x1c] sm:$0xf]
      %v5244 = vld [vmem:[%s3967 + $0x20] sm:$0x1]
      %v5245 = vld [vmem:[%s3967 + $0x24] sm:$0xe]
      %v5246 = vld [vmem:[%s3967 + $0x28] sm:$0xf]
      %v5247 = vld [vmem:[%s3967 + $0x2c] sm:$0x1]
      %v5248 = vld [vmem:[%s3967 + $0x30] sm:$0xe]
      %v5249 = vld [vmem:[%s3967 + $0x34] sm:$0xf]
      %v5250 = vld [vmem:[%s3967 + $0x38] sm:$0x1]
      %v5251 = vld [vmem:[%s3967 + $0x3c] sm:$0xe]
      %v5252 = vld [vmem:[%s3967 + $0x40] sm:$0xf]
      %v5253 = vld [vmem:[%s3967 + $0x44] sm:$0x1]
      %v5254 = vld [vmem:[%s3967 + $0x48] sm:$0xe]
      %v5255 = vld [vmem:[%s3967 + $0x4c] sm:$0xf]
      %v5256 = vld [vmem:[%s3967 + $0x50] sm:$0x1]
      %v5257 = vld [vmem:[%s3967 + $0x54] sm:$0xe]
      %v5258 = vld [vmem:[%s3967 + $0x58] sm:$0xf]
      %v5259 = vld [vmem:[%s3967 + $0x5c] sm:$0x1]
      %v5260 = vld [vmem:[%s3967 + $0x60] sm:$0xe]
      %v5261 = vld [vmem:[%s3967 + $0x64] sm:$0xf]
      %v5262 = vld [vmem:[%s3967 + $0x68] sm:$0x1]
      %v5263 = vld [vmem:[%s3967 + $0x6c] sm:$0xe]
      %v5264 = vld [vmem:[%s3967 + $0x70] sm:$0xf]
      %v5265 = vld [vmem:[%s3967 + $0x74] sm:$0x1]
      %v5266 = vld [vmem:[%s3967 + $0x78] sm:$0xe]
      %v5267 = vld [vmem:[%s3967 + $0x7c] sm:$0xf]
      %v5268 = vld [vmem:[%s3967 + $0x80] sm:$0x1]
      %v5269 = vld [vmem:[%s3967 + $0x84] sm:$0xe]
      %v5270 = vld [vmem:[%s3967 + $0x88] sm:$0xf]
      %v5271 = vld [vmem:[%s3967 + $0x8c] sm:$0x1]
      %v5272 = vld [vmem:[%s3967 + $0x90] sm:$0xe]
      %v5273 = vld [vmem:[%s3967 + $0x94] sm:$0xf]
      %v5274 = vld [vmem:[%s3967 + $0x98] sm:$0x1]
      %v5275 = vld [vmem:[%s3967 + $0x9c] sm:$0xe]
      %v5276 = vld [vmem:[%s3967 + $0xa0] sm:$0xf]
      %v5277 = vld [vmem:[%s3967 + $0xa4] sm:$0x1]
      %v5278 = vld [vmem:[%s3967 + $0xa8] sm:$0xe]
      %v5279 = vld [vmem:[%s3967 + $0xac] sm:$0xf]
      %v5280 = vld [vmem:[%s3967 + $0xb0] sm:$0x1]
      %v5281 = vld [vmem:[%s3967 + $0xb4] sm:$0xe]
      %v5282 = vld [vmem:[%s3967 + $0xb8] sm:$0xf]
      %v5283 = vld [vmem:[%s3967 + $0xbc] sm:$0x1]
      %v5332 = vrot.slane %v5236, 5
      %v5333 = vrot.slane %v5332, 4
      %v5334 = vrot.slane %v5237, 5
      %v5335 = vsel %vm1599, %v5333, %v5334
      %v5336 = vrot.slane %v5334, 4
      %v5337 = vrot.slane %v5238, 5
      %v5338 = vsel %vm1599, %v5336, %v5337
      %v5339 = vrot.slane %v5239, 5
      %v5340 = vrot.slane %v5339, 4
      %v5341 = vrot.slane %v5240, 5
      %v5342 = vsel %vm1599, %v5340, %v5341
      %v5343 = vrot.slane %v5341, 4
      %v5344 = vrot.slane %v5241, 5
      %v5345 = vsel %vm1599, %v5343, %v5344
      %v5346 = vrot.slane %v5242, 5
      %v5347 = vrot.slane %v5346, 4
      %v5348 = vrot.slane %v5243, 5
      %v5349 = vsel %vm1599, %v5347, %v5348
      %v5350 = vrot.slane %v5348, 4
      %v5351 = vrot.slane %v5244, 5
      %v5352 = vsel %vm1599, %v5350, %v5351
      %v5353 = vrot.slane %v5245, 5
      %v5354 = vrot.slane %v5353, 4
      %v5355 = vrot.slane %v5246, 5
      %v5356 = vsel %vm1599, %v5354, %v5355
      %v5357 = vrot.slane %v5355, 4
      %v5358 = vrot.slane %v5247, 5
      %v5359 = vsel %vm1599, %v5357, %v5358
      %v5360 = vrot.slane %v5248, 5
      %v5361 = vrot.slane %v5360, 4
      %v5362 = vrot.slane %v5249, 5
      %v5363 = vsel %vm1599, %v5361, %v5362
      %v5364 = vrot.slane %v5362, 4
      %v5365 = vrot.slane %v5250, 5
      %v5366 = vsel %vm1599, %v5364, %v5365
      %v5367 = vrot.slane %v5251, 5
      %v5368 = vrot.slane %v5367, 4
      %v5369 = vrot.slane %v5252, 5
      %v5370 = vsel %vm1599, %v5368, %v5369
      %v5371 = vrot.slane %v5369, 4
      %v5372 = vrot.slane %v5253, 5
      %v5373 = vsel %vm1599, %v5371, %v5372
      %v5374 = vrot.slane %v5254, 5
      %v5375 = vrot.slane %v5374, 4
      %v5376 = vrot.slane %v5255, 5
      %v5377 = vsel %vm1599, %v5375, %v5376
      %v5378 = vrot.slane %v5376, 4
      %v5379 = vrot.slane %v5256, 5
      %v5380 = vsel %vm1599, %v5378, %v5379
      %v5381 = vrot.slane %v5257, 5
      %v5382 = vrot.slane %v5381, 4
      %v5383 = vrot.slane %v5258, 5
      %v5384 = vsel %vm1599, %v5382, %v5383
      %v5385 = vrot.slane %v5383, 4
      %v5386 = vrot.slane %v5259, 5
      %v5387 = vsel %vm1599, %v5385, %v5386
      %v5388 = vrot.slane %v5260, 5
      %v5389 = vrot.slane %v5388, 4
      %v5390 = vrot.slane %v5261, 5
      %v5391 = vsel %vm1599, %v5389, %v5390
      %v5392 = vrot.slane %v5390, 4
      %v5393 = vrot.slane %v5262, 5
      %v5394 = vsel %vm1599, %v5392, %v5393
      %v5395 = vrot.slane %v5263, 5
      %v5396 = vrot.slane %v5395, 4
      %v5397 = vrot.slane %v5264, 5
      %v5398 = vsel %vm1599, %v5396, %v5397
      %v5399 = vrot.slane %v5397, 4
      %v5400 = vrot.slane %v5265, 5
      %v5401 = vsel %vm1599, %v5399, %v5400
      %v5402 = vrot.slane %v5266, 5
      %v5403 = vrot.slane %v5402, 4
      %v5404 = vrot.slane %v5267, 5
      %v5405 = vsel %vm1599, %v5403, %v5404
      %v5406 = vrot.slane %v5404, 4
      %v5407 = vrot.slane %v5268, 5
      %v5408 = vsel %vm1599, %v5406, %v5407
      %v5409 = vrot.slane %v5269, 5
      %v5410 = vrot.slane %v5409, 4
      %v5411 = vrot.slane %v5270, 5
      %v5412 = vsel %vm1599, %v5410, %v5411
      %v5413 = vrot.slane %v5411, 4
      %v5414 = vrot.slane %v5271, 5
      %v5415 = vsel %vm1599, %v5413, %v5414
      %v5416 = vrot.slane %v5272, 5
      %v5417 = vrot.slane %v5416, 4
      %v5418 = vrot.slane %v5273, 5
      %v5419 = vsel %vm1599, %v5417, %v5418
      %v5420 = vrot.slane %v5418, 4
      %v5421 = vrot.slane %v5274, 5
      %v5422 = vsel %vm1599, %v5420, %v5421
      %v5423 = vrot.slane %v5275, 5
      %v5424 = vrot.slane %v5423, 4
      %v5425 = vrot.slane %v5276, 5
      %v5426 = vsel %vm1599, %v5424, %v5425
      %v5427 = vrot.slane %v5425, 4
      %v5428 = vrot.slane %v5277, 5
      %v5429 = vsel %vm1599, %v5427, %v5428
      %v5430 = vrot.slane %v5278, 5
      %v5431 = vrot.slane %v5430, 4
      %v5432 = vrot.slane %v5279, 5
      %v5433 = vsel %vm1599, %v5431, %v5432
      %v5434 = vrot.slane %v5432, 4
      %v5435 = vrot.slane %v5280, 5
      %v5436 = vsel %vm1599, %v5434, %v5435
      %v5437 = vrot.slane %v5281, 5
      %v5438 = vrot.slane %v5437, 4
      %v5439 = vrot.slane %v5282, 5
      %v5440 = vsel %vm1599, %v5438, %v5439
      %v5441 = vrot.slane %v5439, 4
      %v5442 = vrot.slane %v5283, 5
      %v5443 = vsel %vm1599, %v5441, %v5442
      %v5444 = vld [vmem:[#allocation2] sm:$0xff]
      %v5445 = vld [vmem:[#allocation2 + $0x8] sm:$0xff]
      %v5446 = vld [vmem:[#allocation2 + $0x10] sm:$0xff]
      %v5447 = vld [vmem:[#allocation2 + $0x18] sm:$0xff]
      %v5448 = vld [vmem:[#allocation2 + $0x20] sm:$0xff]
      %v5449 = vld [vmem:[#allocation2 + $0x28] sm:$0xff]
      %v5450 = vld [vmem:[#allocation2 + $0x30] sm:$0xff]
      %v5451 = vld [vmem:[#allocation2 + $0x38] sm:$0xff]
      %v5452 = vld [vmem:[#allocation2 + $0x40] sm:$0xff]
      %v5453 = vld [vmem:[#allocation2 + $0x48] sm:$0xff]
      %v5454 = vld [vmem:[#allocation2 + $0x50] sm:$0xff]
      %v5455 = vld [vmem:[#allocation2 + $0x58] sm:$0xff]
      %v5456 = vld [vmem:[#allocation2 + $0x60] sm:$0xff]
      %v5457 = vld [vmem:[#allocation2 + $0x68] sm:$0xff]
      %v5458 = vld [vmem:[#allocation2 + $0x70] sm:$0xff]
      %v5459 = vld [vmem:[#allocation2 + $0x78] sm:$0xff]
      %v5460 = vld [vmem:[#allocation2 + $0x80] sm:$0xff]
      %v5461 = vld [vmem:[#allocation2 + $0x88] sm:$0xff]
      %v5462 = vld [vmem:[#allocation2 + $0x90] sm:$0xff]
      %v5463 = vld [vmem:[#allocation2 + $0x98] sm:$0xff]
      %v5464 = vld [vmem:[#allocation2 + $0xa0] sm:$0xff]
      %v5465 = vld [vmem:[#allocation2 + $0xa8] sm:$0xff]
      %v5466 = vld [vmem:[#allocation2 + $0xb0] sm:$0xff]
      %v5467 = vld [vmem:[#allocation2 + $0xb8] sm:$0xff]
      %v5468 = vld [vmem:[#allocation2 + $0xc0] sm:$0xff]
      %v5469 = vld [vmem:[#allocation2 + $0xc8] sm:$0xff]
      %v5470 = vld [vmem:[#allocation2 + $0xd0] sm:$0xff]
      %v5471 = vld [vmem:[#allocation2 + $0xd8] sm:$0xff]
      %v5472 = vld [vmem:[#allocation2 + $0xe0] sm:$0xff]
      %v5473 = vld [vmem:[#allocation2 + $0xe8] sm:$0xff]
      %v5474 = vld [vmem:[#allocation2 + $0xf0] sm:$0xff]
      %v5475 = vld [vmem:[#allocation2 + $0xf8] sm:$0xff]
      %s5476 = scalar_lea.vmem %s1, 512
      %v5477 = vld [vmem:[%s5476] sm:$0xf]
      %v5478 = vld [vmem:[%s5476 + $0x4] sm:$0xf]
      %v5479 = vld [vmem:[%s5476 + $0x8] sm:$0xf]
      %v5480 = vld [vmem:[%s5476 + $0xc] sm:$0xf]
      %v5481 = vld [vmem:[%s5476 + $0x10] sm:$0xf]
      %v5482 = vld [vmem:[%s5476 + $0x14] sm:$0xf]
      %v5483 = vld [vmem:[%s5476 + $0x18] sm:$0xf]
      %v5484 = vld [vmem:[%s5476 + $0x1c] sm:$0xf]
      %v5485 = vld [vmem:[%s5476 + $0x20] sm:$0xf]
      %v5486 = vld [vmem:[%s5476 + $0x24] sm:$0xf]
      %v5487 = vld [vmem:[%s5476 + $0x28] sm:$0xf]
      %v5488 = vld [vmem:[%s5476 + $0x2c] sm:$0xf]
      %v5489 = vld [vmem:[%s5476 + $0x30] sm:$0xf]
      %v5490 = vld [vmem:[%s5476 + $0x34] sm:$0xf]
      %v5491 = vld [vmem:[%s5476 + $0x38] sm:$0xf]
      %v5492 = vld [vmem:[%s5476 + $0x3c] sm:$0xf]
      %v5493 = vunpack.c.l.b16 %v5335
      %v5494 = vunpack.c.l.b16 %v5338
      %v5495 = vunpack.c.l.b16 %v5342
      %v5496 = vunpack.c.l.b16 %v5345
      %v5497 = vunpack.c.l.b16 %v5349
      %v5498 = vunpack.c.l.b16 %v5352
      %v5499 = vunpack.c.l.b16 %v5356
      %v5500 = vunpack.c.l.b16 %v5359
      %v5501 = vunpack.c.l.b16 %v5363
      %v5502 = vunpack.c.l.b16 %v5366
      %v5503 = vunpack.c.l.b16 %v5370
      %v5504 = vunpack.c.l.b16 %v5373
      %v5505 = vunpack.c.l.b16 %v5377
      %v5506 = vunpack.c.l.b16 %v5380
      %v5507 = vunpack.c.l.b16 %v5384
      %v5508 = vunpack.c.l.b16 %v5387
      %v5509 = vunpack.c.l.b16 %v5391
      %v5510 = vunpack.c.l.b16 %v5394
      %v5511 = vunpack.c.l.b16 %v5398
      %v5512 = vunpack.c.l.b16 %v5401
      %v5513 = vunpack.c.l.b16 %v5405
      %v5514 = vunpack.c.l.b16 %v5408
      %v5515 = vunpack.c.l.b16 %v5412
      %v5516 = vunpack.c.l.b16 %v5415
      %v5517 = vunpack.c.l.b16 %v5419
      %v5518 = vunpack.c.l.b16 %v5422
      %v5519 = vunpack.c.l.b16 %v5426
      %v5520 = vunpack.c.l.b16 %v5429
      %v5521 = vunpack.c.l.b16 %v5433
      %v5522 = vunpack.c.l.b16 %v5436
      %v5523 = vunpack.c.l.b16 %v5440
      %v5524 = vunpack.c.l.b16 %v5443
      %v5525 = vpack.c.b16 %v5494, %v5493
      %v5526 = vpack.c.b16 %v5496, %v5495
      %v5527 = vpack.c.b16 %v5498, %v5497
      %v5528 = vpack.c.b16 %v5500, %v5499
      %v5529 = vpack.c.b16 %v5502, %v5501
      %v5530 = vpack.c.b16 %v5504, %v5503
      %v5531 = vpack.c.b16 %v5506, %v5505
      %v5532 = vpack.c.b16 %v5508, %v5507
      %v5533 = vpack.c.b16 %v5510, %v5509
      %v5534 = vpack.c.b16 %v5512, %v5511
      %v5535 = vpack.c.b16 %v5514, %v5513
      %v5536 = vpack.c.b16 %v5516, %v5515
      %v5537 = vpack.c.b16 %v5518, %v5517
      %v5538 = vpack.c.b16 %v5520, %v5519
      %v5539 = vpack.c.b16 %v5522, %v5521
      %v5540 = vpack.c.b16 %v5524, %v5523
      %v5573 = vunpack.c.l.b16 %v5477
      %v5574 = vunpack.c.l.b16 %v5478
      %v5575 = vunpack.c.l.b16 %v5479
      %v5576 = vunpack.c.l.b16 %v5480
      %v5577 = vunpack.c.l.b16 %v5481
      %v5578 = vunpack.c.l.b16 %v5482
      %v5579 = vunpack.c.l.b16 %v5483
      %v5580 = vunpack.c.l.b16 %v5484
      %v5581 = vunpack.c.l.b16 %v5485
      %v5582 = vunpack.c.l.b16 %v5486
      %v5583 = vunpack.c.l.b16 %v5487
      %v5584 = vunpack.c.l.b16 %v5488
      %v5585 = vunpack.c.l.b16 %v5489
      %v5586 = vunpack.c.l.b16 %v5490
      %v5587 = vunpack.c.l.b16 %v5491
      %v5588 = vunpack.c.l.b16 %v5492
      %v5589 = vpack.c.b16 %v5574, %v5573
      %v5590 = vpack.c.b16 %v5576, %v5575
      %v5591 = vpack.c.b16 %v5578, %v5577
      %v5592 = vpack.c.b16 %v5580, %v5579
      %v5593 = vpack.c.b16 %v5582, %v5581
      %v5594 = vpack.c.b16 %v5584, %v5583
      %v5595 = vpack.c.b16 %v5586, %v5585
      %v5596 = vpack.c.b16 %v5588, %v5587
      %5605 = vmatprep.subr.bf16.mxu0 0
      %5606 = vmatpush1.bf16.msra.mxu0 %v5596
      %5607 = vmatprep.subr.bf16.mxu0 0
      %5608 = vmatpush1.bf16.msra.mxu0 %v5595
      %5609 = vmatprep.subr.bf16.mxu0 0
      %5610 = vmatpush1.bf16.msra.mxu0 %v5594
      %5611 = vmatprep.subr.bf16.mxu0 0
      %5612 = vmatpush1.bf16.msra.mxu0 %v5593
      %5613 = vmatprep.subr.bf16.mxu0 0
      %5614 = vmatpush1.bf16.msra.mxu0 %v5592
      %5615 = vmatprep.subr.bf16.mxu0 0
      %5616 = vmatpush1.bf16.msra.mxu0 %v5591
      %5617 = vmatprep.subr.bf16.mxu0 0
      %5618 = vmatpush1.bf16.msra.mxu0 %v5590
      %5619 = vmatprep.subr.bf16.mxu0 0
      %5620 = vmatpush1.bf16.msra.mxu0 %v5589
      %5621 = vmatprep.subr.bf16.mxu0 0
      %5622 = vmatpush2.bf16.msra.mxu0 0
      %5623 = vmatprep.subr.bf16.mxu0 0
      %5624 = vmatpush2.bf16.msra.mxu0 0
      %5625 = vmatprep.subr.bf16.mxu0 0
      %5626 = vmatpush2.bf16.msra.mxu0 0
      %5627 = vmatprep.subr.bf16.mxu0 0
      %5628 = vmatpush2.bf16.msra.mxu0 0
      %5629 = vmatprep.subr.bf16.mxu0 0
      %5630 = vmatpush2.bf16.msra.mxu0 0
      %5631 = vmatprep.subr.bf16.mxu0 0
      %5632 = vmatpush2.bf16.msra.mxu0 0
      %5633 = vmatprep.subr.bf16.mxu0 0
      %5634 = vmatpush2.bf16.msra.mxu0 0
      %5635 = vmatprep.subr.bf16.mxu0 0
      %5636 = vmatpush2.bf16.msra.mxu0 0
      %5637 = vmatprep.mubr.bf16.mxu0 0
      %5638 = vmatmul.mubr.bf16.gmra.mxu0 %v5525
      %v5639 = vpop.f32.mrf.mxu0
      %v5640 = vadd.f32 0.0, %v5639
      %v5641 = vpop.f32.mrf.mxu0
      %v5642 = vpop.f32.mrf.mxu0
      %v5643 = vadd.f32 0.0, %v5642
      %v5644 = vpop.f32.mrf.mxu0
      %5645 = vmatprep.mubr.bf16.mxu0 0
      %5646 = vmatmul.mubr.bf16.gmra.mxu0 %v5526
      %v5647 = vpop.f32.mrf.mxu0
      %v5648 = vadd.f32 0.0, %v5647
      %v5649 = vpop.f32.mrf.mxu0
      %v5650 = vpop.f32.mrf.mxu0
      %v5651 = vadd.f32 0.0, %v5650
      %v5652 = vpop.f32.mrf.mxu0
      %5653 = vmatprep.mubr.bf16.mxu0 0
      %5654 = vmatmul.mubr.bf16.gmra.mxu0 %v5527
      %v5655 = vpop.f32.mrf.mxu0
      %v5656 = vadd.f32 0.0, %v5655
      %v5657 = vpop.f32.mrf.mxu0
      %v5658 = vpop.f32.mrf.mxu0
      %v5659 = vadd.f32 0.0, %v5658
      %v5660 = vpop.f32.mrf.mxu0
      %5661 = vmatprep.mubr.bf16.mxu0 0
      %5662 = vmatmul.mubr.bf16.gmra.mxu0 %v5528
      %v5663 = vpop.f32.mrf.mxu0
      %v5664 = vadd.f32 0.0, %v5663
      %v5665 = vpop.f32.mrf.mxu0
      %v5666 = vpop.f32.mrf.mxu0
      %v5667 = vadd.f32 0.0, %v5666
      %v5668 = vpop.f32.mrf.mxu0
      %5669 = vmatprep.mubr.bf16.mxu0 0
      %5670 = vmatmul.mubr.bf16.gmra.mxu0 %v5529
      %v5671 = vpop.f32.mrf.mxu0
      %v5672 = vadd.f32 0.0, %v5671
      %v5673 = vpop.f32.mrf.mxu0
      %v5674 = vpop.f32.mrf.mxu0
      %v5675 = vadd.f32 0.0, %v5674
      %v5676 = vpop.f32.mrf.mxu0
      %5677 = vmatprep.mubr.bf16.mxu0 0
      %5678 = vmatmul.mubr.bf16.gmra.mxu0 %v5530
      %v5679 = vpop.f32.mrf.mxu0
      %v5680 = vadd.f32 0.0, %v5679
      %v5681 = vpop.f32.mrf.mxu0
      %v5682 = vpop.f32.mrf.mxu0
      %v5683 = vadd.f32 0.0, %v5682
      %v5684 = vpop.f32.mrf.mxu0
      %5685 = vmatprep.mubr.bf16.mxu0 0
      %5686 = vmatmul.mubr.bf16.gmra.mxu0 %v5531
      %v5687 = vpop.f32.mrf.mxu0
      %v5688 = vadd.f32 0.0, %v5687
      %v5689 = vpop.f32.mrf.mxu0
      %v5690 = vpop.f32.mrf.mxu0
      %v5691 = vadd.f32 0.0, %v5690
      %v5692 = vpop.f32.mrf.mxu0
      %5693 = vmatprep.mubr.bf16.mxu0 0
      %5694 = vmatmul.mubr.bf16.gmra.mxu0 %v5532
      %v5695 = vpop.f32.mrf.mxu0
      %v5696 = vadd.f32 0.0, %v5695
      %v5697 = vpop.f32.mrf.mxu0
      %v5698 = vpop.f32.mrf.mxu0
      %v5699 = vadd.f32 0.0, %v5698
      %v5700 = vpop.f32.mrf.mxu0
      %5701 = vmatprep.mubr.bf16.mxu0 0
      %5702 = vmatmul.mubr.bf16.gmra.mxu0 %v5533
      %v5703 = vpop.f32.mrf.mxu0
      %v5704 = vadd.f32 0.0, %v5703
      %v5705 = vpop.f32.mrf.mxu0
      %v5706 = vpop.f32.mrf.mxu0
      %v5707 = vadd.f32 0.0, %v5706
      %v5708 = vpop.f32.mrf.mxu0
      %5709 = vmatprep.mubr.bf16.mxu0 0
      %5710 = vmatmul.mubr.bf16.gmra.mxu0 %v5534
      %v5711 = vpop.f32.mrf.mxu0
      %v5712 = vadd.f32 0.0, %v5711
      %v5713 = vpop.f32.mrf.mxu0
      %v5714 = vpop.f32.mrf.mxu0
      %v5715 = vadd.f32 0.0, %v5714
      %v5716 = vpop.f32.mrf.mxu0
      %5717 = vmatprep.mubr.bf16.mxu0 0
      %5718 = vmatmul.mubr.bf16.gmra.mxu0 %v5535
      %v5719 = vpop.f32.mrf.mxu0
      %v5720 = vadd.f32 0.0, %v5719
      %v5721 = vpop.f32.mrf.mxu0
      %v5722 = vpop.f32.mrf.mxu0
      %v5723 = vadd.f32 0.0, %v5722
      %v5724 = vpop.f32.mrf.mxu0
      %5725 = vmatprep.mubr.bf16.mxu0 0
      %5726 = vmatmul.mubr.bf16.gmra.mxu0 %v5536
      %v5727 = vpop.f32.mrf.mxu0
      %v5728 = vadd.f32 0.0, %v5727
      %v5729 = vpop.f32.mrf.mxu0
      %v5730 = vpop.f32.mrf.mxu0
      %v5731 = vadd.f32 0.0, %v5730
      %v5732 = vpop.f32.mrf.mxu0
      %5733 = vmatprep.mubr.bf16.mxu0 0
      %5734 = vmatmul.mubr.bf16.gmra.mxu0 %v5537
      %v5735 = vpop.f32.mrf.mxu0
      %v5736 = vadd.f32 0.0, %v5735
      %v5737 = vpop.f32.mrf.mxu0
      %v5738 = vpop.f32.mrf.mxu0
      %v5739 = vadd.f32 0.0, %v5738
      %v5740 = vpop.f32.mrf.mxu0
      %5741 = vmatprep.mubr.bf16.mxu0 0
      %5742 = vmatmul.mubr.bf16.gmra.mxu0 %v5538
      %v5743 = vpop.f32.mrf.mxu0
      %v5744 = vadd.f32 0.0, %v5743
      %v5745 = vpop.f32.mrf.mxu0
      %v5746 = vpop.f32.mrf.mxu0
      %v5747 = vadd.f32 0.0, %v5746
      %v5748 = vpop.f32.mrf.mxu0
      %5749 = vmatprep.mubr.bf16.mxu0 0
      %5750 = vmatmul.mubr.bf16.gmra.mxu0 %v5539
      %v5751 = vpop.f32.mrf.mxu0
      %v5752 = vadd.f32 0.0, %v5751
      %v5753 = vpop.f32.mrf.mxu0
      %v5754 = vpop.f32.mrf.mxu0
      %v5755 = vadd.f32 0.0, %v5754
      %v5756 = vpop.f32.mrf.mxu0
      %5757 = vmatprep.mubr.bf16.mxu0 0
      %5758 = vmatmul.mubr.bf16.gmra.mxu0 %v5540
      %v5759 = vpop.f32.mrf.mxu0
      %v5760 = vadd.f32 0.0, %v5759
      %v5761 = vpop.f32.mrf.mxu0
      %v5762 = vpop.f32.mrf.mxu0
      %v5763 = vadd.f32 0.0, %v5762
      %v5764 = vpop.f32.mrf.mxu0
      %5765 = vdwg.mxu0
      %v5766 = vadd.f32 %v5444, %v5640
      %v5767 = vadd.f32 %v5445, %v5643
      %v5768 = vadd.f32 %v5446, %v5648
      %v5769 = vadd.f32 %v5447, %v5651
      %v5770 = vadd.f32 %v5448, %v5656
      %v5771 = vadd.f32 %v5449, %v5659
      %v5772 = vadd.f32 %v5450, %v5664
      %v5773 = vadd.f32 %v5451, %v5667
      %v5774 = vadd.f32 %v5452, %v5672
      %v5775 = vadd.f32 %v5453, %v5675
      %v5776 = vadd.f32 %v5454, %v5680
      %v5777 = vadd.f32 %v5455, %v5683
      %v5778 = vadd.f32 %v5456, %v5688
      %v5779 = vadd.f32 %v5457, %v5691
      %v5780 = vadd.f32 %v5458, %v5696
      %v5781 = vadd.f32 %v5459, %v5699
      %v5782 = vadd.f32 %v5460, %v5704
      %v5783 = vadd.f32 %v5461, %v5707
      %v5784 = vadd.f32 %v5462, %v5712
      %v5785 = vadd.f32 %v5463, %v5715
      %v5786 = vadd.f32 %v5464, %v5720
      %v5787 = vadd.f32 %v5465, %v5723
      %v5788 = vadd.f32 %v5466, %v5728
      %v5789 = vadd.f32 %v5467, %v5731
      %v5790 = vadd.f32 %v5468, %v5736
      %v5791 = vadd.f32 %v5469, %v5739
      %v5792 = vadd.f32 %v5470, %v5744
      %v5793 = vadd.f32 %v5471, %v5747
      %v5794 = vadd.f32 %v5472, %v5752
      %v5795 = vadd.f32 %v5473, %v5755
      %v5796 = vadd.f32 %v5474, %v5760
      %v5797 = vadd.f32 %v5475, %v5763
      %5798 = vst [vmem:[#allocation2] sm:$0xff] %v5766
      %5799 = vst [vmem:[#allocation2 + $0x8] sm:$0xff] %v5767
      %5800 = vst [vmem:[#allocation2 + $0x10] sm:$0xff] %v5768
      %5801 = vst [vmem:[#allocation2 + $0x18] sm:$0xff] %v5769
      %5802 = vst [vmem:[#allocation2 + $0x20] sm:$0xff] %v5770
      %5803 = vst [vmem:[#allocation2 + $0x28] sm:$0xff] %v5771
      %5804 = vst [vmem:[#allocation2 + $0x30] sm:$0xff] %v5772
      %5805 = vst [vmem:[#allocation2 + $0x38] sm:$0xff] %v5773
      %5806 = vst [vmem:[#allocation2 + $0x40] sm:$0xff] %v5774
      %5807 = vst [vmem:[#allocation2 + $0x48] sm:$0xff] %v5775
      %5808 = vst [vmem:[#allocation2 + $0x50] sm:$0xff] %v5776
      %5809 = vst [vmem:[#allocation2 + $0x58] sm:$0xff] %v5777
      %5810 = vst [vmem:[#allocation2 + $0x60] sm:$0xff] %v5778
      %5811 = vst [vmem:[#allocation2 + $0x68] sm:$0xff] %v5779
      %5812 = vst [vmem:[#allocation2 + $0x70] sm:$0xff] %v5780
      %5813 = vst [vmem:[#allocation2 + $0x78] sm:$0xff] %v5781
      %5814 = vst [vmem:[#allocation2 + $0x80] sm:$0xff] %v5782
      %5815 = vst [vmem:[#allocation2 + $0x88] sm:$0xff] %v5783
      %5816 = vst [vmem:[#allocation2 + $0x90] sm:$0xff] %v5784
      %5817 = vst [vmem:[#allocation2 + $0x98] sm:$0xff] %v5785
      %5818 = vst [vmem:[#allocation2 + $0xa0] sm:$0xff] %v5786
      %5819 = vst [vmem:[#allocation2 + $0xa8] sm:$0xff] %v5787
      %5820 = vst [vmem:[#allocation2 + $0xb0] sm:$0xff] %v5788
      %5821 = vst [vmem:[#allocation2 + $0xb8] sm:$0xff] %v5789
      %5822 = vst [vmem:[#allocation2 + $0xc0] sm:$0xff] %v5790
      %5823 = vst [vmem:[#allocation2 + $0xc8] sm:$0xff] %v5791
      %5824 = vst [vmem:[#allocation2 + $0xd0] sm:$0xff] %v5792
      %5825 = vst [vmem:[#allocation2 + $0xd8] sm:$0xff] %v5793
      %5826 = vst [vmem:[#allocation2 + $0xe0] sm:$0xff] %v5794
      %5827 = vst [vmem:[#allocation2 + $0xe8] sm:$0xff] %v5795
      %5828 = vst [vmem:[#allocation2 + $0xf0] sm:$0xff] %v5796
      %5829 = vst [vmem:[#allocation2 + $0xf8] sm:$0xff] %v5797
      %v5830 = vld [vmem:[#allocation2] sm:$0xff]
      %v5831 = vld [vmem:[#allocation2 + $0x8] sm:$0xff]
      %v5832 = vld [vmem:[#allocation2 + $0x10] sm:$0xff]
      %v5833 = vld [vmem:[#allocation2 + $0x18] sm:$0xff]
      %v5834 = vld [vmem:[#allocation2 + $0x20] sm:$0xff]
      %v5835 = vld [vmem:[#allocation2 + $0x28] sm:$0xff]
      %v5836 = vld [vmem:[#allocation2 + $0x30] sm:$0xff]
      %v5837 = vld [vmem:[#allocation2 + $0x38] sm:$0xff]
      %v5838 = vld [vmem:[#allocation2 + $0x40] sm:$0xff]
      %v5839 = vld [vmem:[#allocation2 + $0x48] sm:$0xff]
      %v5840 = vld [vmem:[#allocation2 + $0x50] sm:$0xff]
      %v5841 = vld [vmem:[#allocation2 + $0x58] sm:$0xff]
      %v5842 = vld [vmem:[#allocation2 + $0x60] sm:$0xff]
      %v5843 = vld [vmem:[#allocation2 + $0x68] sm:$0xff]
      %v5844 = vld [vmem:[#allocation2 + $0x70] sm:$0xff]
      %v5845 = vld [vmem:[#allocation2 + $0x78] sm:$0xff]
      %v5846 = vld [vmem:[#allocation2 + $0x80] sm:$0xff]
      %v5847 = vld [vmem:[#allocation2 + $0x88] sm:$0xff]
      %v5848 = vld [vmem:[#allocation2 + $0x90] sm:$0xff]
      %v5849 = vld [vmem:[#allocation2 + $0x98] sm:$0xff]
      %v5850 = vld [vmem:[#allocation2 + $0xa0] sm:$0xff]
      %v5851 = vld [vmem:[#allocation2 + $0xa8] sm:$0xff]
      %v5852 = vld [vmem:[#allocation2 + $0xb0] sm:$0xff]
      %v5853 = vld [vmem:[#allocation2 + $0xb8] sm:$0xff]
      %v5854 = vld [vmem:[#allocation2 + $0xc0] sm:$0xff]
      %v5855 = vld [vmem:[#allocation2 + $0xc8] sm:$0xff]
      %v5856 = vld [vmem:[#allocation2 + $0xd0] sm:$0xff]
      %v5857 = vld [vmem:[#allocation2 + $0xd8] sm:$0xff]
      %v5858 = vld [vmem:[#allocation2 + $0xe0] sm:$0xff]
      %v5859 = vld [vmem:[#allocation2 + $0xe8] sm:$0xff]
      %v5860 = vld [vmem:[#allocation2 + $0xf0] sm:$0xff]
      %v5861 = vld [vmem:[#allocation2 + $0xf8] sm:$0xff]
      %v5862 = vld [vmem:[%s2] sm:$0x1]
      %v5864 = vlaneseq
      %v5865 = vshrl.u32 %v5864, 7
      %v5866 = vsub.s32 0, %v5865
      %v5867 = vrot.slane %v5862, %v5866
      %v5869 = vadd.f32 %v5830, %v5867
      %v5870 = vadd.f32 %v5831, %v5867
      %v5871 = vadd.f32 %v5832, %v5867
      %v5872 = vadd.f32 %v5833, %v5867
      %v5873 = vadd.f32 %v5834, %v5867
      %v5874 = vadd.f32 %v5835, %v5867
      %v5875 = vadd.f32 %v5836, %v5867
      %v5876 = vadd.f32 %v5837, %v5867
      %v5877 = vadd.f32 %v5838, %v5867
      %v5878 = vadd.f32 %v5839, %v5867
      %v5879 = vadd.f32 %v5840, %v5867
      %v5880 = vadd.f32 %v5841, %v5867
      %v5881 = vadd.f32 %v5842, %v5867
      %v5882 = vadd.f32 %v5843, %v5867
      %v5883 = vadd.f32 %v5844, %v5867
      %v5884 = vadd.f32 %v5845, %v5867
      %v5885 = vadd.f32 %v5846, %v5867
      %v5886 = vadd.f32 %v5847, %v5867
      %v5887 = vadd.f32 %v5848, %v5867
      %v5888 = vadd.f32 %v5849, %v5867
      %v5889 = vadd.f32 %v5850, %v5867
      %v5890 = vadd.f32 %v5851, %v5867
      %v5891 = vadd.f32 %v5852, %v5867
      %v5892 = vadd.f32 %v5853, %v5867
      %v5893 = vadd.f32 %v5854, %v5867
      %v5894 = vadd.f32 %v5855, %v5867
      %v5895 = vadd.f32 %v5856, %v5867
      %v5896 = vadd.f32 %v5857, %v5867
      %v5897 = vadd.f32 %v5858, %v5867
      %v5898 = vadd.f32 %v5859, %v5867
      %v5899 = vadd.f32 %v5860, %v5867
      %v5900 = vadd.f32 %v5861, %v5867
      %v5901 = vmax.f32 %v5869, 0.0
      %v5902 = vmax.f32 %v5870, 0.0
      %v5903 = vmax.f32 %v5871, 0.0
      %v5904 = vmax.f32 %v5872, 0.0
      %v5905 = vmax.f32 %v5873, 0.0
      %v5906 = vmax.f32 %v5874, 0.0
      %v5907 = vmax.f32 %v5875, 0.0
      %v5908 = vmax.f32 %v5876, 0.0
      %v5909 = vmax.f32 %v5877, 0.0
      %v5910 = vmax.f32 %v5878, 0.0
      %v5911 = vmax.f32 %v5879, 0.0
      %v5912 = vmax.f32 %v5880, 0.0
      %v5913 = vmax.f32 %v5881, 0.0
      %v5914 = vmax.f32 %v5882, 0.0
      %v5915 = vmax.f32 %v5883, 0.0
      %v5916 = vmax.f32 %v5884, 0.0
      %v5917 = vmax.f32 %v5885, 0.0
      %v5918 = vmax.f32 %v5886, 0.0
      %v5919 = vmax.f32 %v5887, 0.0
      %v5920 = vmax.f32 %v5888, 0.0
      %v5921 = vmax.f32 %v5889, 0.0
      %v5922 = vmax.f32 %v5890, 0.0
      %v5923 = vmax.f32 %v5891, 0.0
      %v5924 = vmax.f32 %v5892, 0.0
      %v5925 = vmax.f32 %v5893, 0.0
      %v5926 = vmax.f32 %v5894, 0.0
      %v5927 = vmax.f32 %v5895, 0.0
      %v5928 = vmax.f32 %v5896, 0.0
      %v5929 = vmax.f32 %v5897, 0.0
      %v5930 = vmax.f32 %v5898, 0.0
      %v5931 = vmax.f32 %v5899, 0.0
      %v5932 = vmax.f32 %v5900, 0.0
      %v5933 = vpack.c.bf16 %v5902, %v5901
      %v5934 = vpack.c.bf16 %v5904, %v5903
      %v5935 = vpack.c.bf16 %v5906, %v5905
      %v5936 = vpack.c.bf16 %v5908, %v5907
      %v5937 = vpack.c.bf16 %v5910, %v5909
      %v5938 = vpack.c.bf16 %v5912, %v5911
      %v5939 = vpack.c.bf16 %v5914, %v5913
      %v5940 = vpack.c.bf16 %v5916, %v5915
      %v5941 = vpack.c.bf16 %v5918, %v5917
      %v5942 = vpack.c.bf16 %v5920, %v5919
      %v5943 = vpack.c.bf16 %v5922, %v5921
      %v5944 = vpack.c.bf16 %v5924, %v5923
      %v5945 = vpack.c.bf16 %v5926, %v5925
      %v5946 = vpack.c.bf16 %v5928, %v5927
      %v5947 = vpack.c.bf16 %v5930, %v5929
      %v5948 = vpack.c.bf16 %v5932, %v5931
      %v5965 = vunpack.c.l.b16 %v5933
      %v5966 = vunpack.c.h.b16 %v5933
      %v5967 = vunpack.c.l.b16 %v5934
      %v5968 = vunpack.c.h.b16 %v5934
      %v5969 = vunpack.c.l.b16 %v5935
      %v5970 = vunpack.c.h.b16 %v5935
      %v5971 = vunpack.c.l.b16 %v5936
      %v5972 = vunpack.c.h.b16 %v5936
      %v5973 = vunpack.c.l.b16 %v5937
      %v5974 = vunpack.c.h.b16 %v5937
      %v5975 = vunpack.c.l.b16 %v5938
      %v5976 = vunpack.c.h.b16 %v5938
      %v5977 = vunpack.c.l.b16 %v5939
      %v5978 = vunpack.c.h.b16 %v5939
      %v5979 = vunpack.c.l.b16 %v5940
      %v5980 = vunpack.c.h.b16 %v5940
      %v5981 = vunpack.c.l.b16 %v5941
      %v5982 = vunpack.c.h.b16 %v5941
      %v5983 = vunpack.c.l.b16 %v5942
      %v5984 = vunpack.c.h.b16 %v5942
      %v5985 = vunpack.c.l.b16 %v5943
      %v5986 = vunpack.c.h.b16 %v5943
      %v5987 = vunpack.c.l.b16 %v5944
      %v5988 = vunpack.c.h.b16 %v5944
      %v5989 = vunpack.c.l.b16 %v5945
      %v5990 = vunpack.c.h.b16 %v5945
      %v5991 = vunpack.c.l.b16 %v5946
      %v5992 = vunpack.c.h.b16 %v5946
      %v5993 = vunpack.c.l.b16 %v5947
      %v5994 = vunpack.c.h.b16 %v5947
      %v5995 = vunpack.c.l.b16 %v5948
      %v5996 = vunpack.c.h.b16 %v5948
      %v5997 = vpack.c.b16 %v5965, %v5965
      %v5998 = vpack.c.b16 %v5966, %v5966
      %v5999 = vpack.c.b16 %v5967, %v5967
      %v6000 = vpack.c.b16 %v5968, %v5968
      %v6001 = vpack.c.b16 %v5969, %v5969
      %v6002 = vpack.c.b16 %v5970, %v5970
      %v6003 = vpack.c.b16 %v5971, %v5971
      %v6004 = vpack.c.b16 %v5972, %v5972
      %v6005 = vpack.c.b16 %v5973, %v5973
      %v6006 = vpack.c.b16 %v5974, %v5974
      %v6007 = vpack.c.b16 %v5975, %v5975
      %v6008 = vpack.c.b16 %v5976, %v5976
      %v6009 = vpack.c.b16 %v5977, %v5977
      %v6010 = vpack.c.b16 %v5978, %v5978
      %v6011 = vpack.c.b16 %v5979, %v5979
      %v6012 = vpack.c.b16 %v5980, %v5980
      %v6013 = vpack.c.b16 %v5981, %v5981
      %v6014 = vpack.c.b16 %v5982, %v5982
      %v6015 = vpack.c.b16 %v5983, %v5983
      %v6016 = vpack.c.b16 %v5984, %v5984
      %v6017 = vpack.c.b16 %v5985, %v5985
      %v6018 = vpack.c.b16 %v5986, %v5986
      %v6019 = vpack.c.b16 %v5987, %v5987
      %v6020 = vpack.c.b16 %v5988, %v5988
      %v6021 = vpack.c.b16 %v5989, %v5989
      %v6022 = vpack.c.b16 %v5990, %v5990
      %v6023 = vpack.c.b16 %v5991, %v5991
      %v6024 = vpack.c.b16 %v5992, %v5992
      %v6025 = vpack.c.b16 %v5993, %v5993
      %v6026 = vpack.c.b16 %v5994, %v5994
      %v6027 = vpack.c.b16 %v5995, %v5995
      %v6028 = vpack.c.b16 %v5996, %v5996
      %6061 = vst [vmem:[%s192] sm:$0xf] %v5997
      %6062 = vst [vmem:[%s192 + $0x4] sm:$0xf] %v5998
      %6063 = vst [vmem:[%s192 + $0x8] sm:$0xf] %v5999
      %6064 = vst [vmem:[%s192 + $0xc] sm:$0xf] %v6000
      %6065 = vst [vmem:[%s192 + $0x10] sm:$0xf] %v6001
      %6066 = vst [vmem:[%s192 + $0x14] sm:$0xf] %v6002
      %6067 = vst [vmem:[%s192 + $0x18] sm:$0xf] %v6003
      %6068 = vst [vmem:[%s192 + $0x1c] sm:$0xf] %v6004
      %6069 = vst [vmem:[%s192 + $0x20] sm:$0xf] %v6005
      %6070 = vst [vmem:[%s192 + $0x24] sm:$0xf] %v6006
      %6071 = vst [vmem:[%s192 + $0x28] sm:$0xf] %v6007
      %6072 = vst [vmem:[%s192 + $0x2c] sm:$0xf] %v6008
      %6073 = vst [vmem:[%s192 + $0x30] sm:$0xf] %v6009
      %6074 = vst [vmem:[%s192 + $0x34] sm:$0xf] %v6010
      %6075 = vst [vmem:[%s192 + $0x38] sm:$0xf] %v6011
      %6076 = vst [vmem:[%s192 + $0x3c] sm:$0xf] %v6012
      %6077 = vst [vmem:[%s192 + $0x40] sm:$0xf] %v6013
      %6078 = vst [vmem:[%s192 + $0x44] sm:$0xf] %v6014
      %6079 = vst [vmem:[%s192 + $0x48] sm:$0xf] %v6015
      %6080 = vst [vmem:[%s192 + $0x4c] sm:$0xf] %v6016
      %6081 = vst [vmem:[%s192 + $0x50] sm:$0xf] %v6017
      %6082 = vst [vmem:[%s192 + $0x54] sm:$0xf] %v6018
      %6083 = vst [vmem:[%s192 + $0x58] sm:$0xf] %v6019
      %6084 = vst [vmem:[%s192 + $0x5c] sm:$0xf] %v6020
      %6085 = vst [vmem:[%s192 + $0x60] sm:$0xf] %v6021
      %6086 = vst [vmem:[%s192 + $0x64] sm:$0xf] %v6022
      %6087 = vst [vmem:[%s192 + $0x68] sm:$0xf] %v6023
      %6088 = vst [vmem:[%s192 + $0x6c] sm:$0xf] %v6024
      %6089 = vst [vmem:[%s192 + $0x70] sm:$0xf] %v6025
      %6090 = vst [vmem:[%s192 + $0x74] sm:$0xf] %v6026
      %6091 = vst [vmem:[%s192 + $0x78] sm:$0xf] %v6027
      %6092 = vst [vmem:[%s192 + $0x7c] sm:$0xf] %v6028
      %s6093 = smul.u32 32, %s19
      %p6094 = scmp.lt.s32.totalorder %s18, 1
      %s6095 = scalar_select %p6094, %s18, 1
      %p6096 = scmp.lt.s32.totalorder %s6093, 31
      %s6097 = scalar_select %p6096, %s6093, 31
      %s6098 = smul.addr %s6095, 32
      %s6099 = sadd.s32 %s6097, %s6098
      %s6100 = smul.addr %s6099, 4
      %s6101 = scalar_lea.vmem %s3, %s6100
      // Predicated region
      $region33: #{basic_block_forward.2} parent=31 // pred_check
        %p6102 = pneg %p114
      $region34: #{basic_block_forward.2} parent=31 // pred_check_branch
        %6104 = sbr.rel (%p6102) target = $region36
      $region35: #{basic_block_forward.2} parent=31 // pred_region
        %s6105 = smul.u32 32, %s19
      $region36: #{basic_block_forward.2} parent=31 // pred_fallthru
        _
    $region32: #{basic_block_forward.2} parent=5 // pred_fallthru
      _
    %p6106 = scmp.le.s32.totalorder 2, %s9
    // Predicated region
    $region37: #{basic_block_forward.2} parent=5 // pred_check
      %p6107 = pneg %p6106
    $region38: #{basic_block_forward.2} parent=5 // pred_check_branch
      %6109 = sbr.rel (%p6107) target = $region40
    $region39: #{basic_block_forward.2} parent=5 // pred_region
      %s6110 = ssub.s32 %s9, 2
      // Predicated region
      $region41: #{basic_block_forward.2} parent=39 // pred_check
        %p6111 = pneg %p120
      $region42: #{basic_block_forward.2} parent=39 // pred_check_branch
        %6113 = sbr.rel (%p6111) target = $region44
      $region43: #{basic_block_forward.2} parent=39 // pred_region
        %s6114 = smul.u32 32, %s21
        %p6115 = scmp.lt.s32.totalorder %s20, 1
        %s6116 = scalar_select %p6115, %s20, 1
        %p6117 = scmp.lt.s32.totalorder %s6114, 31
        %s6118 = scalar_select %p6117, %s6114, 31
        %s6119 = smul.addr %s6116, 32
        %s6120 = sadd.s32 %s6118, %s6119
        %s6121 = smul.addr %s6120, 4
        %s6122 = scalar_lea.vmem %s3, %s6121
      $region44: #{basic_block_forward.2} parent=39 // pred_fallthru
        _
    $region40: #{basic_block_forward.2} parent=5 // pred_fallthru
      _
  $region6: #{basic_block_forward.2} parent=0 // loop_footer
    %s13 = sadd.s32 1, %s9
  $region7: #{basic_block_forward.2} parent=0 // loop_footer_branch
    %8 = sbr.rel target = $region3
  $region8: #{basic_block_forward.2} parent=0 // loop_exit
    _

// kernel: basic_block_forward.3
$region0: #{basic_block_forward.3}
  #allocation0 [shape = 'u32[]', space=smem, size = 0x4, offset = 0x4, fixed_abs, tag = 'smem constant byte address 0x4 - core index']
  #allocation1 [shape = 'u32[144,128]{1,0:T(1,128)}', space=vmem, size = 0x12000, scoped, tag = 'internal scratch']
  #allocation2 [shape = 'f32[256,128]{1,0:T(8,128)}', space=vmem, size = 0x20000, scoped, tag = 'scratch operand']
  %s0 = inlined_call_operand.vmem [shape: bf16[2,18,18,128], index: 0, kind: input, shape index: {}]
  %s1 = inlined_call_operand.vmem [shape: bf16[3,3,128,128], index: 1, kind: input, shape index: {}]
  %s2 = inlined_call_operand.vmem [shape: f32[1,128], index: 2, kind: input, shape index: {}]
  %s3 = inlined_call_operand.vmem [shape: f32[2,256,128], index: 3, kind: input, shape index: {}]
  %s4 = inlined_call_operand.vmem [shape: f32[2,256,128], index: 4, kind: output, shape index: {}]
  %s5 = sld [smem:[#allocation0]]
  $region49: #{basic_block_forward.3} parent=0
    _
  %s7 = ssub.s32 1, %s5
  %s8 = scalar_select 0, %s7, %s5
  loop: start=0, step=1, limit=4
  $region2: #{basic_block_forward.3} parent=0 // loop_pre_header
    _
  $region3: #{basic_block_forward.3} parent=0 // loop_header
    %s10 = sphi 0, %s14
    %p11 = scmp.ge.s32.totalorder %s10, 4
    %s17 = sphi 0, %s29
    %s18 = sphi 0, %s25
    %s19 = sphi 0, %s17
    %s20 = sphi 0, %s18
    %s21 = sphi 0, %s19
    %s22 = sphi 0, %s20
    %s32 = sphi 0, %s34
    %s35 = sphi 0, %s32
    %s36 = sphi 0, %s35
    %s52 = sphi 0, %s36
    %s56 = sphi 0, %s56
    %s58 = sphi 0, %s56
    %s59 = sphi 0, %s58
    %s73 = sphi 0, %s59
    %s77 = sphi 0, %s77
    %s79 = sphi 0, %s77
    %s80 = sphi 0, %s79
    %s94 = sphi 0, %s80
    %s102 = sphi 0, %s104
    %s105 = sphi 0, %s102
    %s106 = sphi 0, %s105
    %s122 = sphi 0, %s106
    %s130 = sphi 0, %s132
    %s133 = sphi 0, %s130
    %s134 = sphi 0, %s133
    %s150 = sphi 0, %s134
  $region4: #{basic_block_forward.3} parent=0 // loop_header_branch
    %13 = sbr.rel (%p11) target = $region8
  $region5: #{basic_block_forward.3} parent=0 // loop_body
    %s15 = ssub.s32 %s10, 1
    %s16 = ssub.s32 %s10, 2
    %s23 = sadd.s32 1, %s18
    %p24 = scmp.ge.s32.totalorder %s23, 1
    %s25 = scalar_select %p24, 0, %s23
    %s26 = sadd.s32 1, %s17
    %s27 = scalar_select %p24, %s26, %s17
    %p28 = scmp.ge.s32.totalorder %s27, 2
    %s29 = scalar_select %p28, 0, %s27
    %s30 = ssub.s32 %s17, %s29
    %p31 = scmp.eq.s32.totalorder %s30, 0
    %s33 = sadd.s32 %s32, 1
    %s34 = scalar_select %p31, %s32, %s33
    %p37 = pneg %p31
    %p38 = scmp.eq.s32.totalorder %s10, 1
    %p39 = por %p37, %p38
    %p40 = scmp.ne.s32.totalorder %s32, %s35
    %p41 = scmp.eq.s32.totalorder %s10, 0
    %p42 = por %p40, %p41
    %p43 = scmp.ne.s32.totalorder %s32, %s35
    %p44 = scmp.eq.s32.totalorder %s15, 1
    %p45 = por %p43, %p44
    %p46 = scmp.ne.s32.totalorder %s35, %s36
    %p47 = scmp.eq.s32.totalorder %s15, 0
    %p48 = por %p46, %p47
    %p49 = scmp.ne.s32.totalorder %s35, %s36
    %p50 = scmp.eq.s32.totalorder %s16, 1
    %p51 = por %p49, %p50
    %p53 = scmp.ne.s32.totalorder %s36, %s52
    %p54 = scmp.eq.s32.totalorder %s16, 0
    %p55 = por %p53, %p54
    %s57 = sadd.s32 %s56, 1
    %p60 = scmp.eq.s32.totalorder %s10, 1
    %p61 = scmp.ne.s32.totalorder %s56, %s58
    %p62 = scmp.eq.s32.totalorder %s10, 0
    %p63 = por %p61, %p62
    %p64 = scmp.ne.s32.totalorder %s56, %s58
    %p65 = scmp.eq.s32.totalorder %s15, 1
    %p66 = por %p64, %p65
    %p67 = scmp.ne.s32.totalorder %s58, %s59
    %p68 = scmp.eq.s32.totalorder %s15, 0
    %p69 = por %p67, %p68
    %p70 = scmp.ne.s32.totalorder %s58, %s59
    %p71 = scmp.eq.s32.totalorder %s16, 1
    %p72 = por %p70, %p71
    %p74 = scmp.ne.s32.totalorder %s59, %s73
    %p75 = scmp.eq.s32.totalorder %s16, 0
    %p76 = por %p74, %p75
    %s78 = sadd.s32 %s77, 1
    %p81 = scmp.eq.s32.totalorder %s10, 1
    %p82 = scmp.ne.s32.totalorder %s77, %s79
    %p83 = scmp.eq.s32.totalorder %s10, 0
    %p84 = por %p82, %p83
    %p85 = scmp.ne.s32.totalorder %s77, %s79
    %p86 = scmp.eq.s32.totalorder %s15, 1
    %p87 = por %p85, %p86
    %p88 = scmp.ne.s32.totalorder %s79, %s80
    %p89 = scmp.eq.s32.totalorder %s15, 0
    %p90 = por %p88, %p89
    %p91 = scmp.ne.s32.totalorder %s79, %s80
    %p92 = scmp.eq.s32.totalorder %s16, 1
    %p93 = por %p91, %p92
    %p95 = scmp.ne.s32.totalorder %s80, %s94
    %p96 = scmp.eq.s32.totalorder %s16, 0
    %p97 = por %p95, %p96
    %s98 = ssub.s32 %s17, %s29
    %s99 = ssub.s32 %s18, %s25
    %s100 = sor.u32 %s98, %s99
    %p101 = scmp.eq.s32.totalorder %s100, 0
    %s103 = sadd.s32 %s102, 1
    %s104 = scalar_select %p101, %s102, %s103
    %p107 = pneg %p101
    %p108 = scmp.eq.s32.totalorder %s10, 1
    %p109 = por %p107, %p108
    %p110 = scmp.ne.s32.totalorder %s102, %s105
    %p111 = scmp.eq.s32.totalorder %s10, 0
    %p112 = por %p110, %p111
    %p113 = scmp.ne.s32.totalorder %s102, %s105
    %p114 = scmp.eq.s32.totalorder %s15, 1
    %p115 = por %p113, %p114
    %p116 = scmp.ne.s32.totalorder %s105, %s106
    %p117 = scmp.eq.s32.totalorder %s15, 0
    %p118 = por %p116, %p117
    %p119 = scmp.ne.s32.totalorder %s105, %s106
    %p120 = scmp.eq.s32.totalorder %s16, 1
    %p121 = por %p119, %p120
    %p123 = scmp.ne.s32.totalorder %s106, %s122
    %p124 = scmp.eq.s32.totalorder %s16, 0
    %p125 = por %p123, %p124
    %s126 = ssub.s32 %s17, %s29
    %s127 = ssub.s32 %s18, %s25
    %s128 = sor.u32 %s126, %s127
    %p129 = scmp.eq.s32.totalorder %s128, 0
    %s131 = sadd.s32 %s130, 1
    %s132 = scalar_select %p129, %s130, %s131
    %p135 = pneg %p129
    %p136 = scmp.eq.s32.totalorder %s10, 1
    %p137 = por %p135, %p136
    %p138 = scmp.ne.s32.totalorder %s130, %s133
    %p139 = scmp.eq.s32.totalorder %s10, 0
    %p140 = por %p138, %p139
    %p141 = scmp.ne.s32.totalorder %s130, %s133
    %p142 = scmp.eq.s32.totalorder %s15, 1
    %p143 = por %p141, %p142
    %p144 = scmp.ne.s32.totalorder %s133, %s134
    %p145 = scmp.eq.s32.totalorder %s15, 0
    %p146 = por %p144, %p145
    %p147 = scmp.ne.s32.totalorder %s133, %s134
    %p148 = scmp.eq.s32.totalorder %s16, 1
    %p149 = por %p147, %p148
    %p151 = scmp.ne.s32.totalorder %s134, %s150
    %p152 = scmp.eq.s32.totalorder %s16, 0
    %p153 = por %p151, %p152
    %p154 = scmp.le.s32.totalorder 1, %s10
    %p155 = scmp.lt.s32.totalorder %s10, 3
    %p156 = pnand %p154, %p155
    %p157 = pneg %p156
    // Predicated region
    $region9: #{basic_block_forward.3} parent=5 // pred_check
      _
    $region10: #{basic_block_forward.3} parent=5 // pred_check_branch
      %159 = sbr.rel (%p156) target = $region12
    $region11: #{basic_block_forward.3} parent=5 // pred_region
      %s160 = ssub.s32 %s10, 1
      // Predicated region
      $region13: #{basic_block_forward.3} parent=11 // pred_check
        %p161 = pneg %p69
      $region14: #{basic_block_forward.3} parent=11 // pred_check_branch
        %163 = sbr.rel (%p161) target = $region16
      $region15: #{basic_block_forward.3} parent=11 // pred_region
        _
      $region16: #{basic_block_forward.3} parent=11 // pred_fallthru
        _
      // Predicated region
      $region17: #{basic_block_forward.3} parent=11 // pred_check
        %p164 = pneg %p90
      $region18: #{basic_block_forward.3} parent=11 // pred_check_branch
        %166 = sbr.rel (%p164) target = $region20
      $region19: #{basic_block_forward.3} parent=11 // pred_region
        _
      $region20: #{basic_block_forward.3} parent=11 // pred_fallthru
        _
    $region12: #{basic_block_forward.3} parent=5 // pred_fallthru
      _
    %p167 = scmp.lt.s32.totalorder %s10, 2
    // Predicated region
    $region21: #{basic_block_forward.3} parent=5 // pred_check
      %p168 = pneg %p167
    $region22: #{basic_block_forward.3} parent=5 // pred_check_branch
      %170 = sbr.rel (%p168) target = $region24
    $region23: #{basic_block_forward.3} parent=5 // pred_region
      // Predicated region
      $region25: #{basic_block_forward.3} parent=23 // pred_check
        %p171 = pneg %p42
      $region26: #{basic_block_forward.3} parent=23 // pred_check_branch
        %173 = sbr.rel (%p171) target = $region28
      $region27: #{basic_block_forward.3} parent=23 // pred_region
        %p174 = scmp.lt.s32.totalorder %s17, 1
        %s175 = scalar_select %p174, %s17, 1
        %s176 = smul.addr %s175, 54
        %s177 = smul.addr %s176, 4
        %s178 = scalar_lea.vmem %s0, %s177
      $region28: #{basic_block_forward.3} parent=23 // pred_fallthru
        _
      // Predicated region
      $region29: #{basic_block_forward.3} parent=23 // pred_check
        %p179 = pneg %p112
      $region30: #{basic_block_forward.3} parent=23 // pred_check_branch
        %181 = sbr.rel (%p179) target = $region32
      $region31: #{basic_block_forward.3} parent=23 // pred_region
        %s182 = smul.u32 32, %s18
        %p183 = scmp.lt.s32.totalorder %s17, 1
        %s184 = scalar_select %p183, %s17, 1
        %p185 = scmp.lt.s32.totalorder %s182, 31
        %s186 = scalar_select %p185, %s182, 31
        %s187 = smul.addr %s184, 32
        %s188 = sadd.s32 %s186, %s187
        %s189 = smul.addr %s188, 8
        %s190 = scalar_lea.vmem %s3, %s189
        %s191 = smul.u32 32, %s18
      $region32: #{basic_block_forward.3} parent=23 // pred_fallthru
        _
    $region24: #{basic_block_forward.3} parent=5 // pred_fallthru
      _
    %p192 = scmp.le.s32.totalorder 1, %s10
    %p193 = scmp.lt.s32.totalorder %s10, 3
    %p194 = pnand %p192, %p193
    %p195 = pneg %p194
    // Predicated region
    $region33: #{basic_block_forward.3} parent=5 // pred_check
      _
    $region34: #{basic_block_forward.3} parent=5 // pred_check_branch
      %197 = sbr.rel (%p194) target = $region36
    $region35: #{basic_block_forward.3} parent=5 // pred_region
      %s198 = ssub.s32 %s10, 1
      %p199 = scmp.lt.s32.totalorder %s19, 1
      %s200 = scalar_select %p199, %s19, 1
      %s201 = smul.addr %s200, 54
      %s202 = smul.addr %s201, 4
      %s203 = scalar_lea.vmem %s0, %s202
      %p204 = pneg %p48
      %p205 = pneg %p45
      %p206 = pneg %p69
      %p207 = pneg %p66
      %p208 = pneg %p90
      %p209 = pneg %p87
      %s210 = smul.u32 32, %s20
      %p211 = scmp.lt.s32.totalorder %s19, 1
      %s212 = scalar_select %p211, %s19, 1
      %p213 = scmp.lt.s32.totalorder %s210, 31
      %s214 = scalar_select %p213, %s210, 31
      %s215 = smul.addr %s212, 32
      %s216 = sadd.s32 %s214, %s215
      %s217 = smul.addr %s216, 8
      %s218 = scalar_lea.vmem %s3, %s217
      %p219 = pneg %p118
      %p220 = pneg %p115
      %p221 = pneg %p146
      %p222 = pneg %p143
      %s223 = smul.u32 32, %s20
      %p224 = scmp.lt.s32.totalorder %s19, 1
      %s225 = scalar_select %p224, %s19, 1
      %p226 = scmp.lt.s32.totalorder %s223, 31
      %s227 = scalar_select %p226, %s223, 31
      %s228 = smul.addr %s225, 32
      %s229 = sadd.s32 %s227, %s228
      %s230 = smul.addr %s229, 8
      %s231 = scalar_lea.vmem %s4, %s230
      %p232 = scmp.lt.s32.totalorder %s19, 1
      %s233 = scalar_select %p232, %s19, 1
      %s234 = smul.addr %s233, 54
      %s235 = smul.addr %s234, 4
      %s236 = scalar_lea.vmem %s0, %s235
      %s237 = smul.u32 32, %s20
      %p238 = scmp.lt.s32.totalorder %s19, 1
      %s239 = scalar_select %p238, %s19, 1
      %p240 = scmp.lt.s32.totalorder %s237, 31
      %s241 = scalar_select %p240, %s237, 31
      %s242 = smul.addr %s239, 32
      %s243 = sadd.s32 %s241, %s242
      %s244 = smul.addr %s243, 8
      %s245 = scalar_lea.vmem %s3, %s244
      %s246 = smul.u32 32, %s20
      %s247 = smul.u32 32, %s20
      %p248 = scmp.lt.s32.totalorder %s19, 1
      %s249 = scalar_select %p248, %s19, 1
      %p250 = scmp.lt.s32.totalorder %s247, 31
      %s251 = scalar_select %p250, %s247, 31
      %s252 = smul.addr %s249, 32
      %s253 = sadd.s32 %s251, %s252
      %s254 = smul.addr %s253, 8
      %s255 = scalar_lea.vmem %s4, %s254
      %s256 = smul.u32 32, %s20
      %s258 = smul.u32 %s20, 16
      %259 = vst [vmem:[#allocation2] sm:$0xff] 0.0
      %260 = vst [vmem:[#allocation2 + $0x8] sm:$0xff] 0.0
      %261 = vst [vmem:[#allocation2 + $0x10] sm:$0xff] 0.0
      %262 = vst [vmem:[#allocation2 + $0x18] sm:$0xff] 0.0
      %263 = vst [vmem:[#allocation2 + $0x20] sm:$0xff] 0.0
      %264 = vst [vmem:[#allocation2 + $0x28] sm:$0xff] 0.0
      %265 = vst [vmem:[#allocation2 + $0x30] sm:$0xff] 0.0
      %266 = vst [vmem:[#allocation2 + $0x38] sm:$0xff] 0.0
      %267 = vst [vmem:[#allocation2 + $0x40] sm:$0xff] 0.0
      %268 = vst [vmem:[#allocation2 + $0x48] sm:$0xff] 0.0
      %269 = vst [vmem:[#allocation2 + $0x50] sm:$0xff] 0.0
      %270 = vst [vmem:[#allocation2 + $0x58] sm:$0xff] 0.0
      %271 = vst [vmem:[#allocation2 + $0x60] sm:$0xff] 0.0
      %272 = vst [vmem:[#allocation2 + $0x68] sm:$0xff] 0.0
      %273 = vst [vmem:[#allocation2 + $0x70] sm:$0xff] 0.0
      %274 = vst [vmem:[#allocation2 + $0x78] sm:$0xff] 0.0
      %275 = vst [vmem:[#allocation2 + $0x80] sm:$0xff] 0.0
      %276 = vst [vmem:[#allocation2 + $0x88] sm:$0xff] 0.0
      %277 = vst [vmem:[#allocation2 + $0x90] sm:$0xff] 0.0
      %278 = vst [vmem:[#allocation2 + $0x98] sm:$0xff] 0.0
      %279 = vst [vmem:[#allocation2 + $0xa0] sm:$0xff] 0.0
      %280 = vst [vmem:[#allocation2 + $0xa8] sm:$0xff] 0.0
      %281 = vst [vmem:[#allocation2 + $0xb0] sm:$0xff] 0.0
      %282 = vst [vmem:[#allocation2 + $0xb8] sm:$0xff] 0.0
      %283 = vst [vmem:[#allocation2 + $0xc0] sm:$0xff] 0.0
      %284 = vst [vmem:[#allocation2 + $0xc8] sm:$0xff] 0.0
      %285 = vst [vmem:[#allocation2 + $0xd0] sm:$0xff] 0.0
      %286 = vst [vmem:[#allocation2 + $0xd8] sm:$0xff] 0.0
      %287 = vst [vmem:[#allocation2 + $0xe0] sm:$0xff] 0.0
      %288 = vst [vmem:[#allocation2 + $0xe8] sm:$0xff] 0.0
      %289 = vst [vmem:[#allocation2 + $0xf0] sm:$0xff] 0.0
      %290 = vst [vmem:[#allocation2 + $0xf8] sm:$0xff] 0.0
      %s291 = smul.u32 %s258, 3
      %s292 = smul.addr %s291, 4
      %s293 = scalar_lea.vmem %s236, %s292
      %v294 = vld [vmem:[%s293] sm:$0xf]
      %v295 = vld [vmem:[%s293 + $0x4] sm:$0xf]
      %v296 = vld [vmem:[%s293 + $0xc] sm:$0xf]
      %v297 = vld [vmem:[%s293 + $0x10] sm:$0xf]
      %v298 = vld [vmem:[%s293 + $0x18] sm:$0xf]
      %v299 = vld [vmem:[%s293 + $0x1c] sm:$0xf]
      %v300 = vld [vmem:[%s293 + $0x24] sm:$0xf]
      %v301 = vld [vmem:[%s293 + $0x28] sm:$0xf]
      %v302 = vld [vmem:[%s293 + $0x30] sm:$0xf]
      %v303 = vld [vmem:[%s293 + $0x34] sm:$0xf]
      %v304 = vld [vmem:[%s293 + $0x3c] sm:$0xf]
      %v305 = vld [vmem:[%s293 + $0x40] sm:$0xf]
      %v306 = vld [vmem:[%s293 + $0x48] sm:$0xf]
      %v307 = vld [vmem:[%s293 + $0x4c] sm:$0xf]
      %v308 = vld [vmem:[%s293 + $0x54] sm:$0xf]
      %v309 = vld [vmem:[%s293 + $0x58] sm:$0xf]
      %v310 = vld [vmem:[%s293 + $0x60] sm:$0xf]
      %v311 = vld [vmem:[%s293 + $0x64] sm:$0xf]
      %v312 = vld [vmem:[%s293 + $0x6c] sm:$0xf]
      %v313 = vld [vmem:[%s293 + $0x70] sm:$0xf]
      %v314 = vld [vmem:[%s293 + $0x78] sm:$0xf]
      %v315 = vld [vmem:[%s293 + $0x7c] sm:$0xf]
      %v316 = vld [vmem:[%s293 + $0x84] sm:$0xf]
      %v317 = vld [vmem:[%s293 + $0x88] sm:$0xf]
      %v318 = vld [vmem:[%s293 + $0x90] sm:$0xf]
      %v319 = vld [vmem:[%s293 + $0x94] sm:$0xf]
      %v320 = vld [vmem:[%s293 + $0x9c] sm:$0xf]
      %v321 = vld [vmem:[%s293 + $0xa0] sm:$0xf]
      %v322 = vld [vmem:[%s293 + $0xa8] sm:$0xf]
      %v323 = vld [vmem:[%s293 + $0xac] sm:$0xf]
      %v324 = vld [vmem:[%s293 + $0xb4] sm:$0xf]
      %v325 = vld [vmem:[%s293 + $0xb8] sm:$0xf]
      %v326 = vld [vmem:[#allocation2] sm:$0xff]
      %v327 = vld [vmem:[#allocation2 + $0x8] sm:$0xff]
      %v328 = vld [vmem:[#allocation2 + $0x10] sm:$0xff]
      %v329 = vld [vmem:[#allocation2 + $0x18] sm:$0xff]
      %v330 = vld [vmem:[#allocation2 + $0x20] sm:$0xff]
      %v331 = vld [vmem:[#allocation2 + $0x28] sm:$0xff]
      %v332 = vld [vmem:[#allocation2 + $0x30] sm:$0xff]
      %v333 = vld [vmem:[#allocation2 + $0x38] sm:$0xff]
      %v334 = vld [vmem:[#allocation2 + $0x40] sm:$0xff]
      %v335 = vld [vmem:[#allocation2 + $0x48] sm:$0xff]
      %v336 = vld [vmem:[#allocation2 + $0x50] sm:$0xff]
      %v337 = vld [vmem:[#allocation2 + $0x58] sm:$0xff]
      %v338 = vld [vmem:[#allocation2 + $0x60] sm:$0xff]
      %v339 = vld [vmem:[#allocation2 + $0x68] sm:$0xff]
      %v340 = vld [vmem:[#allocation2 + $0x70] sm:$0xff]
      %v341 = vld [vmem:[#allocation2 + $0x78] sm:$0xff]
      %v342 = vld [vmem:[#allocation2 + $0x80] sm:$0xff]
      %v343 = vld [vmem:[#allocation2 + $0x88] sm:$0xff]
      %v344 = vld [vmem:[#allocation2 + $0x90] sm:$0xff]
      %v345 = vld [vmem:[#allocation2 + $0x98] sm:$0xff]
      %v346 = vld [vmem:[#allocation2 + $0xa0] sm:$0xff]
      %v347 = vld [vmem:[#allocation2 + $0xa8] sm:$0xff]
      %v348 = vld [vmem:[#allocation2 + $0xb0] sm:$0xff]
      %v349 = vld [vmem:[#allocation2 + $0xb8] sm:$0xff]
      %v350 = vld [vmem:[#allocation2 + $0xc0] sm:$0xff]
      %v351 = vld [vmem:[#allocation2 + $0xc8] sm:$0xff]
      %v352 = vld [vmem:[#allocation2 + $0xd0] sm:$0xff]
      %v353 = vld [vmem:[#allocation2 + $0xd8] sm:$0xff]
      %v354 = vld [vmem:[#allocation2 + $0xe0] sm:$0xff]
      %v355 = vld [vmem:[#allocation2 + $0xe8] sm:$0xff]
      %v356 = vld [vmem:[#allocation2 + $0xf0] sm:$0xff]
      %v357 = vld [vmem:[#allocation2 + $0xf8] sm:$0xff]
      %v358 = vld [vmem:[%s1] sm:$0xf]
      %v359 = vld [vmem:[%s1 + $0x4] sm:$0xf]
      %v360 = vld [vmem:[%s1 + $0x8] sm:$0xf]
      %v361 = vld [vmem:[%s1 + $0xc] sm:$0xf]
      %v362 = vld [vmem:[%s1 + $0x10] sm:$0xf]
      %v363 = vld [vmem:[%s1 + $0x14] sm:$0xf]
      %v364 = vld [vmem:[%s1 + $0x18] sm:$0xf]
      %v365 = vld [vmem:[%s1 + $0x1c] sm:$0xf]
      %v366 = vld [vmem:[%s1 + $0x20] sm:$0xf]
      %v367 = vld [vmem:[%s1 + $0x24] sm:$0xf]
      %v368 = vld [vmem:[%s1 + $0x28] sm:$0xf]
      %v369 = vld [vmem:[%s1 + $0x2c] sm:$0xf]
      %v370 = vld [vmem:[%s1 + $0x30] sm:$0xf]
      %v371 = vld [vmem:[%s1 + $0x34] sm:$0xf]
      %v372 = vld [vmem:[%s1 + $0x38] sm:$0xf]
      %v373 = vld [vmem:[%s1 + $0x3c] sm:$0xf]
      %v406 = vunpack.c.l.b16 %v294
      %v407 = vunpack.c.l.b16 %v295
      %v408 = vunpack.c.l.b16 %v296
      %v409 = vunpack.c.l.b16 %v297
      %v410 = vunpack.c.l.b16 %v298
      %v411 = vunpack.c.l.b16 %v299
      %v412 = vunpack.c.l.b16 %v300
      %v413 = vunpack.c.l.b16 %v301
      %v414 = vunpack.c.l.b16 %v302
      %v415 = vunpack.c.l.b16 %v303
      %v416 = vunpack.c.l.b16 %v304
      %v417 = vunpack.c.l.b16 %v305
      %v418 = vunpack.c.l.b16 %v306
      %v419 = vunpack.c.l.b16 %v307
      %v420 = vunpack.c.l.b16 %v308
      %v421 = vunpack.c.l.b16 %v309
      %v422 = vunpack.c.l.b16 %v310
      %v423 = vunpack.c.l.b16 %v311
      %v424 = vunpack.c.l.b16 %v312
      %v425 = vunpack.c.l.b16 %v313
      %v426 = vunpack.c.l.b16 %v314
      %v427 = vunpack.c.l.b16 %v315
      %v428 = vunpack.c.l.b16 %v316
      %v429 = vunpack.c.l.b16 %v317
      %v430 = vunpack.c.l.b16 %v318
      %v431 = vunpack.c.l.b16 %v319
      %v432 = vunpack.c.l.b16 %v320
      %v433 = vunpack.c.l.b16 %v321
      %v434 = vunpack.c.l.b16 %v322
      %v435 = vunpack.c.l.b16 %v323
      %v436 = vunpack.c.l.b16 %v324
      %v437 = vunpack.c.l.b16 %v325
      %v438 = vpack.c.b16 %v407, %v406
      %v439 = vpack.c.b16 %v409, %v408
      %v440 = vpack.c.b16 %v411, %v410
      %v441 = vpack.c.b16 %v413, %v412
      %v442 = vpack.c.b16 %v415, %v414
      %v443 = vpack.c.b16 %v417, %v416
      %v444 = vpack.c.b16 %v419, %v418
      %v445 = vpack.c.b16 %v421, %v420
      %v446 = vpack.c.b16 %v423, %v422
      %v447 = vpack.c.b16 %v425, %v424
      %v448 = vpack.c.b16 %v427, %v426
      %v449 = vpack.c.b16 %v429, %v428
      %v450 = vpack.c.b16 %v431, %v430
      %v451 = vpack.c.b16 %v433, %v432
      %v452 = vpack.c.b16 %v435, %v434
      %v453 = vpack.c.b16 %v437, %v436
      %v486 = vunpack.c.l.b16 %v358
      %v487 = vunpack.c.l.b16 %v359
      %v488 = vunpack.c.l.b16 %v360
      %v489 = vunpack.c.l.b16 %v361
      %v490 = vunpack.c.l.b16 %v362
      %v491 = vunpack.c.l.b16 %v363
      %v492 = vunpack.c.l.b16 %v364
      %v493 = vunpack.c.l.b16 %v365
      %v494 = vunpack.c.l.b16 %v366
      %v495 = vunpack.c.l.b16 %v367
      %v496 = vunpack.c.l.b16 %v368
      %v497 = vunpack.c.l.b16 %v369
      %v498 = vunpack.c.l.b16 %v370
      %v499 = vunpack.c.l.b16 %v371
      %v500 = vunpack.c.l.b16 %v372
      %v501 = vunpack.c.l.b16 %v373
      %v502 = vpack.c.b16 %v487, %v486
      %v503 = vpack.c.b16 %v489, %v488
      %v504 = vpack.c.b16 %v491, %v490
      %v505 = vpack.c.b16 %v493, %v492
      %v506 = vpack.c.b16 %v495, %v494
      %v507 = vpack.c.b16 %v497, %v496
      %v508 = vpack.c.b16 %v499, %v498
      %v509 = vpack.c.b16 %v501, %v500
      %518 = vmatprep.subr.bf16.mxu0 0
      %519 = vmatpush1.bf16.msra.mxu0 %v509
      %520 = vmatprep.subr.bf16.mxu0 0
      %521 = vmatpush1.bf16.msra.mxu0 %v508
      %522 = vmatprep.subr.bf16.mxu0 0
      %523 = vmatpush1.bf16.msra.mxu0 %v507
      %524 = vmatprep.subr.bf16.mxu0 0
      %525 = vmatpush1.bf16.msra.mxu0 %v506
      %526 = vmatprep.subr.bf16.mxu0 0
      %527 = vmatpush1.bf16.msra.mxu0 %v505
      %528 = vmatprep.subr.bf16.mxu0 0
      %529 = vmatpush1.bf16.msra.mxu0 %v504
      %530 = vmatprep.subr.bf16.mxu0 0
      %531 = vmatpush1.bf16.msra.mxu0 %v503
      %532 = vmatprep.subr.bf16.mxu0 0
      %533 = vmatpush1.bf16.msra.mxu0 %v502
      %534 = vmatprep.subr.bf16.mxu0 0
      %535 = vmatpush2.bf16.msra.mxu0 0
      %536 = vmatprep.subr.bf16.mxu0 0
      %537 = vmatpush2.bf16.msra.mxu0 0
      %538 = vmatprep.subr.bf16.mxu0 0
      %539 = vmatpush2.bf16.msra.mxu0 0
      %540 = vmatprep.subr.bf16.mxu0 0
      %541 = vmatpush2.bf16.msra.mxu0 0
      %542 = vmatprep.subr.bf16.mxu0 0
      %543 = vmatpush2.bf16.msra.mxu0 0
      %544 = vmatprep.subr.bf16.mxu0 0
      %545 = vmatpush2.bf16.msra.mxu0 0
      %546 = vmatprep.subr.bf16.mxu0 0
      %547 = vmatpush2.bf16.msra.mxu0 0
      %548 = vmatprep.subr.bf16.mxu0 0
      %549 = vmatpush2.bf16.msra.mxu0 0
      %550 = vmatprep.mubr.bf16.mxu0 0
      %551 = vmatmul.mubr.bf16.gmra.mxu0 %v438
      %v552 = vpop.f32.mrf.mxu0
      %v553 = vadd.f32 0.0, %v552
      %v554 = vpop.f32.mrf.mxu0
      %v555 = vpop.f32.mrf.mxu0
      %v556 = vadd.f32 0.0, %v555
      %v557 = vpop.f32.mrf.mxu0
      %558 = vmatprep.mubr.bf16.mxu0 0
      %559 = vmatmul.mubr.bf16.gmra.mxu0 %v439
      %v560 = vpop.f32.mrf.mxu0
      %v561 = vadd.f32 0.0, %v560
      %v562 = vpop.f32.mrf.mxu0
      %v563 = vpop.f32.mrf.mxu0
      %v564 = vadd.f32 0.0, %v563
      %v565 = vpop.f32.mrf.mxu0
      %566 = vmatprep.mubr.bf16.mxu0 0
      %567 = vmatmul.mubr.bf16.gmra.mxu0 %v440
      %v568 = vpop.f32.mrf.mxu0
      %v569 = vadd.f32 0.0, %v568
      %v570 = vpop.f32.mrf.mxu0
      %v571 = vpop.f32.mrf.mxu0
      %v572 = vadd.f32 0.0, %v571
      %v573 = vpop.f32.mrf.mxu0
      %574 = vmatprep.mubr.bf16.mxu0 0
      %575 = vmatmul.mubr.bf16.gmra.mxu0 %v441
      %v576 = vpop.f32.mrf.mxu0
      %v577 = vadd.f32 0.0, %v576
      %v578 = vpop.f32.mrf.mxu0
      %v579 = vpop.f32.mrf.mxu0
      %v580 = vadd.f32 0.0, %v579
      %v581 = vpop.f32.mrf.mxu0
      %582 = vmatprep.mubr.bf16.mxu0 0
      %583 = vmatmul.mubr.bf16.gmra.mxu0 %v442
      %v584 = vpop.f32.mrf.mxu0
      %v585 = vadd.f32 0.0, %v584
      %v586 = vpop.f32.mrf.mxu0
      %v587 = vpop.f32.mrf.mxu0
      %v588 = vadd.f32 0.0, %v587
      %v589 = vpop.f32.mrf.mxu0
      %590 = vmatprep.mubr.bf16.mxu0 0
      %591 = vmatmul.mubr.bf16.gmra.mxu0 %v443
      %v592 = vpop.f32.mrf.mxu0
      %v593 = vadd.f32 0.0, %v592
      %v594 = vpop.f32.mrf.mxu0
      %v595 = vpop.f32.mrf.mxu0
      %v596 = vadd.f32 0.0, %v595
      %v597 = vpop.f32.mrf.mxu0
      %598 = vmatprep.mubr.bf16.mxu0 0
      %599 = vmatmul.mubr.bf16.gmra.mxu0 %v444
      %v600 = vpop.f32.mrf.mxu0
      %v601 = vadd.f32 0.0, %v600
      %v602 = vpop.f32.mrf.mxu0
      %v603 = vpop.f32.mrf.mxu0
      %v604 = vadd.f32 0.0, %v603
      %v605 = vpop.f32.mrf.mxu0
      %606 = vmatprep.mubr.bf16.mxu0 0
      %607 = vmatmul.mubr.bf16.gmra.mxu0 %v445
      %v608 = vpop.f32.mrf.mxu0
      %v609 = vadd.f32 0.0, %v608
      %v610 = vpop.f32.mrf.mxu0
      %v611 = vpop.f32.mrf.mxu0
      %v612 = vadd.f32 0.0, %v611
      %v613 = vpop.f32.mrf.mxu0
      %614 = vmatprep.mubr.bf16.mxu0 0
      %615 = vmatmul.mubr.bf16.gmra.mxu0 %v446
      %v616 = vpop.f32.mrf.mxu0
      %v617 = vadd.f32 0.0, %v616
      %v618 = vpop.f32.mrf.mxu0
      %v619 = vpop.f32.mrf.mxu0
      %v620 = vadd.f32 0.0, %v619
      %v621 = vpop.f32.mrf.mxu0
      %622 = vmatprep.mubr.bf16.mxu0 0
      %623 = vmatmul.mubr.bf16.gmra.mxu0 %v447
      %v624 = vpop.f32.mrf.mxu0
      %v625 = vadd.f32 0.0, %v624
      %v626 = vpop.f32.mrf.mxu0
      %v627 = vpop.f32.mrf.mxu0
      %v628 = vadd.f32 0.0, %v627
      %v629 = vpop.f32.mrf.mxu0
      %630 = vmatprep.mubr.bf16.mxu0 0
      %631 = vmatmul.mubr.bf16.gmra.mxu0 %v448
      %v632 = vpop.f32.mrf.mxu0
      %v633 = vadd.f32 0.0, %v632
      %v634 = vpop.f32.mrf.mxu0
      %v635 = vpop.f32.mrf.mxu0
      %v636 = vadd.f32 0.0, %v635
      %v637 = vpop.f32.mrf.mxu0
      %638 = vmatprep.mubr.bf16.mxu0 0
      %639 = vmatmul.mubr.bf16.gmra.mxu0 %v449
      %v640 = vpop.f32.mrf.mxu0
      %v641 = vadd.f32 0.0, %v640
      %v642 = vpop.f32.mrf.mxu0
      %v643 = vpop.f32.mrf.mxu0
      %v644 = vadd.f32 0.0, %v643
      %v645 = vpop.f32.mrf.mxu0
      %646 = vmatprep.mubr.bf16.mxu0 0
      %647 = vmatmul.mubr.bf16.gmra.mxu0 %v450
      %v648 = vpop.f32.mrf.mxu0
      %v649 = vadd.f32 0.0, %v648
      %v650 = vpop.f32.mrf.mxu0
      %v651 = vpop.f32.mrf.mxu0
      %v652 = vadd.f32 0.0, %v651
      %v653 = vpop.f32.mrf.mxu0
      %654 = vmatprep.mubr.bf16.mxu0 0
      %655 = vmatmul.mubr.bf16.gmra.mxu0 %v451
      %v656 = vpop.f32.mrf.mxu0
      %v657 = vadd.f32 0.0, %v656
      %v658 = vpop.f32.mrf.mxu0
      %v659 = vpop.f32.mrf.mxu0
      %v660 = vadd.f32 0.0, %v659
      %v661 = vpop.f32.mrf.mxu0
      %662 = vmatprep.mubr.bf16.mxu0 0
      %663 = vmatmul.mubr.bf16.gmra.mxu0 %v452
      %v664 = vpop.f32.mrf.mxu0
      %v665 = vadd.f32 0.0, %v664
      %v666 = vpop.f32.mrf.mxu0
      %v667 = vpop.f32.mrf.mxu0
      %v668 = vadd.f32 0.0, %v667
      %v669 = vpop.f32.mrf.mxu0
      %670 = vmatprep.mubr.bf16.mxu0 0
      %671 = vmatmul.mubr.bf16.gmra.mxu0 %v453
      %v672 = vpop.f32.mrf.mxu0
      %v673 = vadd.f32 0.0, %v672
      %v674 = vpop.f32.mrf.mxu0
      %v675 = vpop.f32.mrf.mxu0
      %v676 = vadd.f32 0.0, %v675
      %v677 = vpop.f32.mrf.mxu0
      %678 = vdwg.mxu0
      %v679 = vadd.f32 %v326, %v553
      %v680 = vadd.f32 %v327, %v556
      %v681 = vadd.f32 %v328, %v561
      %v682 = vadd.f32 %v329, %v564
      %v683 = vadd.f32 %v330, %v569
      %v684 = vadd.f32 %v331, %v572
      %v685 = vadd.f32 %v332, %v577
      %v686 = vadd.f32 %v333, %v580
      %v687 = vadd.f32 %v334, %v585
      %v688 = vadd.f32 %v335, %v588
      %v689 = vadd.f32 %v336, %v593
      %v690 = vadd.f32 %v337, %v596
      %v691 = vadd.f32 %v338, %v601
      %v692 = vadd.f32 %v339, %v604
      %v693 = vadd.f32 %v340, %v609
      %v694 = vadd.f32 %v341, %v612
      %v695 = vadd.f32 %v342, %v617
      %v696 = vadd.f32 %v343, %v620
      %v697 = vadd.f32 %v344, %v625
      %v698 = vadd.f32 %v345, %v628
      %v699 = vadd.f32 %v346, %v633
      %v700 = vadd.f32 %v347, %v636
      %v701 = vadd.f32 %v348, %v641
      %v702 = vadd.f32 %v349, %v644
      %v703 = vadd.f32 %v350, %v649
      %v704 = vadd.f32 %v351, %v652
      %v705 = vadd.f32 %v352, %v657
      %v706 = vadd.f32 %v353, %v660
      %v707 = vadd.f32 %v354, %v665
      %v708 = vadd.f32 %v355, %v668
      %v709 = vadd.f32 %v356, %v673
      %v710 = vadd.f32 %v357, %v676
      %711 = vst [vmem:[#allocation2] sm:$0xff] %v679
      %712 = vst [vmem:[#allocation2 + $0x8] sm:$0xff] %v680
      %713 = vst [vmem:[#allocation2 + $0x10] sm:$0xff] %v681
      %714 = vst [vmem:[#allocation2 + $0x18] sm:$0xff] %v682
      %715 = vst [vmem:[#allocation2 + $0x20] sm:$0xff] %v683
      %716 = vst [vmem:[#allocation2 + $0x28] sm:$0xff] %v684
      %717 = vst [vmem:[#allocation2 + $0x30] sm:$0xff] %v685
      %718 = vst [vmem:[#allocation2 + $0x38] sm:$0xff] %v686
      %719 = vst [vmem:[#allocation2 + $0x40] sm:$0xff] %v687
      %720 = vst [vmem:[#allocation2 + $0x48] sm:$0xff] %v688
      %721 = vst [vmem:[#allocation2 + $0x50] sm:$0xff] %v689
      %722 = vst [vmem:[#allocation2 + $0x58] sm:$0xff] %v690
      %723 = vst [vmem:[#allocation2 + $0x60] sm:$0xff] %v691
      %724 = vst [vmem:[#allocation2 + $0x68] sm:$0xff] %v692
      %725 = vst [vmem:[#allocation2 + $0x70] sm:$0xff] %v693
      %726 = vst [vmem:[#allocation2 + $0x78] sm:$0xff] %v694
      %727 = vst [vmem:[#allocation2 + $0x80] sm:$0xff] %v695
      %728 = vst [vmem:[#allocation2 + $0x88] sm:$0xff] %v696
      %729 = vst [vmem:[#allocation2 + $0x90] sm:$0xff] %v697
      %730 = vst [vmem:[#allocation2 + $0x98] sm:$0xff] %v698
      %731 = vst [vmem:[#allocation2 + $0xa0] sm:$0xff] %v699
      %732 = vst [vmem:[#allocation2 + $0xa8] sm:$0xff] %v700
      %733 = vst [vmem:[#allocation2 + $0xb0] sm:$0xff] %v701
      %734 = vst [vmem:[#allocation2 + $0xb8] sm:$0xff] %v702
      %735 = vst [vmem:[#allocation2 + $0xc0] sm:$0xff] %v703
      %736 = vst [vmem:[#allocation2 + $0xc8] sm:$0xff] %v704
      %737 = vst [vmem:[#allocation2 + $0xd0] sm:$0xff] %v705
      %738 = vst [vmem:[#allocation2 + $0xd8] sm:$0xff] %v706
      %739 = vst [vmem:[#allocation2 + $0xe0] sm:$0xff] %v707
      %740 = vst [vmem:[#allocation2 + $0xe8] sm:$0xff] %v708
      %741 = vst [vmem:[#allocation2 + $0xf0] sm:$0xff] %v709
      %742 = vst [vmem:[#allocation2 + $0xf8] sm:$0xff] %v710
      %v743 = vld [vmem:[%s293] sm:$0xf]
      %v744 = vld [vmem:[%s293 + $0x4] sm:$0xf]
      %v745 = vld [vmem:[%s293 + $0x8] sm:$0x1]
      %v746 = vld [vmem:[%s293 + $0xc] sm:$0xf]
      %v747 = vld [vmem:[%s293 + $0x10] sm:$0xf]
      %v748 = vld [vmem:[%s293 + $0x14] sm:$0x1]
      %v749 = vld [vmem:[%s293 + $0x18] sm:$0xf]
      %v750 = vld [vmem:[%s293 + $0x1c] sm:$0xf]
      %v751 = vld [vmem:[%s293 + $0x20] sm:$0x1]
      %v752 = vld [vmem:[%s293 + $0x24] sm:$0xf]
      %v753 = vld [vmem:[%s293 + $0x28] sm:$0xf]
      %v754 = vld [vmem:[%s293 + $0x2c] sm:$0x1]
      %v755 = vld [vmem:[%s293 + $0x30] sm:$0xf]
      %v756 = vld [vmem:[%s293 + $0x34] sm:$0xf]
      %v757 = vld [vmem:[%s293 + $0x38] sm:$0x1]
      %v758 = vld [vmem:[%s293 + $0x3c] sm:$0xf]
      %v759 = vld [vmem:[%s293 + $0x40] sm:$0xf]
      %v760 = vld [vmem:[%s293 + $0x44] sm:$0x1]
      %v761 = vld [vmem:[%s293 + $0x48] sm:$0xf]
      %v762 = vld [vmem:[%s293 + $0x4c] sm:$0xf]
      %v763 = vld [vmem:[%s293 + $0x50] sm:$0x1]
      %v764 = vld [vmem:[%s293 + $0x54] sm:$0xf]
      %v765 = vld [vmem:[%s293 + $0x58] sm:$0xf]
      %v766 = vld [vmem:[%s293 + $0x5c] sm:$0x1]
      %v767 = vld [vmem:[%s293 + $0x60] sm:$0xf]
      %v768 = vld [vmem:[%s293 + $0x64] sm:$0xf]
      %v769 = vld [vmem:[%s293 + $0x68] sm:$0x1]
      %v770 = vld [vmem:[%s293 + $0x6c] sm:$0xf]
      %v771 = vld [vmem:[%s293 + $0x70] sm:$0xf]
      %v772 = vld [vmem:[%s293 + $0x74] sm:$0x1]
      %v773 = vld [vmem:[%s293 + $0x78] sm:$0xf]
      %v774 = vld [vmem:[%s293 + $0x7c] sm:$0xf]
      %v775 = vld [vmem:[%s293 + $0x80] sm:$0x1]
      %v776 = vld [vmem:[%s293 + $0x84] sm:$0xf]
      %v777 = vld [vmem:[%s293 + $0x88] sm:$0xf]
      %v778 = vld [vmem:[%s293 + $0x8c] sm:$0x1]
      %v779 = vld [vmem:[%s293 + $0x90] sm:$0xf]
      %v780 = vld [vmem:[%s293 + $0x94] sm:$0xf]
      %v781 = vld [vmem:[%s293 + $0x98] sm:$0x1]
      %v782 = vld [vmem:[%s293 + $0x9c] sm:$0xf]
      %v783 = vld [vmem:[%s293 + $0xa0] sm:$0xf]
      %v784 = vld [vmem:[%s293 + $0xa4] sm:$0x1]
      %v785 = vld [vmem:[%s293 + $0xa8] sm:$0xf]
      %v786 = vld [vmem:[%s293 + $0xac] sm:$0xf]
      %v787 = vld [vmem:[%s293 + $0xb0] sm:$0x1]
      %v788 = vld [vmem:[%s293 + $0xb4] sm:$0xf]
      %v789 = vld [vmem:[%s293 + $0xb8] sm:$0xf]
      %v790 = vld [vmem:[%s293 + $0xbc] sm:$0x1]
      %vm791 = vsmask.f32 3328
      %vm792 = vsmask.f32 7440
      %vm793 = vmor %vm791, %vm792
      %v795 = vshrl.u32 %v743, 16
      %v797 = vrot.slane %v795, 4
      %v798 = vshll.u32 %v743, 16
      %v800 = vrot.slane %v798, 5
      %v801 = vor.u32 %v797, %v800
      %v802 = vrot.slane %v801, 4
      %v804 = vshll.u32 %v744, 16
      %v806 = vrot.slane %v804, 5
      %v807 = vsel %vm793, %v802, %v806
      %v808 = vshrl.u32 %v744, 16
      %v810 = vrot.slane %v808, 4
      %v811 = vor.u32 %v810, %v806
      %v812 = vrot.slane %v811, 4
      %v814 = vshll.u32 %v745, 16
      %v816 = vrot.slane %v814, 5
      %v817 = vsel %vm793, %v812, %v816
      %v819 = vshrl.u32 %v746, 16
      %v821 = vrot.slane %v819, 4
      %v822 = vshll.u32 %v746, 16
      %v824 = vrot.slane %v822, 5
      %v825 = vor.u32 %v821, %v824
      %v826 = vrot.slane %v825, 4
      %v828 = vshll.u32 %v747, 16
      %v830 = vrot.slane %v828, 5
      %v831 = vsel %vm793, %v826, %v830
      %v832 = vshrl.u32 %v747, 16
      %v834 = vrot.slane %v832, 4
      %v835 = vor.u32 %v834, %v830
      %v836 = vrot.slane %v835, 4
      %v838 = vshll.u32 %v748, 16
      %v840 = vrot.slane %v838, 5
      %v841 = vsel %vm793, %v836, %v840
      %v843 = vshrl.u32 %v749, 16
      %v845 = vrot.slane %v843, 4
      %v846 = vshll.u32 %v749, 16
      %v848 = vrot.slane %v846, 5
      %v849 = vor.u32 %v845, %v848
      %v850 = vrot.slane %v849, 4
      %v852 = vshll.u32 %v750, 16
      %v854 = vrot.slane %v852, 5
      %v855 = vsel %vm793, %v850, %v854
      %v856 = vshrl.u32 %v750, 16
      %v858 = vrot.slane %v856, 4
      %v859 = vor.u32 %v858, %v854
      %v860 = vrot.slane %v859, 4
      %v862 = vshll.u32 %v751, 16
      %v864 = vrot.slane %v862, 5
      %v865 = vsel %vm793, %v860, %v864
      %v867 = vshrl.u32 %v752, 16
      %v869 = vrot.slane %v867, 4
      %v870 = vshll.u32 %v752, 16
      %v872 = vrot.slane %v870, 5
      %v873 = vor.u32 %v869, %v872
      %v874 = vrot.slane %v873, 4
      %v876 = vshll.u32 %v753, 16
      %v878 = vrot.slane %v876, 5
      %v879 = vsel %vm793, %v874, %v878
      %v880 = vshrl.u32 %v753, 16
      %v882 = vrot.slane %v880, 4
      %v883 = vor.u32 %v882, %v878
      %v884 = vrot.slane %v883, 4
      %v886 = vshll.u32 %v754, 16
      %v888 = vrot.slane %v886, 5
      %v889 = vsel %vm793, %v884, %v888
      %v891 = vshrl.u32 %v755, 16
      %v893 = vrot.slane %v891, 4
      %v894 = vshll.u32 %v755, 16
      %v896 = vrot.slane %v894, 5
      %v897 = vor.u32 %v893, %v896
      %v898 = vrot.slane %v897, 4
      %v900 = vshll.u32 %v756, 16
      %v902 = vrot.slane %v900, 5
      %v903 = vsel %vm793, %v898, %v902
      %v904 = vshrl.u32 %v756, 16
      %v906 = vrot.slane %v904, 4
      %v907 = vor.u32 %v906, %v902
      %v908 = vrot.slane %v907, 4
      %v910 = vshll.u32 %v757, 16
      %v912 = vrot.slane %v910, 5
      %v913 = vsel %vm793, %v908, %v912
      %v915 = vshrl.u32 %v758, 16
      %v917 = vrot.slane %v915, 4
      %v918 = vshll.u32 %v758, 16
      %v920 = vrot.slane %v918, 5
      %v921 = vor.u32 %v917, %v920
      %v922 = vrot.slane %v921, 4
      %v924 = vshll.u32 %v759, 16
      %v926 = vrot.slane %v924, 5
      %v927 = vsel %vm793, %v922, %v926
      %v928 = vshrl.u32 %v759, 16
      %v930 = vrot.slane %v928, 4
      %v931 = vor.u32 %v930, %v926
      %v932 = vrot.slane %v931, 4
      %v934 = vshll.u32 %v760, 16
      %v936 = vrot.slane %v934, 5
      %v937 = vsel %vm793, %v932, %v936
      %v939 = vshrl.u32 %v761, 16
      %v941 = vrot.slane %v939, 4
      %v942 = vshll.u32 %v761, 16
      %v944 = vrot.slane %v942, 5
      %v945 = vor.u32 %v941, %v944
      %v946 = vrot.slane %v945, 4
      %v948 = vshll.u32 %v762, 16
      %v950 = vrot.slane %v948, 5
      %v951 = vsel %vm793, %v946, %v950
      %v952 = vshrl.u32 %v762, 16
      %v954 = vrot.slane %v952, 4
      %v955 = vor.u32 %v954, %v950
      %v956 = vrot.slane %v955, 4
      %v958 = vshll.u32 %v763, 16
      %v960 = vrot.slane %v958, 5
      %v961 = vsel %vm793, %v956, %v960
      %v963 = vshrl.u32 %v764, 16
      %v965 = vrot.slane %v963, 4
      %v966 = vshll.u32 %v764, 16
      %v968 = vrot.slane %v966, 5
      %v969 = vor.u32 %v965, %v968
      %v970 = vrot.slane %v969, 4
      %v972 = vshll.u32 %v765, 16
      %v974 = vrot.slane %v972, 5
      %v975 = vsel %vm793, %v970, %v974
      %v976 = vshrl.u32 %v765, 16
      %v978 = vrot.slane %v976, 4
      %v979 = vor.u32 %v978, %v974
      %v980 = vrot.slane %v979, 4
      %v982 = vshll.u32 %v766, 16
      %v984 = vrot.slane %v982, 5
      %v985 = vsel %vm793, %v980, %v984
      %v987 = vshrl.u32 %v767, 16
      %v989 = vrot.slane %v987, 4
      %v990 = vshll.u32 %v767, 16
      %v992 = vrot.slane %v990, 5
      %v993 = vor.u32 %v989, %v992
      %v994 = vrot.slane %v993, 4
      %v996 = vshll.u32 %v768, 16
      %v998 = vrot.slane %v996, 5
      %v999 = vsel %vm793, %v994, %v998
      %v1000 = vshrl.u32 %v768, 16
      %v1002 = vrot.slane %v1000, 4
      %v1003 = vor.u32 %v1002, %v998
      %v1004 = vrot.slane %v1003, 4
      %v1006 = vshll.u32 %v769, 16
      %v1008 = vrot.slane %v1006, 5
      %v1009 = vsel %vm793, %v1004, %v1008
      %v1011 = vshrl.u32 %v770, 16
      %v1013 = vrot.slane %v1011, 4
      %v1014 = vshll.u32 %v770, 16
      %v1016 = vrot.slane %v1014, 5
      %v1017 = vor.u32 %v1013, %v1016
      %v1018 = vrot.slane %v1017, 4
      %v1020 = vshll.u32 %v771, 16
      %v1022 = vrot.slane %v1020, 5
      %v1023 = vsel %vm793, %v1018, %v1022
      %v1024 = vshrl.u32 %v771, 16
      %v1026 = vrot.slane %v1024, 4
      %v1027 = vor.u32 %v1026, %v1022
      %v1028 = vrot.slane %v1027, 4
      %v1030 = vshll.u32 %v772, 16
      %v1032 = vrot.slane %v1030, 5
      %v1033 = vsel %vm793, %v1028, %v1032
      %v1035 = vshrl.u32 %v773, 16
      %v1037 = vrot.slane %v1035, 4
      %v1038 = vshll.u32 %v773, 16
      %v1040 = vrot.slane %v1038, 5
      %v1041 = vor.u32 %v1037, %v1040
      %v1042 = vrot.slane %v1041, 4
      %v1044 = vshll.u32 %v774, 16
      %v1046 = vrot.slane %v1044, 5
      %v1047 = vsel %vm793, %v1042, %v1046
      %v1048 = vshrl.u32 %v774, 16
      %v1050 = vrot.slane %v1048, 4
      %v1051 = vor.u32 %v1050, %v1046
      %v1052 = vrot.slane %v1051, 4
      %v1054 = vshll.u32 %v775, 16
      %v1056 = vrot.slane %v1054, 5
      %v1057 = vsel %vm793, %v1052, %v1056
      %v1059 = vshrl.u32 %v776, 16
      %v1061 = vrot.slane %v1059, 4
      %v1062 = vshll.u32 %v776, 16
      %v1064 = vrot.slane %v1062, 5
      %v1065 = vor.u32 %v1061, %v1064
      %v1066 = vrot.slane %v1065, 4
      %v1068 = vshll.u32 %v777, 16
      %v1070 = vrot.slane %v1068, 5
      %v1071 = vsel %vm793, %v1066, %v1070
      %v1072 = vshrl.u32 %v777, 16
      %v1074 = vrot.slane %v1072, 4
      %v1075 = vor.u32 %v1074, %v1070
      %v1076 = vrot.slane %v1075, 4
      %v1078 = vshll.u32 %v778, 16
      %v1080 = vrot.slane %v1078, 5
      %v1081 = vsel %vm793, %v1076, %v1080
      %v1083 = vshrl.u32 %v779, 16
      %v1085 = vrot.slane %v1083, 4
      %v1086 = vshll.u32 %v779, 16
      %v1088 = vrot.slane %v1086, 5
      %v1089 = vor.u32 %v1085, %v1088
      %v1090 = vrot.slane %v1089, 4
      %v1092 = vshll.u32 %v780, 16
      %v1094 = vrot.slane %v1092, 5
      %v1095 = vsel %vm793, %v1090, %v1094
      %v1096 = vshrl.u32 %v780, 16
      %v1098 = vrot.slane %v1096, 4
      %v1099 = vor.u32 %v1098, %v1094
      %v1100 = vrot.slane %v1099, 4
      %v1102 = vshll.u32 %v781, 16
      %v1104 = vrot.slane %v1102, 5
      %v1105 = vsel %vm793, %v1100, %v1104
      %v1107 = vshrl.u32 %v782, 16
      %v1109 = vrot.slane %v1107, 4
      %v1110 = vshll.u32 %v782, 16
      %v1112 = vrot.slane %v1110, 5
      %v1113 = vor.u32 %v1109, %v1112
      %v1114 = vrot.slane %v1113, 4
      %v1116 = vshll.u32 %v783, 16
      %v1118 = vrot.slane %v1116, 5
      %v1119 = vsel %vm793, %v1114, %v1118
      %v1120 = vshrl.u32 %v783, 16
      %v1122 = vrot.slane %v1120, 4
      %v1123 = vor.u32 %v1122, %v1118
      %v1124 = vrot.slane %v1123, 4
      %v1126 = vshll.u32 %v784, 16
      %v1128 = vrot.slane %v1126, 5
      %v1129 = vsel %vm793, %v1124, %v1128
      %v1131 = vshrl.u32 %v785, 16
      %v1133 = vrot.slane %v1131, 4
      %v1134 = vshll.u32 %v785, 16
      %v1136 = vrot.slane %v1134, 5
      %v1137 = vor.u32 %v1133, %v1136
      %v1138 = vrot.slane %v1137, 4
      %v1140 = vshll.u32 %v786, 16
      %v1142 = vrot.slane %v1140, 5
      %v1143 = vsel %vm793, %v1138, %v1142
      %v1144 = vshrl.u32 %v786, 16
      %v1146 = vrot.slane %v1144, 4
      %v1147 = vor.u32 %v1146, %v1142
      %v1148 = vrot.slane %v1147, 4
      %v1150 = vshll.u32 %v787, 16
      %v1152 = vrot.slane %v1150, 5
      %v1153 = vsel %vm793, %v1148, %v1152
      %v1155 = vshrl.u32 %v788, 16
      %v1157 = vrot.slane %v1155, 4
      %v1158 = vshll.u32 %v788, 16
      %v1160 = vrot.slane %v1158, 5
      %v1161 = vor.u32 %v1157, %v1160
      %v1162 = vrot.slane %v1161, 4
      %v1164 = vshll.u32 %v789, 16
      %v1166 = vrot.slane %v1164, 5
      %v1167 = vsel %vm793, %v1162, %v1166
      %v1168 = vshrl.u32 %v789, 16
      %v1170 = vrot.slane %v1168, 4
      %v1171 = vor.u32 %v1170, %v1166
      %v1172 = vrot.slane %v1171, 4
      %v1174 = vshll.u32 %v790, 16
      %v1176 = vrot.slane %v1174, 5
      %v1177 = vsel %vm793, %v1172, %v1176
      %v1178 = vld [vmem:[#allocation2] sm:$0xff]
      %v1179 = vld [vmem:[#allocation2 + $0x8] sm:$0xff]
      %v1180 = vld [vmem:[#allocation2 + $0x10] sm:$0xff]
      %v1181 = vld [vmem:[#allocation2 + $0x18] sm:$0xff]
      %v1182 = vld [vmem:[#allocation2 + $0x20] sm:$0xff]
      %v1183 = vld [vmem:[#allocation2 + $0x28] sm:$0xff]
      %v1184 = vld [vmem:[#allocation2 + $0x30] sm:$0xff]
      %v1185 = vld [vmem:[#allocation2 + $0x38] sm:$0xff]
      %v1186 = vld [vmem:[#allocation2 + $0x40] sm:$0xff]
      %v1187 = vld [vmem:[#allocation2 + $0x48] sm:$0xff]
      %v1188 = vld [vmem:[#allocation2 + $0x50] sm:$0xff]
      %v1189 = vld [vmem:[#allocation2 + $0x58] sm:$0xff]
      %v1190 = vld [vmem:[#allocation2 + $0x60] sm:$0xff]
      %v1191 = vld [vmem:[#allocation2 + $0x68] sm:$0xff]
      %v1192 = vld [vmem:[#allocation2 + $0x70] sm:$0xff]
      %v1193 = vld [vmem:[#allocation2 + $0x78] sm:$0xff]
      %v1194 = vld [vmem:[#allocation2 + $0x80] sm:$0xff]
      %v1195 = vld [vmem:[#allocation2 + $0x88] sm:$0xff]
      %v1196 = vld [vmem:[#allocation2 + $0x90] sm:$0xff]
      %v1197 = vld [vmem:[#allocation2 + $0x98] sm:$0xff]
      %v1198 = vld [vmem:[#allocation2 + $0xa0] sm:$0xff]
      %v1199 = vld [vmem:[#allocation2 + $0xa8] sm:$0xff]
      %v1200 = vld [vmem:[#allocation2 + $0xb0] sm:$0xff]
      %v1201 = vld [vmem:[#allocation2 + $0xb8] sm:$0xff]
      %v1202 = vld [vmem:[#allocation2 + $0xc0] sm:$0xff]
      %v1203 = vld [vmem:[#allocation2 + $0xc8] sm:$0xff]
      %v1204 = vld [vmem:[#allocation2 + $0xd0] sm:$0xff]
      %v1205 = vld [vmem:[#allocation2 + $0xd8] sm:$0xff]
      %v1206 = vld [vmem:[#allocation2 + $0xe0] sm:$0xff]
      %v1207 = vld [vmem:[#allocation2 + $0xe8] sm:$0xff]
      %v1208 = vld [vmem:[#allocation2 + $0xf0] sm:$0xff]
      %v1209 = vld [vmem:[#allocation2 + $0xf8] sm:$0xff]
      %s1210 = scalar_lea.vmem %s1, 64
      %v1211 = vld [vmem:[%s1210] sm:$0xf]
      %v1212 = vld [vmem:[%s1210 + $0x4] sm:$0xf]
      %v1213 = vld [vmem:[%s1210 + $0x8] sm:$0xf]
      %v1214 = vld [vmem:[%s1210 + $0xc] sm:$0xf]
      %v1215 = vld [vmem:[%s1210 + $0x10] sm:$0xf]
      %v1216 = vld [vmem:[%s1210 + $0x14] sm:$0xf]
      %v1217 = vld [vmem:[%s1210 + $0x18] sm:$0xf]
      %v1218 = vld [vmem:[%s1210 + $0x1c] sm:$0xf]
      %v1219 = vld [vmem:[%s1210 + $0x20] sm:$0xf]
      %v1220 = vld [vmem:[%s1210 + $0x24] sm:$0xf]
      %v1221 = vld [vmem:[%s1210 + $0x28] sm:$0xf]
      %v1222 = vld [vmem:[%s1210 + $0x2c] sm:$0xf]
      %v1223 = vld [vmem:[%s1210 + $0x30] sm:$0xf]
      %v1224 = vld [vmem:[%s1210 + $0x34] sm:$0xf]
      %v1225 = vld [vmem:[%s1210 + $0x38] sm:$0xf]
      %v1226 = vld [vmem:[%s1210 + $0x3c] sm:$0xf]
      %v1227 = vunpack.c.l.b16 %v807
      %v1228 = vunpack.c.l.b16 %v817
      %v1229 = vunpack.c.l.b16 %v831
      %v1230 = vunpack.c.l.b16 %v841
      %v1231 = vunpack.c.l.b16 %v855
      %v1232 = vunpack.c.l.b16 %v865
      %v1233 = vunpack.c.l.b16 %v879
      %v1234 = vunpack.c.l.b16 %v889
      %v1235 = vunpack.c.l.b16 %v903
      %v1236 = vunpack.c.l.b16 %v913
      %v1237 = vunpack.c.l.b16 %v927
      %v1238 = vunpack.c.l.b16 %v937
      %v1239 = vunpack.c.l.b16 %v951
      %v1240 = vunpack.c.l.b16 %v961
      %v1241 = vunpack.c.l.b16 %v975
      %v1242 = vunpack.c.l.b16 %v985
      %v1243 = vunpack.c.l.b16 %v999
      %v1244 = vunpack.c.l.b16 %v1009
      %v1245 = vunpack.c.l.b16 %v1023
      %v1246 = vunpack.c.l.b16 %v1033
      %v1247 = vunpack.c.l.b16 %v1047
      %v1248 = vunpack.c.l.b16 %v1057
      %v1249 = vunpack.c.l.b16 %v1071
      %v1250 = vunpack.c.l.b16 %v1081
      %v1251 = vunpack.c.l.b16 %v1095
      %v1252 = vunpack.c.l.b16 %v1105
      %v1253 = vunpack.c.l.b16 %v1119
      %v1254 = vunpack.c.l.b16 %v1129
      %v1255 = vunpack.c.l.b16 %v1143
      %v1256 = vunpack.c.l.b16 %v1153
      %v1257 = vunpack.c.l.b16 %v1167
      %v1258 = vunpack.c.l.b16 %v1177
      %v1259 = vpack.c.b16 %v1228, %v1227
      %v1260 = vpack.c.b16 %v1230, %v1229
      %v1261 = vpack.c.b16 %v1232, %v1231
      %v1262 = vpack.c.b16 %v1234, %v1233
      %v1263 = vpack.c.b16 %v1236, %v1235
      %v1264 = vpack.c.b16 %v1238, %v1237
      %v1265 = vpack.c.b16 %v1240, %v1239
      %v1266 = vpack.c.b16 %v1242, %v1241
      %v1267 = vpack.c.b16 %v1244, %v1243
      %v1268 = vpack.c.b16 %v1246, %v1245
      %v1269 = vpack.c.b16 %v1248, %v1247
      %v1270 = vpack.c.b16 %v1250, %v1249
      %v1271 = vpack.c.b16 %v1252, %v1251
      %v1272 = vpack.c.b16 %v1254, %v1253
      %v1273 = vpack.c.b16 %v1256, %v1255
      %v1274 = vpack.c.b16 %v1258, %v1257
      %v1307 = vunpack.c.l.b16 %v1211
      %v1308 = vunpack.c.l.b16 %v1212
      %v1309 = vunpack.c.l.b16 %v1213
      %v1310 = vunpack.c.l.b16 %v1214
      %v1311 = vunpack.c.l.b16 %v1215
      %v1312 = vunpack.c.l.b16 %v1216
      %v1313 = vunpack.c.l.b16 %v1217
      %v1314 = vunpack.c.l.b16 %v1218
      %v1315 = vunpack.c.l.b16 %v1219
      %v1316 = vunpack.c.l.b16 %v1220
      %v1317 = vunpack.c.l.b16 %v1221
      %v1318 = vunpack.c.l.b16 %v1222
      %v1319 = vunpack.c.l.b16 %v1223
      %v1320 = vunpack.c.l.b16 %v1224
      %v1321 = vunpack.c.l.b16 %v1225
      %v1322 = vunpack.c.l.b16 %v1226
      %v1323 = vpack.c.b16 %v1308, %v1307
      %v1324 = vpack.c.b16 %v1310, %v1309
      %v1325 = vpack.c.b16 %v1312, %v1311
      %v1326 = vpack.c.b16 %v1314, %v1313
      %v1327 = vpack.c.b16 %v1316, %v1315
      %v1328 = vpack.c.b16 %v1318, %v1317
      %v1329 = vpack.c.b16 %v1320, %v1319
      %v1330 = vpack.c.b16 %v1322, %v1321
      %1339 = vmatprep.subr.bf16.mxu0 0
      %1340 = vmatpush1.bf16.msra.mxu0 %v1330
      %1341 = vmatprep.subr.bf16.mxu0 0
      %1342 = vmatpush1.bf16.msra.mxu0 %v1329
      %1343 = vmatprep.subr.bf16.mxu0 0
      %1344 = vmatpush1.bf16.msra.mxu0 %v1328
      %1345 = vmatprep.subr.bf16.mxu0 0
      %1346 = vmatpush1.bf16.msra.mxu0 %v1327
      %1347 = vmatprep.subr.bf16.mxu0 0
      %1348 = vmatpush1.bf16.msra.mxu0 %v1326
      %1349 = vmatprep.subr.bf16.mxu0 0
      %1350 = vmatpush1.bf16.msra.mxu0 %v1325
      %1351 = vmatprep.subr.bf16.mxu0 0
      %1352 = vmatpush1.bf16.msra.mxu0 %v1324
      %1353 = vmatprep.subr.bf16.mxu0 0
      %1354 = vmatpush1.bf16.msra.mxu0 %v1323
      %1355 = vmatprep.subr.bf16.mxu0 0
      %1356 = vmatpush2.bf16.msra.mxu0 0
      %1357 = vmatprep.subr.bf16.mxu0 0
      %1358 = vmatpush2.bf16.msra.mxu0 0
      %1359 = vmatprep.subr.bf16.mxu0 0
      %1360 = vmatpush2.bf16.msra.mxu0 0
      %1361 = vmatprep.subr.bf16.mxu0 0
      %1362 = vmatpush2.bf16.msra.mxu0 0
      %1363 = vmatprep.subr.bf16.mxu0 0
      %1364 = vmatpush2.bf16.msra.mxu0 0
      %1365 = vmatprep.subr.bf16.mxu0 0
      %1366 = vmatpush2.bf16.msra.mxu0 0
      %1367 = vmatprep.subr.bf16.mxu0 0
      %1368 = vmatpush2.bf16.msra.mxu0 0
      %1369 = vmatprep.subr.bf16.mxu0 0
      %1370 = vmatpush2.bf16.msra.mxu0 0
      %1371 = vmatprep.mubr.bf16.mxu0 0
      %1372 = vmatmul.mubr.bf16.gmra.mxu0 %v1259
      %v1373 = vpop.f32.mrf.mxu0
      %v1374 = vadd.f32 0.0, %v1373
      %v1375 = vpop.f32.mrf.mxu0
      %v1376 = vpop.f32.mrf.mxu0
      %v1377 = vadd.f32 0.0, %v1376
      %v1378 = vpop.f32.mrf.mxu0
      %1379 = vmatprep.mubr.bf16.mxu0 0
      %1380 = vmatmul.mubr.bf16.gmra.mxu0 %v1260
      %v1381 = vpop.f32.mrf.mxu0
      %v1382 = vadd.f32 0.0, %v1381
      %v1383 = vpop.f32.mrf.mxu0
      %v1384 = vpop.f32.mrf.mxu0
      %v1385 = vadd.f32 0.0, %v1384
      %v1386 = vpop.f32.mrf.mxu0
      %1387 = vmatprep.mubr.bf16.mxu0 0
      %1388 = vmatmul.mubr.bf16.gmra.mxu0 %v1261
      %v1389 = vpop.f32.mrf.mxu0
      %v1390 = vadd.f32 0.0, %v1389
      %v1391 = vpop.f32.mrf.mxu0
      %v1392 = vpop.f32.mrf.mxu0
      %v1393 = vadd.f32 0.0, %v1392
      %v1394 = vpop.f32.mrf.mxu0
      %1395 = vmatprep.mubr.bf16.mxu0 0
      %1396 = vmatmul.mubr.bf16.gmra.mxu0 %v1262
      %v1397 = vpop.f32.mrf.mxu0
      %v1398 = vadd.f32 0.0, %v1397
      %v1399 = vpop.f32.mrf.mxu0
      %v1400 = vpop.f32.mrf.mxu0
      %v1401 = vadd.f32 0.0, %v1400
      %v1402 = vpop.f32.mrf.mxu0
      %1403 = vmatprep.mubr.bf16.mxu0 0
      %1404 = vmatmul.mubr.bf16.gmra.mxu0 %v1263
      %v1405 = vpop.f32.mrf.mxu0
      %v1406 = vadd.f32 0.0, %v1405
      %v1407 = vpop.f32.mrf.mxu0
      %v1408 = vpop.f32.mrf.mxu0
      %v1409 = vadd.f32 0.0, %v1408
      %v1410 = vpop.f32.mrf.mxu0
      %1411 = vmatprep.mubr.bf16.mxu0 0
      %1412 = vmatmul.mubr.bf16.gmra.mxu0 %v1264
      %v1413 = vpop.f32.mrf.mxu0
      %v1414 = vadd.f32 0.0, %v1413
      %v1415 = vpop.f32.mrf.mxu0
      %v1416 = vpop.f32.mrf.mxu0
      %v1417 = vadd.f32 0.0, %v1416
      %v1418 = vpop.f32.mrf.mxu0
      %1419 = vmatprep.mubr.bf16.mxu0 0
      %1420 = vmatmul.mubr.bf16.gmra.mxu0 %v1265
      %v1421 = vpop.f32.mrf.mxu0
      %v1422 = vadd.f32 0.0, %v1421
      %v1423 = vpop.f32.mrf.mxu0
      %v1424 = vpop.f32.mrf.mxu0
      %v1425 = vadd.f32 0.0, %v1424
      %v1426 = vpop.f32.mrf.mxu0
      %1427 = vmatprep.mubr.bf16.mxu0 0
      %1428 = vmatmul.mubr.bf16.gmra.mxu0 %v1266
      %v1429 = vpop.f32.mrf.mxu0
      %v1430 = vadd.f32 0.0, %v1429
      %v1431 = vpop.f32.mrf.mxu0
      %v1432 = vpop.f32.mrf.mxu0
      %v1433 = vadd.f32 0.0, %v1432
      %v1434 = vpop.f32.mrf.mxu0
      %1435 = vmatprep.mubr.bf16.mxu0 0
      %1436 = vmatmul.mubr.bf16.gmra.mxu0 %v1267
      %v1437 = vpop.f32.mrf.mxu0
      %v1438 = vadd.f32 0.0, %v1437
      %v1439 = vpop.f32.mrf.mxu0
      %v1440 = vpop.f32.mrf.mxu0
      %v1441 = vadd.f32 0.0, %v1440
      %v1442 = vpop.f32.mrf.mxu0
      %1443 = vmatprep.mubr.bf16.mxu0 0
      %1444 = vmatmul.mubr.bf16.gmra.mxu0 %v1268
      %v1445 = vpop.f32.mrf.mxu0
      %v1446 = vadd.f32 0.0, %v1445
      %v1447 = vpop.f32.mrf.mxu0
      %v1448 = vpop.f32.mrf.mxu0
      %v1449 = vadd.f32 0.0, %v1448
      %v1450 = vpop.f32.mrf.mxu0
      %1451 = vmatprep.mubr.bf16.mxu0 0
      %1452 = vmatmul.mubr.bf16.gmra.mxu0 %v1269
      %v1453 = vpop.f32.mrf.mxu0
      %v1454 = vadd.f32 0.0, %v1453
      %v1455 = vpop.f32.mrf.mxu0
      %v1456 = vpop.f32.mrf.mxu0
      %v1457 = vadd.f32 0.0, %v1456
      %v1458 = vpop.f32.mrf.mxu0
      %1459 = vmatprep.mubr.bf16.mxu0 0
      %1460 = vmatmul.mubr.bf16.gmra.mxu0 %v1270
      %v1461 = vpop.f32.mrf.mxu0
      %v1462 = vadd.f32 0.0, %v1461
      %v1463 = vpop.f32.mrf.mxu0
      %v1464 = vpop.f32.mrf.mxu0
      %v1465 = vadd.f32 0.0, %v1464
      %v1466 = vpop.f32.mrf.mxu0
      %1467 = vmatprep.mubr.bf16.mxu0 0
      %1468 = vmatmul.mubr.bf16.gmra.mxu0 %v1271
      %v1469 = vpop.f32.mrf.mxu0
      %v1470 = vadd.f32 0.0, %v1469
      %v1471 = vpop.f32.mrf.mxu0
      %v1472 = vpop.f32.mrf.mxu0
      %v1473 = vadd.f32 0.0, %v1472
      %v1474 = vpop.f32.mrf.mxu0
      %1475 = vmatprep.mubr.bf16.mxu0 0
      %1476 = vmatmul.mubr.bf16.gmra.mxu0 %v1272
      %v1477 = vpop.f32.mrf.mxu0
      %v1478 = vadd.f32 0.0, %v1477
      %v1479 = vpop.f32.mrf.mxu0
      %v1480 = vpop.f32.mrf.mxu0
      %v1481 = vadd.f32 0.0, %v1480
      %v1482 = vpop.f32.mrf.mxu0
      %1483 = vmatprep.mubr.bf16.mxu0 0
      %1484 = vmatmul.mubr.bf16.gmra.mxu0 %v1273
      %v1485 = vpop.f32.mrf.mxu0
      %v1486 = vadd.f32 0.0, %v1485
      %v1487 = vpop.f32.mrf.mxu0
      %v1488 = vpop.f32.mrf.mxu0
      %v1489 = vadd.f32 0.0, %v1488
      %v1490 = vpop.f32.mrf.mxu0
      %1491 = vmatprep.mubr.bf16.mxu0 0
      %1492 = vmatmul.mubr.bf16.gmra.mxu0 %v1274
      %v1493 = vpop.f32.mrf.mxu0
      %v1494 = vadd.f32 0.0, %v1493
      %v1495 = vpop.f32.mrf.mxu0
      %v1496 = vpop.f32.mrf.mxu0
      %v1497 = vadd.f32 0.0, %v1496
      %v1498 = vpop.f32.mrf.mxu0
      %1499 = vdwg.mxu0
      %v1500 = vadd.f32 %v1178, %v1374
      %v1501 = vadd.f32 %v1179, %v1377
      %v1502 = vadd.f32 %v1180, %v1382
      %v1503 = vadd.f32 %v1181, %v1385
      %v1504 = vadd.f32 %v1182, %v1390
      %v1505 = vadd.f32 %v1183, %v1393
      %v1506 = vadd.f32 %v1184, %v1398
      %v1507 = vadd.f32 %v1185, %v1401
      %v1508 = vadd.f32 %v1186, %v1406
      %v1509 = vadd.f32 %v1187, %v1409
      %v1510 = vadd.f32 %v1188, %v1414
      %v1511 = vadd.f32 %v1189, %v1417
      %v1512 = vadd.f32 %v1190, %v1422
      %v1513 = vadd.f32 %v1191, %v1425
      %v1514 = vadd.f32 %v1192, %v1430
      %v1515 = vadd.f32 %v1193, %v1433
      %v1516 = vadd.f32 %v1194, %v1438
      %v1517 = vadd.f32 %v1195, %v1441
      %v1518 = vadd.f32 %v1196, %v1446
      %v1519 = vadd.f32 %v1197, %v1449
      %v1520 = vadd.f32 %v1198, %v1454
      %v1521 = vadd.f32 %v1199, %v1457
      %v1522 = vadd.f32 %v1200, %v1462
      %v1523 = vadd.f32 %v1201, %v1465
      %v1524 = vadd.f32 %v1202, %v1470
      %v1525 = vadd.f32 %v1203, %v1473
      %v1526 = vadd.f32 %v1204, %v1478
      %v1527 = vadd.f32 %v1205, %v1481
      %v1528 = vadd.f32 %v1206, %v1486
      %v1529 = vadd.f32 %v1207, %v1489
      %v1530 = vadd.f32 %v1208, %v1494
      %v1531 = vadd.f32 %v1209, %v1497
      %1532 = vst [vmem:[#allocation2] sm:$0xff] %v1500
      %1533 = vst [vmem:[#allocation2 + $0x8] sm:$0xff] %v1501
      %1534 = vst [vmem:[#allocation2 + $0x10] sm:$0xff] %v1502
      %1535 = vst [vmem:[#allocation2 + $0x18] sm:$0xff] %v1503
      %1536 = vst [vmem:[#allocation2 + $0x20] sm:$0xff] %v1504
      %1537 = vst [vmem:[#allocation2 + $0x28] sm:$0xff] %v1505
      %1538 = vst [vmem:[#allocation2 + $0x30] sm:$0xff] %v1506
      %1539 = vst [vmem:[#allocation2 + $0x38] sm:$0xff] %v1507
      %1540 = vst [vmem:[#allocation2 + $0x40] sm:$0xff] %v1508
      %1541 = vst [vmem:[#allocation2 + $0x48] sm:$0xff] %v1509
      %1542 = vst [vmem:[#allocation2 + $0x50] sm:$0xff] %v1510
      %1543 = vst [vmem:[#allocation2 + $0x58] sm:$0xff] %v1511
      %1544 = vst [vmem:[#allocation2 + $0x60] sm:$0xff] %v1512
      %1545 = vst [vmem:[#allocation2 + $0x68] sm:$0xff] %v1513
      %1546 = vst [vmem:[#allocation2 + $0x70] sm:$0xff] %v1514
      %1547 = vst [vmem:[#allocation2 + $0x78] sm:$0xff] %v1515
      %1548 = vst [vmem:[#allocation2 + $0x80] sm:$0xff] %v1516
      %1549 = vst [vmem:[#allocation2 + $0x88] sm:$0xff] %v1517
      %1550 = vst [vmem:[#allocation2 + $0x90] sm:$0xff] %v1518
      %1551 = vst [vmem:[#allocation2 + $0x98] sm:$0xff] %v1519
      %1552 = vst [vmem:[#allocation2 + $0xa0] sm:$0xff] %v1520
      %1553 = vst [vmem:[#allocation2 + $0xa8] sm:$0xff] %v1521
      %1554 = vst [vmem:[#allocation2 + $0xb0] sm:$0xff] %v1522
      %1555 = vst [vmem:[#allocation2 + $0xb8] sm:$0xff] %v1523
      %1556 = vst [vmem:[#allocation2 + $0xc0] sm:$0xff] %v1524
      %1557 = vst [vmem:[#allocation2 + $0xc8] sm:$0xff] %v1525
      %1558 = vst [vmem:[#allocation2 + $0xd0] sm:$0xff] %v1526
      %1559 = vst [vmem:[#allocation2 + $0xd8] sm:$0xff] %v1527
      %1560 = vst [vmem:[#allocation2 + $0xe0] sm:$0xff] %v1528
      %1561 = vst [vmem:[#allocation2 + $0xe8] sm:$0xff] %v1529
      %1562 = vst [vmem:[#allocation2 + $0xf0] sm:$0xff] %v1530
      %1563 = vst [vmem:[#allocation2 + $0xf8] sm:$0xff] %v1531
      %v1564 = vld [vmem:[%s293] sm:$0xe]
      %v1565 = vld [vmem:[%s293 + $0x4] sm:$0xf]
      %v1566 = vld [vmem:[%s293 + $0x8] sm:$0x1]
      %v1567 = vld [vmem:[%s293 + $0xc] sm:$0xe]
      %v1568 = vld [vmem:[%s293 + $0x10] sm:$0xf]
      %v1569 = vld [vmem:[%s293 + $0x14] sm:$0x1]
      %v1570 = vld [vmem:[%s293 + $0x18] sm:$0xe]
      %v1571 = vld [vmem:[%s293 + $0x1c] sm:$0xf]
      %v1572 = vld [vmem:[%s293 + $0x20] sm:$0x1]
      %v1573 = vld [vmem:[%s293 + $0x24] sm:$0xe]
      %v1574 = vld [vmem:[%s293 + $0x28] sm:$0xf]
      %v1575 = vld [vmem:[%s293 + $0x2c] sm:$0x1]
      %v1576 = vld [vmem:[%s293 + $0x30] sm:$0xe]
      %v1577 = vld [vmem:[%s293 + $0x34] sm:$0xf]
      %v1578 = vld [vmem:[%s293 + $0x38] sm:$0x1]
      %v1579 = vld [vmem:[%s293 + $0x3c] sm:$0xe]
      %v1580 = vld [vmem:[%s293 + $0x40] sm:$0xf]
      %v1581 = vld [vmem:[%s293 + $0x44] sm:$0x1]
      %v1582 = vld [vmem:[%s293 + $0x48] sm:$0xe]
      %v1583 = vld [vmem:[%s293 + $0x4c] sm:$0xf]
      %v1584 = vld [vmem:[%s293 + $0x50] sm:$0x1]
      %v1585 = vld [vmem:[%s293 + $0x54] sm:$0xe]
      %v1586 = vld [vmem:[%s293 + $0x58] sm:$0xf]
      %v1587 = vld [vmem:[%s293 + $0x5c] sm:$0x1]
      %v1588 = vld [vmem:[%s293 + $0x60] sm:$0xe]
      %v1589 = vld [vmem:[%s293 + $0x64] sm:$0xf]
      %v1590 = vld [vmem:[%s293 + $0x68] sm:$0x1]
      %v1591 = vld [vmem:[%s293 + $0x6c] sm:$0xe]
      %v1592 = vld [vmem:[%s293 + $0x70] sm:$0xf]
      %v1593 = vld [vmem:[%s293 + $0x74] sm:$0x1]
      %v1594 = vld [vmem:[%s293 + $0x78] sm:$0xe]
      %v1595 = vld [vmem:[%s293 + $0x7c] sm:$0xf]
      %v1596 = vld [vmem:[%s293 + $0x80] sm:$0x1]
      %v1597 = vld [vmem:[%s293 + $0x84] sm:$0xe]
      %v1598 = vld [vmem:[%s293 + $0x88] sm:$0xf]
      %v1599 = vld [vmem:[%s293 + $0x8c] sm:$0x1]
      %v1600 = vld [vmem:[%s293 + $0x90] sm:$0xe]
      %v1601 = vld [vmem:[%s293 + $0x94] sm:$0xf]
      %v1602 = vld [vmem:[%s293 + $0x98] sm:$0x1]
      %v1603 = vld [vmem:[%s293 + $0x9c] sm:$0xe]
      %v1604 = vld [vmem:[%s293 + $0xa0] sm:$0xf]
      %v1605 = vld [vmem:[%s293 + $0xa4] sm:$0x1]
      %v1606 = vld [vmem:[%s293 + $0xa8] sm:$0xe]
      %v1607 = vld [vmem:[%s293 + $0xac] sm:$0xf]
      %v1608 = vld [vmem:[%s293 + $0xb0] sm:$0x1]
      %v1609 = vld [vmem:[%s293 + $0xb4] sm:$0xe]
      %v1610 = vld [vmem:[%s293 + $0xb8] sm:$0xf]
      %v1611 = vld [vmem:[%s293 + $0xbc] sm:$0x1]
      %vm1660 = vcmask 1042432
      %vm1661 = vcmask 1046532
      %vm1662 = vmor %vm1660, %vm1661
      %v1663 = vrot.slane %v1564, 5
      %v1664 = vrot.slane %v1663, 4
      %v1665 = vrot.slane %v1565, 5
      %v1666 = vsel %vm1662, %v1664, %v1665
      %v1667 = vrot.slane %v1665, 4
      %v1668 = vrot.slane %v1566, 5
      %v1669 = vsel %vm1662, %v1667, %v1668
      %v1670 = vrot.slane %v1567, 5
      %v1671 = vrot.slane %v1670, 4
      %v1672 = vrot.slane %v1568, 5
      %v1673 = vsel %vm1662, %v1671, %v1672
      %v1674 = vrot.slane %v1672, 4
      %v1675 = vrot.slane %v1569, 5
      %v1676 = vsel %vm1662, %v1674, %v1675
      %v1677 = vrot.slane %v1570, 5
      %v1678 = vrot.slane %v1677, 4
      %v1679 = vrot.slane %v1571, 5
      %v1680 = vsel %vm1662, %v1678, %v1679
      %v1681 = vrot.slane %v1679, 4
      %v1682 = vrot.slane %v1572, 5
      %v1683 = vsel %vm1662, %v1681, %v1682
      %v1684 = vrot.slane %v1573, 5
      %v1685 = vrot.slane %v1684, 4
      %v1686 = vrot.slane %v1574, 5
      %v1687 = vsel %vm1662, %v1685, %v1686
      %v1688 = vrot.slane %v1686, 4
      %v1689 = vrot.slane %v1575, 5
      %v1690 = vsel %vm1662, %v1688, %v1689
      %v1691 = vrot.slane %v1576, 5
      %v1692 = vrot.slane %v1691, 4
      %v1693 = vrot.slane %v1577, 5
      %v1694 = vsel %vm1662, %v1692, %v1693
      %v1695 = vrot.slane %v1693, 4
      %v1696 = vrot.slane %v1578, 5
      %v1697 = vsel %vm1662, %v1695, %v1696
      %v1698 = vrot.slane %v1579, 5
      %v1699 = vrot.slane %v1698, 4
      %v1700 = vrot.slane %v1580, 5
      %v1701 = vsel %vm1662, %v1699, %v1700
      %v1702 = vrot.slane %v1700, 4
      %v1703 = vrot.slane %v1581, 5
      %v1704 = vsel %vm1662, %v1702, %v1703
      %v1705 = vrot.slane %v1582, 5
      %v1706 = vrot.slane %v1705, 4
      %v1707 = vrot.slane %v1583, 5
      %v1708 = vsel %vm1662, %v1706, %v1707
      %v1709 = vrot.slane %v1707, 4
      %v1710 = vrot.slane %v1584, 5
      %v1711 = vsel %vm1662, %v1709, %v1710
      %v1712 = vrot.slane %v1585, 5
      %v1713 = vrot.slane %v1712, 4
      %v1714 = vrot.slane %v1586, 5
      %v1715 = vsel %vm1662, %v1713, %v1714
      %v1716 = vrot.slane %v1714, 4
      %v1717 = vrot.slane %v1587, 5
      %v1718 = vsel %vm1662, %v1716, %v1717
      %v1719 = vrot.slane %v1588, 5
      %v1720 = vrot.slane %v1719, 4
      %v1721 = vrot.slane %v1589, 5
      %v1722 = vsel %vm1662, %v1720, %v1721
      %v1723 = vrot.slane %v1721, 4
      %v1724 = vrot.slane %v1590, 5
      %v1725 = vsel %vm1662, %v1723, %v1724
      %v1726 = vrot.slane %v1591, 5
      %v1727 = vrot.slane %v1726, 4
      %v1728 = vrot.slane %v1592, 5
      %v1729 = vsel %vm1662, %v1727, %v1728
      %v1730 = vrot.slane %v1728, 4
      %v1731 = vrot.slane %v1593, 5
      %v1732 = vsel %vm1662, %v1730, %v1731
      %v1733 = vrot.slane %v1594, 5
      %v1734 = vrot.slane %v1733, 4
      %v1735 = vrot.slane %v1595, 5
      %v1736 = vsel %vm1662, %v1734, %v1735
      %v1737 = vrot.slane %v1735, 4
      %v1738 = vrot.slane %v1596, 5
      %v1739 = vsel %vm1662, %v1737, %v1738
      %v1740 = vrot.slane %v1597, 5
      %v1741 = vrot.slane %v1740, 4
      %v1742 = vrot.slane %v1598, 5
      %v1743 = vsel %vm1662, %v1741, %v1742
      %v1744 = vrot.slane %v1742, 4
      %v1745 = vrot.slane %v1599, 5
      %v1746 = vsel %vm1662, %v1744, %v1745
      %v1747 = vrot.slane %v1600, 5
      %v1748 = vrot.slane %v1747, 4
      %v1749 = vrot.slane %v1601, 5
      %v1750 = vsel %vm1662, %v1748, %v1749
      %v1751 = vrot.slane %v1749, 4
      %v1752 = vrot.slane %v1602, 5
      %v1753 = vsel %vm1662, %v1751, %v1752
      %v1754 = vrot.slane %v1603, 5
      %v1755 = vrot.slane %v1754, 4
      %v1756 = vrot.slane %v1604, 5
      %v1757 = vsel %vm1662, %v1755, %v1756
      %v1758 = vrot.slane %v1756, 4
      %v1759 = vrot.slane %v1605, 5
      %v1760 = vsel %vm1662, %v1758, %v1759
      %v1761 = vrot.slane %v1606, 5
      %v1762 = vrot.slane %v1761, 4
      %v1763 = vrot.slane %v1607, 5
      %v1764 = vsel %vm1662, %v1762, %v1763
      %v1765 = vrot.slane %v1763, 4
      %v1766 = vrot.slane %v1608, 5
      %v1767 = vsel %vm1662, %v1765, %v1766
      %v1768 = vrot.slane %v1609, 5
      %v1769 = vrot.slane %v1768, 4
      %v1770 = vrot.slane %v1610, 5
      %v1771 = vsel %vm1662, %v1769, %v1770
      %v1772 = vrot.slane %v1770, 4
      %v1773 = vrot.slane %v1611, 5
      %v1774 = vsel %vm1662, %v1772, %v1773
      %v1775 = vld [vmem:[#allocation2] sm:$0xff]
      %v1776 = vld [vmem:[#allocation2 + $0x8] sm:$0xff]
      %v1777 = vld [vmem:[#allocation2 + $0x10] sm:$0xff]
      %v1778 = vld [vmem:[#allocation2 + $0x18] sm:$0xff]
      %v1779 = vld [vmem:[#allocation2 + $0x20] sm:$0xff]
      %v1780 = vld [vmem:[#allocation2 + $0x28] sm:$0xff]
      %v1781 = vld [vmem:[#allocation2 + $0x30] sm:$0xff]
      %v1782 = vld [vmem:[#allocation2 + $0x38] sm:$0xff]
      %v1783 = vld [vmem:[#allocation2 + $0x40] sm:$0xff]
      %v1784 = vld [vmem:[#allocation2 + $0x48] sm:$0xff]
      %v1785 = vld [vmem:[#allocation2 + $0x50] sm:$0xff]
      %v1786 = vld [vmem:[#allocation2 + $0x58] sm:$0xff]
      %v1787 = vld [vmem:[#allocation2 + $0x60] sm:$0xff]
      %v1788 = vld [vmem:[#allocation2 + $0x68] sm:$0xff]
      %v1789 = vld [vmem:[#allocation2 + $0x70] sm:$0xff]
      %v1790 = vld [vmem:[#allocation2 + $0x78] sm:$0xff]
      %v1791 = vld [vmem:[#allocation2 + $0x80] sm:$0xff]
      %v1792 = vld [vmem:[#allocation2 + $0x88] sm:$0xff]
      %v1793 = vld [vmem:[#allocation2 + $0x90] sm:$0xff]
      %v1794 = vld [vmem:[#allocation2 + $0x98] sm:$0xff]
      %v1795 = vld [vmem:[#allocation2 + $0xa0] sm:$0xff]
      %v1796 = vld [vmem:[#allocation2 + $0xa8] sm:$0xff]
      %v1797 = vld [vmem:[#allocation2 + $0xb0] sm:$0xff]
      %v1798 = vld [vmem:[#allocation2 + $0xb8] sm:$0xff]
      %v1799 = vld [vmem:[#allocation2 + $0xc0] sm:$0xff]
      %v1800 = vld [vmem:[#allocation2 + $0xc8] sm:$0xff]
      %v1801 = vld [vmem:[#allocation2 + $0xd0] sm:$0xff]
      %v1802 = vld [vmem:[#allocation2 + $0xd8] sm:$0xff]
      %v1803 = vld [vmem:[#allocation2 + $0xe0] sm:$0xff]
      %v1804 = vld [vmem:[#allocation2 + $0xe8] sm:$0xff]
      %v1805 = vld [vmem:[#allocation2 + $0xf0] sm:$0xff]
      %v1806 = vld [vmem:[#allocation2 + $0xf8] sm:$0xff]
      %s1807 = scalar_lea.vmem %s1, 128
      %v1808 = vld [vmem:[%s1807] sm:$0xf]
      %v1809 = vld [vmem:[%s1807 + $0x4] sm:$0xf]
      %v1810 = vld [vmem:[%s1807 + $0x8] sm:$0xf]
      %v1811 = vld [vmem:[%s1807 + $0xc] sm:$0xf]
      %v1812 = vld [vmem:[%s1807 + $0x10] sm:$0xf]
      %v1813 = vld [vmem:[%s1807 + $0x14] sm:$0xf]
      %v1814 = vld [vmem:[%s1807 + $0x18] sm:$0xf]
      %v1815 = vld [vmem:[%s1807 + $0x1c] sm:$0xf]
      %v1816 = vld [vmem:[%s1807 + $0x20] sm:$0xf]
      %v1817 = vld [vmem:[%s1807 + $0x24] sm:$0xf]
      %v1818 = vld [vmem:[%s1807 + $0x28] sm:$0xf]
      %v1819 = vld [vmem:[%s1807 + $0x2c] sm:$0xf]
      %v1820 = vld [vmem:[%s1807 + $0x30] sm:$0xf]
      %v1821 = vld [vmem:[%s1807 + $0x34] sm:$0xf]
      %v1822 = vld [vmem:[%s1807 + $0x38] sm:$0xf]
      %v1823 = vld [vmem:[%s1807 + $0x3c] sm:$0xf]
      %v1824 = vunpack.c.l.b16 %v1666
      %v1825 = vunpack.c.l.b16 %v1669
      %v1826 = vunpack.c.l.b16 %v1673
      %v1827 = vunpack.c.l.b16 %v1676
      %v1828 = vunpack.c.l.b16 %v1680
      %v1829 = vunpack.c.l.b16 %v1683
      %v1830 = vunpack.c.l.b16 %v1687
      %v1831 = vunpack.c.l.b16 %v1690
      %v1832 = vunpack.c.l.b16 %v1694
      %v1833 = vunpack.c.l.b16 %v1697
      %v1834 = vunpack.c.l.b16 %v1701
      %v1835 = vunpack.c.l.b16 %v1704
      %v1836 = vunpack.c.l.b16 %v1708
      %v1837 = vunpack.c.l.b16 %v1711
      %v1838 = vunpack.c.l.b16 %v1715
      %v1839 = vunpack.c.l.b16 %v1718
      %v1840 = vunpack.c.l.b16 %v1722
      %v1841 = vunpack.c.l.b16 %v1725
      %v1842 = vunpack.c.l.b16 %v1729
      %v1843 = vunpack.c.l.b16 %v1732
      %v1844 = vunpack.c.l.b16 %v1736
      %v1845 = vunpack.c.l.b16 %v1739
      %v1846 = vunpack.c.l.b16 %v1743
      %v1847 = vunpack.c.l.b16 %v1746
      %v1848 = vunpack.c.l.b16 %v1750
      %v1849 = vunpack.c.l.b16 %v1753
      %v1850 = vunpack.c.l.b16 %v1757
      %v1851 = vunpack.c.l.b16 %v1760
      %v1852 = vunpack.c.l.b16 %v1764
      %v1853 = vunpack.c.l.b16 %v1767
      %v1854 = vunpack.c.l.b16 %v1771
      %v1855 = vunpack.c.l.b16 %v1774
      %v1856 = vpack.c.b16 %v1825, %v1824
      %v1857 = vpack.c.b16 %v1827, %v1826
      %v1858 = vpack.c.b16 %v1829, %v1828
      %v1859 = vpack.c.b16 %v1831, %v1830
      %v1860 = vpack.c.b16 %v1833, %v1832
      %v1861 = vpack.c.b16 %v1835, %v1834
      %v1862 = vpack.c.b16 %v1837, %v1836
      %v1863 = vpack.c.b16 %v1839, %v1838
      %v1864 = vpack.c.b16 %v1841, %v1840
      %v1865 = vpack.c.b16 %v1843, %v1842
      %v1866 = vpack.c.b16 %v1845, %v1844
      %v1867 = vpack.c.b16 %v1847, %v1846
      %v1868 = vpack.c.b16 %v1849, %v1848
      %v1869 = vpack.c.b16 %v1851, %v1850
      %v1870 = vpack.c.b16 %v1853, %v1852
      %v1871 = vpack.c.b16 %v1855, %v1854
      %v1904 = vunpack.c.l.b16 %v1808
      %v1905 = vunpack.c.l.b16 %v1809
      %v1906 = vunpack.c.l.b16 %v1810
      %v1907 = vunpack.c.l.b16 %v1811
      %v1908 = vunpack.c.l.b16 %v1812
      %v1909 = vunpack.c.l.b16 %v1813
      %v1910 = vunpack.c.l.b16 %v1814
      %v1911 = vunpack.c.l.b16 %v1815
      %v1912 = vunpack.c.l.b16 %v1816
      %v1913 = vunpack.c.l.b16 %v1817
      %v1914 = vunpack.c.l.b16 %v1818
      %v1915 = vunpack.c.l.b16 %v1819
      %v1916 = vunpack.c.l.b16 %v1820
      %v1917 = vunpack.c.l.b16 %v1821
      %v1918 = vunpack.c.l.b16 %v1822
      %v1919 = vunpack.c.l.b16 %v1823
      %v1920 = vpack.c.b16 %v1905, %v1904
      %v1921 = vpack.c.b16 %v1907, %v1906
      %v1922 = vpack.c.b16 %v1909, %v1908
      %v1923 = vpack.c.b16 %v1911, %v1910
      %v1924 = vpack.c.b16 %v1913, %v1912
      %v1925 = vpack.c.b16 %v1915, %v1914
      %v1926 = vpack.c.b16 %v1917, %v1916
      %v1927 = vpack.c.b16 %v1919, %v1918
      %1936 = vmatprep.subr.bf16.mxu0 0
      %1937 = vmatpush1.bf16.msra.mxu0 %v1927
      %1938 = vmatprep.subr.bf16.mxu0 0
      %1939 = vmatpush1.bf16.msra.mxu0 %v1926
      %1940 = vmatprep.subr.bf16.mxu0 0
      %1941 = vmatpush1.bf16.msra.mxu0 %v1925
      %1942 = vmatprep.subr.bf16.mxu0 0
      %1943 = vmatpush1.bf16.msra.mxu0 %v1924
      %1944 = vmatprep.subr.bf16.mxu0 0
      %1945 = vmatpush1.bf16.msra.mxu0 %v1923
      %1946 = vmatprep.subr.bf16.mxu0 0
      %1947 = vmatpush1.bf16.msra.mxu0 %v1922
      %1948 = vmatprep.subr.bf16.mxu0 0
      %1949 = vmatpush1.bf16.msra.mxu0 %v1921
      %1950 = vmatprep.subr.bf16.mxu0 0
      %1951 = vmatpush1.bf16.msra.mxu0 %v1920
      %1952 = vmatprep.subr.bf16.mxu0 0
      %1953 = vmatpush2.bf16.msra.mxu0 0
      %1954 = vmatprep.subr.bf16.mxu0 0
      %1955 = vmatpush2.bf16.msra.mxu0 0
      %1956 = vmatprep.subr.bf16.mxu0 0
      %1957 = vmatpush2.bf16.msra.mxu0 0
      %1958 = vmatprep.subr.bf16.mxu0 0
      %1959 = vmatpush2.bf16.msra.mxu0 0
      %1960 = vmatprep.subr.bf16.mxu0 0
      %1961 = vmatpush2.bf16.msra.mxu0 0
      %1962 = vmatprep.subr.bf16.mxu0 0
      %1963 = vmatpush2.bf16.msra.mxu0 0
      %1964 = vmatprep.subr.bf16.mxu0 0
      %1965 = vmatpush2.bf16.msra.mxu0 0
      %1966 = vmatprep.subr.bf16.mxu0 0
      %1967 = vmatpush2.bf16.msra.mxu0 0
      %1968 = vmatprep.mubr.bf16.mxu0 0
      %1969 = vmatmul.mubr.bf16.gmra.mxu0 %v1856
      %v1970 = vpop.f32.mrf.mxu0
      %v1971 = vadd.f32 0.0, %v1970
      %v1972 = vpop.f32.mrf.mxu0
      %v1973 = vpop.f32.mrf.mxu0
      %v1974 = vadd.f32 0.0, %v1973
      %v1975 = vpop.f32.mrf.mxu0
      %1976 = vmatprep.mubr.bf16.mxu0 0
      %1977 = vmatmul.mubr.bf16.gmra.mxu0 %v1857
      %v1978 = vpop.f32.mrf.mxu0
      %v1979 = vadd.f32 0.0, %v1978
      %v1980 = vpop.f32.mrf.mxu0
      %v1981 = vpop.f32.mrf.mxu0
      %v1982 = vadd.f32 0.0, %v1981
      %v1983 = vpop.f32.mrf.mxu0
      %1984 = vmatprep.mubr.bf16.mxu0 0
      %1985 = vmatmul.mubr.bf16.gmra.mxu0 %v1858
      %v1986 = vpop.f32.mrf.mxu0
      %v1987 = vadd.f32 0.0, %v1986
      %v1988 = vpop.f32.mrf.mxu0
      %v1989 = vpop.f32.mrf.mxu0
      %v1990 = vadd.f32 0.0, %v1989
      %v1991 = vpop.f32.mrf.mxu0
      %1992 = vmatprep.mubr.bf16.mxu0 0
      %1993 = vmatmul.mubr.bf16.gmra.mxu0 %v1859
      %v1994 = vpop.f32.mrf.mxu0
      %v1995 = vadd.f32 0.0, %v1994
      %v1996 = vpop.f32.mrf.mxu0
      %v1997 = vpop.f32.mrf.mxu0
      %v1998 = vadd.f32 0.0, %v1997
      %v1999 = vpop.f32.mrf.mxu0
      %2000 = vmatprep.mubr.bf16.mxu0 0
      %2001 = vmatmul.mubr.bf16.gmra.mxu0 %v1860
      %v2002 = vpop.f32.mrf.mxu0
      %v2003 = vadd.f32 0.0, %v2002
      %v2004 = vpop.f32.mrf.mxu0
      %v2005 = vpop.f32.mrf.mxu0
      %v2006 = vadd.f32 0.0, %v2005
      %v2007 = vpop.f32.mrf.mxu0
      %2008 = vmatprep.mubr.bf16.mxu0 0
      %2009 = vmatmul.mubr.bf16.gmra.mxu0 %v1861
      %v2010 = vpop.f32.mrf.mxu0
      %v2011 = vadd.f32 0.0, %v2010
      %v2012 = vpop.f32.mrf.mxu0
      %v2013 = vpop.f32.mrf.mxu0
      %v2014 = vadd.f32 0.0, %v2013
      %v2015 = vpop.f32.mrf.mxu0
      %2016 = vmatprep.mubr.bf16.mxu0 0
      %2017 = vmatmul.mubr.bf16.gmra.mxu0 %v1862
      %v2018 = vpop.f32.mrf.mxu0
      %v2019 = vadd.f32 0.0, %v2018
      %v2020 = vpop.f32.mrf.mxu0
      %v2021 = vpop.f32.mrf.mxu0
      %v2022 = vadd.f32 0.0, %v2021
      %v2023 = vpop.f32.mrf.mxu0
      %2024 = vmatprep.mubr.bf16.mxu0 0
      %2025 = vmatmul.mubr.bf16.gmra.mxu0 %v1863
      %v2026 = vpop.f32.mrf.mxu0
      %v2027 = vadd.f32 0.0, %v2026
      %v2028 = vpop.f32.mrf.mxu0
      %v2029 = vpop.f32.mrf.mxu0
      %v2030 = vadd.f32 0.0, %v2029
      %v2031 = vpop.f32.mrf.mxu0
      %2032 = vmatprep.mubr.bf16.mxu0 0
      %2033 = vmatmul.mubr.bf16.gmra.mxu0 %v1864
      %v2034 = vpop.f32.mrf.mxu0
      %v2035 = vadd.f32 0.0, %v2034
      %v2036 = vpop.f32.mrf.mxu0
      %v2037 = vpop.f32.mrf.mxu0
      %v2038 = vadd.f32 0.0, %v2037
      %v2039 = vpop.f32.mrf.mxu0
      %2040 = vmatprep.mubr.bf16.mxu0 0
      %2041 = vmatmul.mubr.bf16.gmra.mxu0 %v1865
      %v2042 = vpop.f32.mrf.mxu0
      %v2043 = vadd.f32 0.0, %v2042
      %v2044 = vpop.f32.mrf.mxu0
      %v2045 = vpop.f32.mrf.mxu0
      %v2046 = vadd.f32 0.0, %v2045
      %v2047 = vpop.f32.mrf.mxu0
      %2048 = vmatprep.mubr.bf16.mxu0 0
      %2049 = vmatmul.mubr.bf16.gmra.mxu0 %v1866
      %v2050 = vpop.f32.mrf.mxu0
      %v2051 = vadd.f32 0.0, %v2050
      %v2052 = vpop.f32.mrf.mxu0
      %v2053 = vpop.f32.mrf.mxu0
      %v2054 = vadd.f32 0.0, %v2053
      %v2055 = vpop.f32.mrf.mxu0
      %2056 = vmatprep.mubr.bf16.mxu0 0
      %2057 = vmatmul.mubr.bf16.gmra.mxu0 %v1867
      %v2058 = vpop.f32.mrf.mxu0
      %v2059 = vadd.f32 0.0, %v2058
      %v2060 = vpop.f32.mrf.mxu0
      %v2061 = vpop.f32.mrf.mxu0
      %v2062 = vadd.f32 0.0, %v2061
      %v2063 = vpop.f32.mrf.mxu0
      %2064 = vmatprep.mubr.bf16.mxu0 0
      %2065 = vmatmul.mubr.bf16.gmra.mxu0 %v1868
      %v2066 = vpop.f32.mrf.mxu0
      %v2067 = vadd.f32 0.0, %v2066
      %v2068 = vpop.f32.mrf.mxu0
      %v2069 = vpop.f32.mrf.mxu0
      %v2070 = vadd.f32 0.0, %v2069
      %v2071 = vpop.f32.mrf.mxu0
      %2072 = vmatprep.mubr.bf16.mxu0 0
      %2073 = vmatmul.mubr.bf16.gmra.mxu0 %v1869
      %v2074 = vpop.f32.mrf.mxu0
      %v2075 = vadd.f32 0.0, %v2074
      %v2076 = vpop.f32.mrf.mxu0
      %v2077 = vpop.f32.mrf.mxu0
      %v2078 = vadd.f32 0.0, %v2077
      %v2079 = vpop.f32.mrf.mxu0
      %2080 = vmatprep.mubr.bf16.mxu0 0
      %2081 = vmatmul.mubr.bf16.gmra.mxu0 %v1870
      %v2082 = vpop.f32.mrf.mxu0
      %v2083 = vadd.f32 0.0, %v2082
      %v2084 = vpop.f32.mrf.mxu0
      %v2085 = vpop.f32.mrf.mxu0
      %v2086 = vadd.f32 0.0, %v2085
      %v2087 = vpop.f32.mrf.mxu0
      %2088 = vmatprep.mubr.bf16.mxu0 0
      %2089 = vmatmul.mubr.bf16.gmra.mxu0 %v1871
      %v2090 = vpop.f32.mrf.mxu0
      %v2091 = vadd.f32 0.0, %v2090
      %v2092 = vpop.f32.mrf.mxu0
      %v2093 = vpop.f32.mrf.mxu0
      %v2094 = vadd.f32 0.0, %v2093
      %v2095 = vpop.f32.mrf.mxu0
      %2096 = vdwg.mxu0
      %v2097 = vadd.f32 %v1775, %v1971
      %v2098 = vadd.f32 %v1776, %v1974
      %v2099 = vadd.f32 %v1777, %v1979
      %v2100 = vadd.f32 %v1778, %v1982
      %v2101 = vadd.f32 %v1779, %v1987
      %v2102 = vadd.f32 %v1780, %v1990
      %v2103 = vadd.f32 %v1781, %v1995
      %v2104 = vadd.f32 %v1782, %v1998
      %v2105 = vadd.f32 %v1783, %v2003
      %v2106 = vadd.f32 %v1784, %v2006
      %v2107 = vadd.f32 %v1785, %v2011
      %v2108 = vadd.f32 %v1786, %v2014
      %v2109 = vadd.f32 %v1787, %v2019
      %v2110 = vadd.f32 %v1788, %v2022
      %v2111 = vadd.f32 %v1789, %v2027
      %v2112 = vadd.f32 %v1790, %v2030
      %v2113 = vadd.f32 %v1791, %v2035
      %v2114 = vadd.f32 %v1792, %v2038
      %v2115 = vadd.f32 %v1793, %v2043
      %v2116 = vadd.f32 %v1794, %v2046
      %v2117 = vadd.f32 %v1795, %v2051
      %v2118 = vadd.f32 %v1796, %v2054
      %v2119 = vadd.f32 %v1797, %v2059
      %v2120 = vadd.f32 %v1798, %v2062
      %v2121 = vadd.f32 %v1799, %v2067
      %v2122 = vadd.f32 %v1800, %v2070
      %v2123 = vadd.f32 %v1801, %v2075
      %v2124 = vadd.f32 %v1802, %v2078
      %v2125 = vadd.f32 %v1803, %v2083
      %v2126 = vadd.f32 %v1804, %v2086
      %v2127 = vadd.f32 %v1805, %v2091
      %v2128 = vadd.f32 %v1806, %v2094
      %2129 = vst [vmem:[#allocation2] sm:$0xff] %v2097
      %2130 = vst [vmem:[#allocation2 + $0x8] sm:$0xff] %v2098
      %2131 = vst [vmem:[#allocation2 + $0x10] sm:$0xff] %v2099
      %2132 = vst [vmem:[#allocation2 + $0x18] sm:$0xff] %v2100
      %2133 = vst [vmem:[#allocation2 + $0x20] sm:$0xff] %v2101
      %2134 = vst [vmem:[#allocation2 + $0x28] sm:$0xff] %v2102
      %2135 = vst [vmem:[#allocation2 + $0x30] sm:$0xff] %v2103
      %2136 = vst [vmem:[#allocation2 + $0x38] sm:$0xff] %v2104
      %2137 = vst [vmem:[#allocation2 + $0x40] sm:$0xff] %v2105
      %2138 = vst [vmem:[#allocation2 + $0x48] sm:$0xff] %v2106
      %2139 = vst [vmem:[#allocation2 + $0x50] sm:$0xff] %v2107
      %2140 = vst [vmem:[#allocation2 + $0x58] sm:$0xff] %v2108
      %2141 = vst [vmem:[#allocation2 + $0x60] sm:$0xff] %v2109
      %2142 = vst [vmem:[#allocation2 + $0x68] sm:$0xff] %v2110
      %2143 = vst [vmem:[#allocation2 + $0x70] sm:$0xff] %v2111
      %2144 = vst [vmem:[#allocation2 + $0x78] sm:$0xff] %v2112
      %2145 = vst [vmem:[#allocation2 + $0x80] sm:$0xff] %v2113
      %2146 = vst [vmem:[#allocation2 + $0x88] sm:$0xff] %v2114
      %2147 = vst [vmem:[#allocation2 + $0x90] sm:$0xff] %v2115
      %2148 = vst [vmem:[#allocation2 + $0x98] sm:$0xff] %v2116
      %2149 = vst [vmem:[#allocation2 + $0xa0] sm:$0xff] %v2117
      %2150 = vst [vmem:[#allocation2 + $0xa8] sm:$0xff] %v2118
      %2151 = vst [vmem:[#allocation2 + $0xb0] sm:$0xff] %v2119
      %2152 = vst [vmem:[#allocation2 + $0xb8] sm:$0xff] %v2120
      %2153 = vst [vmem:[#allocation2 + $0xc0] sm:$0xff] %v2121
      %2154 = vst [vmem:[#allocation2 + $0xc8] sm:$0xff] %v2122
      %2155 = vst [vmem:[#allocation2 + $0xd0] sm:$0xff] %v2123
      %2156 = vst [vmem:[#allocation2 + $0xd8] sm:$0xff] %v2124
      %2157 = vst [vmem:[#allocation2 + $0xe0] sm:$0xff] %v2125
      %2158 = vst [vmem:[#allocation2 + $0xe8] sm:$0xff] %v2126
      %2159 = vst [vmem:[#allocation2 + $0xf0] sm:$0xff] %v2127
      %2160 = vst [vmem:[#allocation2 + $0xf8] sm:$0xff] %v2128
      %s2161 = sadd.s32 %s258, 1
      %s2162 = smul.u32 %s2161, 3
      %s2163 = smul.addr %s2162, 4
      %s2164 = scalar_lea.vmem %s236, %s2163
      %v2165 = vld [vmem:[%s2164] sm:$0xf]
      %v2166 = vld [vmem:[%s2164 + $0x4] sm:$0xf]
      %v2167 = vld [vmem:[%s2164 + $0xc] sm:$0xf]
      %v2168 = vld [vmem:[%s2164 + $0x10] sm:$0xf]
      %v2169 = vld [vmem:[%s2164 + $0x18] sm:$0xf]
      %v2170 = vld [vmem:[%s2164 + $0x1c] sm:$0xf]
      %v2171 = vld [vmem:[%s2164 + $0x24] sm:$0xf]
      %v2172 = vld [vmem:[%s2164 + $0x28] sm:$0xf]
      %v2173 = vld [vmem:[%s2164 + $0x30] sm:$0xf]
      %v2174 = vld [vmem:[%s2164 + $0x34] sm:$0xf]
      %v2175 = vld [vmem:[%s2164 + $0x3c] sm:$0xf]
      %v2176 = vld [vmem:[%s2164 + $0x40] sm:$0xf]
      %v2177 = vld [vmem:[%s2164 + $0x48] sm:$0xf]
      %v2178 = vld [vmem:[%s2164 + $0x4c] sm:$0xf]
      %v2179 = vld [vmem:[%s2164 + $0x54] sm:$0xf]
      %v2180 = vld [vmem:[%s2164 + $0x58] sm:$0xf]
      %v2181 = vld [vmem:[%s2164 + $0x60] sm:$0xf]
      %v2182 = vld [vmem:[%s2164 + $0x64] sm:$0xf]
      %v2183 = vld [vmem:[%s2164 + $0x6c] sm:$0xf]
      %v2184 = vld [vmem:[%s2164 + $0x70] sm:$0xf]
      %v2185 = vld [vmem:[%s2164 + $0x78] sm:$0xf]
      %v2186 = vld [vmem:[%s2164 + $0x7c] sm:$0xf]
      %v2187 = vld [vmem:[%s2164 + $0x84] sm:$0xf]
      %v2188 = vld [vmem:[%s2164 + $0x88] sm:$0xf]
      %v2189 = vld [vmem:[%s2164 + $0x90] sm:$0xf]
      %v2190 = vld [vmem:[%s2164 + $0x94] sm:$0xf]
      %v2191 = vld [vmem:[%s2164 + $0x9c] sm:$0xf]
      %v2192 = vld [vmem:[%s2164 + $0xa0] sm:$0xf]
      %v2193 = vld [vmem:[%s2164 + $0xa8] sm:$0xf]
      %v2194 = vld [vmem:[%s2164 + $0xac] sm:$0xf]
      %v2195 = vld [vmem:[%s2164 + $0xb4] sm:$0xf]
      %v2196 = vld [vmem:[%s2164 + $0xb8] sm:$0xf]
      %v2197 = vld [vmem:[#allocation2] sm:$0xff]
      %v2198 = vld [vmem:[#allocation2 + $0x8] sm:$0xff]
      %v2199 = vld [vmem:[#allocation2 + $0x10] sm:$0xff]
      %v2200 = vld [vmem:[#allocation2 + $0x18] sm:$0xff]
      %v2201 = vld [vmem:[#allocation2 + $0x20] sm:$0xff]
      %v2202 = vld [vmem:[#allocation2 + $0x28] sm:$0xff]
      %v2203 = vld [vmem:[#allocation2 + $0x30] sm:$0xff]
      %v2204 = vld [vmem:[#allocation2 + $0x38] sm:$0xff]
      %v2205 = vld [vmem:[#allocation2 + $0x40] sm:$0xff]
      %v2206 = vld [vmem:[#allocation2 + $0x48] sm:$0xff]
      %v2207 = vld [vmem:[#allocation2 + $0x50] sm:$0xff]
      %v2208 = vld [vmem:[#allocation2 + $0x58] sm:$0xff]
      %v2209 = vld [vmem:[#allocation2 + $0x60] sm:$0xff]
      %v2210 = vld [vmem:[#allocation2 + $0x68] sm:$0xff]
      %v2211 = vld [vmem:[#allocation2 + $0x70] sm:$0xff]
      %v2212 = vld [vmem:[#allocation2 + $0x78] sm:$0xff]
      %v2213 = vld [vmem:[#allocation2 + $0x80] sm:$0xff]
      %v2214 = vld [vmem:[#allocation2 + $0x88] sm:$0xff]
      %v2215 = vld [vmem:[#allocation2 + $0x90] sm:$0xff]
      %v2216 = vld [vmem:[#allocation2 + $0x98] sm:$0xff]
      %v2217 = vld [vmem:[#allocation2 + $0xa0] sm:$0xff]
      %v2218 = vld [vmem:[#allocation2 + $0xa8] sm:$0xff]
      %v2219 = vld [vmem:[#allocation2 + $0xb0] sm:$0xff]
      %v2220 = vld [vmem:[#allocation2 + $0xb8] sm:$0xff]
      %v2221 = vld [vmem:[#allocation2 + $0xc0] sm:$0xff]
      %v2222 = vld [vmem:[#allocation2 + $0xc8] sm:$0xff]
      %v2223 = vld [vmem:[#allocation2 + $0xd0] sm:$0xff]
      %v2224 = vld [vmem:[#allocation2 + $0xd8] sm:$0xff]
      %v2225 = vld [vmem:[#allocation2 + $0xe0] sm:$0xff]
      %v2226 = vld [vmem:[#allocation2 + $0xe8] sm:$0xff]
      %v2227 = vld [vmem:[#allocation2 + $0xf0] sm:$0xff]
      %v2228 = vld [vmem:[#allocation2 + $0xf8] sm:$0xff]
      %s2229 = scalar_lea.vmem %s1, 192
      %v2230 = vld [vmem:[%s2229] sm:$0xf]
      %v2231 = vld [vmem:[%s2229 + $0x4] sm:$0xf]
      %v2232 = vld [vmem:[%s2229 + $0x8] sm:$0xf]
      %v2233 = vld [vmem:[%s2229 + $0xc] sm:$0xf]
      %v2234 = vld [vmem:[%s2229 + $0x10] sm:$0xf]
      %v2235 = vld [vmem:[%s2229 + $0x14] sm:$0xf]
      %v2236 = vld [vmem:[%s2229 + $0x18] sm:$0xf]
      %v2237 = vld [vmem:[%s2229 + $0x1c] sm:$0xf]
      %v2238 = vld [vmem:[%s2229 + $0x20] sm:$0xf]
      %v2239 = vld [vmem:[%s2229 + $0x24] sm:$0xf]
      %v2240 = vld [vmem:[%s2229 + $0x28] sm:$0xf]
      %v2241 = vld [vmem:[%s2229 + $0x2c] sm:$0xf]
      %v2242 = vld [vmem:[%s2229 + $0x30] sm:$0xf]
      %v2243 = vld [vmem:[%s2229 + $0x34] sm:$0xf]
      %v2244 = vld [vmem:[%s2229 + $0x38] sm:$0xf]
      %v2245 = vld [vmem:[%s2229 + $0x3c] sm:$0xf]
      %v2278 = vunpack.c.l.b16 %v2165
      %v2279 = vunpack.c.l.b16 %v2166
      %v2280 = vunpack.c.l.b16 %v2167
      %v2281 = vunpack.c.l.b16 %v2168
      %v2282 = vunpack.c.l.b16 %v2169
      %v2283 = vunpack.c.l.b16 %v2170
      %v2284 = vunpack.c.l.b16 %v2171
      %v2285 = vunpack.c.l.b16 %v2172
      %v2286 = vunpack.c.l.b16 %v2173
      %v2287 = vunpack.c.l.b16 %v2174
      %v2288 = vunpack.c.l.b16 %v2175
      %v2289 = vunpack.c.l.b16 %v2176
      %v2290 = vunpack.c.l.b16 %v2177
      %v2291 = vunpack.c.l.b16 %v2178
      %v2292 = vunpack.c.l.b16 %v2179
      %v2293 = vunpack.c.l.b16 %v2180
      %v2294 = vunpack.c.l.b16 %v2181
      %v2295 = vunpack.c.l.b16 %v2182
      %v2296 = vunpack.c.l.b16 %v2183
      %v2297 = vunpack.c.l.b16 %v2184
      %v2298 = vunpack.c.l.b16 %v2185
      %v2299 = vunpack.c.l.b16 %v2186
      %v2300 = vunpack.c.l.b16 %v2187
      %v2301 = vunpack.c.l.b16 %v2188
      %v2302 = vunpack.c.l.b16 %v2189
      %v2303 = vunpack.c.l.b16 %v2190
      %v2304 = vunpack.c.l.b16 %v2191
      %v2305 = vunpack.c.l.b16 %v2192
      %v2306 = vunpack.c.l.b16 %v2193
      %v2307 = vunpack.c.l.b16 %v2194
      %v2308 = vunpack.c.l.b16 %v2195
      %v2309 = vunpack.c.l.b16 %v2196
      %v2310 = vpack.c.b16 %v2279, %v2278
      %v2311 = vpack.c.b16 %v2281, %v2280
      %v2312 = vpack.c.b16 %v2283, %v2282
      %v2313 = vpack.c.b16 %v2285, %v2284
      %v2314 = vpack.c.b16 %v2287, %v2286
      %v2315 = vpack.c.b16 %v2289, %v2288
      %v2316 = vpack.c.b16 %v2291, %v2290
      %v2317 = vpack.c.b16 %v2293, %v2292
      %v2318 = vpack.c.b16 %v2295, %v2294
      %v2319 = vpack.c.b16 %v2297, %v2296
      %v2320 = vpack.c.b16 %v2299, %v2298
      %v2321 = vpack.c.b16 %v2301, %v2300
      %v2322 = vpack.c.b16 %v2303, %v2302
      %v2323 = vpack.c.b16 %v2305, %v2304
      %v2324 = vpack.c.b16 %v2307, %v2306
      %v2325 = vpack.c.b16 %v2309, %v2308
      %v2358 = vunpack.c.l.b16 %v2230
      %v2359 = vunpack.c.l.b16 %v2231
      %v2360 = vunpack.c.l.b16 %v2232
      %v2361 = vunpack.c.l.b16 %v2233
      %v2362 = vunpack.c.l.b16 %v2234
      %v2363 = vunpack.c.l.b16 %v2235
      %v2364 = vunpack.c.l.b16 %v2236
      %v2365 = vunpack.c.l.b16 %v2237
      %v2366 = vunpack.c.l.b16 %v2238
      %v2367 = vunpack.c.l.b16 %v2239
      %v2368 = vunpack.c.l.b16 %v2240
      %v2369 = vunpack.c.l.b16 %v2241
      %v2370 = vunpack.c.l.b16 %v2242
      %v2371 = vunpack.c.l.b16 %v2243
      %v2372 = vunpack.c.l.b16 %v2244
      %v2373 = vunpack.c.l.b16 %v2245
      %v2374 = vpack.c.b16 %v2359, %v2358
      %v2375 = vpack.c.b16 %v2361, %v2360
      %v2376 = vpack.c.b16 %v2363, %v2362
      %v2377 = vpack.c.b16 %v2365, %v2364
      %v2378 = vpack.c.b16 %v2367, %v2366
      %v2379 = vpack.c.b16 %v2369, %v2368
      %v2380 = vpack.c.b16 %v2371, %v2370
      %v2381 = vpack.c.b16 %v2373, %v2372
      %2390 = vmatprep.subr.bf16.mxu0 0
      %2391 = vmatpush1.bf16.msra.mxu0 %v2381
      %2392 = vmatprep.subr.bf16.mxu0 0
      %2393 = vmatpush1.bf16.msra.mxu0 %v2380
      %2394 = vmatprep.subr.bf16.mxu0 0
      %2395 = vmatpush1.bf16.msra.mxu0 %v2379
      %2396 = vmatprep.subr.bf16.mxu0 0
      %2397 = vmatpush1.bf16.msra.mxu0 %v2378
      %2398 = vmatprep.subr.bf16.mxu0 0
      %2399 = vmatpush1.bf16.msra.mxu0 %v2377
      %2400 = vmatprep.subr.bf16.mxu0 0
      %2401 = vmatpush1.bf16.msra.mxu0 %v2376
      %2402 = vmatprep.subr.bf16.mxu0 0
      %2403 = vmatpush1.bf16.msra.mxu0 %v2375
      %2404 = vmatprep.subr.bf16.mxu0 0
      %2405 = vmatpush1.bf16.msra.mxu0 %v2374
      %2406 = vmatprep.subr.bf16.mxu0 0
      %2407 = vmatpush2.bf16.msra.mxu0 0
      %2408 = vmatprep.subr.bf16.mxu0 0
      %2409 = vmatpush2.bf16.msra.mxu0 0
      %2410 = vmatprep.subr.bf16.mxu0 0
      %2411 = vmatpush2.bf16.msra.mxu0 0
      %2412 = vmatprep.subr.bf16.mxu0 0
      %2413 = vmatpush2.bf16.msra.mxu0 0
      %2414 = vmatprep.subr.bf16.mxu0 0
      %2415 = vmatpush2.bf16.msra.mxu0 0
      %2416 = vmatprep.subr.bf16.mxu0 0
      %2417 = vmatpush2.bf16.msra.mxu0 0
      %2418 = vmatprep.subr.bf16.mxu0 0
      %2419 = vmatpush2.bf16.msra.mxu0 0
      %2420 = vmatprep.subr.bf16.mxu0 0
      %2421 = vmatpush2.bf16.msra.mxu0 0
      %2422 = vmatprep.mubr.bf16.mxu0 0
      %2423 = vmatmul.mubr.bf16.gmra.mxu0 %v2310
      %v2424 = vpop.f32.mrf.mxu0
      %v2425 = vadd.f32 0.0, %v2424
      %v2426 = vpop.f32.mrf.mxu0
      %v2427 = vpop.f32.mrf.mxu0
      %v2428 = vadd.f32 0.0, %v2427
      %v2429 = vpop.f32.mrf.mxu0
      %2430 = vmatprep.mubr.bf16.mxu0 0
      %2431 = vmatmul.mubr.bf16.gmra.mxu0 %v2311
      %v2432 = vpop.f32.mrf.mxu0
      %v2433 = vadd.f32 0.0, %v2432
      %v2434 = vpop.f32.mrf.mxu0
      %v2435 = vpop.f32.mrf.mxu0
      %v2436 = vadd.f32 0.0, %v2435
      %v2437 = vpop.f32.mrf.mxu0
      %2438 = vmatprep.mubr.bf16.mxu0 0
      %2439 = vmatmul.mubr.bf16.gmra.mxu0 %v2312
      %v2440 = vpop.f32.mrf.mxu0
      %v2441 = vadd.f32 0.0, %v2440
      %v2442 = vpop.f32.mrf.mxu0
      %v2443 = vpop.f32.mrf.mxu0
      %v2444 = vadd.f32 0.0, %v2443
      %v2445 = vpop.f32.mrf.mxu0
      %2446 = vmatprep.mubr.bf16.mxu0 0
      %2447 = vmatmul.mubr.bf16.gmra.mxu0 %v2313
      %v2448 = vpop.f32.mrf.mxu0
      %v2449 = vadd.f32 0.0, %v2448
      %v2450 = vpop.f32.mrf.mxu0
      %v2451 = vpop.f32.mrf.mxu0
      %v2452 = vadd.f32 0.0, %v2451
      %v2453 = vpop.f32.mrf.mxu0
      %2454 = vmatprep.mubr.bf16.mxu0 0
      %2455 = vmatmul.mubr.bf16.gmra.mxu0 %v2314
      %v2456 = vpop.f32.mrf.mxu0
      %v2457 = vadd.f32 0.0, %v2456
      %v2458 = vpop.f32.mrf.mxu0
      %v2459 = vpop.f32.mrf.mxu0
      %v2460 = vadd.f32 0.0, %v2459
      %v2461 = vpop.f32.mrf.mxu0
      %2462 = vmatprep.mubr.bf16.mxu0 0
      %2463 = vmatmul.mubr.bf16.gmra.mxu0 %v2315
      %v2464 = vpop.f32.mrf.mxu0
      %v2465 = vadd.f32 0.0, %v2464
      %v2466 = vpop.f32.mrf.mxu0
      %v2467 = vpop.f32.mrf.mxu0
      %v2468 = vadd.f32 0.0, %v2467
      %v2469 = vpop.f32.mrf.mxu0
      %2470 = vmatprep.mubr.bf16.mxu0 0
      %2471 = vmatmul.mubr.bf16.gmra.mxu0 %v2316
      %v2472 = vpop.f32.mrf.mxu0
      %v2473 = vadd.f32 0.0, %v2472
      %v2474 = vpop.f32.mrf.mxu0
      %v2475 = vpop.f32.mrf.mxu0
      %v2476 = vadd.f32 0.0, %v2475
      %v2477 = vpop.f32.mrf.mxu0
      %2478 = vmatprep.mubr.bf16.mxu0 0
      %2479 = vmatmul.mubr.bf16.gmra.mxu0 %v2317
      %v2480 = vpop.f32.mrf.mxu0
      %v2481 = vadd.f32 0.0, %v2480
      %v2482 = vpop.f32.mrf.mxu0
      %v2483 = vpop.f32.mrf.mxu0
      %v2484 = vadd.f32 0.0, %v2483
      %v2485 = vpop.f32.mrf.mxu0
      %2486 = vmatprep.mubr.bf16.mxu0 0
      %2487 = vmatmul.mubr.bf16.gmra.mxu0 %v2318
      %v2488 = vpop.f32.mrf.mxu0
      %v2489 = vadd.f32 0.0, %v2488
      %v2490 = vpop.f32.mrf.mxu0
      %v2491 = vpop.f32.mrf.mxu0
      %v2492 = vadd.f32 0.0, %v2491
      %v2493 = vpop.f32.mrf.mxu0
      %2494 = vmatprep.mubr.bf16.mxu0 0
      %2495 = vmatmul.mubr.bf16.gmra.mxu0 %v2319
      %v2496 = vpop.f32.mrf.mxu0
      %v2497 = vadd.f32 0.0, %v2496
      %v2498 = vpop.f32.mrf.mxu0
      %v2499 = vpop.f32.mrf.mxu0
      %v2500 = vadd.f32 0.0, %v2499
      %v2501 = vpop.f32.mrf.mxu0
      %2502 = vmatprep.mubr.bf16.mxu0 0
      %2503 = vmatmul.mubr.bf16.gmra.mxu0 %v2320
      %v2504 = vpop.f32.mrf.mxu0
      %v2505 = vadd.f32 0.0, %v2504
      %v2506 = vpop.f32.mrf.mxu0
      %v2507 = vpop.f32.mrf.mxu0
      %v2508 = vadd.f32 0.0, %v2507
      %v2509 = vpop.f32.mrf.mxu0
      %2510 = vmatprep.mubr.bf16.mxu0 0
      %2511 = vmatmul.mubr.bf16.gmra.mxu0 %v2321
      %v2512 = vpop.f32.mrf.mxu0
      %v2513 = vadd.f32 0.0, %v2512
      %v2514 = vpop.f32.mrf.mxu0
      %v2515 = vpop.f32.mrf.mxu0
      %v2516 = vadd.f32 0.0, %v2515
      %v2517 = vpop.f32.mrf.mxu0
      %2518 = vmatprep.mubr.bf16.mxu0 0
      %2519 = vmatmul.mubr.bf16.gmra.mxu0 %v2322
      %v2520 = vpop.f32.mrf.mxu0
      %v2521 = vadd.f32 0.0, %v2520
      %v2522 = vpop.f32.mrf.mxu0
      %v2523 = vpop.f32.mrf.mxu0
      %v2524 = vadd.f32 0.0, %v2523
      %v2525 = vpop.f32.mrf.mxu0
      %2526 = vmatprep.mubr.bf16.mxu0 0
      %2527 = vmatmul.mubr.bf16.gmra.mxu0 %v2323
      %v2528 = vpop.f32.mrf.mxu0
      %v2529 = vadd.f32 0.0, %v2528
      %v2530 = vpop.f32.mrf.mxu0
      %v2531 = vpop.f32.mrf.mxu0
      %v2532 = vadd.f32 0.0, %v2531
      %v2533 = vpop.f32.mrf.mxu0
      %2534 = vmatprep.mubr.bf16.mxu0 0
      %2535 = vmatmul.mubr.bf16.gmra.mxu0 %v2324
      %v2536 = vpop.f32.mrf.mxu0
      %v2537 = vadd.f32 0.0, %v2536
      %v2538 = vpop.f32.mrf.mxu0
      %v2539 = vpop.f32.mrf.mxu0
      %v2540 = vadd.f32 0.0, %v2539
      %v2541 = vpop.f32.mrf.mxu0
      %2542 = vmatprep.mubr.bf16.mxu0 0
      %2543 = vmatmul.mubr.bf16.gmra.mxu0 %v2325
      %v2544 = vpop.f32.mrf.mxu0
      %v2545 = vadd.f32 0.0, %v2544
      %v2546 = vpop.f32.mrf.mxu0
      %v2547 = vpop.f32.mrf.mxu0
      %v2548 = vadd.f32 0.0, %v2547
      %v2549 = vpop.f32.mrf.mxu0
      %2550 = vdwg.mxu0
      %v2551 = vadd.f32 %v2197, %v2425
      %v2552 = vadd.f32 %v2198, %v2428
      %v2553 = vadd.f32 %v2199, %v2433
      %v2554 = vadd.f32 %v2200, %v2436
      %v2555 = vadd.f32 %v2201, %v2441
      %v2556 = vadd.f32 %v2202, %v2444
      %v2557 = vadd.f32 %v2203, %v2449
      %v2558 = vadd.f32 %v2204, %v2452
      %v2559 = vadd.f32 %v2205, %v2457
      %v2560 = vadd.f32 %v2206, %v2460
      %v2561 = vadd.f32 %v2207, %v2465
      %v2562 = vadd.f32 %v2208, %v2468
      %v2563 = vadd.f32 %v2209, %v2473
      %v2564 = vadd.f32 %v2210, %v2476
      %v2565 = vadd.f32 %v2211, %v2481
      %v2566 = vadd.f32 %v2212, %v2484
      %v2567 = vadd.f32 %v2213, %v2489
      %v2568 = vadd.f32 %v2214, %v2492
      %v2569 = vadd.f32 %v2215, %v2497
      %v2570 = vadd.f32 %v2216, %v2500
      %v2571 = vadd.f32 %v2217, %v2505
      %v2572 = vadd.f32 %v2218, %v2508
      %v2573 = vadd.f32 %v2219, %v2513
      %v2574 = vadd.f32 %v2220, %v2516
      %v2575 = vadd.f32 %v2221, %v2521
      %v2576 = vadd.f32 %v2222, %v2524
      %v2577 = vadd.f32 %v2223, %v2529
      %v2578 = vadd.f32 %v2224, %v2532
      %v2579 = vadd.f32 %v2225, %v2537
      %v2580 = vadd.f32 %v2226, %v2540
      %v2581 = vadd.f32 %v2227, %v2545
      %v2582 = vadd.f32 %v2228, %v2548
      %2583 = vst [vmem:[#allocation2] sm:$0xff] %v2551
      %2584 = vst [vmem:[#allocation2 + $0x8] sm:$0xff] %v2552
      %2585 = vst [vmem:[#allocation2 + $0x10] sm:$0xff] %v2553
      %2586 = vst [vmem:[#allocation2 + $0x18] sm:$0xff] %v2554
      %2587 = vst [vmem:[#allocation2 + $0x20] sm:$0xff] %v2555
      %2588 = vst [vmem:[#allocation2 + $0x28] sm:$0xff] %v2556
      %2589 = vst [vmem:[#allocation2 + $0x30] sm:$0xff] %v2557
      %2590 = vst [vmem:[#allocation2 + $0x38] sm:$0xff] %v2558
      %2591 = vst [vmem:[#allocation2 + $0x40] sm:$0xff] %v2559
      %2592 = vst [vmem:[#allocation2 + $0x48] sm:$0xff] %v2560
      %2593 = vst [vmem:[#allocation2 + $0x50] sm:$0xff] %v2561
      %2594 = vst [vmem:[#allocation2 + $0x58] sm:$0xff] %v2562
      %2595 = vst [vmem:[#allocation2 + $0x60] sm:$0xff] %v2563
      %2596 = vst [vmem:[#allocation2 + $0x68] sm:$0xff] %v2564
      %2597 = vst [vmem:[#allocation2 + $0x70] sm:$0xff] %v2565
      %2598 = vst [vmem:[#allocation2 + $0x78] sm:$0xff] %v2566
      %2599 = vst [vmem:[#allocation2 + $0x80] sm:$0xff] %v2567
      %2600 = vst [vmem:[#allocation2 + $0x88] sm:$0xff] %v2568
      %2601 = vst [vmem:[#allocation2 + $0x90] sm:$0xff] %v2569
      %2602 = vst [vmem:[#allocation2 + $0x98] sm:$0xff] %v2570
      %2603 = vst [vmem:[#allocation2 + $0xa0] sm:$0xff] %v2571
      %2604 = vst [vmem:[#allocation2 + $0xa8] sm:$0xff] %v2572
      %2605 = vst [vmem:[#allocation2 + $0xb0] sm:$0xff] %v2573
      %2606 = vst [vmem:[#allocation2 + $0xb8] sm:$0xff] %v2574
      %2607 = vst [vmem:[#allocation2 + $0xc0] sm:$0xff] %v2575
      %2608 = vst [vmem:[#allocation2 + $0xc8] sm:$0xff] %v2576
      %2609 = vst [vmem:[#allocation2 + $0xd0] sm:$0xff] %v2577
      %2610 = vst [vmem:[#allocation2 + $0xd8] sm:$0xff] %v2578
      %2611 = vst [vmem:[#allocation2 + $0xe0] sm:$0xff] %v2579
      %2612 = vst [vmem:[#allocation2 + $0xe8] sm:$0xff] %v2580
      %2613 = vst [vmem:[#allocation2 + $0xf0] sm:$0xff] %v2581
      %2614 = vst [vmem:[#allocation2 + $0xf8] sm:$0xff] %v2582
      %v2615 = vld [vmem:[%s2164] sm:$0xf]
      %v2616 = vld [vmem:[%s2164 + $0x4] sm:$0xf]
      %v2617 = vld [vmem:[%s2164 + $0x8] sm:$0x1]
      %v2618 = vld [vmem:[%s2164 + $0xc] sm:$0xf]
      %v2619 = vld [vmem:[%s2164 + $0x10] sm:$0xf]
      %v2620 = vld [vmem:[%s2164 + $0x14] sm:$0x1]
      %v2621 = vld [vmem:[%s2164 + $0x18] sm:$0xf]
      %v2622 = vld [vmem:[%s2164 + $0x1c] sm:$0xf]
      %v2623 = vld [vmem:[%s2164 + $0x20] sm:$0x1]
      %v2624 = vld [vmem:[%s2164 + $0x24] sm:$0xf]
      %v2625 = vld [vmem:[%s2164 + $0x28] sm:$0xf]
      %v2626 = vld [vmem:[%s2164 + $0x2c] sm:$0x1]
      %v2627 = vld [vmem:[%s2164 + $0x30] sm:$0xf]
      %v2628 = vld [vmem:[%s2164 + $0x34] sm:$0xf]
      %v2629 = vld [vmem:[%s2164 + $0x38] sm:$0x1]
      %v2630 = vld [vmem:[%s2164 + $0x3c] sm:$0xf]
      %v2631 = vld [vmem:[%s2164 + $0x40] sm:$0xf]
      %v2632 = vld [vmem:[%s2164 + $0x44] sm:$0x1]
      %v2633 = vld [vmem:[%s2164 + $0x48] sm:$0xf]
      %v2634 = vld [vmem:[%s2164 + $0x4c] sm:$0xf]
      %v2635 = vld [vmem:[%s2164 + $0x50] sm:$0x1]
      %v2636 = vld [vmem:[%s2164 + $0x54] sm:$0xf]
      %v2637 = vld [vmem:[%s2164 + $0x58] sm:$0xf]
      %v2638 = vld [vmem:[%s2164 + $0x5c] sm:$0x1]
      %v2639 = vld [vmem:[%s2164 + $0x60] sm:$0xf]
      %v2640 = vld [vmem:[%s2164 + $0x64] sm:$0xf]
      %v2641 = vld [vmem:[%s2164 + $0x68] sm:$0x1]
      %v2642 = vld [vmem:[%s2164 + $0x6c] sm:$0xf]
      %v2643 = vld [vmem:[%s2164 + $0x70] sm:$0xf]
      %v2644 = vld [vmem:[%s2164 + $0x74] sm:$0x1]
      %v2645 = vld [vmem:[%s2164 + $0x78] sm:$0xf]
      %v2646 = vld [vmem:[%s2164 + $0x7c] sm:$0xf]
      %v2647 = vld [vmem:[%s2164 + $0x80] sm:$0x1]
      %v2648 = vld [vmem:[%s2164 + $0x84] sm:$0xf]
      %v2649 = vld [vmem:[%s2164 + $0x88] sm:$0xf]
      %v2650 = vld [vmem:[%s2164 + $0x8c] sm:$0x1]
      %v2651 = vld [vmem:[%s2164 + $0x90] sm:$0xf]
      %v2652 = vld [vmem:[%s2164 + $0x94] sm:$0xf]
      %v2653 = vld [vmem:[%s2164 + $0x98] sm:$0x1]
      %v2654 = vld [vmem:[%s2164 + $0x9c] sm:$0xf]
      %v2655 = vld [vmem:[%s2164 + $0xa0] sm:$0xf]
      %v2656 = vld [vmem:[%s2164 + $0xa4] sm:$0x1]
      %v2657 = vld [vmem:[%s2164 + $0xa8] sm:$0xf]
      %v2658 = vld [vmem:[%s2164 + $0xac] sm:$0xf]
      %v2659 = vld [vmem:[%s2164 + $0xb0] sm:$0x1]
      %v2660 = vld [vmem:[%s2164 + $0xb4] sm:$0xf]
      %v2661 = vld [vmem:[%s2164 + $0xb8] sm:$0xf]
      %v2662 = vld [vmem:[%s2164 + $0xbc] sm:$0x1]
      %v2664 = vshrl.u32 %v2615, 16
      %v2666 = vrot.slane %v2664, 4
      %v2667 = vshll.u32 %v2615, 16
      %v2669 = vrot.slane %v2667, 5
      %v2670 = vor.u32 %v2666, %v2669
      %v2671 = vrot.slane %v2670, 4
      %v2673 = vshll.u32 %v2616, 16
      %v2675 = vrot.slane %v2673, 5
      %v2676 = vsel %vm793, %v2671, %v2675
      %v2677 = vshrl.u32 %v2616, 16
      %v2679 = vrot.slane %v2677, 4
      %v2680 = vor.u32 %v2679, %v2675
      %v2681 = vrot.slane %v2680, 4
      %v2683 = vshll.u32 %v2617, 16
      %v2685 = vrot.slane %v2683, 5
      %v2686 = vsel %vm793, %v2681, %v2685
      %v2688 = vshrl.u32 %v2618, 16
      %v2690 = vrot.slane %v2688, 4
      %v2691 = vshll.u32 %v2618, 16
      %v2693 = vrot.slane %v2691, 5
      %v2694 = vor.u32 %v2690, %v2693
      %v2695 = vrot.slane %v2694, 4
      %v2697 = vshll.u32 %v2619, 16
      %v2699 = vrot.slane %v2697, 5
      %v2700 = vsel %vm793, %v2695, %v2699
      %v2701 = vshrl.u32 %v2619, 16
      %v2703 = vrot.slane %v2701, 4
      %v2704 = vor.u32 %v2703, %v2699
      %v2705 = vrot.slane %v2704, 4
      %v2707 = vshll.u32 %v2620, 16
      %v2709 = vrot.slane %v2707, 5
      %v2710 = vsel %vm793, %v2705, %v2709
      %v2712 = vshrl.u32 %v2621, 16
      %v2714 = vrot.slane %v2712, 4
      %v2715 = vshll.u32 %v2621, 16
      %v2717 = vrot.slane %v2715, 5
      %v2718 = vor.u32 %v2714, %v2717
      %v2719 = vrot.slane %v2718, 4
      %v2721 = vshll.u32 %v2622, 16
      %v2723 = vrot.slane %v2721, 5
      %v2724 = vsel %vm793, %v2719, %v2723
      %v2725 = vshrl.u32 %v2622, 16
      %v2727 = vrot.slane %v2725, 4
      %v2728 = vor.u32 %v2727, %v2723
      %v2729 = vrot.slane %v2728, 4
      %v2731 = vshll.u32 %v2623, 16
      %v2733 = vrot.slane %v2731, 5
      %v2734 = vsel %vm793, %v2729, %v2733
      %v2736 = vshrl.u32 %v2624, 16
      %v2738 = vrot.slane %v2736, 4
      %v2739 = vshll.u32 %v2624, 16
      %v2741 = vrot.slane %v2739, 5
      %v2742 = vor.u32 %v2738, %v2741
      %v2743 = vrot.slane %v2742, 4
      %v2745 = vshll.u32 %v2625, 16
      %v2747 = vrot.slane %v2745, 5
      %v2748 = vsel %vm793, %v2743, %v2747
      %v2749 = vshrl.u32 %v2625, 16
      %v2751 = vrot.slane %v2749, 4
      %v2752 = vor.u32 %v2751, %v2747
      %v2753 = vrot.slane %v2752, 4
      %v2755 = vshll.u32 %v2626, 16
      %v2757 = vrot.slane %v2755, 5
      %v2758 = vsel %vm793, %v2753, %v2757
      %v2760 = vshrl.u32 %v2627, 16
      %v2762 = vrot.slane %v2760, 4
      %v2763 = vshll.u32 %v2627, 16
      %v2765 = vrot.slane %v2763, 5
      %v2766 = vor.u32 %v2762, %v2765
      %v2767 = vrot.slane %v2766, 4
      %v2769 = vshll.u32 %v2628, 16
      %v2771 = vrot.slane %v2769, 5
      %v2772 = vsel %vm793, %v2767, %v2771
      %v2773 = vshrl.u32 %v2628, 16
      %v2775 = vrot.slane %v2773, 4
      %v2776 = vor.u32 %v2775, %v2771
      %v2777 = vrot.slane %v2776, 4
      %v2779 = vshll.u32 %v2629, 16
      %v2781 = vrot.slane %v2779, 5
      %v2782 = vsel %vm793, %v2777, %v2781
      %v2784 = vshrl.u32 %v2630, 16
      %v2786 = vrot.slane %v2784, 4
      %v2787 = vshll.u32 %v2630, 16
      %v2789 = vrot.slane %v2787, 5
      %v2790 = vor.u32 %v2786, %v2789
      %v2791 = vrot.slane %v2790, 4
      %v2793 = vshll.u32 %v2631, 16
      %v2795 = vrot.slane %v2793, 5
      %v2796 = vsel %vm793, %v2791, %v2795
      %v2797 = vshrl.u32 %v2631, 16
      %v2799 = vrot.slane %v2797, 4
      %v2800 = vor.u32 %v2799, %v2795
      %v2801 = vrot.slane %v2800, 4
      %v2803 = vshll.u32 %v2632, 16
      %v2805 = vrot.slane %v2803, 5
      %v2806 = vsel %vm793, %v2801, %v2805
      %v2808 = vshrl.u32 %v2633, 16
      %v2810 = vrot.slane %v2808, 4
      %v2811 = vshll.u32 %v2633, 16
      %v2813 = vrot.slane %v2811, 5
      %v2814 = vor.u32 %v2810, %v2813
      %v2815 = vrot.slane %v2814, 4
      %v2817 = vshll.u32 %v2634, 16
      %v2819 = vrot.slane %v2817, 5
      %v2820 = vsel %vm793, %v2815, %v2819
      %v2821 = vshrl.u32 %v2634, 16
      %v2823 = vrot.slane %v2821, 4
      %v2824 = vor.u32 %v2823, %v2819
      %v2825 = vrot.slane %v2824, 4
      %v2827 = vshll.u32 %v2635, 16
      %v2829 = vrot.slane %v2827, 5
      %v2830 = vsel %vm793, %v2825, %v2829
      %v2832 = vshrl.u32 %v2636, 16
      %v2834 = vrot.slane %v2832, 4
      %v2835 = vshll.u32 %v2636, 16
      %v2837 = vrot.slane %v2835, 5
      %v2838 = vor.u32 %v2834, %v2837
      %v2839 = vrot.slane %v2838, 4
      %v2841 = vshll.u32 %v2637, 16
      %v2843 = vrot.slane %v2841, 5
      %v2844 = vsel %vm793, %v2839, %v2843
      %v2845 = vshrl.u32 %v2637, 16
      %v2847 = vrot.slane %v2845, 4
      %v2848 = vor.u32 %v2847, %v2843
      %v2849 = vrot.slane %v2848, 4
      %v2851 = vshll.u32 %v2638, 16
      %v2853 = vrot.slane %v2851, 5
      %v2854 = vsel %vm793, %v2849, %v2853
      %v2856 = vshrl.u32 %v2639, 16
      %v2858 = vrot.slane %v2856, 4
      %v2859 = vshll.u32 %v2639, 16
      %v2861 = vrot.slane %v2859, 5
      %v2862 = vor.u32 %v2858, %v2861
      %v2863 = vrot.slane %v2862, 4
      %v2865 = vshll.u32 %v2640, 16
      %v2867 = vrot.slane %v2865, 5
      %v2868 = vsel %vm793, %v2863, %v2867
      %v2869 = vshrl.u32 %v2640, 16
      %v2871 = vrot.slane %v2869, 4
      %v2872 = vor.u32 %v2871, %v2867
      %v2873 = vrot.slane %v2872, 4
      %v2875 = vshll.u32 %v2641, 16
      %v2877 = vrot.slane %v2875, 5
      %v2878 = vsel %vm793, %v2873, %v2877
      %v2880 = vshrl.u32 %v2642, 16
      %v2882 = vrot.slane %v2880, 4
      %v2883 = vshll.u32 %v2642, 16
      %v2885 = vrot.slane %v2883, 5
      %v2886 = vor.u32 %v2882, %v2885
      %v2887 = vrot.slane %v2886, 4
      %v2889 = vshll.u32 %v2643, 16
      %v2891 = vrot.slane %v2889, 5
      %v2892 = vsel %vm793, %v2887, %v2891
      %v2893 = vshrl.u32 %v2643, 16
      %v2895 = vrot.slane %v2893, 4
      %v2896 = vor.u32 %v2895, %v2891
      %v2897 = vrot.slane %v2896, 4
      %v2899 = vshll.u32 %v2644, 16
      %v2901 = vrot.slane %v2899, 5
      %v2902 = vsel %vm793, %v2897, %v2901
      %v2904 = vshrl.u32 %v2645, 16
      %v2906 = vrot.slane %v2904, 4
      %v2907 = vshll.u32 %v2645, 16
      %v2909 = vrot.slane %v2907, 5
      %v2910 = vor.u32 %v2906, %v2909
      %v2911 = vrot.slane %v2910, 4
      %v2913 = vshll.u32 %v2646, 16
      %v2915 = vrot.slane %v2913, 5
      %v2916 = vsel %vm793, %v2911, %v2915
      %v2917 = vshrl.u32 %v2646, 16
      %v2919 = vrot.slane %v2917, 4
      %v2920 = vor.u32 %v2919, %v2915
      %v2921 = vrot.slane %v2920, 4
      %v2923 = vshll.u32 %v2647, 16
      %v2925 = vrot.slane %v2923, 5
      %v2926 = vsel %vm793, %v2921, %v2925
      %v2928 = vshrl.u32 %v2648, 16
      %v2930 = vrot.slane %v2928, 4
      %v2931 = vshll.u32 %v2648, 16
      %v2933 = vrot.slane %v2931, 5
      %v2934 = vor.u32 %v2930, %v2933
      %v2935 = vrot.slane %v2934, 4
      %v2937 = vshll.u32 %v2649, 16
      %v2939 = vrot.slane %v2937, 5
      %v2940 = vsel %vm793, %v2935, %v2939
      %v2941 = vshrl.u32 %v2649, 16
      %v2943 = vrot.slane %v2941, 4
      %v2944 = vor.u32 %v2943, %v2939
      %v2945 = vrot.slane %v2944, 4
      %v2947 = vshll.u32 %v2650, 16
      %v2949 = vrot.slane %v2947, 5
      %v2950 = vsel %vm793, %v2945, %v2949
      %v2952 = vshrl.u32 %v2651, 16
      %v2954 = vrot.slane %v2952, 4
      %v2955 = vshll.u32 %v2651, 16
      %v2957 = vrot.slane %v2955, 5
      %v2958 = vor.u32 %v2954, %v2957
      %v2959 = vrot.slane %v2958, 4
      %v2961 = vshll.u32 %v2652, 16
      %v2963 = vrot.slane %v2961, 5
      %v2964 = vsel %vm793, %v2959, %v2963
      %v2965 = vshrl.u32 %v2652, 16
      %v2967 = vrot.slane %v2965, 4
      %v2968 = vor.u32 %v2967, %v2963
      %v2969 = vrot.slane %v2968, 4
      %v2971 = vshll.u32 %v2653, 16
      %v2973 = vrot.slane %v2971, 5
      %v2974 = vsel %vm793, %v2969, %v2973
      %v2976 = vshrl.u32 %v2654, 16
      %v2978 = vrot.slane %v2976, 4
      %v2979 = vshll.u32 %v2654, 16
      %v2981 = vrot.slane %v2979, 5
      %v2982 = vor.u32 %v2978, %v2981
      %v2983 = vrot.slane %v2982, 4
      %v2985 = vshll.u32 %v2655, 16
      %v2987 = vrot.slane %v2985, 5
      %v2988 = vsel %vm793, %v2983, %v2987
      %v2989 = vshrl.u32 %v2655, 16
      %v2991 = vrot.slane %v2989, 4
      %v2992 = vor.u32 %v2991, %v2987
      %v2993 = vrot.slane %v2992, 4
      %v2995 = vshll.u32 %v2656, 16
      %v2997 = vrot.slane %v2995, 5
      %v2998 = vsel %vm793, %v2993, %v2997
      %v3000 = vshrl.u32 %v2657, 16
      %v3002 = vrot.slane %v3000, 4
      %v3003 = vshll.u32 %v2657, 16
      %v3005 = vrot.slane %v3003, 5
      %v3006 = vor.u32 %v3002, %v3005
      %v3007 = vrot.slane %v3006, 4
      %v3009 = vshll.u32 %v2658, 16
      %v3011 = vrot.slane %v3009, 5
      %v3012 = vsel %vm793, %v3007, %v3011
      %v3013 = vshrl.u32 %v2658, 16
      %v3015 = vrot.slane %v3013, 4
      %v3016 = vor.u32 %v3015, %v3011
      %v3017 = vrot.slane %v3016, 4
      %v3019 = vshll.u32 %v2659, 16
      %v3021 = vrot.slane %v3019, 5
      %v3022 = vsel %vm793, %v3017, %v3021
      %v3024 = vshrl.u32 %v2660, 16
      %v3026 = vrot.slane %v3024, 4
      %v3027 = vshll.u32 %v2660, 16
      %v3029 = vrot.slane %v3027, 5
      %v3030 = vor.u32 %v3026, %v3029
      %v3031 = vrot.slane %v3030, 4
      %v3033 = vshll.u32 %v2661, 16
      %v3035 = vrot.slane %v3033, 5
      %v3036 = vsel %vm793, %v3031, %v3035
      %v3037 = vshrl.u32 %v2661, 16
      %v3039 = vrot.slane %v3037, 4
      %v3040 = vor.u32 %v3039, %v3035
      %v3041 = vrot.slane %v3040, 4
      %v3043 = vshll.u32 %v2662, 16
      %v3045 = vrot.slane %v3043, 5
      %v3046 = vsel %vm793, %v3041, %v3045
      %v3047 = vld [vmem:[#allocation2] sm:$0xff]
      %v3048 = vld [vmem:[#allocation2 + $0x8] sm:$0xff]
      %v3049 = vld [vmem:[#allocation2 + $0x10] sm:$0xff]
      %v3050 = vld [vmem:[#allocation2 + $0x18] sm:$0xff]
      %v3051 = vld [vmem:[#allocation2 + $0x20] sm:$0xff]
      %v3052 = vld [vmem:[#allocation2 + $0x28] sm:$0xff]
      %v3053 = vld [vmem:[#allocation2 + $0x30] sm:$0xff]
      %v3054 = vld [vmem:[#allocation2 + $0x38] sm:$0xff]
      %v3055 = vld [vmem:[#allocation2 + $0x40] sm:$0xff]
      %v3056 = vld [vmem:[#allocation2 + $0x48] sm:$0xff]
      %v3057 = vld [vmem:[#allocation2 + $0x50] sm:$0xff]
      %v3058 = vld [vmem:[#allocation2 + $0x58] sm:$0xff]
      %v3059 = vld [vmem:[#allocation2 + $0x60] sm:$0xff]
      %v3060 = vld [vmem:[#allocation2 + $0x68] sm:$0xff]
      %v3061 = vld [vmem:[#allocation2 + $0x70] sm:$0xff]
      %v3062 = vld [vmem:[#allocation2 + $0x78] sm:$0xff]
      %v3063 = vld [vmem:[#allocation2 + $0x80] sm:$0xff]
      %v3064 = vld [vmem:[#allocation2 + $0x88] sm:$0xff]
      %v3065 = vld [vmem:[#allocation2 + $0x90] sm:$0xff]
      %v3066 = vld [vmem:[#allocation2 + $0x98] sm:$0xff]
      %v3067 = vld [vmem:[#allocation2 + $0xa0] sm:$0xff]
      %v3068 = vld [vmem:[#allocation2 + $0xa8] sm:$0xff]
      %v3069 = vld [vmem:[#allocation2 + $0xb0] sm:$0xff]
      %v3070 = vld [vmem:[#allocation2 + $0xb8] sm:$0xff]
      %v3071 = vld [vmem:[#allocation2 + $0xc0] sm:$0xff]
      %v3072 = vld [vmem:[#allocation2 + $0xc8] sm:$0xff]
      %v3073 = vld [vmem:[#allocation2 + $0xd0] sm:$0xff]
      %v3074 = vld [vmem:[#allocation2 + $0xd8] sm:$0xff]
      %v3075 = vld [vmem:[#allocation2 + $0xe0] sm:$0xff]
      %v3076 = vld [vmem:[#allocation2 + $0xe8] sm:$0xff]
      %v3077 = vld [vmem:[#allocation2 + $0xf0] sm:$0xff]
      %v3078 = vld [vmem:[#allocation2 + $0xf8] sm:$0xff]
      %s3079 = scalar_lea.vmem %s1, 256
      %v3080 = vld [vmem:[%s3079] sm:$0xf]
      %v3081 = vld [vmem:[%s3079 + $0x4] sm:$0xf]
      %v3082 = vld [vmem:[%s3079 + $0x8] sm:$0xf]
      %v3083 = vld [vmem:[%s3079 + $0xc] sm:$0xf]
      %v3084 = vld [vmem:[%s3079 + $0x10] sm:$0xf]
      %v3085 = vld [vmem:[%s3079 + $0x14] sm:$0xf]
      %v3086 = vld [vmem:[%s3079 + $0x18] sm:$0xf]
      %v3087 = vld [vmem:[%s3079 + $0x1c] sm:$0xf]
      %v3088 = vld [vmem:[%s3079 + $0x20] sm:$0xf]
      %v3089 = vld [vmem:[%s3079 + $0x24] sm:$0xf]
      %v3090 = vld [vmem:[%s3079 + $0x28] sm:$0xf]
      %v3091 = vld [vmem:[%s3079 + $0x2c] sm:$0xf]
      %v3092 = vld [vmem:[%s3079 + $0x30] sm:$0xf]
      %v3093 = vld [vmem:[%s3079 + $0x34] sm:$0xf]
      %v3094 = vld [vmem:[%s3079 + $0x38] sm:$0xf]
      %v3095 = vld [vmem:[%s3079 + $0x3c] sm:$0xf]
      %v3096 = vunpack.c.l.b16 %v2676
      %v3097 = vunpack.c.l.b16 %v2686
      %v3098 = vunpack.c.l.b16 %v2700
      %v3099 = vunpack.c.l.b16 %v2710
      %v3100 = vunpack.c.l.b16 %v2724
      %v3101 = vunpack.c.l.b16 %v2734
      %v3102 = vunpack.c.l.b16 %v2748
      %v3103 = vunpack.c.l.b16 %v2758
      %v3104 = vunpack.c.l.b16 %v2772
      %v3105 = vunpack.c.l.b16 %v2782
      %v3106 = vunpack.c.l.b16 %v2796
      %v3107 = vunpack.c.l.b16 %v2806
      %v3108 = vunpack.c.l.b16 %v2820
      %v3109 = vunpack.c.l.b16 %v2830
      %v3110 = vunpack.c.l.b16 %v2844
      %v3111 = vunpack.c.l.b16 %v2854
      %v3112 = vunpack.c.l.b16 %v2868
      %v3113 = vunpack.c.l.b16 %v2878
      %v3114 = vunpack.c.l.b16 %v2892
      %v3115 = vunpack.c.l.b16 %v2902
      %v3116 = vunpack.c.l.b16 %v2916
      %v3117 = vunpack.c.l.b16 %v2926
      %v3118 = vunpack.c.l.b16 %v2940
      %v3119 = vunpack.c.l.b16 %v2950
      %v3120 = vunpack.c.l.b16 %v2964
      %v3121 = vunpack.c.l.b16 %v2974
      %v3122 = vunpack.c.l.b16 %v2988
      %v3123 = vunpack.c.l.b16 %v2998
      %v3124 = vunpack.c.l.b16 %v3012
      %v3125 = vunpack.c.l.b16 %v3022
      %v3126 = vunpack.c.l.b16 %v3036
      %v3127 = vunpack.c.l.b16 %v3046
      %v3128 = vpack.c.b16 %v3097, %v3096
      %v3129 = vpack.c.b16 %v3099, %v3098
      %v3130 = vpack.c.b16 %v3101, %v3100
      %v3131 = vpack.c.b16 %v3103, %v3102
      %v3132 = vpack.c.b16 %v3105, %v3104
      %v3133 = vpack.c.b16 %v3107, %v3106
      %v3134 = vpack.c.b16 %v3109, %v3108
      %v3135 = vpack.c.b16 %v3111, %v3110
      %v3136 = vpack.c.b16 %v3113, %v3112
      %v3137 = vpack.c.b16 %v3115, %v3114
      %v3138 = vpack.c.b16 %v3117, %v3116
      %v3139 = vpack.c.b16 %v3119, %v3118
      %v3140 = vpack.c.b16 %v3121, %v3120
      %v3141 = vpack.c.b16 %v3123, %v3122
      %v3142 = vpack.c.b16 %v3125, %v3124
      %v3143 = vpack.c.b16 %v3127, %v3126
      %v3176 = vunpack.c.l.b16 %v3080
      %v3177 = vunpack.c.l.b16 %v3081
      %v3178 = vunpack.c.l.b16 %v3082
      %v3179 = vunpack.c.l.b16 %v3083
      %v3180 = vunpack.c.l.b16 %v3084
      %v3181 = vunpack.c.l.b16 %v3085
      %v3182 = vunpack.c.l.b16 %v3086
      %v3183 = vunpack.c.l.b16 %v3087
      %v3184 = vunpack.c.l.b16 %v3088
      %v3185 = vunpack.c.l.b16 %v3089
      %v3186 = vunpack.c.l.b16 %v3090
      %v3187 = vunpack.c.l.b16 %v3091
      %v3188 = vunpack.c.l.b16 %v3092
      %v3189 = vunpack.c.l.b16 %v3093
      %v3190 = vunpack.c.l.b16 %v3094
      %v3191 = vunpack.c.l.b16 %v3095
      %v3192 = vpack.c.b16 %v3177, %v3176
      %v3193 = vpack.c.b16 %v3179, %v3178
      %v3194 = vpack.c.b16 %v3181, %v3180
      %v3195 = vpack.c.b16 %v3183, %v3182
      %v3196 = vpack.c.b16 %v3185, %v3184
      %v3197 = vpack.c.b16 %v3187, %v3186
      %v3198 = vpack.c.b16 %v3189, %v3188
      %v3199 = vpack.c.b16 %v3191, %v3190
      %3208 = vmatprep.subr.bf16.mxu0 0
      %3209 = vmatpush1.bf16.msra.mxu0 %v3199
      %3210 = vmatprep.subr.bf16.mxu0 0
      %3211 = vmatpush1.bf16.msra.mxu0 %v3198
      %3212 = vmatprep.subr.bf16.mxu0 0
      %3213 = vmatpush1.bf16.msra.mxu0 %v3197
      %3214 = vmatprep.subr.bf16.mxu0 0
      %3215 = vmatpush1.bf16.msra.mxu0 %v3196
      %3216 = vmatprep.subr.bf16.mxu0 0
      %3217 = vmatpush1.bf16.msra.mxu0 %v3195
      %3218 = vmatprep.subr.bf16.mxu0 0
      %3219 = vmatpush1.bf16.msra.mxu0 %v3194
      %3220 = vmatprep.subr.bf16.mxu0 0
      %3221 = vmatpush1.bf16.msra.mxu0 %v3193
      %3222 = vmatprep.subr.bf16.mxu0 0
      %3223 = vmatpush1.bf16.msra.mxu0 %v3192
      %3224 = vmatprep.subr.bf16.mxu0 0
      %3225 = vmatpush2.bf16.msra.mxu0 0
      %3226 = vmatprep.subr.bf16.mxu0 0
      %3227 = vmatpush2.bf16.msra.mxu0 0
      %3228 = vmatprep.subr.bf16.mxu0 0
      %3229 = vmatpush2.bf16.msra.mxu0 0
      %3230 = vmatprep.subr.bf16.mxu0 0
      %3231 = vmatpush2.bf16.msra.mxu0 0
      %3232 = vmatprep.subr.bf16.mxu0 0
      %3233 = vmatpush2.bf16.msra.mxu0 0
      %3234 = vmatprep.subr.bf16.mxu0 0
      %3235 = vmatpush2.bf16.msra.mxu0 0
      %3236 = vmatprep.subr.bf16.mxu0 0
      %3237 = vmatpush2.bf16.msra.mxu0 0
      %3238 = vmatprep.subr.bf16.mxu0 0
      %3239 = vmatpush2.bf16.msra.mxu0 0
      %3240 = vmatprep.mubr.bf16.mxu0 0
      %3241 = vmatmul.mubr.bf16.gmra.mxu0 %v3128
      %v3242 = vpop.f32.mrf.mxu0
      %v3243 = vadd.f32 0.0, %v3242
      %v3244 = vpop.f32.mrf.mxu0
      %v3245 = vpop.f32.mrf.mxu0
      %v3246 = vadd.f32 0.0, %v3245
      %v3247 = vpop.f32.mrf.mxu0
      %3248 = vmatprep.mubr.bf16.mxu0 0
      %3249 = vmatmul.mubr.bf16.gmra.mxu0 %v3129
      %v3250 = vpop.f32.mrf.mxu0
      %v3251 = vadd.f32 0.0, %v3250
      %v3252 = vpop.f32.mrf.mxu0
      %v3253 = vpop.f32.mrf.mxu0
      %v3254 = vadd.f32 0.0, %v3253
      %v3255 = vpop.f32.mrf.mxu0
      %3256 = vmatprep.mubr.bf16.mxu0 0
      %3257 = vmatmul.mubr.bf16.gmra.mxu0 %v3130
      %v3258 = vpop.f32.mrf.mxu0
      %v3259 = vadd.f32 0.0, %v3258
      %v3260 = vpop.f32.mrf.mxu0
      %v3261 = vpop.f32.mrf.mxu0
      %v3262 = vadd.f32 0.0, %v3261
      %v3263 = vpop.f32.mrf.mxu0
      %3264 = vmatprep.mubr.bf16.mxu0 0
      %3265 = vmatmul.mubr.bf16.gmra.mxu0 %v3131
      %v3266 = vpop.f32.mrf.mxu0
      %v3267 = vadd.f32 0.0, %v3266
      %v3268 = vpop.f32.mrf.mxu0
      %v3269 = vpop.f32.mrf.mxu0
      %v3270 = vadd.f32 0.0, %v3269
      %v3271 = vpop.f32.mrf.mxu0
      %3272 = vmatprep.mubr.bf16.mxu0 0
      %3273 = vmatmul.mubr.bf16.gmra.mxu0 %v3132
      %v3274 = vpop.f32.mrf.mxu0
      %v3275 = vadd.f32 0.0, %v3274
      %v3276 = vpop.f32.mrf.mxu0
      %v3277 = vpop.f32.mrf.mxu0
      %v3278 = vadd.f32 0.0, %v3277
      %v3279 = vpop.f32.mrf.mxu0
      %3280 = vmatprep.mubr.bf16.mxu0 0
      %3281 = vmatmul.mubr.bf16.gmra.mxu0 %v3133
      %v3282 = vpop.f32.mrf.mxu0
      %v3283 = vadd.f32 0.0, %v3282
      %v3284 = vpop.f32.mrf.mxu0
      %v3285 = vpop.f32.mrf.mxu0
      %v3286 = vadd.f32 0.0, %v3285
      %v3287 = vpop.f32.mrf.mxu0
      %3288 = vmatprep.mubr.bf16.mxu0 0
      %3289 = vmatmul.mubr.bf16.gmra.mxu0 %v3134
      %v3290 = vpop.f32.mrf.mxu0
      %v3291 = vadd.f32 0.0, %v3290
      %v3292 = vpop.f32.mrf.mxu0
      %v3293 = vpop.f32.mrf.mxu0
      %v3294 = vadd.f32 0.0, %v3293
      %v3295 = vpop.f32.mrf.mxu0
      %3296 = vmatprep.mubr.bf16.mxu0 0
      %3297 = vmatmul.mubr.bf16.gmra.mxu0 %v3135
      %v3298 = vpop.f32.mrf.mxu0
      %v3299 = vadd.f32 0.0, %v3298
      %v3300 = vpop.f32.mrf.mxu0
      %v3301 = vpop.f32.mrf.mxu0
      %v3302 = vadd.f32 0.0, %v3301
      %v3303 = vpop.f32.mrf.mxu0
      %3304 = vmatprep.mubr.bf16.mxu0 0
      %3305 = vmatmul.mubr.bf16.gmra.mxu0 %v3136
      %v3306 = vpop.f32.mrf.mxu0
      %v3307 = vadd.f32 0.0, %v3306
      %v3308 = vpop.f32.mrf.mxu0
      %v3309 = vpop.f32.mrf.mxu0
      %v3310 = vadd.f32 0.0, %v3309
      %v3311 = vpop.f32.mrf.mxu0
      %3312 = vmatprep.mubr.bf16.mxu0 0
      %3313 = vmatmul.mubr.bf16.gmra.mxu0 %v3137
      %v3314 = vpop.f32.mrf.mxu0
      %v3315 = vadd.f32 0.0, %v3314
      %v3316 = vpop.f32.mrf.mxu0
      %v3317 = vpop.f32.mrf.mxu0
      %v3318 = vadd.f32 0.0, %v3317
      %v3319 = vpop.f32.mrf.mxu0
      %3320 = vmatprep.mubr.bf16.mxu0 0
      %3321 = vmatmul.mubr.bf16.gmra.mxu0 %v3138
      %v3322 = vpop.f32.mrf.mxu0
      %v3323 = vadd.f32 0.0, %v3322
      %v3324 = vpop.f32.mrf.mxu0
      %v3325 = vpop.f32.mrf.mxu0
      %v3326 = vadd.f32 0.0, %v3325
      %v3327 = vpop.f32.mrf.mxu0
      %3328 = vmatprep.mubr.bf16.mxu0 0
      %3329 = vmatmul.mubr.bf16.gmra.mxu0 %v3139
      %v3330 = vpop.f32.mrf.mxu0
      %v3331 = vadd.f32 0.0, %v3330
      %v3332 = vpop.f32.mrf.mxu0
      %v3333 = vpop.f32.mrf.mxu0
      %v3334 = vadd.f32 0.0, %v3333
      %v3335 = vpop.f32.mrf.mxu0
      %3336 = vmatprep.mubr.bf16.mxu0 0
      %3337 = vmatmul.mubr.bf16.gmra.mxu0 %v3140
      %v3338 = vpop.f32.mrf.mxu0
      %v3339 = vadd.f32 0.0, %v3338
      %v3340 = vpop.f32.mrf.mxu0
      %v3341 = vpop.f32.mrf.mxu0
      %v3342 = vadd.f32 0.0, %v3341
      %v3343 = vpop.f32.mrf.mxu0
      %3344 = vmatprep.mubr.bf16.mxu0 0
      %3345 = vmatmul.mubr.bf16.gmra.mxu0 %v3141
      %v3346 = vpop.f32.mrf.mxu0
      %v3347 = vadd.f32 0.0, %v3346
      %v3348 = vpop.f32.mrf.mxu0
      %v3349 = vpop.f32.mrf.mxu0
      %v3350 = vadd.f32 0.0, %v3349
      %v3351 = vpop.f32.mrf.mxu0
      %3352 = vmatprep.mubr.bf16.mxu0 0
      %3353 = vmatmul.mubr.bf16.gmra.mxu0 %v3142
      %v3354 = vpop.f32.mrf.mxu0
      %v3355 = vadd.f32 0.0, %v3354
      %v3356 = vpop.f32.mrf.mxu0
      %v3357 = vpop.f32.mrf.mxu0
      %v3358 = vadd.f32 0.0, %v3357
      %v3359 = vpop.f32.mrf.mxu0
      %3360 = vmatprep.mubr.bf16.mxu0 0
      %3361 = vmatmul.mubr.bf16.gmra.mxu0 %v3143
      %v3362 = vpop.f32.mrf.mxu0
      %v3363 = vadd.f32 0.0, %v3362
      %v3364 = vpop.f32.mrf.mxu0
      %v3365 = vpop.f32.mrf.mxu0
      %v3366 = vadd.f32 0.0, %v3365
      %v3367 = vpop.f32.mrf.mxu0
      %3368 = vdwg.mxu0
      %v3369 = vadd.f32 %v3047, %v3243
      %v3370 = vadd.f32 %v3048, %v3246
      %v3371 = vadd.f32 %v3049, %v3251
      %v3372 = vadd.f32 %v3050, %v3254
      %v3373 = vadd.f32 %v3051, %v3259
      %v3374 = vadd.f32 %v3052, %v3262
      %v3375 = vadd.f32 %v3053, %v3267
      %v3376 = vadd.f32 %v3054, %v3270
      %v3377 = vadd.f32 %v3055, %v3275
      %v3378 = vadd.f32 %v3056, %v3278
      %v3379 = vadd.f32 %v3057, %v3283
      %v3380 = vadd.f32 %v3058, %v3286
      %v3381 = vadd.f32 %v3059, %v3291
      %v3382 = vadd.f32 %v3060, %v3294
      %v3383 = vadd.f32 %v3061, %v3299
      %v3384 = vadd.f32 %v3062, %v3302
      %v3385 = vadd.f32 %v3063, %v3307
      %v3386 = vadd.f32 %v3064, %v3310
      %v3387 = vadd.f32 %v3065, %v3315
      %v3388 = vadd.f32 %v3066, %v3318
      %v3389 = vadd.f32 %v3067, %v3323
      %v3390 = vadd.f32 %v3068, %v3326
      %v3391 = vadd.f32 %v3069, %v3331
      %v3392 = vadd.f32 %v3070, %v3334
      %v3393 = vadd.f32 %v3071, %v3339
      %v3394 = vadd.f32 %v3072, %v3342
      %v3395 = vadd.f32 %v3073, %v3347
      %v3396 = vadd.f32 %v3074, %v3350
      %v3397 = vadd.f32 %v3075, %v3355
      %v3398 = vadd.f32 %v3076, %v3358
      %v3399 = vadd.f32 %v3077, %v3363
      %v3400 = vadd.f32 %v3078, %v3366
      %3401 = vst [vmem:[#allocation2] sm:$0xff] %v3369
      %3402 = vst [vmem:[#allocation2 + $0x8] sm:$0xff] %v3370
      %3403 = vst [vmem:[#allocation2 + $0x10] sm:$0xff] %v3371
      %3404 = vst [vmem:[#allocation2 + $0x18] sm:$0xff] %v3372
      %3405 = vst [vmem:[#allocation2 + $0x20] sm:$0xff] %v3373
      %3406 = vst [vmem:[#allocation2 + $0x28] sm:$0xff] %v3374
      %3407 = vst [vmem:[#allocation2 + $0x30] sm:$0xff] %v3375
      %3408 = vst [vmem:[#allocation2 + $0x38] sm:$0xff] %v3376
      %3409 = vst [vmem:[#allocation2 + $0x40] sm:$0xff] %v3377
      %3410 = vst [vmem:[#allocation2 + $0x48] sm:$0xff] %v3378
      %3411 = vst [vmem:[#allocation2 + $0x50] sm:$0xff] %v3379
      %3412 = vst [vmem:[#allocation2 + $0x58] sm:$0xff] %v3380
      %3413 = vst [vmem:[#allocation2 + $0x60] sm:$0xff] %v3381
      %3414 = vst [vmem:[#allocation2 + $0x68] sm:$0xff] %v3382
      %3415 = vst [vmem:[#allocation2 + $0x70] sm:$0xff] %v3383
      %3416 = vst [vmem:[#allocation2 + $0x78] sm:$0xff] %v3384
      %3417 = vst [vmem:[#allocation2 + $0x80] sm:$0xff] %v3385
      %3418 = vst [vmem:[#allocation2 + $0x88] sm:$0xff] %v3386
      %3419 = vst [vmem:[#allocation2 + $0x90] sm:$0xff] %v3387
      %3420 = vst [vmem:[#allocation2 + $0x98] sm:$0xff] %v3388
      %3421 = vst [vmem:[#allocation2 + $0xa0] sm:$0xff] %v3389
      %3422 = vst [vmem:[#allocation2 + $0xa8] sm:$0xff] %v3390
      %3423 = vst [vmem:[#allocation2 + $0xb0] sm:$0xff] %v3391
      %3424 = vst [vmem:[#allocation2 + $0xb8] sm:$0xff] %v3392
      %3425 = vst [vmem:[#allocation2 + $0xc0] sm:$0xff] %v3393
      %3426 = vst [vmem:[#allocation2 + $0xc8] sm:$0xff] %v3394
      %3427 = vst [vmem:[#allocation2 + $0xd0] sm:$0xff] %v3395
      %3428 = vst [vmem:[#allocation2 + $0xd8] sm:$0xff] %v3396
      %3429 = vst [vmem:[#allocation2 + $0xe0] sm:$0xff] %v3397
      %3430 = vst [vmem:[#allocation2 + $0xe8] sm:$0xff] %v3398
      %3431 = vst [vmem:[#allocation2 + $0xf0] sm:$0xff] %v3399
      %3432 = vst [vmem:[#allocation2 + $0xf8] sm:$0xff] %v3400
      %v3433 = vld [vmem:[%s2164] sm:$0xe]
      %v3434 = vld [vmem:[%s2164 + $0x4] sm:$0xf]
      %v3435 = vld [vmem:[%s2164 + $0x8] sm:$0x1]
      %v3436 = vld [vmem:[%s2164 + $0xc] sm:$0xe]
      %v3437 = vld [vmem:[%s2164 + $0x10] sm:$0xf]
      %v3438 = vld [vmem:[%s2164 + $0x14] sm:$0x1]
      %v3439 = vld [vmem:[%s2164 + $0x18] sm:$0xe]
      %v3440 = vld [vmem:[%s2164 + $0x1c] sm:$0xf]
      %v3441 = vld [vmem:[%s2164 + $0x20] sm:$0x1]
      %v3442 = vld [vmem:[%s2164 + $0x24] sm:$0xe]
      %v3443 = vld [vmem:[%s2164 + $0x28] sm:$0xf]
      %v3444 = vld [vmem:[%s2164 + $0x2c] sm:$0x1]
      %v3445 = vld [vmem:[%s2164 + $0x30] sm:$0xe]
      %v3446 = vld [vmem:[%s2164 + $0x34] sm:$0xf]
      %v3447 = vld [vmem:[%s2164 + $0x38] sm:$0x1]
      %v3448 = vld [vmem:[%s2164 + $0x3c] sm:$0xe]
      %v3449 = vld [vmem:[%s2164 + $0x40] sm:$0xf]
      %v3450 = vld [vmem:[%s2164 + $0x44] sm:$0x1]
      %v3451 = vld [vmem:[%s2164 + $0x48] sm:$0xe]
      %v3452 = vld [vmem:[%s2164 + $0x4c] sm:$0xf]
      %v3453 = vld [vmem:[%s2164 + $0x50] sm:$0x1]
      %v3454 = vld [vmem:[%s2164 + $0x54] sm:$0xe]
      %v3455 = vld [vmem:[%s2164 + $0x58] sm:$0xf]
      %v3456 = vld [vmem:[%s2164 + $0x5c] sm:$0x1]
      %v3457 = vld [vmem:[%s2164 + $0x60] sm:$0xe]
      %v3458 = vld [vmem:[%s2164 + $0x64] sm:$0xf]
      %v3459 = vld [vmem:[%s2164 + $0x68] sm:$0x1]
      %v3460 = vld [vmem:[%s2164 + $0x6c] sm:$0xe]
      %v3461 = vld [vmem:[%s2164 + $0x70] sm:$0xf]
      %v3462 = vld [vmem:[%s2164 + $0x74] sm:$0x1]
      %v3463 = vld [vmem:[%s2164 + $0x78] sm:$0xe]
      %v3464 = vld [vmem:[%s2164 + $0x7c] sm:$0xf]
      %v3465 = vld [vmem:[%s2164 + $0x80] sm:$0x1]
      %v3466 = vld [vmem:[%s2164 + $0x84] sm:$0xe]
      %v3467 = vld [vmem:[%s2164 + $0x88] sm:$0xf]
      %v3468 = vld [vmem:[%s2164 + $0x8c] sm:$0x1]
      %v3469 = vld [vmem:[%s2164 + $0x90] sm:$0xe]
      %v3470 = vld [vmem:[%s2164 + $0x94] sm:$0xf]
      %v3471 = vld [vmem:[%s2164 + $0x98] sm:$0x1]
      %v3472 = vld [vmem:[%s2164 + $0x9c] sm:$0xe]
      %v3473 = vld [vmem:[%s2164 + $0xa0] sm:$0xf]
      %v3474 = vld [vmem:[%s2164 + $0xa4] sm:$0x1]
      %v3475 = vld [vmem:[%s2164 + $0xa8] sm:$0xe]
      %v3476 = vld [vmem:[%s2164 + $0xac] sm:$0xf]
      %v3477 = vld [vmem:[%s2164 + $0xb0] sm:$0x1]
      %v3478 = vld [vmem:[%s2164 + $0xb4] sm:$0xe]
      %v3479 = vld [vmem:[%s2164 + $0xb8] sm:$0xf]
      %v3480 = vld [vmem:[%s2164 + $0xbc] sm:$0x1]
      %v3529 = vrot.slane %v3433, 5
      %v3530 = vrot.slane %v3529, 4
      %v3531 = vrot.slane %v3434, 5
      %v3532 = vsel %vm1662, %v3530, %v3531
      %v3533 = vrot.slane %v3531, 4
      %v3534 = vrot.slane %v3435, 5
      %v3535 = vsel %vm1662, %v3533, %v3534
      %v3536 = vrot.slane %v3436, 5
      %v3537 = vrot.slane %v3536, 4
      %v3538 = vrot.slane %v3437, 5
      %v3539 = vsel %vm1662, %v3537, %v3538
      %v3540 = vrot.slane %v3538, 4
      %v3541 = vrot.slane %v3438, 5
      %v3542 = vsel %vm1662, %v3540, %v3541
      %v3543 = vrot.slane %v3439, 5
      %v3544 = vrot.slane %v3543, 4
      %v3545 = vrot.slane %v3440, 5
      %v3546 = vsel %vm1662, %v3544, %v3545
      %v3547 = vrot.slane %v3545, 4
      %v3548 = vrot.slane %v3441, 5
      %v3549 = vsel %vm1662, %v3547, %v3548
      %v3550 = vrot.slane %v3442, 5
      %v3551 = vrot.slane %v3550, 4
      %v3552 = vrot.slane %v3443, 5
      %v3553 = vsel %vm1662, %v3551, %v3552
      %v3554 = vrot.slane %v3552, 4
      %v3555 = vrot.slane %v3444, 5
      %v3556 = vsel %vm1662, %v3554, %v3555
      %v3557 = vrot.slane %v3445, 5
      %v3558 = vrot.slane %v3557, 4
      %v3559 = vrot.slane %v3446, 5
      %v3560 = vsel %vm1662, %v3558, %v3559
      %v3561 = vrot.slane %v3559, 4
      %v3562 = vrot.slane %v3447, 5
      %v3563 = vsel %vm1662, %v3561, %v3562
      %v3564 = vrot.slane %v3448, 5
      %v3565 = vrot.slane %v3564, 4
      %v3566 = vrot.slane %v3449, 5
      %v3567 = vsel %vm1662, %v3565, %v3566
      %v3568 = vrot.slane %v3566, 4
      %v3569 = vrot.slane %v3450, 5
      %v3570 = vsel %vm1662, %v3568, %v3569
      %v3571 = vrot.slane %v3451, 5
      %v3572 = vrot.slane %v3571, 4
      %v3573 = vrot.slane %v3452, 5
      %v3574 = vsel %vm1662, %v3572, %v3573
      %v3575 = vrot.slane %v3573, 4
      %v3576 = vrot.slane %v3453, 5
      %v3577 = vsel %vm1662, %v3575, %v3576
      %v3578 = vrot.slane %v3454, 5
      %v3579 = vrot.slane %v3578, 4
      %v3580 = vrot.slane %v3455, 5
      %v3581 = vsel %vm1662, %v3579, %v3580
      %v3582 = vrot.slane %v3580, 4
      %v3583 = vrot.slane %v3456, 5
      %v3584 = vsel %vm1662, %v3582, %v3583
      %v3585 = vrot.slane %v3457, 5
      %v3586 = vrot.slane %v3585, 4
      %v3587 = vrot.slane %v3458, 5
      %v3588 = vsel %vm1662, %v3586, %v3587
      %v3589 = vrot.slane %v3587, 4
      %v3590 = vrot.slane %v3459, 5
      %v3591 = vsel %vm1662, %v3589, %v3590
      %v3592 = vrot.slane %v3460, 5
      %v3593 = vrot.slane %v3592, 4
      %v3594 = vrot.slane %v3461, 5
      %v3595 = vsel %vm1662, %v3593, %v3594
      %v3596 = vrot.slane %v3594, 4
      %v3597 = vrot.slane %v3462, 5
      %v3598 = vsel %vm1662, %v3596, %v3597
      %v3599 = vrot.slane %v3463, 5
      %v3600 = vrot.slane %v3599, 4
      %v3601 = vrot.slane %v3464, 5
      %v3602 = vsel %vm1662, %v3600, %v3601
      %v3603 = vrot.slane %v3601, 4
      %v3604 = vrot.slane %v3465, 5
      %v3605 = vsel %vm1662, %v3603, %v3604
      %v3606 = vrot.slane %v3466, 5
      %v3607 = vrot.slane %v3606, 4
      %v3608 = vrot.slane %v3467, 5
      %v3609 = vsel %vm1662, %v3607, %v3608
      %v3610 = vrot.slane %v3608, 4
      %v3611 = vrot.slane %v3468, 5
      %v3612 = vsel %vm1662, %v3610, %v3611
      %v3613 = vrot.slane %v3469, 5
      %v3614 = vrot.slane %v3613, 4
      %v3615 = vrot.slane %v3470, 5
      %v3616 = vsel %vm1662, %v3614, %v3615
      %v3617 = vrot.slane %v3615, 4
      %v3618 = vrot.slane %v3471, 5
      %v3619 = vsel %vm1662, %v3617, %v3618
      %v3620 = vrot.slane %v3472, 5
      %v3621 = vrot.slane %v3620, 4
      %v3622 = vrot.slane %v3473, 5
      %v3623 = vsel %vm1662, %v3621, %v3622
      %v3624 = vrot.slane %v3622, 4
      %v3625 = vrot.slane %v3474, 5
      %v3626 = vsel %vm1662, %v3624, %v3625
      %v3627 = vrot.slane %v3475, 5
      %v3628 = vrot.slane %v3627, 4
      %v3629 = vrot.slane %v3476, 5
      %v3630 = vsel %vm1662, %v3628, %v3629
      %v3631 = vrot.slane %v3629, 4
      %v3632 = vrot.slane %v3477, 5
      %v3633 = vsel %vm1662, %v3631, %v3632
      %v3634 = vrot.slane %v3478, 5
      %v3635 = vrot.slane %v3634, 4
      %v3636 = vrot.slane %v3479, 5
      %v3637 = vsel %vm1662, %v3635, %v3636
      %v3638 = vrot.slane %v3636, 4
      %v3639 = vrot.slane %v3480, 5
      %v3640 = vsel %vm1662, %v3638, %v3639
      %v3641 = vld [vmem:[#allocation2] sm:$0xff]
      %v3642 = vld [vmem:[#allocation2 + $0x8] sm:$0xff]
      %v3643 = vld [vmem:[#allocation2 + $0x10] sm:$0xff]
      %v3644 = vld [vmem:[#allocation2 + $0x18] sm:$0xff]
      %v3645 = vld [vmem:[#allocation2 + $0x20] sm:$0xff]
      %v3646 = vld [vmem:[#allocation2 + $0x28] sm:$0xff]
      %v3647 = vld [vmem:[#allocation2 + $0x30] sm:$0xff]
      %v3648 = vld [vmem:[#allocation2 + $0x38] sm:$0xff]
      %v3649 = vld [vmem:[#allocation2 + $0x40] sm:$0xff]
      %v3650 = vld [vmem:[#allocation2 + $0x48] sm:$0xff]
      %v3651 = vld [vmem:[#allocation2 + $0x50] sm:$0xff]
      %v3652 = vld [vmem:[#allocation2 + $0x58] sm:$0xff]
      %v3653 = vld [vmem:[#allocation2 + $0x60] sm:$0xff]
      %v3654 = vld [vmem:[#allocation2 + $0x68] sm:$0xff]
      %v3655 = vld [vmem:[#allocation2 + $0x70] sm:$0xff]
      %v3656 = vld [vmem:[#allocation2 + $0x78] sm:$0xff]
      %v3657 = vld [vmem:[#allocation2 + $0x80] sm:$0xff]
      %v3658 = vld [vmem:[#allocation2 + $0x88] sm:$0xff]
      %v3659 = vld [vmem:[#allocation2 + $0x90] sm:$0xff]
      %v3660 = vld [vmem:[#allocation2 + $0x98] sm:$0xff]
      %v3661 = vld [vmem:[#allocation2 + $0xa0] sm:$0xff]
      %v3662 = vld [vmem:[#allocation2 + $0xa8] sm:$0xff]
      %v3663 = vld [vmem:[#allocation2 + $0xb0] sm:$0xff]
      %v3664 = vld [vmem:[#allocation2 + $0xb8] sm:$0xff]
      %v3665 = vld [vmem:[#allocation2 + $0xc0] sm:$0xff]
      %v3666 = vld [vmem:[#allocation2 + $0xc8] sm:$0xff]
      %v3667 = vld [vmem:[#allocation2 + $0xd0] sm:$0xff]
      %v3668 = vld [vmem:[#allocation2 + $0xd8] sm:$0xff]
      %v3669 = vld [vmem:[#allocation2 + $0xe0] sm:$0xff]
      %v3670 = vld [vmem:[#allocation2 + $0xe8] sm:$0xff]
      %v3671 = vld [vmem:[#allocation2 + $0xf0] sm:$0xff]
      %v3672 = vld [vmem:[#allocation2 + $0xf8] sm:$0xff]
      %s3673 = scalar_lea.vmem %s1, 320
      %v3674 = vld [vmem:[%s3673] sm:$0xf]
      %v3675 = vld [vmem:[%s3673 + $0x4] sm:$0xf]
      %v3676 = vld [vmem:[%s3673 + $0x8] sm:$0xf]
      %v3677 = vld [vmem:[%s3673 + $0xc] sm:$0xf]
      %v3678 = vld [vmem:[%s3673 + $0x10] sm:$0xf]
      %v3679 = vld [vmem:[%s3673 + $0x14] sm:$0xf]
      %v3680 = vld [vmem:[%s3673 + $0x18] sm:$0xf]
      %v3681 = vld [vmem:[%s3673 + $0x1c] sm:$0xf]
      %v3682 = vld [vmem:[%s3673 + $0x20] sm:$0xf]
      %v3683 = vld [vmem:[%s3673 + $0x24] sm:$0xf]
      %v3684 = vld [vmem:[%s3673 + $0x28] sm:$0xf]
      %v3685 = vld [vmem:[%s3673 + $0x2c] sm:$0xf]
      %v3686 = vld [vmem:[%s3673 + $0x30] sm:$0xf]
      %v3687 = vld [vmem:[%s3673 + $0x34] sm:$0xf]
      %v3688 = vld [vmem:[%s3673 + $0x38] sm:$0xf]
      %v3689 = vld [vmem:[%s3673 + $0x3c] sm:$0xf]
      %v3690 = vunpack.c.l.b16 %v3532
      %v3691 = vunpack.c.l.b16 %v3535
      %v3692 = vunpack.c.l.b16 %v3539
      %v3693 = vunpack.c.l.b16 %v3542
      %v3694 = vunpack.c.l.b16 %v3546
      %v3695 = vunpack.c.l.b16 %v3549
      %v3696 = vunpack.c.l.b16 %v3553
      %v3697 = vunpack.c.l.b16 %v3556
      %v3698 = vunpack.c.l.b16 %v3560
      %v3699 = vunpack.c.l.b16 %v3563
      %v3700 = vunpack.c.l.b16 %v3567
      %v3701 = vunpack.c.l.b16 %v3570
      %v3702 = vunpack.c.l.b16 %v3574
      %v3703 = vunpack.c.l.b16 %v3577
      %v3704 = vunpack.c.l.b16 %v3581
      %v3705 = vunpack.c.l.b16 %v3584
      %v3706 = vunpack.c.l.b16 %v3588
      %v3707 = vunpack.c.l.b16 %v3591
      %v3708 = vunpack.c.l.b16 %v3595
      %v3709 = vunpack.c.l.b16 %v3598
      %v3710 = vunpack.c.l.b16 %v3602
      %v3711 = vunpack.c.l.b16 %v3605
      %v3712 = vunpack.c.l.b16 %v3609
      %v3713 = vunpack.c.l.b16 %v3612
      %v3714 = vunpack.c.l.b16 %v3616
      %v3715 = vunpack.c.l.b16 %v3619
      %v3716 = vunpack.c.l.b16 %v3623
      %v3717 = vunpack.c.l.b16 %v3626
      %v3718 = vunpack.c.l.b16 %v3630
      %v3719 = vunpack.c.l.b16 %v3633
      %v3720 = vunpack.c.l.b16 %v3637
      %v3721 = vunpack.c.l.b16 %v3640
      %v3722 = vpack.c.b16 %v3691, %v3690
      %v3723 = vpack.c.b16 %v3693, %v3692
      %v3724 = vpack.c.b16 %v3695, %v3694
      %v3725 = vpack.c.b16 %v3697, %v3696
      %v3726 = vpack.c.b16 %v3699, %v3698
      %v3727 = vpack.c.b16 %v3701, %v3700
      %v3728 = vpack.c.b16 %v3703, %v3702
      %v3729 = vpack.c.b16 %v3705, %v3704
      %v3730 = vpack.c.b16 %v3707, %v3706
      %v3731 = vpack.c.b16 %v3709, %v3708
      %v3732 = vpack.c.b16 %v3711, %v3710
      %v3733 = vpack.c.b16 %v3713, %v3712
      %v3734 = vpack.c.b16 %v3715, %v3714
      %v3735 = vpack.c.b16 %v3717, %v3716
      %v3736 = vpack.c.b16 %v3719, %v3718
      %v3737 = vpack.c.b16 %v3721, %v3720
      %v3770 = vunpack.c.l.b16 %v3674
      %v3771 = vunpack.c.l.b16 %v3675
      %v3772 = vunpack.c.l.b16 %v3676
      %v3773 = vunpack.c.l.b16 %v3677
      %v3774 = vunpack.c.l.b16 %v3678
      %v3775 = vunpack.c.l.b16 %v3679
      %v3776 = vunpack.c.l.b16 %v3680
      %v3777 = vunpack.c.l.b16 %v3681
      %v3778 = vunpack.c.l.b16 %v3682
      %v3779 = vunpack.c.l.b16 %v3683
      %v3780 = vunpack.c.l.b16 %v3684
      %v3781 = vunpack.c.l.b16 %v3685
      %v3782 = vunpack.c.l.b16 %v3686
      %v3783 = vunpack.c.l.b16 %v3687
      %v3784 = vunpack.c.l.b16 %v3688
      %v3785 = vunpack.c.l.b16 %v3689
      %v3786 = vpack.c.b16 %v3771, %v3770
      %v3787 = vpack.c.b16 %v3773, %v3772
      %v3788 = vpack.c.b16 %v3775, %v3774
      %v3789 = vpack.c.b16 %v3777, %v3776
      %v3790 = vpack.c.b16 %v3779, %v3778
      %v3791 = vpack.c.b16 %v3781, %v3780
      %v3792 = vpack.c.b16 %v3783, %v3782
      %v3793 = vpack.c.b16 %v3785, %v3784
      %3802 = vmatprep.subr.bf16.mxu0 0
      %3803 = vmatpush1.bf16.msra.mxu0 %v3793
      %3804 = vmatprep.subr.bf16.mxu0 0
      %3805 = vmatpush1.bf16.msra.mxu0 %v3792
      %3806 = vmatprep.subr.bf16.mxu0 0
      %3807 = vmatpush1.bf16.msra.mxu0 %v3791
      %3808 = vmatprep.subr.bf16.mxu0 0
      %3809 = vmatpush1.bf16.msra.mxu0 %v3790
      %3810 = vmatprep.subr.bf16.mxu0 0
      %3811 = vmatpush1.bf16.msra.mxu0 %v3789
      %3812 = vmatprep.subr.bf16.mxu0 0
      %3813 = vmatpush1.bf16.msra.mxu0 %v3788
      %3814 = vmatprep.subr.bf16.mxu0 0
      %3815 = vmatpush1.bf16.msra.mxu0 %v3787
      %3816 = vmatprep.subr.bf16.mxu0 0
      %3817 = vmatpush1.bf16.msra.mxu0 %v3786
      %3818 = vmatprep.subr.bf16.mxu0 0
      %3819 = vmatpush2.bf16.msra.mxu0 0
      %3820 = vmatprep.subr.bf16.mxu0 0
      %3821 = vmatpush2.bf16.msra.mxu0 0
      %3822 = vmatprep.subr.bf16.mxu0 0
      %3823 = vmatpush2.bf16.msra.mxu0 0
      %3824 = vmatprep.subr.bf16.mxu0 0
      %3825 = vmatpush2.bf16.msra.mxu0 0
      %3826 = vmatprep.subr.bf16.mxu0 0
      %3827 = vmatpush2.bf16.msra.mxu0 0
      %3828 = vmatprep.subr.bf16.mxu0 0
      %3829 = vmatpush2.bf16.msra.mxu0 0
      %3830 = vmatprep.subr.bf16.mxu0 0
      %3831 = vmatpush2.bf16.msra.mxu0 0
      %3832 = vmatprep.subr.bf16.mxu0 0
      %3833 = vmatpush2.bf16.msra.mxu0 0
      %3834 = vmatprep.mubr.bf16.mxu0 0
      %3835 = vmatmul.mubr.bf16.gmra.mxu0 %v3722
      %v3836 = vpop.f32.mrf.mxu0
      %v3837 = vadd.f32 0.0, %v3836
      %v3838 = vpop.f32.mrf.mxu0
      %v3839 = vpop.f32.mrf.mxu0
      %v3840 = vadd.f32 0.0, %v3839
      %v3841 = vpop.f32.mrf.mxu0
      %3842 = vmatprep.mubr.bf16.mxu0 0
      %3843 = vmatmul.mubr.bf16.gmra.mxu0 %v3723
      %v3844 = vpop.f32.mrf.mxu0
      %v3845 = vadd.f32 0.0, %v3844
      %v3846 = vpop.f32.mrf.mxu0
      %v3847 = vpop.f32.mrf.mxu0
      %v3848 = vadd.f32 0.0, %v3847
      %v3849 = vpop.f32.mrf.mxu0
      %3850 = vmatprep.mubr.bf16.mxu0 0
      %3851 = vmatmul.mubr.bf16.gmra.mxu0 %v3724
      %v3852 = vpop.f32.mrf.mxu0
      %v3853 = vadd.f32 0.0, %v3852
      %v3854 = vpop.f32.mrf.mxu0
      %v3855 = vpop.f32.mrf.mxu0
      %v3856 = vadd.f32 0.0, %v3855
      %v3857 = vpop.f32.mrf.mxu0
      %3858 = vmatprep.mubr.bf16.mxu0 0
      %3859 = vmatmul.mubr.bf16.gmra.mxu0 %v3725
      %v3860 = vpop.f32.mrf.mxu0
      %v3861 = vadd.f32 0.0, %v3860
      %v3862 = vpop.f32.mrf.mxu0
      %v3863 = vpop.f32.mrf.mxu0
      %v3864 = vadd.f32 0.0, %v3863
      %v3865 = vpop.f32.mrf.mxu0
      %3866 = vmatprep.mubr.bf16.mxu0 0
      %3867 = vmatmul.mubr.bf16.gmra.mxu0 %v3726
      %v3868 = vpop.f32.mrf.mxu0
      %v3869 = vadd.f32 0.0, %v3868
      %v3870 = vpop.f32.mrf.mxu0
      %v3871 = vpop.f32.mrf.mxu0
      %v3872 = vadd.f32 0.0, %v3871
      %v3873 = vpop.f32.mrf.mxu0
      %3874 = vmatprep.mubr.bf16.mxu0 0
      %3875 = vmatmul.mubr.bf16.gmra.mxu0 %v3727
      %v3876 = vpop.f32.mrf.mxu0
      %v3877 = vadd.f32 0.0, %v3876
      %v3878 = vpop.f32.mrf.mxu0
      %v3879 = vpop.f32.mrf.mxu0
      %v3880 = vadd.f32 0.0, %v3879
      %v3881 = vpop.f32.mrf.mxu0
      %3882 = vmatprep.mubr.bf16.mxu0 0
      %3883 = vmatmul.mubr.bf16.gmra.mxu0 %v3728
      %v3884 = vpop.f32.mrf.mxu0
      %v3885 = vadd.f32 0.0, %v3884
      %v3886 = vpop.f32.mrf.mxu0
      %v3887 = vpop.f32.mrf.mxu0
      %v3888 = vadd.f32 0.0, %v3887
      %v3889 = vpop.f32.mrf.mxu0
      %3890 = vmatprep.mubr.bf16.mxu0 0
      %3891 = vmatmul.mubr.bf16.gmra.mxu0 %v3729
      %v3892 = vpop.f32.mrf.mxu0
      %v3893 = vadd.f32 0.0, %v3892
      %v3894 = vpop.f32.mrf.mxu0
      %v3895 = vpop.f32.mrf.mxu0
      %v3896 = vadd.f32 0.0, %v3895
      %v3897 = vpop.f32.mrf.mxu0
      %3898 = vmatprep.mubr.bf16.mxu0 0
      %3899 = vmatmul.mubr.bf16.gmra.mxu0 %v3730
      %v3900 = vpop.f32.mrf.mxu0
      %v3901 = vadd.f32 0.0, %v3900
      %v3902 = vpop.f32.mrf.mxu0
      %v3903 = vpop.f32.mrf.mxu0
      %v3904 = vadd.f32 0.0, %v3903
      %v3905 = vpop.f32.mrf.mxu0
      %3906 = vmatprep.mubr.bf16.mxu0 0
      %3907 = vmatmul.mubr.bf16.gmra.mxu0 %v3731
      %v3908 = vpop.f32.mrf.mxu0
      %v3909 = vadd.f32 0.0, %v3908
      %v3910 = vpop.f32.mrf.mxu0
      %v3911 = vpop.f32.mrf.mxu0
      %v3912 = vadd.f32 0.0, %v3911
      %v3913 = vpop.f32.mrf.mxu0
      %3914 = vmatprep.mubr.bf16.mxu0 0
      %3915 = vmatmul.mubr.bf16.gmra.mxu0 %v3732
      %v3916 = vpop.f32.mrf.mxu0
      %v3917 = vadd.f32 0.0, %v3916
      %v3918 = vpop.f32.mrf.mxu0
      %v3919 = vpop.f32.mrf.mxu0
      %v3920 = vadd.f32 0.0, %v3919
      %v3921 = vpop.f32.mrf.mxu0
      %3922 = vmatprep.mubr.bf16.mxu0 0
      %3923 = vmatmul.mubr.bf16.gmra.mxu0 %v3733
      %v3924 = vpop.f32.mrf.mxu0
      %v3925 = vadd.f32 0.0, %v3924
      %v3926 = vpop.f32.mrf.mxu0
      %v3927 = vpop.f32.mrf.mxu0
      %v3928 = vadd.f32 0.0, %v3927
      %v3929 = vpop.f32.mrf.mxu0
      %3930 = vmatprep.mubr.bf16.mxu0 0
      %3931 = vmatmul.mubr.bf16.gmra.mxu0 %v3734
      %v3932 = vpop.f32.mrf.mxu0
      %v3933 = vadd.f32 0.0, %v3932
      %v3934 = vpop.f32.mrf.mxu0
      %v3935 = vpop.f32.mrf.mxu0
      %v3936 = vadd.f32 0.0, %v3935
      %v3937 = vpop.f32.mrf.mxu0
      %3938 = vmatprep.mubr.bf16.mxu0 0
      %3939 = vmatmul.mubr.bf16.gmra.mxu0 %v3735
      %v3940 = vpop.f32.mrf.mxu0
      %v3941 = vadd.f32 0.0, %v3940
      %v3942 = vpop.f32.mrf.mxu0
      %v3943 = vpop.f32.mrf.mxu0
      %v3944 = vadd.f32 0.0, %v3943
      %v3945 = vpop.f32.mrf.mxu0
      %3946 = vmatprep.mubr.bf16.mxu0 0
      %3947 = vmatmul.mubr.bf16.gmra.mxu0 %v3736
      %v3948 = vpop.f32.mrf.mxu0
      %v3949 = vadd.f32 0.0, %v3948
      %v3950 = vpop.f32.mrf.mxu0
      %v3951 = vpop.f32.mrf.mxu0
      %v3952 = vadd.f32 0.0, %v3951
      %v3953 = vpop.f32.mrf.mxu0
      %3954 = vmatprep.mubr.bf16.mxu0 0
      %3955 = vmatmul.mubr.bf16.gmra.mxu0 %v3737
      %v3956 = vpop.f32.mrf.mxu0
      %v3957 = vadd.f32 0.0, %v3956
      %v3958 = vpop.f32.mrf.mxu0
      %v3959 = vpop.f32.mrf.mxu0
      %v3960 = vadd.f32 0.0, %v3959
      %v3961 = vpop.f32.mrf.mxu0
      %3962 = vdwg.mxu0
      %v3963 = vadd.f32 %v3641, %v3837
      %v3964 = vadd.f32 %v3642, %v3840
      %v3965 = vadd.f32 %v3643, %v3845
      %v3966 = vadd.f32 %v3644, %v3848
      %v3967 = vadd.f32 %v3645, %v3853
      %v3968 = vadd.f32 %v3646, %v3856
      %v3969 = vadd.f32 %v3647, %v3861
      %v3970 = vadd.f32 %v3648, %v3864
      %v3971 = vadd.f32 %v3649, %v3869
      %v3972 = vadd.f32 %v3650, %v3872
      %v3973 = vadd.f32 %v3651, %v3877
      %v3974 = vadd.f32 %v3652, %v3880
      %v3975 = vadd.f32 %v3653, %v3885
      %v3976 = vadd.f32 %v3654, %v3888
      %v3977 = vadd.f32 %v3655, %v3893
      %v3978 = vadd.f32 %v3656, %v3896
      %v3979 = vadd.f32 %v3657, %v3901
      %v3980 = vadd.f32 %v3658, %v3904
      %v3981 = vadd.f32 %v3659, %v3909
      %v3982 = vadd.f32 %v3660, %v3912
      %v3983 = vadd.f32 %v3661, %v3917
      %v3984 = vadd.f32 %v3662, %v3920
      %v3985 = vadd.f32 %v3663, %v3925
      %v3986 = vadd.f32 %v3664, %v3928
      %v3987 = vadd.f32 %v3665, %v3933
      %v3988 = vadd.f32 %v3666, %v3936
      %v3989 = vadd.f32 %v3667, %v3941
      %v3990 = vadd.f32 %v3668, %v3944
      %v3991 = vadd.f32 %v3669, %v3949
      %v3992 = vadd.f32 %v3670, %v3952
      %v3993 = vadd.f32 %v3671, %v3957
      %v3994 = vadd.f32 %v3672, %v3960
      %3995 = vst [vmem:[#allocation2] sm:$0xff] %v3963
      %3996 = vst [vmem:[#allocation2 + $0x8] sm:$0xff] %v3964
      %3997 = vst [vmem:[#allocation2 + $0x10] sm:$0xff] %v3965
      %3998 = vst [vmem:[#allocation2 + $0x18] sm:$0xff] %v3966
      %3999 = vst [vmem:[#allocation2 + $0x20] sm:$0xff] %v3967
      %4000 = vst [vmem:[#allocation2 + $0x28] sm:$0xff] %v3968
      %4001 = vst [vmem:[#allocation2 + $0x30] sm:$0xff] %v3969
      %4002 = vst [vmem:[#allocation2 + $0x38] sm:$0xff] %v3970
      %4003 = vst [vmem:[#allocation2 + $0x40] sm:$0xff] %v3971
      %4004 = vst [vmem:[#allocation2 + $0x48] sm:$0xff] %v3972
      %4005 = vst [vmem:[#allocation2 + $0x50] sm:$0xff] %v3973
      %4006 = vst [vmem:[#allocation2 + $0x58] sm:$0xff] %v3974
      %4007 = vst [vmem:[#allocation2 + $0x60] sm:$0xff] %v3975
      %4008 = vst [vmem:[#allocation2 + $0x68] sm:$0xff] %v3976
      %4009 = vst [vmem:[#allocation2 + $0x70] sm:$0xff] %v3977
      %4010 = vst [vmem:[#allocation2 + $0x78] sm:$0xff] %v3978
      %4011 = vst [vmem:[#allocation2 + $0x80] sm:$0xff] %v3979
      %4012 = vst [vmem:[#allocation2 + $0x88] sm:$0xff] %v3980
      %4013 = vst [vmem:[#allocation2 + $0x90] sm:$0xff] %v3981
      %4014 = vst [vmem:[#allocation2 + $0x98] sm:$0xff] %v3982
      %4015 = vst [vmem:[#allocation2 + $0xa0] sm:$0xff] %v3983
      %4016 = vst [vmem:[#allocation2 + $0xa8] sm:$0xff] %v3984
      %4017 = vst [vmem:[#allocation2 + $0xb0] sm:$0xff] %v3985
      %4018 = vst [vmem:[#allocation2 + $0xb8] sm:$0xff] %v3986
      %4019 = vst [vmem:[#allocation2 + $0xc0] sm:$0xff] %v3987
      %4020 = vst [vmem:[#allocation2 + $0xc8] sm:$0xff] %v3988
      %4021 = vst [vmem:[#allocation2 + $0xd0] sm:$0xff] %v3989
      %4022 = vst [vmem:[#allocation2 + $0xd8] sm:$0xff] %v3990
      %4023 = vst [vmem:[#allocation2 + $0xe0] sm:$0xff] %v3991
      %4024 = vst [vmem:[#allocation2 + $0xe8] sm:$0xff] %v3992
      %4025 = vst [vmem:[#allocation2 + $0xf0] sm:$0xff] %v3993
      %4026 = vst [vmem:[#allocation2 + $0xf8] sm:$0xff] %v3994
      %s4027 = sadd.s32 %s258, 2
      %s4028 = smul.u32 %s4027, 3
      %s4029 = smul.addr %s4028, 4
      %s4030 = scalar_lea.vmem %s236, %s4029
      %v4031 = vld [vmem:[%s4030] sm:$0xf]
      %v4032 = vld [vmem:[%s4030 + $0x4] sm:$0xf]
      %v4033 = vld [vmem:[%s4030 + $0xc] sm:$0xf]
      %v4034 = vld [vmem:[%s4030 + $0x10] sm:$0xf]
      %v4035 = vld [vmem:[%s4030 + $0x18] sm:$0xf]
      %v4036 = vld [vmem:[%s4030 + $0x1c] sm:$0xf]
      %v4037 = vld [vmem:[%s4030 + $0x24] sm:$0xf]
      %v4038 = vld [vmem:[%s4030 + $0x28] sm:$0xf]
      %v4039 = vld [vmem:[%s4030 + $0x30] sm:$0xf]
      %v4040 = vld [vmem:[%s4030 + $0x34] sm:$0xf]
      %v4041 = vld [vmem:[%s4030 + $0x3c] sm:$0xf]
      %v4042 = vld [vmem:[%s4030 + $0x40] sm:$0xf]
      %v4043 = vld [vmem:[%s4030 + $0x48] sm:$0xf]
      %v4044 = vld [vmem:[%s4030 + $0x4c] sm:$0xf]
      %v4045 = vld [vmem:[%s4030 + $0x54] sm:$0xf]
      %v4046 = vld [vmem:[%s4030 + $0x58] sm:$0xf]
      %v4047 = vld [vmem:[%s4030 + $0x60] sm:$0xf]
      %v4048 = vld [vmem:[%s4030 + $0x64] sm:$0xf]
      %v4049 = vld [vmem:[%s4030 + $0x6c] sm:$0xf]
      %v4050 = vld [vmem:[%s4030 + $0x70] sm:$0xf]
      %v4051 = vld [vmem:[%s4030 + $0x78] sm:$0xf]
      %v4052 = vld [vmem:[%s4030 + $0x7c] sm:$0xf]
      %v4053 = vld [vmem:[%s4030 + $0x84] sm:$0xf]
      %v4054 = vld [vmem:[%s4030 + $0x88] sm:$0xf]
      %v4055 = vld [vmem:[%s4030 + $0x90] sm:$0xf]
      %v4056 = vld [vmem:[%s4030 + $0x94] sm:$0xf]
      %v4057 = vld [vmem:[%s4030 + $0x9c] sm:$0xf]
      %v4058 = vld [vmem:[%s4030 + $0xa0] sm:$0xf]
      %v4059 = vld [vmem:[%s4030 + $0xa8] sm:$0xf]
      %v4060 = vld [vmem:[%s4030 + $0xac] sm:$0xf]
      %v4061 = vld [vmem:[%s4030 + $0xb4] sm:$0xf]
      %v4062 = vld [vmem:[%s4030 + $0xb8] sm:$0xf]
      %v4063 = vld [vmem:[#allocation2] sm:$0xff]
      %v4064 = vld [vmem:[#allocation2 + $0x8] sm:$0xff]
      %v4065 = vld [vmem:[#allocation2 + $0x10] sm:$0xff]
      %v4066 = vld [vmem:[#allocation2 + $0x18] sm:$0xff]
      %v4067 = vld [vmem:[#allocation2 + $0x20] sm:$0xff]
      %v4068 = vld [vmem:[#allocation2 + $0x28] sm:$0xff]
      %v4069 = vld [vmem:[#allocation2 + $0x30] sm:$0xff]
      %v4070 = vld [vmem:[#allocation2 + $0x38] sm:$0xff]
      %v4071 = vld [vmem:[#allocation2 + $0x40] sm:$0xff]
      %v4072 = vld [vmem:[#allocation2 + $0x48] sm:$0xff]
      %v4073 = vld [vmem:[#allocation2 + $0x50] sm:$0xff]
      %v4074 = vld [vmem:[#allocation2 + $0x58] sm:$0xff]
      %v4075 = vld [vmem:[#allocation2 + $0x60] sm:$0xff]
      %v4076 = vld [vmem:[#allocation2 + $0x68] sm:$0xff]
      %v4077 = vld [vmem:[#allocation2 + $0x70] sm:$0xff]
      %v4078 = vld [vmem:[#allocation2 + $0x78] sm:$0xff]
      %v4079 = vld [vmem:[#allocation2 + $0x80] sm:$0xff]
      %v4080 = vld [vmem:[#allocation2 + $0x88] sm:$0xff]
      %v4081 = vld [vmem:[#allocation2 + $0x90] sm:$0xff]
      %v4082 = vld [vmem:[#allocation2 + $0x98] sm:$0xff]
      %v4083 = vld [vmem:[#allocation2 + $0xa0] sm:$0xff]
      %v4084 = vld [vmem:[#allocation2 + $0xa8] sm:$0xff]
      %v4085 = vld [vmem:[#allocation2 + $0xb0] sm:$0xff]
      %v4086 = vld [vmem:[#allocation2 + $0xb8] sm:$0xff]
      %v4087 = vld [vmem:[#allocation2 + $0xc0] sm:$0xff]
      %v4088 = vld [vmem:[#allocation2 + $0xc8] sm:$0xff]
      %v4089 = vld [vmem:[#allocation2 + $0xd0] sm:$0xff]
      %v4090 = vld [vmem:[#allocation2 + $0xd8] sm:$0xff]
      %v4091 = vld [vmem:[#allocation2 + $0xe0] sm:$0xff]
      %v4092 = vld [vmem:[#allocation2 + $0xe8] sm:$0xff]
      %v4093 = vld [vmem:[#allocation2 + $0xf0] sm:$0xff]
      %v4094 = vld [vmem:[#allocation2 + $0xf8] sm:$0xff]
      %s4095 = scalar_lea.vmem %s1, 384
      %v4096 = vld [vmem:[%s4095] sm:$0xf]
      %v4097 = vld [vmem:[%s4095 + $0x4] sm:$0xf]
      %v4098 = vld [vmem:[%s4095 + $0x8] sm:$0xf]
      %v4099 = vld [vmem:[%s4095 + $0xc] sm:$0xf]
      %v4100 = vld [vmem:[%s4095 + $0x10] sm:$0xf]
      %v4101 = vld [vmem:[%s4095 + $0x14] sm:$0xf]
      %v4102 = vld [vmem:[%s4095 + $0x18] sm:$0xf]
      %v4103 = vld [vmem:[%s4095 + $0x1c] sm:$0xf]
      %v4104 = vld [vmem:[%s4095 + $0x20] sm:$0xf]
      %v4105 = vld [vmem:[%s4095 + $0x24] sm:$0xf]
      %v4106 = vld [vmem:[%s4095 + $0x28] sm:$0xf]
      %v4107 = vld [vmem:[%s4095 + $0x2c] sm:$0xf]
      %v4108 = vld [vmem:[%s4095 + $0x30] sm:$0xf]
      %v4109 = vld [vmem:[%s4095 + $0x34] sm:$0xf]
      %v4110 = vld [vmem:[%s4095 + $0x38] sm:$0xf]
      %v4111 = vld [vmem:[%s4095 + $0x3c] sm:$0xf]
      %v4144 = vunpack.c.l.b16 %v4031
      %v4145 = vunpack.c.l.b16 %v4032
      %v4146 = vunpack.c.l.b16 %v4033
      %v4147 = vunpack.c.l.b16 %v4034
      %v4148 = vunpack.c.l.b16 %v4035
      %v4149 = vunpack.c.l.b16 %v4036
      %v4150 = vunpack.c.l.b16 %v4037
      %v4151 = vunpack.c.l.b16 %v4038
      %v4152 = vunpack.c.l.b16 %v4039
      %v4153 = vunpack.c.l.b16 %v4040
      %v4154 = vunpack.c.l.b16 %v4041
      %v4155 = vunpack.c.l.b16 %v4042
      %v4156 = vunpack.c.l.b16 %v4043
      %v4157 = vunpack.c.l.b16 %v4044
      %v4158 = vunpack.c.l.b16 %v4045
      %v4159 = vunpack.c.l.b16 %v4046
      %v4160 = vunpack.c.l.b16 %v4047
      %v4161 = vunpack.c.l.b16 %v4048
      %v4162 = vunpack.c.l.b16 %v4049
      %v4163 = vunpack.c.l.b16 %v4050
      %v4164 = vunpack.c.l.b16 %v4051
      %v4165 = vunpack.c.l.b16 %v4052
      %v4166 = vunpack.c.l.b16 %v4053
      %v4167 = vunpack.c.l.b16 %v4054
      %v4168 = vunpack.c.l.b16 %v4055
      %v4169 = vunpack.c.l.b16 %v4056
      %v4170 = vunpack.c.l.b16 %v4057
      %v4171 = vunpack.c.l.b16 %v4058
      %v4172 = vunpack.c.l.b16 %v4059
      %v4173 = vunpack.c.l.b16 %v4060
      %v4174 = vunpack.c.l.b16 %v4061
      %v4175 = vunpack.c.l.b16 %v4062
      %v4176 = vpack.c.b16 %v4145, %v4144
      %v4177 = vpack.c.b16 %v4147, %v4146
      %v4178 = vpack.c.b16 %v4149, %v4148
      %v4179 = vpack.c.b16 %v4151, %v4150
      %v4180 = vpack.c.b16 %v4153, %v4152
      %v4181 = vpack.c.b16 %v4155, %v4154
      %v4182 = vpack.c.b16 %v4157, %v4156
      %v4183 = vpack.c.b16 %v4159, %v4158
      %v4184 = vpack.c.b16 %v4161, %v4160
      %v4185 = vpack.c.b16 %v4163, %v4162
      %v4186 = vpack.c.b16 %v4165, %v4164
      %v4187 = vpack.c.b16 %v4167, %v4166
      %v4188 = vpack.c.b16 %v4169, %v4168
      %v4189 = vpack.c.b16 %v4171, %v4170
      %v4190 = vpack.c.b16 %v4173, %v4172
      %v4191 = vpack.c.b16 %v4175, %v4174
      %v4224 = vunpack.c.l.b16 %v4096
      %v4225 = vunpack.c.l.b16 %v4097
      %v4226 = vunpack.c.l.b16 %v4098
      %v4227 = vunpack.c.l.b16 %v4099
      %v4228 = vunpack.c.l.b16 %v4100
      %v4229 = vunpack.c.l.b16 %v4101
      %v4230 = vunpack.c.l.b16 %v4102
      %v4231 = vunpack.c.l.b16 %v4103
      %v4232 = vunpack.c.l.b16 %v4104
      %v4233 = vunpack.c.l.b16 %v4105
      %v4234 = vunpack.c.l.b16 %v4106
      %v4235 = vunpack.c.l.b16 %v4107
      %v4236 = vunpack.c.l.b16 %v4108
      %v4237 = vunpack.c.l.b16 %v4109
      %v4238 = vunpack.c.l.b16 %v4110
      %v4239 = vunpack.c.l.b16 %v4111
      %v4240 = vpack.c.b16 %v4225, %v4224
      %v4241 = vpack.c.b16 %v4227, %v4226
      %v4242 = vpack.c.b16 %v4229, %v4228
      %v4243 = vpack.c.b16 %v4231, %v4230
      %v4244 = vpack.c.b16 %v4233, %v4232
      %v4245 = vpack.c.b16 %v4235, %v4234
      %v4246 = vpack.c.b16 %v4237, %v4236
      %v4247 = vpack.c.b16 %v4239, %v4238
      %4256 = vmatprep.subr.bf16.mxu0 0
      %4257 = vmatpush1.bf16.msra.mxu0 %v4247
      %4258 = vmatprep.subr.bf16.mxu0 0
      %4259 = vmatpush1.bf16.msra.mxu0 %v4246
      %4260 = vmatprep.subr.bf16.mxu0 0
      %4261 = vmatpush1.bf16.msra.mxu0 %v4245
      %4262 = vmatprep.subr.bf16.mxu0 0
      %4263 = vmatpush1.bf16.msra.mxu0 %v4244
      %4264 = vmatprep.subr.bf16.mxu0 0
      %4265 = vmatpush1.bf16.msra.mxu0 %v4243
      %4266 = vmatprep.subr.bf16.mxu0 0
      %4267 = vmatpush1.bf16.msra.mxu0 %v4242
      %4268 = vmatprep.subr.bf16.mxu0 0
      %4269 = vmatpush1.bf16.msra.mxu0 %v4241
      %4270 = vmatprep.subr.bf16.mxu0 0
      %4271 = vmatpush1.bf16.msra.mxu0 %v4240
      %4272 = vmatprep.subr.bf16.mxu0 0
      %4273 = vmatpush2.bf16.msra.mxu0 0
      %4274 = vmatprep.subr.bf16.mxu0 0
      %4275 = vmatpush2.bf16.msra.mxu0 0
      %4276 = vmatprep.subr.bf16.mxu0 0
      %4277 = vmatpush2.bf16.msra.mxu0 0
      %4278 = vmatprep.subr.bf16.mxu0 0
      %4279 = vmatpush2.bf16.msra.mxu0 0
      %4280 = vmatprep.subr.bf16.mxu0 0
      %4281 = vmatpush2.bf16.msra.mxu0 0
      %4282 = vmatprep.subr.bf16.mxu0 0
      %4283 = vmatpush2.bf16.msra.mxu0 0
      %4284 = vmatprep.subr.bf16.mxu0 0
      %4285 = vmatpush2.bf16.msra.mxu0 0
      %4286 = vmatprep.subr.bf16.mxu0 0
      %4287 = vmatpush2.bf16.msra.mxu0 0
      %4288 = vmatprep.mubr.bf16.mxu0 0
      %4289 = vmatmul.mubr.bf16.gmra.mxu0 %v4176
      %v4290 = vpop.f32.mrf.mxu0
      %v4291 = vadd.f32 0.0, %v4290
      %v4292 = vpop.f32.mrf.mxu0
      %v4293 = vpop.f32.mrf.mxu0
      %v4294 = vadd.f32 0.0, %v4293
      %v4295 = vpop.f32.mrf.mxu0
      %4296 = vmatprep.mubr.bf16.mxu0 0
      %4297 = vmatmul.mubr.bf16.gmra.mxu0 %v4177
      %v4298 = vpop.f32.mrf.mxu0
      %v4299 = vadd.f32 0.0, %v4298
      %v4300 = vpop.f32.mrf.mxu0
      %v4301 = vpop.f32.mrf.mxu0
      %v4302 = vadd.f32 0.0, %v4301
      %v4303 = vpop.f32.mrf.mxu0
      %4304 = vmatprep.mubr.bf16.mxu0 0
      %4305 = vmatmul.mubr.bf16.gmra.mxu0 %v4178
      %v4306 = vpop.f32.mrf.mxu0
      %v4307 = vadd.f32 0.0, %v4306
      %v4308 = vpop.f32.mrf.mxu0
      %v4309 = vpop.f32.mrf.mxu0
      %v4310 = vadd.f32 0.0, %v4309
      %v4311 = vpop.f32.mrf.mxu0
      %4312 = vmatprep.mubr.bf16.mxu0 0
      %4313 = vmatmul.mubr.bf16.gmra.mxu0 %v4179
      %v4314 = vpop.f32.mrf.mxu0
      %v4315 = vadd.f32 0.0, %v4314
      %v4316 = vpop.f32.mrf.mxu0
      %v4317 = vpop.f32.mrf.mxu0
      %v4318 = vadd.f32 0.0, %v4317
      %v4319 = vpop.f32.mrf.mxu0
      %4320 = vmatprep.mubr.bf16.mxu0 0
      %4321 = vmatmul.mubr.bf16.gmra.mxu0 %v4180
      %v4322 = vpop.f32.mrf.mxu0
      %v4323 = vadd.f32 0.0, %v4322
      %v4324 = vpop.f32.mrf.mxu0
      %v4325 = vpop.f32.mrf.mxu0
      %v4326 = vadd.f32 0.0, %v4325
      %v4327 = vpop.f32.mrf.mxu0
      %4328 = vmatprep.mubr.bf16.mxu0 0
      %4329 = vmatmul.mubr.bf16.gmra.mxu0 %v4181
      %v4330 = vpop.f32.mrf.mxu0
      %v4331 = vadd.f32 0.0, %v4330
      %v4332 = vpop.f32.mrf.mxu0
      %v4333 = vpop.f32.mrf.mxu0
      %v4334 = vadd.f32 0.0, %v4333
      %v4335 = vpop.f32.mrf.mxu0
      %4336 = vmatprep.mubr.bf16.mxu0 0
      %4337 = vmatmul.mubr.bf16.gmra.mxu0 %v4182
      %v4338 = vpop.f32.mrf.mxu0
      %v4339 = vadd.f32 0.0, %v4338
      %v4340 = vpop.f32.mrf.mxu0
      %v4341 = vpop.f32.mrf.mxu0
      %v4342 = vadd.f32 0.0, %v4341
      %v4343 = vpop.f32.mrf.mxu0
      %4344 = vmatprep.mubr.bf16.mxu0 0
      %4345 = vmatmul.mubr.bf16.gmra.mxu0 %v4183
      %v4346 = vpop.f32.mrf.mxu0
      %v4347 = vadd.f32 0.0, %v4346
      %v4348 = vpop.f32.mrf.mxu0
      %v4349 = vpop.f32.mrf.mxu0
      %v4350 = vadd.f32 0.0, %v4349
      %v4351 = vpop.f32.mrf.mxu0
      %4352 = vmatprep.mubr.bf16.mxu0 0
      %4353 = vmatmul.mubr.bf16.gmra.mxu0 %v4184
      %v4354 = vpop.f32.mrf.mxu0
      %v4355 = vadd.f32 0.0, %v4354
      %v4356 = vpop.f32.mrf.mxu0
      %v4357 = vpop.f32.mrf.mxu0
      %v4358 = vadd.f32 0.0, %v4357
      %v4359 = vpop.f32.mrf.mxu0
      %4360 = vmatprep.mubr.bf16.mxu0 0
      %4361 = vmatmul.mubr.bf16.gmra.mxu0 %v4185
      %v4362 = vpop.f32.mrf.mxu0
      %v4363 = vadd.f32 0.0, %v4362
      %v4364 = vpop.f32.mrf.mxu0
      %v4365 = vpop.f32.mrf.mxu0
      %v4366 = vadd.f32 0.0, %v4365
      %v4367 = vpop.f32.mrf.mxu0
      %4368 = vmatprep.mubr.bf16.mxu0 0
      %4369 = vmatmul.mubr.bf16.gmra.mxu0 %v4186
      %v4370 = vpop.f32.mrf.mxu0
      %v4371 = vadd.f32 0.0, %v4370
      %v4372 = vpop.f32.mrf.mxu0
      %v4373 = vpop.f32.mrf.mxu0
      %v4374 = vadd.f32 0.0, %v4373
      %v4375 = vpop.f32.mrf.mxu0
      %4376 = vmatprep.mubr.bf16.mxu0 0
      %4377 = vmatmul.mubr.bf16.gmra.mxu0 %v4187
      %v4378 = vpop.f32.mrf.mxu0
      %v4379 = vadd.f32 0.0, %v4378
      %v4380 = vpop.f32.mrf.mxu0
      %v4381 = vpop.f32.mrf.mxu0
      %v4382 = vadd.f32 0.0, %v4381
      %v4383 = vpop.f32.mrf.mxu0
      %4384 = vmatprep.mubr.bf16.mxu0 0
      %4385 = vmatmul.mubr.bf16.gmra.mxu0 %v4188
      %v4386 = vpop.f32.mrf.mxu0
      %v4387 = vadd.f32 0.0, %v4386
      %v4388 = vpop.f32.mrf.mxu0
      %v4389 = vpop.f32.mrf.mxu0
      %v4390 = vadd.f32 0.0, %v4389
      %v4391 = vpop.f32.mrf.mxu0
      %4392 = vmatprep.mubr.bf16.mxu0 0
      %4393 = vmatmul.mubr.bf16.gmra.mxu0 %v4189
      %v4394 = vpop.f32.mrf.mxu0
      %v4395 = vadd.f32 0.0, %v4394
      %v4396 = vpop.f32.mrf.mxu0
      %v4397 = vpop.f32.mrf.mxu0
      %v4398 = vadd.f32 0.0, %v4397
      %v4399 = vpop.f32.mrf.mxu0
      %4400 = vmatprep.mubr.bf16.mxu0 0
      %4401 = vmatmul.mubr.bf16.gmra.mxu0 %v4190
      %v4402 = vpop.f32.mrf.mxu0
      %v4403 = vadd.f32 0.0, %v4402
      %v4404 = vpop.f32.mrf.mxu0
      %v4405 = vpop.f32.mrf.mxu0
      %v4406 = vadd.f32 0.0, %v4405
      %v4407 = vpop.f32.mrf.mxu0
      %4408 = vmatprep.mubr.bf16.mxu0 0
      %4409 = vmatmul.mubr.bf16.gmra.mxu0 %v4191
      %v4410 = vpop.f32.mrf.mxu0
      %v4411 = vadd.f32 0.0, %v4410
      %v4412 = vpop.f32.mrf.mxu0
      %v4413 = vpop.f32.mrf.mxu0
      %v4414 = vadd.f32 0.0, %v4413
      %v4415 = vpop.f32.mrf.mxu0
      %4416 = vdwg.mxu0
      %v4417 = vadd.f32 %v4063, %v4291
      %v4418 = vadd.f32 %v4064, %v4294
      %v4419 = vadd.f32 %v4065, %v4299
      %v4420 = vadd.f32 %v4066, %v4302
      %v4421 = vadd.f32 %v4067, %v4307
      %v4422 = vadd.f32 %v4068, %v4310
      %v4423 = vadd.f32 %v4069, %v4315
      %v4424 = vadd.f32 %v4070, %v4318
      %v4425 = vadd.f32 %v4071, %v4323
      %v4426 = vadd.f32 %v4072, %v4326
      %v4427 = vadd.f32 %v4073, %v4331
      %v4428 = vadd.f32 %v4074, %v4334
      %v4429 = vadd.f32 %v4075, %v4339
      %v4430 = vadd.f32 %v4076, %v4342
      %v4431 = vadd.f32 %v4077, %v4347
      %v4432 = vadd.f32 %v4078, %v4350
      %v4433 = vadd.f32 %v4079, %v4355
      %v4434 = vadd.f32 %v4080, %v4358
      %v4435 = vadd.f32 %v4081, %v4363
      %v4436 = vadd.f32 %v4082, %v4366
      %v4437 = vadd.f32 %v4083, %v4371
      %v4438 = vadd.f32 %v4084, %v4374
      %v4439 = vadd.f32 %v4085, %v4379
      %v4440 = vadd.f32 %v4086, %v4382
      %v4441 = vadd.f32 %v4087, %v4387
      %v4442 = vadd.f32 %v4088, %v4390
      %v4443 = vadd.f32 %v4089, %v4395
      %v4444 = vadd.f32 %v4090, %v4398
      %v4445 = vadd.f32 %v4091, %v4403
      %v4446 = vadd.f32 %v4092, %v4406
      %v4447 = vadd.f32 %v4093, %v4411
      %v4448 = vadd.f32 %v4094, %v4414
      %4449 = vst [vmem:[#allocation2] sm:$0xff] %v4417
      %4450 = vst [vmem:[#allocation2 + $0x8] sm:$0xff] %v4418
      %4451 = vst [vmem:[#allocation2 + $0x10] sm:$0xff] %v4419
      %4452 = vst [vmem:[#allocation2 + $0x18] sm:$0xff] %v4420
      %4453 = vst [vmem:[#allocation2 + $0x20] sm:$0xff] %v4421
      %4454 = vst [vmem:[#allocation2 + $0x28] sm:$0xff] %v4422
      %4455 = vst [vmem:[#allocation2 + $0x30] sm:$0xff] %v4423
      %4456 = vst [vmem:[#allocation2 + $0x38] sm:$0xff] %v4424
      %4457 = vst [vmem:[#allocation2 + $0x40] sm:$0xff] %v4425
      %4458 = vst [vmem:[#allocation2 + $0x48] sm:$0xff] %v4426
      %4459 = vst [vmem:[#allocation2 + $0x50] sm:$0xff] %v4427
      %4460 = vst [vmem:[#allocation2 + $0x58] sm:$0xff] %v4428
      %4461 = vst [vmem:[#allocation2 + $0x60] sm:$0xff] %v4429
      %4462 = vst [vmem:[#allocation2 + $0x68] sm:$0xff] %v4430
      %4463 = vst [vmem:[#allocation2 + $0x70] sm:$0xff] %v4431
      %4464 = vst [vmem:[#allocation2 + $0x78] sm:$0xff] %v4432
      %4465 = vst [vmem:[#allocation2 + $0x80] sm:$0xff] %v4433
      %4466 = vst [vmem:[#allocation2 + $0x88] sm:$0xff] %v4434
      %4467 = vst [vmem:[#allocation2 + $0x90] sm:$0xff] %v4435
      %4468 = vst [vmem:[#allocation2 + $0x98] sm:$0xff] %v4436
      %4469 = vst [vmem:[#allocation2 + $0xa0] sm:$0xff] %v4437
      %4470 = vst [vmem:[#allocation2 + $0xa8] sm:$0xff] %v4438
      %4471 = vst [vmem:[#allocation2 + $0xb0] sm:$0xff] %v4439
      %4472 = vst [vmem:[#allocation2 + $0xb8] sm:$0xff] %v4440
      %4473 = vst [vmem:[#allocation2 + $0xc0] sm:$0xff] %v4441
      %4474 = vst [vmem:[#allocation2 + $0xc8] sm:$0xff] %v4442
      %4475 = vst [vmem:[#allocation2 + $0xd0] sm:$0xff] %v4443
      %4476 = vst [vmem:[#allocation2 + $0xd8] sm:$0xff] %v4444
      %4477 = vst [vmem:[#allocation2 + $0xe0] sm:$0xff] %v4445
      %4478 = vst [vmem:[#allocation2 + $0xe8] sm:$0xff] %v4446
      %4479 = vst [vmem:[#allocation2 + $0xf0] sm:$0xff] %v4447
      %4480 = vst [vmem:[#allocation2 + $0xf8] sm:$0xff] %v4448
      %v4481 = vld [vmem:[%s4030] sm:$0xf]
      %v4482 = vld [vmem:[%s4030 + $0x4] sm:$0xf]
      %v4483 = vld [vmem:[%s4030 + $0x8] sm:$0x1]
      %v4484 = vld [vmem:[%s4030 + $0xc] sm:$0xf]
      %v4485 = vld [vmem:[%s4030 + $0x10] sm:$0xf]
      %v4486 = vld [vmem:[%s4030 + $0x14] sm:$0x1]
      %v4487 = vld [vmem:[%s4030 + $0x18] sm:$0xf]
      %v4488 = vld [vmem:[%s4030 + $0x1c] sm:$0xf]
      %v4489 = vld [vmem:[%s4030 + $0x20] sm:$0x1]
      %v4490 = vld [vmem:[%s4030 + $0x24] sm:$0xf]
      %v4491 = vld [vmem:[%s4030 + $0x28] sm:$0xf]
      %v4492 = vld [vmem:[%s4030 + $0x2c] sm:$0x1]
      %v4493 = vld [vmem:[%s4030 + $0x30] sm:$0xf]
      %v4494 = vld [vmem:[%s4030 + $0x34] sm:$0xf]
      %v4495 = vld [vmem:[%s4030 + $0x38] sm:$0x1]
      %v4496 = vld [vmem:[%s4030 + $0x3c] sm:$0xf]
      %v4497 = vld [vmem:[%s4030 + $0x40] sm:$0xf]
      %v4498 = vld [vmem:[%s4030 + $0x44] sm:$0x1]
      %v4499 = vld [vmem:[%s4030 + $0x48] sm:$0xf]
      %v4500 = vld [vmem:[%s4030 + $0x4c] sm:$0xf]
      %v4501 = vld [vmem:[%s4030 + $0x50] sm:$0x1]
      %v4502 = vld [vmem:[%s4030 + $0x54] sm:$0xf]
      %v4503 = vld [vmem:[%s4030 + $0x58] sm:$0xf]
      %v4504 = vld [vmem:[%s4030 + $0x5c] sm:$0x1]
      %v4505 = vld [vmem:[%s4030 + $0x60] sm:$0xf]
      %v4506 = vld [vmem:[%s4030 + $0x64] sm:$0xf]
      %v4507 = vld [vmem:[%s4030 + $0x68] sm:$0x1]
      %v4508 = vld [vmem:[%s4030 + $0x6c] sm:$0xf]
      %v4509 = vld [vmem:[%s4030 + $0x70] sm:$0xf]
      %v4510 = vld [vmem:[%s4030 + $0x74] sm:$0x1]
      %v4511 = vld [vmem:[%s4030 + $0x78] sm:$0xf]
      %v4512 = vld [vmem:[%s4030 + $0x7c] sm:$0xf]
      %v4513 = vld [vmem:[%s4030 + $0x80] sm:$0x1]
      %v4514 = vld [vmem:[%s4030 + $0x84] sm:$0xf]
      %v4515 = vld [vmem:[%s4030 + $0x88] sm:$0xf]
      %v4516 = vld [vmem:[%s4030 + $0x8c] sm:$0x1]
      %v4517 = vld [vmem:[%s4030 + $0x90] sm:$0xf]
      %v4518 = vld [vmem:[%s4030 + $0x94] sm:$0xf]
      %v4519 = vld [vmem:[%s4030 + $0x98] sm:$0x1]
      %v4520 = vld [vmem:[%s4030 + $0x9c] sm:$0xf]
      %v4521 = vld [vmem:[%s4030 + $0xa0] sm:$0xf]
      %v4522 = vld [vmem:[%s4030 + $0xa4] sm:$0x1]
      %v4523 = vld [vmem:[%s4030 + $0xa8] sm:$0xf]
      %v4524 = vld [vmem:[%s4030 + $0xac] sm:$0xf]
      %v4525 = vld [vmem:[%s4030 + $0xb0] sm:$0x1]
      %v4526 = vld [vmem:[%s4030 + $0xb4] sm:$0xf]
      %v4527 = vld [vmem:[%s4030 + $0xb8] sm:$0xf]
      %v4528 = vld [vmem:[%s4030 + $0xbc] sm:$0x1]
      %v4530 = vshrl.u32 %v4481, 16
      %v4532 = vrot.slane %v4530, 4
      %v4533 = vshll.u32 %v4481, 16
      %v4535 = vrot.slane %v4533, 5
      %v4536 = vor.u32 %v4532, %v4535
      %v4537 = vrot.slane %v4536, 4
      %v4539 = vshll.u32 %v4482, 16
      %v4541 = vrot.slane %v4539, 5
      %v4542 = vsel %vm793, %v4537, %v4541
      %v4543 = vshrl.u32 %v4482, 16
      %v4545 = vrot.slane %v4543, 4
      %v4546 = vor.u32 %v4545, %v4541
      %v4547 = vrot.slane %v4546, 4
      %v4549 = vshll.u32 %v4483, 16
      %v4551 = vrot.slane %v4549, 5
      %v4552 = vsel %vm793, %v4547, %v4551
      %v4554 = vshrl.u32 %v4484, 16
      %v4556 = vrot.slane %v4554, 4
      %v4557 = vshll.u32 %v4484, 16
      %v4559 = vrot.slane %v4557, 5
      %v4560 = vor.u32 %v4556, %v4559
      %v4561 = vrot.slane %v4560, 4
      %v4563 = vshll.u32 %v4485, 16
      %v4565 = vrot.slane %v4563, 5
      %v4566 = vsel %vm793, %v4561, %v4565
      %v4567 = vshrl.u32 %v4485, 16
      %v4569 = vrot.slane %v4567, 4
      %v4570 = vor.u32 %v4569, %v4565
      %v4571 = vrot.slane %v4570, 4
      %v4573 = vshll.u32 %v4486, 16
      %v4575 = vrot.slane %v4573, 5
      %v4576 = vsel %vm793, %v4571, %v4575
      %v4578 = vshrl.u32 %v4487, 16
      %v4580 = vrot.slane %v4578, 4
      %v4581 = vshll.u32 %v4487, 16
      %v4583 = vrot.slane %v4581, 5
      %v4584 = vor.u32 %v4580, %v4583
      %v4585 = vrot.slane %v4584, 4
      %v4587 = vshll.u32 %v4488, 16
      %v4589 = vrot.slane %v4587, 5
      %v4590 = vsel %vm793, %v4585, %v4589
      %v4591 = vshrl.u32 %v4488, 16
      %v4593 = vrot.slane %v4591, 4
      %v4594 = vor.u32 %v4593, %v4589
      %v4595 = vrot.slane %v4594, 4
      %v4597 = vshll.u32 %v4489, 16
      %v4599 = vrot.slane %v4597, 5
      %v4600 = vsel %vm793, %v4595, %v4599
      %v4602 = vshrl.u32 %v4490, 16
      %v4604 = vrot.slane %v4602, 4
      %v4605 = vshll.u32 %v4490, 16
      %v4607 = vrot.slane %v4605, 5
      %v4608 = vor.u32 %v4604, %v4607
      %v4609 = vrot.slane %v4608, 4
      %v4611 = vshll.u32 %v4491, 16
      %v4613 = vrot.slane %v4611, 5
      %v4614 = vsel %vm793, %v4609, %v4613
      %v4615 = vshrl.u32 %v4491, 16
      %v4617 = vrot.slane %v4615, 4
      %v4618 = vor.u32 %v4617, %v4613
      %v4619 = vrot.slane %v4618, 4
      %v4621 = vshll.u32 %v4492, 16
      %v4623 = vrot.slane %v4621, 5
      %v4624 = vsel %vm793, %v4619, %v4623
      %v4626 = vshrl.u32 %v4493, 16
      %v4628 = vrot.slane %v4626, 4
      %v4629 = vshll.u32 %v4493, 16
      %v4631 = vrot.slane %v4629, 5
      %v4632 = vor.u32 %v4628, %v4631
      %v4633 = vrot.slane %v4632, 4
      %v4635 = vshll.u32 %v4494, 16
      %v4637 = vrot.slane %v4635, 5
      %v4638 = vsel %vm793, %v4633, %v4637
      %v4639 = vshrl.u32 %v4494, 16
      %v4641 = vrot.slane %v4639, 4
      %v4642 = vor.u32 %v4641, %v4637
      %v4643 = vrot.slane %v4642, 4
      %v4645 = vshll.u32 %v4495, 16
      %v4647 = vrot.slane %v4645, 5
      %v4648 = vsel %vm793, %v4643, %v4647
      %v4650 = vshrl.u32 %v4496, 16
      %v4652 = vrot.slane %v4650, 4
      %v4653 = vshll.u32 %v4496, 16
      %v4655 = vrot.slane %v4653, 5
      %v4656 = vor.u32 %v4652, %v4655
      %v4657 = vrot.slane %v4656, 4
      %v4659 = vshll.u32 %v4497, 16
      %v4661 = vrot.slane %v4659, 5
      %v4662 = vsel %vm793, %v4657, %v4661
      %v4663 = vshrl.u32 %v4497, 16
      %v4665 = vrot.slane %v4663, 4
      %v4666 = vor.u32 %v4665, %v4661
      %v4667 = vrot.slane %v4666, 4
      %v4669 = vshll.u32 %v4498, 16
      %v4671 = vrot.slane %v4669, 5
      %v4672 = vsel %vm793, %v4667, %v4671
      %v4674 = vshrl.u32 %v4499, 16
      %v4676 = vrot.slane %v4674, 4
      %v4677 = vshll.u32 %v4499, 16
      %v4679 = vrot.slane %v4677, 5
      %v4680 = vor.u32 %v4676, %v4679
      %v4681 = vrot.slane %v4680, 4
      %v4683 = vshll.u32 %v4500, 16
      %v4685 = vrot.slane %v4683, 5
      %v4686 = vsel %vm793, %v4681, %v4685
      %v4687 = vshrl.u32 %v4500, 16
      %v4689 = vrot.slane %v4687, 4
      %v4690 = vor.u32 %v4689, %v4685
      %v4691 = vrot.slane %v4690, 4
      %v4693 = vshll.u32 %v4501, 16
      %v4695 = vrot.slane %v4693, 5
      %v4696 = vsel %vm793, %v4691, %v4695
      %v4698 = vshrl.u32 %v4502, 16
      %v4700 = vrot.slane %v4698, 4
      %v4701 = vshll.u32 %v4502, 16
      %v4703 = vrot.slane %v4701, 5
      %v4704 = vor.u32 %v4700, %v4703
      %v4705 = vrot.slane %v4704, 4
      %v4707 = vshll.u32 %v4503, 16
      %v4709 = vrot.slane %v4707, 5
      %v4710 = vsel %vm793, %v4705, %v4709
      %v4711 = vshrl.u32 %v4503, 16
      %v4713 = vrot.slane %v4711, 4
      %v4714 = vor.u32 %v4713, %v4709
      %v4715 = vrot.slane %v4714, 4
      %v4717 = vshll.u32 %v4504, 16
      %v4719 = vrot.slane %v4717, 5
      %v4720 = vsel %vm793, %v4715, %v4719
      %v4722 = vshrl.u32 %v4505, 16
      %v4724 = vrot.slane %v4722, 4
      %v4725 = vshll.u32 %v4505, 16
      %v4727 = vrot.slane %v4725, 5
      %v4728 = vor.u32 %v4724, %v4727
      %v4729 = vrot.slane %v4728, 4
      %v4731 = vshll.u32 %v4506, 16
      %v4733 = vrot.slane %v4731, 5
      %v4734 = vsel %vm793, %v4729, %v4733
      %v4735 = vshrl.u32 %v4506, 16
      %v4737 = vrot.slane %v4735, 4
      %v4738 = vor.u32 %v4737, %v4733
      %v4739 = vrot.slane %v4738, 4
      %v4741 = vshll.u32 %v4507, 16
      %v4743 = vrot.slane %v4741, 5
      %v4744 = vsel %vm793, %v4739, %v4743
      %v4746 = vshrl.u32 %v4508, 16
      %v4748 = vrot.slane %v4746, 4
      %v4749 = vshll.u32 %v4508, 16
      %v4751 = vrot.slane %v4749, 5
      %v4752 = vor.u32 %v4748, %v4751
      %v4753 = vrot.slane %v4752, 4
      %v4755 = vshll.u32 %v4509, 16
      %v4757 = vrot.slane %v4755, 5
      %v4758 = vsel %vm793, %v4753, %v4757
      %v4759 = vshrl.u32 %v4509, 16
      %v4761 = vrot.slane %v4759, 4
      %v4762 = vor.u32 %v4761, %v4757
      %v4763 = vrot.slane %v4762, 4
      %v4765 = vshll.u32 %v4510, 16
      %v4767 = vrot.slane %v4765, 5
      %v4768 = vsel %vm793, %v4763, %v4767
      %v4770 = vshrl.u32 %v4511, 16
      %v4772 = vrot.slane %v4770, 4
      %v4773 = vshll.u32 %v4511, 16
      %v4775 = vrot.slane %v4773, 5
      %v4776 = vor.u32 %v4772, %v4775
      %v4777 = vrot.slane %v4776, 4
      %v4779 = vshll.u32 %v4512, 16
      %v4781 = vrot.slane %v4779, 5
      %v4782 = vsel %vm793, %v4777, %v4781
      %v4783 = vshrl.u32 %v4512, 16
      %v4785 = vrot.slane %v4783, 4
      %v4786 = vor.u32 %v4785, %v4781
      %v4787 = vrot.slane %v4786, 4
      %v4789 = vshll.u32 %v4513, 16
      %v4791 = vrot.slane %v4789, 5
      %v4792 = vsel %vm793, %v4787, %v4791
      %v4794 = vshrl.u32 %v4514, 16
      %v4796 = vrot.slane %v4794, 4
      %v4797 = vshll.u32 %v4514, 16
      %v4799 = vrot.slane %v4797, 5
      %v4800 = vor.u32 %v4796, %v4799
      %v4801 = vrot.slane %v4800, 4
      %v4803 = vshll.u32 %v4515, 16
      %v4805 = vrot.slane %v4803, 5
      %v4806 = vsel %vm793, %v4801, %v4805
      %v4807 = vshrl.u32 %v4515, 16
      %v4809 = vrot.slane %v4807, 4
      %v4810 = vor.u32 %v4809, %v4805
      %v4811 = vrot.slane %v4810, 4
      %v4813 = vshll.u32 %v4516, 16
      %v4815 = vrot.slane %v4813, 5
      %v4816 = vsel %vm793, %v4811, %v4815
      %v4818 = vshrl.u32 %v4517, 16
      %v4820 = vrot.slane %v4818, 4
      %v4821 = vshll.u32 %v4517, 16
      %v4823 = vrot.slane %v4821, 5
      %v4824 = vor.u32 %v4820, %v4823
      %v4825 = vrot.slane %v4824, 4
      %v4827 = vshll.u32 %v4518, 16
      %v4829 = vrot.slane %v4827, 5
      %v4830 = vsel %vm793, %v4825, %v4829
      %v4831 = vshrl.u32 %v4518, 16
      %v4833 = vrot.slane %v4831, 4
      %v4834 = vor.u32 %v4833, %v4829
      %v4835 = vrot.slane %v4834, 4
      %v4837 = vshll.u32 %v4519, 16
      %v4839 = vrot.slane %v4837, 5
      %v4840 = vsel %vm793, %v4835, %v4839
      %v4842 = vshrl.u32 %v4520, 16
      %v4844 = vrot.slane %v4842, 4
      %v4845 = vshll.u32 %v4520, 16
      %v4847 = vrot.slane %v4845, 5
      %v4848 = vor.u32 %v4844, %v4847
      %v4849 = vrot.slane %v4848, 4
      %v4851 = vshll.u32 %v4521, 16
      %v4853 = vrot.slane %v4851, 5
      %v4854 = vsel %vm793, %v4849, %v4853
      %v4855 = vshrl.u32 %v4521, 16
      %v4857 = vrot.slane %v4855, 4
      %v4858 = vor.u32 %v4857, %v4853
      %v4859 = vrot.slane %v4858, 4
      %v4861 = vshll.u32 %v4522, 16
      %v4863 = vrot.slane %v4861, 5
      %v4864 = vsel %vm793, %v4859, %v4863
      %v4866 = vshrl.u32 %v4523, 16
      %v4868 = vrot.slane %v4866, 4
      %v4869 = vshll.u32 %v4523, 16
      %v4871 = vrot.slane %v4869, 5
      %v4872 = vor.u32 %v4868, %v4871
      %v4873 = vrot.slane %v4872, 4
      %v4875 = vshll.u32 %v4524, 16
      %v4877 = vrot.slane %v4875, 5
      %v4878 = vsel %vm793, %v4873, %v4877
      %v4879 = vshrl.u32 %v4524, 16
      %v4881 = vrot.slane %v4879, 4
      %v4882 = vor.u32 %v4881, %v4877
      %v4883 = vrot.slane %v4882, 4
      %v4885 = vshll.u32 %v4525, 16
      %v4887 = vrot.slane %v4885, 5
      %v4888 = vsel %vm793, %v4883, %v4887
      %v4890 = vshrl.u32 %v4526, 16
      %v4892 = vrot.slane %v4890, 4
      %v4893 = vshll.u32 %v4526, 16
      %v4895 = vrot.slane %v4893, 5
      %v4896 = vor.u32 %v4892, %v4895
      %v4897 = vrot.slane %v4896, 4
      %v4899 = vshll.u32 %v4527, 16
      %v4901 = vrot.slane %v4899, 5
      %v4902 = vsel %vm793, %v4897, %v4901
      %v4903 = vshrl.u32 %v4527, 16
      %v4905 = vrot.slane %v4903, 4
      %v4906 = vor.u32 %v4905, %v4901
      %v4907 = vrot.slane %v4906, 4
      %v4909 = vshll.u32 %v4528, 16
      %v4911 = vrot.slane %v4909, 5
      %v4912 = vsel %vm793, %v4907, %v4911
      %v4913 = vld [vmem:[#allocation2] sm:$0xff]
      %v4914 = vld [vmem:[#allocation2 + $0x8] sm:$0xff]
      %v4915 = vld [vmem:[#allocation2 + $0x10] sm:$0xff]
      %v4916 = vld [vmem:[#allocation2 + $0x18] sm:$0xff]
      %v4917 = vld [vmem:[#allocation2 + $0x20] sm:$0xff]
      %v4918 = vld [vmem:[#allocation2 + $0x28] sm:$0xff]
      %v4919 = vld [vmem:[#allocation2 + $0x30] sm:$0xff]
      %v4920 = vld [vmem:[#allocation2 + $0x38] sm:$0xff]
      %v4921 = vld [vmem:[#allocation2 + $0x40] sm:$0xff]
      %v4922 = vld [vmem:[#allocation2 + $0x48] sm:$0xff]
      %v4923 = vld [vmem:[#allocation2 + $0x50] sm:$0xff]
      %v4924 = vld [vmem:[#allocation2 + $0x58] sm:$0xff]
      %v4925 = vld [vmem:[#allocation2 + $0x60] sm:$0xff]
      %v4926 = vld [vmem:[#allocation2 + $0x68] sm:$0xff]
      %v4927 = vld [vmem:[#allocation2 + $0x70] sm:$0xff]
      %v4928 = vld [vmem:[#allocation2 + $0x78] sm:$0xff]
      %v4929 = vld [vmem:[#allocation2 + $0x80] sm:$0xff]
      %v4930 = vld [vmem:[#allocation2 + $0x88] sm:$0xff]
      %v4931 = vld [vmem:[#allocation2 + $0x90] sm:$0xff]
      %v4932 = vld [vmem:[#allocation2 + $0x98] sm:$0xff]
      %v4933 = vld [vmem:[#allocation2 + $0xa0] sm:$0xff]
      %v4934 = vld [vmem:[#allocation2 + $0xa8] sm:$0xff]
      %v4935 = vld [vmem:[#allocation2 + $0xb0] sm:$0xff]
      %v4936 = vld [vmem:[#allocation2 + $0xb8] sm:$0xff]
      %v4937 = vld [vmem:[#allocation2 + $0xc0] sm:$0xff]
      %v4938 = vld [vmem:[#allocation2 + $0xc8] sm:$0xff]
      %v4939 = vld [vmem:[#allocation2 + $0xd0] sm:$0xff]
      %v4940 = vld [vmem:[#allocation2 + $0xd8] sm:$0xff]
      %v4941 = vld [vmem:[#allocation2 + $0xe0] sm:$0xff]
      %v4942 = vld [vmem:[#allocation2 + $0xe8] sm:$0xff]
      %v4943 = vld [vmem:[#allocation2 + $0xf0] sm:$0xff]
      %v4944 = vld [vmem:[#allocation2 + $0xf8] sm:$0xff]
      %s4945 = scalar_lea.vmem %s1, 448
      %v4946 = vld [vmem:[%s4945] sm:$0xf]
      %v4947 = vld [vmem:[%s4945 + $0x4] sm:$0xf]
      %v4948 = vld [vmem:[%s4945 + $0x8] sm:$0xf]
      %v4949 = vld [vmem:[%s4945 + $0xc] sm:$0xf]
      %v4950 = vld [vmem:[%s4945 + $0x10] sm:$0xf]
      %v4951 = vld [vmem:[%s4945 + $0x14] sm:$0xf]
      %v4952 = vld [vmem:[%s4945 + $0x18] sm:$0xf]
      %v4953 = vld [vmem:[%s4945 + $0x1c] sm:$0xf]
      %v4954 = vld [vmem:[%s4945 + $0x20] sm:$0xf]
      %v4955 = vld [vmem:[%s4945 + $0x24] sm:$0xf]
      %v4956 = vld [vmem:[%s4945 + $0x28] sm:$0xf]
      %v4957 = vld [vmem:[%s4945 + $0x2c] sm:$0xf]
      %v4958 = vld [vmem:[%s4945 + $0x30] sm:$0xf]
      %v4959 = vld [vmem:[%s4945 + $0x34] sm:$0xf]
      %v4960 = vld [vmem:[%s4945 + $0x38] sm:$0xf]
      %v4961 = vld [vmem:[%s4945 + $0x3c] sm:$0xf]
      %v4962 = vunpack.c.l.b16 %v4542
      %v4963 = vunpack.c.l.b16 %v4552
      %v4964 = vunpack.c.l.b16 %v4566
      %v4965 = vunpack.c.l.b16 %v4576
      %v4966 = vunpack.c.l.b16 %v4590
      %v4967 = vunpack.c.l.b16 %v4600
      %v4968 = vunpack.c.l.b16 %v4614
      %v4969 = vunpack.c.l.b16 %v4624
      %v4970 = vunpack.c.l.b16 %v4638
      %v4971 = vunpack.c.l.b16 %v4648
      %v4972 = vunpack.c.l.b16 %v4662
      %v4973 = vunpack.c.l.b16 %v4672
      %v4974 = vunpack.c.l.b16 %v4686
      %v4975 = vunpack.c.l.b16 %v4696
      %v4976 = vunpack.c.l.b16 %v4710
      %v4977 = vunpack.c.l.b16 %v4720
      %v4978 = vunpack.c.l.b16 %v4734
      %v4979 = vunpack.c.l.b16 %v4744
      %v4980 = vunpack.c.l.b16 %v4758
      %v4981 = vunpack.c.l.b16 %v4768
      %v4982 = vunpack.c.l.b16 %v4782
      %v4983 = vunpack.c.l.b16 %v4792
      %v4984 = vunpack.c.l.b16 %v4806
      %v4985 = vunpack.c.l.b16 %v4816
      %v4986 = vunpack.c.l.b16 %v4830
      %v4987 = vunpack.c.l.b16 %v4840
      %v4988 = vunpack.c.l.b16 %v4854
      %v4989 = vunpack.c.l.b16 %v4864
      %v4990 = vunpack.c.l.b16 %v4878
      %v4991 = vunpack.c.l.b16 %v4888
      %v4992 = vunpack.c.l.b16 %v4902
      %v4993 = vunpack.c.l.b16 %v4912
      %v4994 = vpack.c.b16 %v4963, %v4962
      %v4995 = vpack.c.b16 %v4965, %v4964
      %v4996 = vpack.c.b16 %v4967, %v4966
      %v4997 = vpack.c.b16 %v4969, %v4968
      %v4998 = vpack.c.b16 %v4971, %v4970
      %v4999 = vpack.c.b16 %v4973, %v4972
      %v5000 = vpack.c.b16 %v4975, %v4974
      %v5001 = vpack.c.b16 %v4977, %v4976
      %v5002 = vpack.c.b16 %v4979, %v4978
      %v5003 = vpack.c.b16 %v4981, %v4980
      %v5004 = vpack.c.b16 %v4983, %v4982
      %v5005 = vpack.c.b16 %v4985, %v4984
      %v5006 = vpack.c.b16 %v4987, %v4986
      %v5007 = vpack.c.b16 %v4989, %v4988
      %v5008 = vpack.c.b16 %v4991, %v4990
      %v5009 = vpack.c.b16 %v4993, %v4992
      %v5042 = vunpack.c.l.b16 %v4946
      %v5043 = vunpack.c.l.b16 %v4947
      %v5044 = vunpack.c.l.b16 %v4948
      %v5045 = vunpack.c.l.b16 %v4949
      %v5046 = vunpack.c.l.b16 %v4950
      %v5047 = vunpack.c.l.b16 %v4951
      %v5048 = vunpack.c.l.b16 %v4952
      %v5049 = vunpack.c.l.b16 %v4953
      %v5050 = vunpack.c.l.b16 %v4954
      %v5051 = vunpack.c.l.b16 %v4955
      %v5052 = vunpack.c.l.b16 %v4956
      %v5053 = vunpack.c.l.b16 %v4957
      %v5054 = vunpack.c.l.b16 %v4958
      %v5055 = vunpack.c.l.b16 %v4959
      %v5056 = vunpack.c.l.b16 %v4960
      %v5057 = vunpack.c.l.b16 %v4961
      %v5058 = vpack.c.b16 %v5043, %v5042
      %v5059 = vpack.c.b16 %v5045, %v5044
      %v5060 = vpack.c.b16 %v5047, %v5046
      %v5061 = vpack.c.b16 %v5049, %v5048
      %v5062 = vpack.c.b16 %v5051, %v5050
      %v5063 = vpack.c.b16 %v5053, %v5052
      %v5064 = vpack.c.b16 %v5055, %v5054
      %v5065 = vpack.c.b16 %v5057, %v5056
      %5074 = vmatprep.subr.bf16.mxu0 0
      %5075 = vmatpush1.bf16.msra.mxu0 %v5065
      %5076 = vmatprep.subr.bf16.mxu0 0
      %5077 = vmatpush1.bf16.msra.mxu0 %v5064
      %5078 = vmatprep.subr.bf16.mxu0 0
      %5079 = vmatpush1.bf16.msra.mxu0 %v5063
      %5080 = vmatprep.subr.bf16.mxu0 0
      %5081 = vmatpush1.bf16.msra.mxu0 %v5062
      %5082 = vmatprep.subr.bf16.mxu0 0
      %5083 = vmatpush1.bf16.msra.mxu0 %v5061
      %5084 = vmatprep.subr.bf16.mxu0 0
      %5085 = vmatpush1.bf16.msra.mxu0 %v5060
      %5086 = vmatprep.subr.bf16.mxu0 0
      %5087 = vmatpush1.bf16.msra.mxu0 %v5059
      %5088 = vmatprep.subr.bf16.mxu0 0
      %5089 = vmatpush1.bf16.msra.mxu0 %v5058
      %5090 = vmatprep.subr.bf16.mxu0 0
      %5091 = vmatpush2.bf16.msra.mxu0 0
      %5092 = vmatprep.subr.bf16.mxu0 0
      %5093 = vmatpush2.bf16.msra.mxu0 0
      %5094 = vmatprep.subr.bf16.mxu0 0
      %5095 = vmatpush2.bf16.msra.mxu0 0
      %5096 = vmatprep.subr.bf16.mxu0 0
      %5097 = vmatpush2.bf16.msra.mxu0 0
      %5098 = vmatprep.subr.bf16.mxu0 0
      %5099 = vmatpush2.bf16.msra.mxu0 0
      %5100 = vmatprep.subr.bf16.mxu0 0
      %5101 = vmatpush2.bf16.msra.mxu0 0
      %5102 = vmatprep.subr.bf16.mxu0 0
      %5103 = vmatpush2.bf16.msra.mxu0 0
      %5104 = vmatprep.subr.bf16.mxu0 0
      %5105 = vmatpush2.bf16.msra.mxu0 0
      %5106 = vmatprep.mubr.bf16.mxu0 0
      %5107 = vmatmul.mubr.bf16.gmra.mxu0 %v4994
      %v5108 = vpop.f32.mrf.mxu0
      %v5109 = vadd.f32 0.0, %v5108
      %v5110 = vpop.f32.mrf.mxu0
      %v5111 = vpop.f32.mrf.mxu0
      %v5112 = vadd.f32 0.0, %v5111
      %v5113 = vpop.f32.mrf.mxu0
      %5114 = vmatprep.mubr.bf16.mxu0 0
      %5115 = vmatmul.mubr.bf16.gmra.mxu0 %v4995
      %v5116 = vpop.f32.mrf.mxu0
      %v5117 = vadd.f32 0.0, %v5116
      %v5118 = vpop.f32.mrf.mxu0
      %v5119 = vpop.f32.mrf.mxu0
      %v5120 = vadd.f32 0.0, %v5119
      %v5121 = vpop.f32.mrf.mxu0
      %5122 = vmatprep.mubr.bf16.mxu0 0
      %5123 = vmatmul.mubr.bf16.gmra.mxu0 %v4996
      %v5124 = vpop.f32.mrf.mxu0
      %v5125 = vadd.f32 0.0, %v5124
      %v5126 = vpop.f32.mrf.mxu0
      %v5127 = vpop.f32.mrf.mxu0
      %v5128 = vadd.f32 0.0, %v5127
      %v5129 = vpop.f32.mrf.mxu0
      %5130 = vmatprep.mubr.bf16.mxu0 0
      %5131 = vmatmul.mubr.bf16.gmra.mxu0 %v4997
      %v5132 = vpop.f32.mrf.mxu0
      %v5133 = vadd.f32 0.0, %v5132
      %v5134 = vpop.f32.mrf.mxu0
      %v5135 = vpop.f32.mrf.mxu0
      %v5136 = vadd.f32 0.0, %v5135
      %v5137 = vpop.f32.mrf.mxu0
      %5138 = vmatprep.mubr.bf16.mxu0 0
      %5139 = vmatmul.mubr.bf16.gmra.mxu0 %v4998
      %v5140 = vpop.f32.mrf.mxu0
      %v5141 = vadd.f32 0.0, %v5140
      %v5142 = vpop.f32.mrf.mxu0
      %v5143 = vpop.f32.mrf.mxu0
      %v5144 = vadd.f32 0.0, %v5143
      %v5145 = vpop.f32.mrf.mxu0
      %5146 = vmatprep.mubr.bf16.mxu0 0
      %5147 = vmatmul.mubr.bf16.gmra.mxu0 %v4999
      %v5148 = vpop.f32.mrf.mxu0
      %v5149 = vadd.f32 0.0, %v5148
      %v5150 = vpop.f32.mrf.mxu0
      %v5151 = vpop.f32.mrf.mxu0
      %v5152 = vadd.f32 0.0, %v5151
      %v5153 = vpop.f32.mrf.mxu0
      %5154 = vmatprep.mubr.bf16.mxu0 0
      %5155 = vmatmul.mubr.bf16.gmra.mxu0 %v5000
      %v5156 = vpop.f32.mrf.mxu0
      %v5157 = vadd.f32 0.0, %v5156
      %v5158 = vpop.f32.mrf.mxu0
      %v5159 = vpop.f32.mrf.mxu0
      %v5160 = vadd.f32 0.0, %v5159
      %v5161 = vpop.f32.mrf.mxu0
      %5162 = vmatprep.mubr.bf16.mxu0 0
      %5163 = vmatmul.mubr.bf16.gmra.mxu0 %v5001
      %v5164 = vpop.f32.mrf.mxu0
      %v5165 = vadd.f32 0.0, %v5164
      %v5166 = vpop.f32.mrf.mxu0
      %v5167 = vpop.f32.mrf.mxu0
      %v5168 = vadd.f32 0.0, %v5167
      %v5169 = vpop.f32.mrf.mxu0
      %5170 = vmatprep.mubr.bf16.mxu0 0
      %5171 = vmatmul.mubr.bf16.gmra.mxu0 %v5002
      %v5172 = vpop.f32.mrf.mxu0
      %v5173 = vadd.f32 0.0, %v5172
      %v5174 = vpop.f32.mrf.mxu0
      %v5175 = vpop.f32.mrf.mxu0
      %v5176 = vadd.f32 0.0, %v5175
      %v5177 = vpop.f32.mrf.mxu0
      %5178 = vmatprep.mubr.bf16.mxu0 0
      %5179 = vmatmul.mubr.bf16.gmra.mxu0 %v5003
      %v5180 = vpop.f32.mrf.mxu0
      %v5181 = vadd.f32 0.0, %v5180
      %v5182 = vpop.f32.mrf.mxu0
      %v5183 = vpop.f32.mrf.mxu0
      %v5184 = vadd.f32 0.0, %v5183
      %v5185 = vpop.f32.mrf.mxu0
      %5186 = vmatprep.mubr.bf16.mxu0 0
      %5187 = vmatmul.mubr.bf16.gmra.mxu0 %v5004
      %v5188 = vpop.f32.mrf.mxu0
      %v5189 = vadd.f32 0.0, %v5188
      %v5190 = vpop.f32.mrf.mxu0
      %v5191 = vpop.f32.mrf.mxu0
      %v5192 = vadd.f32 0.0, %v5191
      %v5193 = vpop.f32.mrf.mxu0
      %5194 = vmatprep.mubr.bf16.mxu0 0
      %5195 = vmatmul.mubr.bf16.gmra.mxu0 %v5005
      %v5196 = vpop.f32.mrf.mxu0
      %v5197 = vadd.f32 0.0, %v5196
      %v5198 = vpop.f32.mrf.mxu0
      %v5199 = vpop.f32.mrf.mxu0
      %v5200 = vadd.f32 0.0, %v5199
      %v5201 = vpop.f32.mrf.mxu0
      %5202 = vmatprep.mubr.bf16.mxu0 0
      %5203 = vmatmul.mubr.bf16.gmra.mxu0 %v5006
      %v5204 = vpop.f32.mrf.mxu0
      %v5205 = vadd.f32 0.0, %v5204
      %v5206 = vpop.f32.mrf.mxu0
      %v5207 = vpop.f32.mrf.mxu0
      %v5208 = vadd.f32 0.0, %v5207
      %v5209 = vpop.f32.mrf.mxu0
      %5210 = vmatprep.mubr.bf16.mxu0 0
      %5211 = vmatmul.mubr.bf16.gmra.mxu0 %v5007
      %v5212 = vpop.f32.mrf.mxu0
      %v5213 = vadd.f32 0.0, %v5212
      %v5214 = vpop.f32.mrf.mxu0
      %v5215 = vpop.f32.mrf.mxu0
      %v5216 = vadd.f32 0.0, %v5215
      %v5217 = vpop.f32.mrf.mxu0
      %5218 = vmatprep.mubr.bf16.mxu0 0
      %5219 = vmatmul.mubr.bf16.gmra.mxu0 %v5008
      %v5220 = vpop.f32.mrf.mxu0
      %v5221 = vadd.f32 0.0, %v5220
      %v5222 = vpop.f32.mrf.mxu0
      %v5223 = vpop.f32.mrf.mxu0
      %v5224 = vadd.f32 0.0, %v5223
      %v5225 = vpop.f32.mrf.mxu0
      %5226 = vmatprep.mubr.bf16.mxu0 0
      %5227 = vmatmul.mubr.bf16.gmra.mxu0 %v5009
      %v5228 = vpop.f32.mrf.mxu0
      %v5229 = vadd.f32 0.0, %v5228
      %v5230 = vpop.f32.mrf.mxu0
      %v5231 = vpop.f32.mrf.mxu0
      %v5232 = vadd.f32 0.0, %v5231
      %v5233 = vpop.f32.mrf.mxu0
      %5234 = vdwg.mxu0
      %v5235 = vadd.f32 %v4913, %v5109
      %v5236 = vadd.f32 %v4914, %v5112
      %v5237 = vadd.f32 %v4915, %v5117
      %v5238 = vadd.f32 %v4916, %v5120
      %v5239 = vadd.f32 %v4917, %v5125
      %v5240 = vadd.f32 %v4918, %v5128
      %v5241 = vadd.f32 %v4919, %v5133
      %v5242 = vadd.f32 %v4920, %v5136
      %v5243 = vadd.f32 %v4921, %v5141
      %v5244 = vadd.f32 %v4922, %v5144
      %v5245 = vadd.f32 %v4923, %v5149
      %v5246 = vadd.f32 %v4924, %v5152
      %v5247 = vadd.f32 %v4925, %v5157
      %v5248 = vadd.f32 %v4926, %v5160
      %v5249 = vadd.f32 %v4927, %v5165
      %v5250 = vadd.f32 %v4928, %v5168
      %v5251 = vadd.f32 %v4929, %v5173
      %v5252 = vadd.f32 %v4930, %v5176
      %v5253 = vadd.f32 %v4931, %v5181
      %v5254 = vadd.f32 %v4932, %v5184
      %v5255 = vadd.f32 %v4933, %v5189
      %v5256 = vadd.f32 %v4934, %v5192
      %v5257 = vadd.f32 %v4935, %v5197
      %v5258 = vadd.f32 %v4936, %v5200
      %v5259 = vadd.f32 %v4937, %v5205
      %v5260 = vadd.f32 %v4938, %v5208
      %v5261 = vadd.f32 %v4939, %v5213
      %v5262 = vadd.f32 %v4940, %v5216
      %v5263 = vadd.f32 %v4941, %v5221
      %v5264 = vadd.f32 %v4942, %v5224
      %v5265 = vadd.f32 %v4943, %v5229
      %v5266 = vadd.f32 %v4944, %v5232
      %5267 = vst [vmem:[#allocation2] sm:$0xff] %v5235
      %5268 = vst [vmem:[#allocation2 + $0x8] sm:$0xff] %v5236
      %5269 = vst [vmem:[#allocation2 + $0x10] sm:$0xff] %v5237
      %5270 = vst [vmem:[#allocation2 + $0x18] sm:$0xff] %v5238
      %5271 = vst [vmem:[#allocation2 + $0x20] sm:$0xff] %v5239
      %5272 = vst [vmem:[#allocation2 + $0x28] sm:$0xff] %v5240
      %5273 = vst [vmem:[#allocation2 + $0x30] sm:$0xff] %v5241
      %5274 = vst [vmem:[#allocation2 + $0x38] sm:$0xff] %v5242
      %5275 = vst [vmem:[#allocation2 + $0x40] sm:$0xff] %v5243
      %5276 = vst [vmem:[#allocation2 + $0x48] sm:$0xff] %v5244
      %5277 = vst [vmem:[#allocation2 + $0x50] sm:$0xff] %v5245
      %5278 = vst [vmem:[#allocation2 + $0x58] sm:$0xff] %v5246
      %5279 = vst [vmem:[#allocation2 + $0x60] sm:$0xff] %v5247
      %5280 = vst [vmem:[#allocation2 + $0x68] sm:$0xff] %v5248
      %5281 = vst [vmem:[#allocation2 + $0x70] sm:$0xff] %v5249
      %5282 = vst [vmem:[#allocation2 + $0x78] sm:$0xff] %v5250
      %5283 = vst [vmem:[#allocation2 + $0x80] sm:$0xff] %v5251
      %5284 = vst [vmem:[#allocation2 + $0x88] sm:$0xff] %v5252
      %5285 = vst [vmem:[#allocation2 + $0x90] sm:$0xff] %v5253
      %5286 = vst [vmem:[#allocation2 + $0x98] sm:$0xff] %v5254
      %5287 = vst [vmem:[#allocation2 + $0xa0] sm:$0xff] %v5255
      %5288 = vst [vmem:[#allocation2 + $0xa8] sm:$0xff] %v5256
      %5289 = vst [vmem:[#allocation2 + $0xb0] sm:$0xff] %v5257
      %5290 = vst [vmem:[#allocation2 + $0xb8] sm:$0xff] %v5258
      %5291 = vst [vmem:[#allocation2 + $0xc0] sm:$0xff] %v5259
      %5292 = vst [vmem:[#allocation2 + $0xc8] sm:$0xff] %v5260
      %5293 = vst [vmem:[#allocation2 + $0xd0] sm:$0xff] %v5261
      %5294 = vst [vmem:[#allocation2 + $0xd8] sm:$0xff] %v5262
      %5295 = vst [vmem:[#allocation2 + $0xe0] sm:$0xff] %v5263
      %5296 = vst [vmem:[#allocation2 + $0xe8] sm:$0xff] %v5264
      %5297 = vst [vmem:[#allocation2 + $0xf0] sm:$0xff] %v5265
      %5298 = vst [vmem:[#allocation2 + $0xf8] sm:$0xff] %v5266
      %v5299 = vld [vmem:[%s4030] sm:$0xe]
      %v5300 = vld [vmem:[%s4030 + $0x4] sm:$0xf]
      %v5301 = vld [vmem:[%s4030 + $0x8] sm:$0x1]
      %v5302 = vld [vmem:[%s4030 + $0xc] sm:$0xe]
      %v5303 = vld [vmem:[%s4030 + $0x10] sm:$0xf]
      %v5304 = vld [vmem:[%s4030 + $0x14] sm:$0x1]
      %v5305 = vld [vmem:[%s4030 + $0x18] sm:$0xe]
      %v5306 = vld [vmem:[%s4030 + $0x1c] sm:$0xf]
      %v5307 = vld [vmem:[%s4030 + $0x20] sm:$0x1]
      %v5308 = vld [vmem:[%s4030 + $0x24] sm:$0xe]
      %v5309 = vld [vmem:[%s4030 + $0x28] sm:$0xf]
      %v5310 = vld [vmem:[%s4030 + $0x2c] sm:$0x1]
      %v5311 = vld [vmem:[%s4030 + $0x30] sm:$0xe]
      %v5312 = vld [vmem:[%s4030 + $0x34] sm:$0xf]
      %v5313 = vld [vmem:[%s4030 + $0x38] sm:$0x1]
      %v5314 = vld [vmem:[%s4030 + $0x3c] sm:$0xe]
      %v5315 = vld [vmem:[%s4030 + $0x40] sm:$0xf]
      %v5316 = vld [vmem:[%s4030 + $0x44] sm:$0x1]
      %v5317 = vld [vmem:[%s4030 + $0x48] sm:$0xe]
      %v5318 = vld [vmem:[%s4030 + $0x4c] sm:$0xf]
      %v5319 = vld [vmem:[%s4030 + $0x50] sm:$0x1]
      %v5320 = vld [vmem:[%s4030 + $0x54] sm:$0xe]
      %v5321 = vld [vmem:[%s4030 + $0x58] sm:$0xf]
      %v5322 = vld [vmem:[%s4030 + $0x5c] sm:$0x1]
      %v5323 = vld [vmem:[%s4030 + $0x60] sm:$0xe]
      %v5324 = vld [vmem:[%s4030 + $0x64] sm:$0xf]
      %v5325 = vld [vmem:[%s4030 + $0x68] sm:$0x1]
      %v5326 = vld [vmem:[%s4030 + $0x6c] sm:$0xe]
      %v5327 = vld [vmem:[%s4030 + $0x70] sm:$0xf]
      %v5328 = vld [vmem:[%s4030 + $0x74] sm:$0x1]
      %v5329 = vld [vmem:[%s4030 + $0x78] sm:$0xe]
      %v5330 = vld [vmem:[%s4030 + $0x7c] sm:$0xf]
      %v5331 = vld [vmem:[%s4030 + $0x80] sm:$0x1]
      %v5332 = vld [vmem:[%s4030 + $0x84] sm:$0xe]
      %v5333 = vld [vmem:[%s4030 + $0x88] sm:$0xf]
      %v5334 = vld [vmem:[%s4030 + $0x8c] sm:$0x1]
      %v5335 = vld [vmem:[%s4030 + $0x90] sm:$0xe]
      %v5336 = vld [vmem:[%s4030 + $0x94] sm:$0xf]
      %v5337 = vld [vmem:[%s4030 + $0x98] sm:$0x1]
      %v5338 = vld [vmem:[%s4030 + $0x9c] sm:$0xe]
      %v5339 = vld [vmem:[%s4030 + $0xa0] sm:$0xf]
      %v5340 = vld [vmem:[%s4030 + $0xa4] sm:$0x1]
      %v5341 = vld [vmem:[%s4030 + $0xa8] sm:$0xe]
      %v5342 = vld [vmem:[%s4030 + $0xac] sm:$0xf]
      %v5343 = vld [vmem:[%s4030 + $0xb0] sm:$0x1]
      %v5344 = vld [vmem:[%s4030 + $0xb4] sm:$0xe]
      %v5345 = vld [vmem:[%s4030 + $0xb8] sm:$0xf]
      %v5346 = vld [vmem:[%s4030 + $0xbc] sm:$0x1]
      %v5395 = vrot.slane %v5299, 5
      %v5396 = vrot.slane %v5395, 4
      %v5397 = vrot.slane %v5300, 5
      %v5398 = vsel %vm1662, %v5396, %v5397
      %v5399 = vrot.slane %v5397, 4
      %v5400 = vrot.slane %v5301, 5
      %v5401 = vsel %vm1662, %v5399, %v5400
      %v5402 = vrot.slane %v5302, 5
      %v5403 = vrot.slane %v5402, 4
      %v5404 = vrot.slane %v5303, 5
      %v5405 = vsel %vm1662, %v5403, %v5404
      %v5406 = vrot.slane %v5404, 4
      %v5407 = vrot.slane %v5304, 5
      %v5408 = vsel %vm1662, %v5406, %v5407
      %v5409 = vrot.slane %v5305, 5
      %v5410 = vrot.slane %v5409, 4
      %v5411 = vrot.slane %v5306, 5
      %v5412 = vsel %vm1662, %v5410, %v5411
      %v5413 = vrot.slane %v5411, 4
      %v5414 = vrot.slane %v5307, 5
      %v5415 = vsel %vm1662, %v5413, %v5414
      %v5416 = vrot.slane %v5308, 5
      %v5417 = vrot.slane %v5416, 4
      %v5418 = vrot.slane %v5309, 5
      %v5419 = vsel %vm1662, %v5417, %v5418
      %v5420 = vrot.slane %v5418, 4
      %v5421 = vrot.slane %v5310, 5
      %v5422 = vsel %vm1662, %v5420, %v5421
      %v5423 = vrot.slane %v5311, 5
      %v5424 = vrot.slane %v5423, 4
      %v5425 = vrot.slane %v5312, 5
      %v5426 = vsel %vm1662, %v5424, %v5425
      %v5427 = vrot.slane %v5425, 4
      %v5428 = vrot.slane %v5313, 5
      %v5429 = vsel %vm1662, %v5427, %v5428
      %v5430 = vrot.slane %v5314, 5
      %v5431 = vrot.slane %v5430, 4
      %v5432 = vrot.slane %v5315, 5
      %v5433 = vsel %vm1662, %v5431, %v5432
      %v5434 = vrot.slane %v5432, 4
      %v5435 = vrot.slane %v5316, 5
      %v5436 = vsel %vm1662, %v5434, %v5435
      %v5437 = vrot.slane %v5317, 5
      %v5438 = vrot.slane %v5437, 4
      %v5439 = vrot.slane %v5318, 5
      %v5440 = vsel %vm1662, %v5438, %v5439
      %v5441 = vrot.slane %v5439, 4
      %v5442 = vrot.slane %v5319, 5
      %v5443 = vsel %vm1662, %v5441, %v5442
      %v5444 = vrot.slane %v5320, 5
      %v5445 = vrot.slane %v5444, 4
      %v5446 = vrot.slane %v5321, 5
      %v5447 = vsel %vm1662, %v5445, %v5446
      %v5448 = vrot.slane %v5446, 4
      %v5449 = vrot.slane %v5322, 5
      %v5450 = vsel %vm1662, %v5448, %v5449
      %v5451 = vrot.slane %v5323, 5
      %v5452 = vrot.slane %v5451, 4
      %v5453 = vrot.slane %v5324, 5
      %v5454 = vsel %vm1662, %v5452, %v5453
      %v5455 = vrot.slane %v5453, 4
      %v5456 = vrot.slane %v5325, 5
      %v5457 = vsel %vm1662, %v5455, %v5456
      %v5458 = vrot.slane %v5326, 5
      %v5459 = vrot.slane %v5458, 4
      %v5460 = vrot.slane %v5327, 5
      %v5461 = vsel %vm1662, %v5459, %v5460
      %v5462 = vrot.slane %v5460, 4
      %v5463 = vrot.slane %v5328, 5
      %v5464 = vsel %vm1662, %v5462, %v5463
      %v5465 = vrot.slane %v5329, 5
      %v5466 = vrot.slane %v5465, 4
      %v5467 = vrot.slane %v5330, 5
      %v5468 = vsel %vm1662, %v5466, %v5467
      %v5469 = vrot.slane %v5467, 4
      %v5470 = vrot.slane %v5331, 5
      %v5471 = vsel %vm1662, %v5469, %v5470
      %v5472 = vrot.slane %v5332, 5
      %v5473 = vrot.slane %v5472, 4
      %v5474 = vrot.slane %v5333, 5
      %v5475 = vsel %vm1662, %v5473, %v5474
      %v5476 = vrot.slane %v5474, 4
      %v5477 = vrot.slane %v5334, 5
      %v5478 = vsel %vm1662, %v5476, %v5477
      %v5479 = vrot.slane %v5335, 5
      %v5480 = vrot.slane %v5479, 4
      %v5481 = vrot.slane %v5336, 5
      %v5482 = vsel %vm1662, %v5480, %v5481
      %v5483 = vrot.slane %v5481, 4
      %v5484 = vrot.slane %v5337, 5
      %v5485 = vsel %vm1662, %v5483, %v5484
      %v5486 = vrot.slane %v5338, 5
      %v5487 = vrot.slane %v5486, 4
      %v5488 = vrot.slane %v5339, 5
      %v5489 = vsel %vm1662, %v5487, %v5488
      %v5490 = vrot.slane %v5488, 4
      %v5491 = vrot.slane %v5340, 5
      %v5492 = vsel %vm1662, %v5490, %v5491
      %v5493 = vrot.slane %v5341, 5
      %v5494 = vrot.slane %v5493, 4
      %v5495 = vrot.slane %v5342, 5
      %v5496 = vsel %vm1662, %v5494, %v5495
      %v5497 = vrot.slane %v5495, 4
      %v5498 = vrot.slane %v5343, 5
      %v5499 = vsel %vm1662, %v5497, %v5498
      %v5500 = vrot.slane %v5344, 5
      %v5501 = vrot.slane %v5500, 4
      %v5502 = vrot.slane %v5345, 5
      %v5503 = vsel %vm1662, %v5501, %v5502
      %v5504 = vrot.slane %v5502, 4
      %v5505 = vrot.slane %v5346, 5
      %v5506 = vsel %vm1662, %v5504, %v5505
      %v5507 = vld [vmem:[#allocation2] sm:$0xff]
      %v5508 = vld [vmem:[#allocation2 + $0x8] sm:$0xff]
      %v5509 = vld [vmem:[#allocation2 + $0x10] sm:$0xff]
      %v5510 = vld [vmem:[#allocation2 + $0x18] sm:$0xff]
      %v5511 = vld [vmem:[#allocation2 + $0x20] sm:$0xff]
      %v5512 = vld [vmem:[#allocation2 + $0x28] sm:$0xff]
      %v5513 = vld [vmem:[#allocation2 + $0x30] sm:$0xff]
      %v5514 = vld [vmem:[#allocation2 + $0x38] sm:$0xff]
      %v5515 = vld [vmem:[#allocation2 + $0x40] sm:$0xff]
      %v5516 = vld [vmem:[#allocation2 + $0x48] sm:$0xff]
      %v5517 = vld [vmem:[#allocation2 + $0x50] sm:$0xff]
      %v5518 = vld [vmem:[#allocation2 + $0x58] sm:$0xff]
      %v5519 = vld [vmem:[#allocation2 + $0x60] sm:$0xff]
      %v5520 = vld [vmem:[#allocation2 + $0x68] sm:$0xff]
      %v5521 = vld [vmem:[#allocation2 + $0x70] sm:$0xff]
      %v5522 = vld [vmem:[#allocation2 + $0x78] sm:$0xff]
      %v5523 = vld [vmem:[#allocation2 + $0x80] sm:$0xff]
      %v5524 = vld [vmem:[#allocation2 + $0x88] sm:$0xff]
      %v5525 = vld [vmem:[#allocation2 + $0x90] sm:$0xff]
      %v5526 = vld [vmem:[#allocation2 + $0x98] sm:$0xff]
      %v5527 = vld [vmem:[#allocation2 + $0xa0] sm:$0xff]
      %v5528 = vld [vmem:[#allocation2 + $0xa8] sm:$0xff]
      %v5529 = vld [vmem:[#allocation2 + $0xb0] sm:$0xff]
      %v5530 = vld [vmem:[#allocation2 + $0xb8] sm:$0xff]
      %v5531 = vld [vmem:[#allocation2 + $0xc0] sm:$0xff]
      %v5532 = vld [vmem:[#allocation2 + $0xc8] sm:$0xff]
      %v5533 = vld [vmem:[#allocation2 + $0xd0] sm:$0xff]
      %v5534 = vld [vmem:[#allocation2 + $0xd8] sm:$0xff]
      %v5535 = vld [vmem:[#allocation2 + $0xe0] sm:$0xff]
      %v5536 = vld [vmem:[#allocation2 + $0xe8] sm:$0xff]
      %v5537 = vld [vmem:[#allocation2 + $0xf0] sm:$0xff]
      %v5538 = vld [vmem:[#allocation2 + $0xf8] sm:$0xff]
      %s5539 = scalar_lea.vmem %s1, 512
      %v5540 = vld [vmem:[%s5539] sm:$0xf]
      %v5541 = vld [vmem:[%s5539 + $0x4] sm:$0xf]
      %v5542 = vld [vmem:[%s5539 + $0x8] sm:$0xf]
      %v5543 = vld [vmem:[%s5539 + $0xc] sm:$0xf]
      %v5544 = vld [vmem:[%s5539 + $0x10] sm:$0xf]
      %v5545 = vld [vmem:[%s5539 + $0x14] sm:$0xf]
      %v5546 = vld [vmem:[%s5539 + $0x18] sm:$0xf]
      %v5547 = vld [vmem:[%s5539 + $0x1c] sm:$0xf]
      %v5548 = vld [vmem:[%s5539 + $0x20] sm:$0xf]
      %v5549 = vld [vmem:[%s5539 + $0x24] sm:$0xf]
      %v5550 = vld [vmem:[%s5539 + $0x28] sm:$0xf]
      %v5551 = vld [vmem:[%s5539 + $0x2c] sm:$0xf]
      %v5552 = vld [vmem:[%s5539 + $0x30] sm:$0xf]
      %v5553 = vld [vmem:[%s5539 + $0x34] sm:$0xf]
      %v5554 = vld [vmem:[%s5539 + $0x38] sm:$0xf]
      %v5555 = vld [vmem:[%s5539 + $0x3c] sm:$0xf]
      %v5556 = vunpack.c.l.b16 %v5398
      %v5557 = vunpack.c.l.b16 %v5401
      %v5558 = vunpack.c.l.b16 %v5405
      %v5559 = vunpack.c.l.b16 %v5408
      %v5560 = vunpack.c.l.b16 %v5412
      %v5561 = vunpack.c.l.b16 %v5415
      %v5562 = vunpack.c.l.b16 %v5419
      %v5563 = vunpack.c.l.b16 %v5422
      %v5564 = vunpack.c.l.b16 %v5426
      %v5565 = vunpack.c.l.b16 %v5429
      %v5566 = vunpack.c.l.b16 %v5433
      %v5567 = vunpack.c.l.b16 %v5436
      %v5568 = vunpack.c.l.b16 %v5440
      %v5569 = vunpack.c.l.b16 %v5443
      %v5570 = vunpack.c.l.b16 %v5447
      %v5571 = vunpack.c.l.b16 %v5450
      %v5572 = vunpack.c.l.b16 %v5454
      %v5573 = vunpack.c.l.b16 %v5457
      %v5574 = vunpack.c.l.b16 %v5461
      %v5575 = vunpack.c.l.b16 %v5464
      %v5576 = vunpack.c.l.b16 %v5468
      %v5577 = vunpack.c.l.b16 %v5471
      %v5578 = vunpack.c.l.b16 %v5475
      %v5579 = vunpack.c.l.b16 %v5478
      %v5580 = vunpack.c.l.b16 %v5482
      %v5581 = vunpack.c.l.b16 %v5485
      %v5582 = vunpack.c.l.b16 %v5489
      %v5583 = vunpack.c.l.b16 %v5492
      %v5584 = vunpack.c.l.b16 %v5496
      %v5585 = vunpack.c.l.b16 %v5499
      %v5586 = vunpack.c.l.b16 %v5503
      %v5587 = vunpack.c.l.b16 %v5506
      %v5588 = vpack.c.b16 %v5557, %v5556
      %v5589 = vpack.c.b16 %v5559, %v5558
      %v5590 = vpack.c.b16 %v5561, %v5560
      %v5591 = vpack.c.b16 %v5563, %v5562
      %v5592 = vpack.c.b16 %v5565, %v5564
      %v5593 = vpack.c.b16 %v5567, %v5566
      %v5594 = vpack.c.b16 %v5569, %v5568
      %v5595 = vpack.c.b16 %v5571, %v5570
      %v5596 = vpack.c.b16 %v5573, %v5572
      %v5597 = vpack.c.b16 %v5575, %v5574
      %v5598 = vpack.c.b16 %v5577, %v5576
      %v5599 = vpack.c.b16 %v5579, %v5578
      %v5600 = vpack.c.b16 %v5581, %v5580
      %v5601 = vpack.c.b16 %v5583, %v5582
      %v5602 = vpack.c.b16 %v5585, %v5584
      %v5603 = vpack.c.b16 %v5587, %v5586
      %v5636 = vunpack.c.l.b16 %v5540
      %v5637 = vunpack.c.l.b16 %v5541
      %v5638 = vunpack.c.l.b16 %v5542
      %v5639 = vunpack.c.l.b16 %v5543
      %v5640 = vunpack.c.l.b16 %v5544
      %v5641 = vunpack.c.l.b16 %v5545
      %v5642 = vunpack.c.l.b16 %v5546
      %v5643 = vunpack.c.l.b16 %v5547
      %v5644 = vunpack.c.l.b16 %v5548
      %v5645 = vunpack.c.l.b16 %v5549
      %v5646 = vunpack.c.l.b16 %v5550
      %v5647 = vunpack.c.l.b16 %v5551
      %v5648 = vunpack.c.l.b16 %v5552
      %v5649 = vunpack.c.l.b16 %v5553
      %v5650 = vunpack.c.l.b16 %v5554
      %v5651 = vunpack.c.l.b16 %v5555
      %v5652 = vpack.c.b16 %v5637, %v5636
      %v5653 = vpack.c.b16 %v5639, %v5638
      %v5654 = vpack.c.b16 %v5641, %v5640
      %v5655 = vpack.c.b16 %v5643, %v5642
      %v5656 = vpack.c.b16 %v5645, %v5644
      %v5657 = vpack.c.b16 %v5647, %v5646
      %v5658 = vpack.c.b16 %v5649, %v5648
      %v5659 = vpack.c.b16 %v5651, %v5650
      %5668 = vmatprep.subr.bf16.mxu0 0
      %5669 = vmatpush1.bf16.msra.mxu0 %v5659
      %5670 = vmatprep.subr.bf16.mxu0 0
      %5671 = vmatpush1.bf16.msra.mxu0 %v5658
      %5672 = vmatprep.subr.bf16.mxu0 0
      %5673 = vmatpush1.bf16.msra.mxu0 %v5657
      %5674 = vmatprep.subr.bf16.mxu0 0
      %5675 = vmatpush1.bf16.msra.mxu0 %v5656
      %5676 = vmatprep.subr.bf16.mxu0 0
      %5677 = vmatpush1.bf16.msra.mxu0 %v5655
      %5678 = vmatprep.subr.bf16.mxu0 0
      %5679 = vmatpush1.bf16.msra.mxu0 %v5654
      %5680 = vmatprep.subr.bf16.mxu0 0
      %5681 = vmatpush1.bf16.msra.mxu0 %v5653
      %5682 = vmatprep.subr.bf16.mxu0 0
      %5683 = vmatpush1.bf16.msra.mxu0 %v5652
      %5684 = vmatprep.subr.bf16.mxu0 0
      %5685 = vmatpush2.bf16.msra.mxu0 0
      %5686 = vmatprep.subr.bf16.mxu0 0
      %5687 = vmatpush2.bf16.msra.mxu0 0
      %5688 = vmatprep.subr.bf16.mxu0 0
      %5689 = vmatpush2.bf16.msra.mxu0 0
      %5690 = vmatprep.subr.bf16.mxu0 0
      %5691 = vmatpush2.bf16.msra.mxu0 0
      %5692 = vmatprep.subr.bf16.mxu0 0
      %5693 = vmatpush2.bf16.msra.mxu0 0
      %5694 = vmatprep.subr.bf16.mxu0 0
      %5695 = vmatpush2.bf16.msra.mxu0 0
      %5696 = vmatprep.subr.bf16.mxu0 0
      %5697 = vmatpush2.bf16.msra.mxu0 0
      %5698 = vmatprep.subr.bf16.mxu0 0
      %5699 = vmatpush2.bf16.msra.mxu0 0
      %5700 = vmatprep.mubr.bf16.mxu0 0
      %5701 = vmatmul.mubr.bf16.gmra.mxu0 %v5588
      %v5702 = vpop.f32.mrf.mxu0
      %v5703 = vadd.f32 0.0, %v5702
      %v5704 = vpop.f32.mrf.mxu0
      %v5705 = vpop.f32.mrf.mxu0
      %v5706 = vadd.f32 0.0, %v5705
      %v5707 = vpop.f32.mrf.mxu0
      %5708 = vmatprep.mubr.bf16.mxu0 0
      %5709 = vmatmul.mubr.bf16.gmra.mxu0 %v5589
      %v5710 = vpop.f32.mrf.mxu0
      %v5711 = vadd.f32 0.0, %v5710
      %v5712 = vpop.f32.mrf.mxu0
      %v5713 = vpop.f32.mrf.mxu0
      %v5714 = vadd.f32 0.0, %v5713
      %v5715 = vpop.f32.mrf.mxu0
      %5716 = vmatprep.mubr.bf16.mxu0 0
      %5717 = vmatmul.mubr.bf16.gmra.mxu0 %v5590
      %v5718 = vpop.f32.mrf.mxu0
      %v5719 = vadd.f32 0.0, %v5718
      %v5720 = vpop.f32.mrf.mxu0
      %v5721 = vpop.f32.mrf.mxu0
      %v5722 = vadd.f32 0.0, %v5721
      %v5723 = vpop.f32.mrf.mxu0
      %5724 = vmatprep.mubr.bf16.mxu0 0
      %5725 = vmatmul.mubr.bf16.gmra.mxu0 %v5591
      %v5726 = vpop.f32.mrf.mxu0
      %v5727 = vadd.f32 0.0, %v5726
      %v5728 = vpop.f32.mrf.mxu0
      %v5729 = vpop.f32.mrf.mxu0
      %v5730 = vadd.f32 0.0, %v5729
      %v5731 = vpop.f32.mrf.mxu0
      %5732 = vmatprep.mubr.bf16.mxu0 0
      %5733 = vmatmul.mubr.bf16.gmra.mxu0 %v5592
      %v5734 = vpop.f32.mrf.mxu0
      %v5735 = vadd.f32 0.0, %v5734
      %v5736 = vpop.f32.mrf.mxu0
      %v5737 = vpop.f32.mrf.mxu0
      %v5738 = vadd.f32 0.0, %v5737
      %v5739 = vpop.f32.mrf.mxu0
      %5740 = vmatprep.mubr.bf16.mxu0 0
      %5741 = vmatmul.mubr.bf16.gmra.mxu0 %v5593
      %v5742 = vpop.f32.mrf.mxu0
      %v5743 = vadd.f32 0.0, %v5742
      %v5744 = vpop.f32.mrf.mxu0
      %v5745 = vpop.f32.mrf.mxu0
      %v5746 = vadd.f32 0.0, %v5745
      %v5747 = vpop.f32.mrf.mxu0
      %5748 = vmatprep.mubr.bf16.mxu0 0
      %5749 = vmatmul.mubr.bf16.gmra.mxu0 %v5594
      %v5750 = vpop.f32.mrf.mxu0
      %v5751 = vadd.f32 0.0, %v5750
      %v5752 = vpop.f32.mrf.mxu0
      %v5753 = vpop.f32.mrf.mxu0
      %v5754 = vadd.f32 0.0, %v5753
      %v5755 = vpop.f32.mrf.mxu0
      %5756 = vmatprep.mubr.bf16.mxu0 0
      %5757 = vmatmul.mubr.bf16.gmra.mxu0 %v5595
      %v5758 = vpop.f32.mrf.mxu0
      %v5759 = vadd.f32 0.0, %v5758
      %v5760 = vpop.f32.mrf.mxu0
      %v5761 = vpop.f32.mrf.mxu0
      %v5762 = vadd.f32 0.0, %v5761
      %v5763 = vpop.f32.mrf.mxu0
      %5764 = vmatprep.mubr.bf16.mxu0 0
      %5765 = vmatmul.mubr.bf16.gmra.mxu0 %v5596
      %v5766 = vpop.f32.mrf.mxu0
      %v5767 = vadd.f32 0.0, %v5766
      %v5768 = vpop.f32.mrf.mxu0
      %v5769 = vpop.f32.mrf.mxu0
      %v5770 = vadd.f32 0.0, %v5769
      %v5771 = vpop.f32.mrf.mxu0
      %5772 = vmatprep.mubr.bf16.mxu0 0
      %5773 = vmatmul.mubr.bf16.gmra.mxu0 %v5597
      %v5774 = vpop.f32.mrf.mxu0
      %v5775 = vadd.f32 0.0, %v5774
      %v5776 = vpop.f32.mrf.mxu0
      %v5777 = vpop.f32.mrf.mxu0
      %v5778 = vadd.f32 0.0, %v5777
      %v5779 = vpop.f32.mrf.mxu0
      %5780 = vmatprep.mubr.bf16.mxu0 0
      %5781 = vmatmul.mubr.bf16.gmra.mxu0 %v5598
      %v5782 = vpop.f32.mrf.mxu0
      %v5783 = vadd.f32 0.0, %v5782
      %v5784 = vpop.f32.mrf.mxu0
      %v5785 = vpop.f32.mrf.mxu0
      %v5786 = vadd.f32 0.0, %v5785
      %v5787 = vpop.f32.mrf.mxu0
      %5788 = vmatprep.mubr.bf16.mxu0 0
      %5789 = vmatmul.mubr.bf16.gmra.mxu0 %v5599
      %v5790 = vpop.f32.mrf.mxu0
      %v5791 = vadd.f32 0.0, %v5790
      %v5792 = vpop.f32.mrf.mxu0
      %v5793 = vpop.f32.mrf.mxu0
      %v5794 = vadd.f32 0.0, %v5793
      %v5795 = vpop.f32.mrf.mxu0
      %5796 = vmatprep.mubr.bf16.mxu0 0
      %5797 = vmatmul.mubr.bf16.gmra.mxu0 %v5600
      %v5798 = vpop.f32.mrf.mxu0
      %v5799 = vadd.f32 0.0, %v5798
      %v5800 = vpop.f32.mrf.mxu0
      %v5801 = vpop.f32.mrf.mxu0
      %v5802 = vadd.f32 0.0, %v5801
      %v5803 = vpop.f32.mrf.mxu0
      %5804 = vmatprep.mubr.bf16.mxu0 0
      %5805 = vmatmul.mubr.bf16.gmra.mxu0 %v5601
      %v5806 = vpop.f32.mrf.mxu0
      %v5807 = vadd.f32 0.0, %v5806
      %v5808 = vpop.f32.mrf.mxu0
      %v5809 = vpop.f32.mrf.mxu0
      %v5810 = vadd.f32 0.0, %v5809
      %v5811 = vpop.f32.mrf.mxu0
      %5812 = vmatprep.mubr.bf16.mxu0 0
      %5813 = vmatmul.mubr.bf16.gmra.mxu0 %v5602
      %v5814 = vpop.f32.mrf.mxu0
      %v5815 = vadd.f32 0.0, %v5814
      %v5816 = vpop.f32.mrf.mxu0
      %v5817 = vpop.f32.mrf.mxu0
      %v5818 = vadd.f32 0.0, %v5817
      %v5819 = vpop.f32.mrf.mxu0
      %5820 = vmatprep.mubr.bf16.mxu0 0
      %5821 = vmatmul.mubr.bf16.gmra.mxu0 %v5603
      %v5822 = vpop.f32.mrf.mxu0
      %v5823 = vadd.f32 0.0, %v5822
      %v5824 = vpop.f32.mrf.mxu0
      %v5825 = vpop.f32.mrf.mxu0
      %v5826 = vadd.f32 0.0, %v5825
      %v5827 = vpop.f32.mrf.mxu0
      %5828 = vdwg.mxu0
      %v5829 = vadd.f32 %v5507, %v5703
      %v5830 = vadd.f32 %v5508, %v5706
      %v5831 = vadd.f32 %v5509, %v5711
      %v5832 = vadd.f32 %v5510, %v5714
      %v5833 = vadd.f32 %v5511, %v5719
      %v5834 = vadd.f32 %v5512, %v5722
      %v5835 = vadd.f32 %v5513, %v5727
      %v5836 = vadd.f32 %v5514, %v5730
      %v5837 = vadd.f32 %v5515, %v5735
      %v5838 = vadd.f32 %v5516, %v5738
      %v5839 = vadd.f32 %v5517, %v5743
      %v5840 = vadd.f32 %v5518, %v5746
      %v5841 = vadd.f32 %v5519, %v5751
      %v5842 = vadd.f32 %v5520, %v5754
      %v5843 = vadd.f32 %v5521, %v5759
      %v5844 = vadd.f32 %v5522, %v5762
      %v5845 = vadd.f32 %v5523, %v5767
      %v5846 = vadd.f32 %v5524, %v5770
      %v5847 = vadd.f32 %v5525, %v5775
      %v5848 = vadd.f32 %v5526, %v5778
      %v5849 = vadd.f32 %v5527, %v5783
      %v5850 = vadd.f32 %v5528, %v5786
      %v5851 = vadd.f32 %v5529, %v5791
      %v5852 = vadd.f32 %v5530, %v5794
      %v5853 = vadd.f32 %v5531, %v5799
      %v5854 = vadd.f32 %v5532, %v5802
      %v5855 = vadd.f32 %v5533, %v5807
      %v5856 = vadd.f32 %v5534, %v5810
      %v5857 = vadd.f32 %v5535, %v5815
      %v5858 = vadd.f32 %v5536, %v5818
      %v5859 = vadd.f32 %v5537, %v5823
      %v5860 = vadd.f32 %v5538, %v5826
      %5861 = vst [vmem:[#allocation2] sm:$0xff] %v5829
      %5862 = vst [vmem:[#allocation2 + $0x8] sm:$0xff] %v5830
      %5863 = vst [vmem:[#allocation2 + $0x10] sm:$0xff] %v5831
      %5864 = vst [vmem:[#allocation2 + $0x18] sm:$0xff] %v5832
      %5865 = vst [vmem:[#allocation2 + $0x20] sm:$0xff] %v5833
      %5866 = vst [vmem:[#allocation2 + $0x28] sm:$0xff] %v5834
      %5867 = vst [vmem:[#allocation2 + $0x30] sm:$0xff] %v5835
      %5868 = vst [vmem:[#allocation2 + $0x38] sm:$0xff] %v5836
      %5869 = vst [vmem:[#allocation2 + $0x40] sm:$0xff] %v5837
      %5870 = vst [vmem:[#allocation2 + $0x48] sm:$0xff] %v5838
      %5871 = vst [vmem:[#allocation2 + $0x50] sm:$0xff] %v5839
      %5872 = vst [vmem:[#allocation2 + $0x58] sm:$0xff] %v5840
      %5873 = vst [vmem:[#allocation2 + $0x60] sm:$0xff] %v5841
      %5874 = vst [vmem:[#allocation2 + $0x68] sm:$0xff] %v5842
      %5875 = vst [vmem:[#allocation2 + $0x70] sm:$0xff] %v5843
      %5876 = vst [vmem:[#allocation2 + $0x78] sm:$0xff] %v5844
      %5877 = vst [vmem:[#allocation2 + $0x80] sm:$0xff] %v5845
      %5878 = vst [vmem:[#allocation2 + $0x88] sm:$0xff] %v5846
      %5879 = vst [vmem:[#allocation2 + $0x90] sm:$0xff] %v5847
      %5880 = vst [vmem:[#allocation2 + $0x98] sm:$0xff] %v5848
      %5881 = vst [vmem:[#allocation2 + $0xa0] sm:$0xff] %v5849
      %5882 = vst [vmem:[#allocation2 + $0xa8] sm:$0xff] %v5850
      %5883 = vst [vmem:[#allocation2 + $0xb0] sm:$0xff] %v5851
      %5884 = vst [vmem:[#allocation2 + $0xb8] sm:$0xff] %v5852
      %5885 = vst [vmem:[#allocation2 + $0xc0] sm:$0xff] %v5853
      %5886 = vst [vmem:[#allocation2 + $0xc8] sm:$0xff] %v5854
      %5887 = vst [vmem:[#allocation2 + $0xd0] sm:$0xff] %v5855
      %5888 = vst [vmem:[#allocation2 + $0xd8] sm:$0xff] %v5856
      %5889 = vst [vmem:[#allocation2 + $0xe0] sm:$0xff] %v5857
      %5890 = vst [vmem:[#allocation2 + $0xe8] sm:$0xff] %v5858
      %5891 = vst [vmem:[#allocation2 + $0xf0] sm:$0xff] %v5859
      %5892 = vst [vmem:[#allocation2 + $0xf8] sm:$0xff] %v5860
      %v5893 = vld [vmem:[#allocation2] sm:$0xff]
      %v5894 = vld [vmem:[#allocation2 + $0x8] sm:$0xff]
      %v5895 = vld [vmem:[#allocation2 + $0x10] sm:$0xff]
      %v5896 = vld [vmem:[#allocation2 + $0x18] sm:$0xff]
      %v5897 = vld [vmem:[#allocation2 + $0x20] sm:$0xff]
      %v5898 = vld [vmem:[#allocation2 + $0x28] sm:$0xff]
      %v5899 = vld [vmem:[#allocation2 + $0x30] sm:$0xff]
      %v5900 = vld [vmem:[#allocation2 + $0x38] sm:$0xff]
      %v5901 = vld [vmem:[#allocation2 + $0x40] sm:$0xff]
      %v5902 = vld [vmem:[#allocation2 + $0x48] sm:$0xff]
      %v5903 = vld [vmem:[#allocation2 + $0x50] sm:$0xff]
      %v5904 = vld [vmem:[#allocation2 + $0x58] sm:$0xff]
      %v5905 = vld [vmem:[#allocation2 + $0x60] sm:$0xff]
      %v5906 = vld [vmem:[#allocation2 + $0x68] sm:$0xff]
      %v5907 = vld [vmem:[#allocation2 + $0x70] sm:$0xff]
      %v5908 = vld [vmem:[#allocation2 + $0x78] sm:$0xff]
      %v5909 = vld [vmem:[#allocation2 + $0x80] sm:$0xff]
      %v5910 = vld [vmem:[#allocation2 + $0x88] sm:$0xff]
      %v5911 = vld [vmem:[#allocation2 + $0x90] sm:$0xff]
      %v5912 = vld [vmem:[#allocation2 + $0x98] sm:$0xff]
      %v5913 = vld [vmem:[#allocation2 + $0xa0] sm:$0xff]
      %v5914 = vld [vmem:[#allocation2 + $0xa8] sm:$0xff]
      %v5915 = vld [vmem:[#allocation2 + $0xb0] sm:$0xff]
      %v5916 = vld [vmem:[#allocation2 + $0xb8] sm:$0xff]
      %v5917 = vld [vmem:[#allocation2 + $0xc0] sm:$0xff]
      %v5918 = vld [vmem:[#allocation2 + $0xc8] sm:$0xff]
      %v5919 = vld [vmem:[#allocation2 + $0xd0] sm:$0xff]
      %v5920 = vld [vmem:[#allocation2 + $0xd8] sm:$0xff]
      %v5921 = vld [vmem:[#allocation2 + $0xe0] sm:$0xff]
      %v5922 = vld [vmem:[#allocation2 + $0xe8] sm:$0xff]
      %v5923 = vld [vmem:[#allocation2 + $0xf0] sm:$0xff]
      %v5924 = vld [vmem:[#allocation2 + $0xf8] sm:$0xff]
      %v5925 = vld [vmem:[%s2] sm:$0x1]
      %v5927 = vlaneseq
      %v5928 = vshrl.u32 %v5927, 7
      %v5929 = vsub.s32 0, %v5928
      %v5930 = vrot.slane %v5925, %v5929
      %v5932 = vadd.f32 %v5893, %v5930
      %v5933 = vadd.f32 %v5894, %v5930
      %v5934 = vadd.f32 %v5895, %v5930
      %v5935 = vadd.f32 %v5896, %v5930
      %v5936 = vadd.f32 %v5897, %v5930
      %v5937 = vadd.f32 %v5898, %v5930
      %v5938 = vadd.f32 %v5899, %v5930
      %v5939 = vadd.f32 %v5900, %v5930
      %v5940 = vadd.f32 %v5901, %v5930
      %v5941 = vadd.f32 %v5902, %v5930
      %v5942 = vadd.f32 %v5903, %v5930
      %v5943 = vadd.f32 %v5904, %v5930
      %v5944 = vadd.f32 %v5905, %v5930
      %v5945 = vadd.f32 %v5906, %v5930
      %v5946 = vadd.f32 %v5907, %v5930
      %v5947 = vadd.f32 %v5908, %v5930
      %v5948 = vadd.f32 %v5909, %v5930
      %v5949 = vadd.f32 %v5910, %v5930
      %v5950 = vadd.f32 %v5911, %v5930
      %v5951 = vadd.f32 %v5912, %v5930
      %v5952 = vadd.f32 %v5913, %v5930
      %v5953 = vadd.f32 %v5914, %v5930
      %v5954 = vadd.f32 %v5915, %v5930
      %v5955 = vadd.f32 %v5916, %v5930
      %v5956 = vadd.f32 %v5917, %v5930
      %v5957 = vadd.f32 %v5918, %v5930
      %v5958 = vadd.f32 %v5919, %v5930
      %v5959 = vadd.f32 %v5920, %v5930
      %v5960 = vadd.f32 %v5921, %v5930
      %v5961 = vadd.f32 %v5922, %v5930
      %v5962 = vadd.f32 %v5923, %v5930
      %v5963 = vadd.f32 %v5924, %v5930
      %v5964 = vld [vmem:[%s245] sm:$0xff]
      %v5965 = vld [vmem:[%s245 + $0x8] sm:$0xff]
      %v5966 = vld [vmem:[%s245 + $0x10] sm:$0xff]
      %v5967 = vld [vmem:[%s245 + $0x18] sm:$0xff]
      %v5968 = vld [vmem:[%s245 + $0x20] sm:$0xff]
      %v5969 = vld [vmem:[%s245 + $0x28] sm:$0xff]
      %v5970 = vld [vmem:[%s245 + $0x30] sm:$0xff]
      %v5971 = vld [vmem:[%s245 + $0x38] sm:$0xff]
      %v5972 = vld [vmem:[%s245 + $0x40] sm:$0xff]
      %v5973 = vld [vmem:[%s245 + $0x48] sm:$0xff]
      %v5974 = vld [vmem:[%s245 + $0x50] sm:$0xff]
      %v5975 = vld [vmem:[%s245 + $0x58] sm:$0xff]
      %v5976 = vld [vmem:[%s245 + $0x60] sm:$0xff]
      %v5977 = vld [vmem:[%s245 + $0x68] sm:$0xff]
      %v5978 = vld [vmem:[%s245 + $0x70] sm:$0xff]
      %v5979 = vld [vmem:[%s245 + $0x78] sm:$0xff]
      %v5980 = vld [vmem:[%s245 + $0x80] sm:$0xff]
      %v5981 = vld [vmem:[%s245 + $0x88] sm:$0xff]
      %v5982 = vld [vmem:[%s245 + $0x90] sm:$0xff]
      %v5983 = vld [vmem:[%s245 + $0x98] sm:$0xff]
      %v5984 = vld [vmem:[%s245 + $0xa0] sm:$0xff]
      %v5985 = vld [vmem:[%s245 + $0xa8] sm:$0xff]
      %v5986 = vld [vmem:[%s245 + $0xb0] sm:$0xff]
      %v5987 = vld [vmem:[%s245 + $0xb8] sm:$0xff]
      %v5988 = vld [vmem:[%s245 + $0xc0] sm:$0xff]
      %v5989 = vld [vmem:[%s245 + $0xc8] sm:$0xff]
      %v5990 = vld [vmem:[%s245 + $0xd0] sm:$0xff]
      %v5991 = vld [vmem:[%s245 + $0xd8] sm:$0xff]
      %v5992 = vld [vmem:[%s245 + $0xe0] sm:$0xff]
      %v5993 = vld [vmem:[%s245 + $0xe8] sm:$0xff]
      %v5994 = vld [vmem:[%s245 + $0xf0] sm:$0xff]
      %v5995 = vld [vmem:[%s245 + $0xf8] sm:$0xff]
      %v5996 = vadd.f32 %v5932, %v5964
      %v5997 = vadd.f32 %v5933, %v5965
      %v5998 = vadd.f32 %v5934, %v5966
      %v5999 = vadd.f32 %v5935, %v5967
      %v6000 = vadd.f32 %v5936, %v5968
      %v6001 = vadd.f32 %v5937, %v5969
      %v6002 = vadd.f32 %v5938, %v5970
      %v6003 = vadd.f32 %v5939, %v5971
      %v6004 = vadd.f32 %v5940, %v5972
      %v6005 = vadd.f32 %v5941, %v5973
      %v6006 = vadd.f32 %v5942, %v5974
      %v6007 = vadd.f32 %v5943, %v5975
      %v6008 = vadd.f32 %v5944, %v5976
      %v6009 = vadd.f32 %v5945, %v5977
      %v6010 = vadd.f32 %v5946, %v5978
      %v6011 = vadd.f32 %v5947, %v5979
      %v6012 = vadd.f32 %v5948, %v5980
      %v6013 = vadd.f32 %v5949, %v5981
      %v6014 = vadd.f32 %v5950, %v5982
      %v6015 = vadd.f32 %v5951, %v5983
      %v6016 = vadd.f32 %v5952, %v5984
      %v6017 = vadd.f32 %v5953, %v5985
      %v6018 = vadd.f32 %v5954, %v5986
      %v6019 = vadd.f32 %v5955, %v5987
      %v6020 = vadd.f32 %v5956, %v5988
      %v6021 = vadd.f32 %v5957, %v5989
      %v6022 = vadd.f32 %v5958, %v5990
      %v6023 = vadd.f32 %v5959, %v5991
      %v6024 = vadd.f32 %v5960, %v5992
      %v6025 = vadd.f32 %v5961, %v5993
      %v6026 = vadd.f32 %v5962, %v5994
      %v6027 = vadd.f32 %v5963, %v5995
      %v6028 = vmax.f32 %v5996, 0.0
      %v6029 = vmax.f32 %v5997, 0.0
      %v6030 = vmax.f32 %v5998, 0.0
      %v6031 = vmax.f32 %v5999, 0.0
      %v6032 = vmax.f32 %v6000, 0.0
      %v6033 = vmax.f32 %v6001, 0.0
      %v6034 = vmax.f32 %v6002, 0.0
      %v6035 = vmax.f32 %v6003, 0.0
      %v6036 = vmax.f32 %v6004, 0.0
      %v6037 = vmax.f32 %v6005, 0.0
      %v6038 = vmax.f32 %v6006, 0.0
      %v6039 = vmax.f32 %v6007, 0.0
      %v6040 = vmax.f32 %v6008, 0.0
      %v6041 = vmax.f32 %v6009, 0.0
      %v6042 = vmax.f32 %v6010, 0.0
      %v6043 = vmax.f32 %v6011, 0.0
      %v6044 = vmax.f32 %v6012, 0.0
      %v6045 = vmax.f32 %v6013, 0.0
      %v6046 = vmax.f32 %v6014, 0.0
      %v6047 = vmax.f32 %v6015, 0.0
      %v6048 = vmax.f32 %v6016, 0.0
      %v6049 = vmax.f32 %v6017, 0.0
      %v6050 = vmax.f32 %v6018, 0.0
      %v6051 = vmax.f32 %v6019, 0.0
      %v6052 = vmax.f32 %v6020, 0.0
      %v6053 = vmax.f32 %v6021, 0.0
      %v6054 = vmax.f32 %v6022, 0.0
      %v6055 = vmax.f32 %v6023, 0.0
      %v6056 = vmax.f32 %v6024, 0.0
      %v6057 = vmax.f32 %v6025, 0.0
      %v6058 = vmax.f32 %v6026, 0.0
      %v6059 = vmax.f32 %v6027, 0.0
      %6060 = vst [vmem:[%s255] sm:$0xff] %v6028
      %6061 = vst [vmem:[%s255 + $0x8] sm:$0xff] %v6029
      %6062 = vst [vmem:[%s255 + $0x10] sm:$0xff] %v6030
      %6063 = vst [vmem:[%s255 + $0x18] sm:$0xff] %v6031
      %6064 = vst [vmem:[%s255 + $0x20] sm:$0xff] %v6032
      %6065 = vst [vmem:[%s255 + $0x28] sm:$0xff] %v6033
      %6066 = vst [vmem:[%s255 + $0x30] sm:$0xff] %v6034
      %6067 = vst [vmem:[%s255 + $0x38] sm:$0xff] %v6035
      %6068 = vst [vmem:[%s255 + $0x40] sm:$0xff] %v6036
      %6069 = vst [vmem:[%s255 + $0x48] sm:$0xff] %v6037
      %6070 = vst [vmem:[%s255 + $0x50] sm:$0xff] %v6038
      %6071 = vst [vmem:[%s255 + $0x58] sm:$0xff] %v6039
      %6072 = vst [vmem:[%s255 + $0x60] sm:$0xff] %v6040
      %6073 = vst [vmem:[%s255 + $0x68] sm:$0xff] %v6041
      %6074 = vst [vmem:[%s255 + $0x70] sm:$0xff] %v6042
      %6075 = vst [vmem:[%s255 + $0x78] sm:$0xff] %v6043
      %6076 = vst [vmem:[%s255 + $0x80] sm:$0xff] %v6044
      %6077 = vst [vmem:[%s255 + $0x88] sm:$0xff] %v6045
      %6078 = vst [vmem:[%s255 + $0x90] sm:$0xff] %v6046
      %6079 = vst [vmem:[%s255 + $0x98] sm:$0xff] %v6047
      %6080 = vst [vmem:[%s255 + $0xa0] sm:$0xff] %v6048
      %6081 = vst [vmem:[%s255 + $0xa8] sm:$0xff] %v6049
      %6082 = vst [vmem:[%s255 + $0xb0] sm:$0xff] %v6050
      %6083 = vst [vmem:[%s255 + $0xb8] sm:$0xff] %v6051
      %6084 = vst [vmem:[%s255 + $0xc0] sm:$0xff] %v6052
      %6085 = vst [vmem:[%s255 + $0xc8] sm:$0xff] %v6053
      %6086 = vst [vmem:[%s255 + $0xd0] sm:$0xff] %v6054
      %6087 = vst [vmem:[%s255 + $0xd8] sm:$0xff] %v6055
      %6088 = vst [vmem:[%s255 + $0xe0] sm:$0xff] %v6056
      %6089 = vst [vmem:[%s255 + $0xe8] sm:$0xff] %v6057
      %6090 = vst [vmem:[%s255 + $0xf0] sm:$0xff] %v6058
      %6091 = vst [vmem:[%s255 + $0xf8] sm:$0xff] %v6059
      %s6092 = smul.u32 32, %s20
      %p6093 = scmp.lt.s32.totalorder %s19, 1
      %s6094 = scalar_select %p6093, %s19, 1
      %p6095 = scmp.lt.s32.totalorder %s6092, 31
      %s6096 = scalar_select %p6095, %s6092, 31
      %s6097 = smul.addr %s6094, 32
      %s6098 = sadd.s32 %s6096, %s6097
      %s6099 = smul.addr %s6098, 8
      %s6100 = scalar_lea.vmem %s4, %s6099
      // Predicated region
      $region37: #{basic_block_forward.3} parent=35 // pred_check
        %p6101 = pneg %p143
      $region38: #{basic_block_forward.3} parent=35 // pred_check_branch
        %6103 = sbr.rel (%p6101) target = $region40
      $region39: #{basic_block_forward.3} parent=35 // pred_region
        %s6104 = smul.u32 32, %s20
      $region40: #{basic_block_forward.3} parent=35 // pred_fallthru
        _
    $region36: #{basic_block_forward.3} parent=5 // pred_fallthru
      _
    %p6105 = scmp.le.s32.totalorder 2, %s10
    // Predicated region
    $region41: #{basic_block_forward.3} parent=5 // pred_check
      %p6106 = pneg %p6105
    $region42: #{basic_block_forward.3} parent=5 // pred_check_branch
      %6108 = sbr.rel (%p6106) target = $region44
    $region43: #{basic_block_forward.3} parent=5 // pred_region
      %s6109 = ssub.s32 %s10, 2
      // Predicated region
      $region45: #{basic_block_forward.3} parent=43 // pred_check
        %p6110 = pneg %p149
      $region46: #{basic_block_forward.3} parent=43 // pred_check_branch
        %6112 = sbr.rel (%p6110) target = $region48
      $region47: #{basic_block_forward.3} parent=43 // pred_region
        %s6113 = smul.u32 32, %s22
        %p6114 = scmp.lt.s32.totalorder %s21, 1
        %s6115 = scalar_select %p6114, %s21, 1
        %p6116 = scmp.lt.s32.totalorder %s6113, 31
        %s6117 = scalar_select %p6116, %s6113, 31
        %s6118 = smul.addr %s6115, 32
        %s6119 = sadd.s32 %s6117, %s6118
        %s6120 = smul.addr %s6119, 8
        %s6121 = scalar_lea.vmem %s4, %s6120
      $region48: #{basic_block_forward.3} parent=43 // pred_fallthru
        _
    $region44: #{basic_block_forward.3} parent=5 // pred_fallthru
      _
  $region6: #{basic_block_forward.3} parent=0 // loop_footer
    %s14 = sadd.s32 1, %s10
  $region7: #{basic_block_forward.3} parent=0 // loop_footer_branch
    %9 = sbr.rel target = $region3
  $region8: #{basic_block_forward.3} parent=0 // loop_exit
    _

</llo_original>
